<compile_context>
chip_gen: v6e
topology: v6e:2x2x1
jax: 0.10.0
libtpu: 0.0.40
codegen_flags: <defaults>
</compile_context>

<pallas_src>
import math

import jax
import jax.numpy as jnp
from jax import lax
from jax.experimental import pallas as pl
from jax.experimental.pallas import tpu as pltpu  # noqa: F401  (TPU backend)

# ----------------------------- configuration --------------------------------
B = 2                       # batch
S = 8                       # source (encoder) sequence length
MAX_SEQ_LEN = 10            # toy bart_model.config.max_position_embeddings
T_DEC = MAX_SEQ_LEN - 2     # decoder output positions (steps 1 .. max_seq_len-2)
D_MODEL = 32                # toy bart_model.config.d_model
N_HEADS = 4
HEAD_DIM = D_MODEL // N_HEADS
FFN_DIM = 64
VOCAB_SIZE = 128            # lane-dense (128) vocab dimension for the output
ONTOLOGY_VOCAB_IDS = list(range(4, 20))     # 16 ontology tokens
N_ONT = len(ONTOLOGY_VOCAB_IDS)
PG_HIDDEN = [512, 512, N_ONT]               # PointerGenerator hidden_dim_list
PAD_ID, BOS_ID, EOS_ID = 0, 1, 2
MAX_POS = 16
NEG_INF = -1e9

# --------------------------- packed-parameter layout -------------------------
# w_dd pack: 13 [D, D] matrices stacked along rows.
(W_ENC_Q, W_ENC_K, W_ENC_V, W_ENC_O,
 W_DSA_Q, W_DSA_K, W_DSA_V, W_DSA_O,
 W_DCA_Q, W_DCA_K, W_DCA_V, W_DCA_O,
 W_PG_C) = range(13)
N_WDD = 13

# vec_d pack: every D-sized LayerNorm gain/bias and projection bias, one row each.
(V_ENC_EMB_G, V_ENC_EMB_B,
 V_ENC_BQ, V_ENC_BK, V_ENC_BV, V_ENC_BO,
 V_ENC_LN1_G, V_ENC_LN1_B,
 V_ENC_FC2_B,
 V_ENC_LN2_G, V_ENC_LN2_B,
 V_DEC_EMB_G, V_DEC_EMB_B,
 V_DSA_BQ, V_DSA_BK, V_DSA_BV, V_DSA_BO,
 V_DEC_LN1_G, V_DEC_LN1_B,
 V_DCA_BQ, V_DCA_BK, V_DCA_BV, V_DCA_BO,
 V_DEC_LN2_G, V_DEC_LN2_B,
 V_DEC_FC2_B,
 V_DEC_LN3_G, V_DEC_LN3_B,
 V_PG_BC) = range(29)
N_VECD = 32                                        # padded to a sublane multiple
LN_GAIN_ROWS = (V_ENC_EMB_G, V_ENC_LN1_G, V_ENC_LN2_G,
                V_DEC_EMB_G, V_DEC_LN1_G, V_DEC_LN2_G, V_DEC_LN3_G)


# ------------------------- in-kernel helper functions ------------------------
def _layer_norm(x, g, b):
    mu = jnp.mean(x, axis=-1, keepdims=True)
    var = jnp.mean((x - mu) ** 2, axis=-1, keepdims=True)
    return (x - mu) * lax.rsqrt(var + 1e-5) * g + b


def _softmax_rows(s):
    # attention softmax: approximate reciprocal is fine (EUP slot, unbiased
    # enough for internal attention weights).
    m = jnp.max(s, axis=-1, keepdims=True)
    p = jnp.exp(s - m)
    denom = jnp.sum(p, axis=-1, keepdims=True)
    return p * pl.reciprocal(denom, approx=True)


# ------------------------------ fused Pallas kernel --------------------------
def _fused_forward_kernel(src_ids_ref, dec_ids_ref, ont_ids_ref,
                          ekb_ref, dkb_ref,
                          tok_emb_ref, pos_ref,
                          wdd_ref, wffn1_ref, wffn2_ref,
                          pgw1_ref, pgw2_ref, pgw3_ref,
                          vecd_ref, bffn_ref, pgb12_ref, pgb3_ref,
                          o_ref):
    D = D_MODEL
    V = o_ref.shape[-1]
    attn_scale = 1.0 / math.sqrt(HEAD_DIM)
    copy_scale = 1.0 / math.sqrt(D)

    wdd = wdd_ref[...]
    vecd = vecd_ref[...]
    bffn = bffn_ref[...]
    pgb12 = pgb12_ref[...]
    pgb3 = pgb3_ref[...]
    tok_emb = tok_emb_ref[...]                      # [V, D]
    pos = pos_ref[...]                              # [max(S,T), D] (offset +2 applied)

    def W(i):                                       # [D, D] weight slice (8-aligned rows)
        return wdd[i * D:(i + 1) * D, :]

    def Vd(i):                                      # [1, D] packed vector row
        return vecd[i:i + 1, :]

    # ---- token + positional embeddings: one-hot gather on the MXU ----------
    src_oh = (src_ids_ref[...] ==
              lax.broadcasted_iota(jnp.int32, (B * S, V), 1)).astype(jnp.float32)
    dec_oh = (dec_ids_ref[...] ==
              lax.broadcasted_iota(jnp.int32, (B * T_DEC, V), 1)).astype(jnp.float32)
    pos_src = jnp.concatenate([pos[0:S, :]] * B, axis=0)        # [B*S, D]
    pos_dec = jnp.concatenate([pos[0:T_DEC, :]] * B, axis=0)    # [B*T, D]
    x = jnp.dot(src_oh, tok_emb, preferred_element_type=jnp.float32) + pos_src
    y = jnp.dot(dec_oh, tok_emb, preferred_element_type=jnp.float32) + pos_dec

    # ---- multi-head attention: per-(batch,head) scores, fused out-proj -----
    def mha(q, k, v, tq, tk, bias_fn):
        rows = []
        for b in range(B):                          # static batch loop (softmax/mask only)
            qb = q[b * tq:(b + 1) * tq, :]
            kb = k[b * tk:(b + 1) * tk, :]
            vb = v[b * tk:(b + 1) * tk, :]
            bias = bias_fn(b)
            heads = []
            for h in range(N_HEADS):
                lo, hi = h * HEAD_DIM, (h + 1) * HEAD_DIM
                sc = lax.dot_general(qb[:, lo:hi], kb[:, lo:hi],
                                     (((1,), (1,)), ((), ())),
                                     preferred_element_type=jnp.float32) * attn_scale
                p = _softmax_rows(sc + bias)
                heads.append(jnp.dot(p, vb[:, lo:hi],
                                     preferred_element_type=jnp.float32))
            rows.append(jnp.concatenate(heads, axis=1))          # lane concat -> [tq, D]
        return jnp.concatenate(rows, axis=0)                     # [B*tq, D]

    # ======================= encoder layer (B*S rows) =======================
    x = _layer_norm(x, Vd(V_ENC_EMB_G), Vd(V_ENC_EMB_B))
    q = jnp.dot(x, W(W_ENC_Q), preferred_element_type=jnp.float32) + Vd(V_ENC_BQ)
    k = jnp.dot(x, W(W_ENC_K), preferred_element_type=jnp.float32) + Vd(V_ENC_BK)
    v = jnp.dot(x, W(W_ENC_V), preferred_element_type=jnp.float32) + Vd(V_ENC_BV)
    ctx = mha(q, k, v, S, S, lambda b: ekb_ref[b])
    h = jnp.dot(ctx, W(W_ENC_O), preferred_element_type=jnp.float32) + Vd(V_ENC_BO)
    x = _layer_norm(x + h, Vd(V_ENC_LN1_G), Vd(V_ENC_LN1_B))
    hf = jnp.dot(x, wffn1_ref[0:D, :], preferred_element_type=jnp.float32) + bffn[0:1, :]
    hf = jax.nn.gelu(hf, approximate=True)
    hf = jnp.dot(hf, wffn2_ref[0:FFN_DIM, :],
                 preferred_element_type=jnp.float32) + Vd(V_ENC_FC2_B)
    enc = _layer_norm(x + hf, Vd(V_ENC_LN2_G), Vd(V_ENC_LN2_B))   # [B*S, D]

    # ======================= decoder layer (B*T rows) =======================
    # Single causal decode over the full prefix replaces the O(T^2) per-step
    # teacher-forcing loop: with causal self-attention, position i of the full
    # decode equals the last state of decoding the length-(i+1) prefix.
    rr = lax.broadcasted_iota(jnp.int32, (T_DEC, T_DEC), 0)
    cc = lax.broadcasted_iota(jnp.int32, (T_DEC, T_DEC), 1)
    causal = jnp.where(rr >= cc, 0.0, NEG_INF).astype(jnp.float32)

    y = _layer_norm(y, Vd(V_DEC_EMB_G), Vd(V_DEC_EMB_B))
    q = jnp.dot(y, W(W_DSA_Q), preferred_element_type=jnp.float32) + Vd(V_DSA_BQ)
    k = jnp.dot(y, W(W_DSA_K), preferred_element_type=jnp.float32) + Vd(V_DSA_BK)
    v = jnp.dot(y, W(W_DSA_V), preferred_element_type=jnp.float32) + Vd(V_DSA_BV)
    ctx = mha(q, k, v, T_DEC, T_DEC, lambda b: causal + dkb_ref[b])
    h = jnp.dot(ctx, W(W_DSA_O), preferred_element_type=jnp.float32) + Vd(V_DSA_BO)
    y = _layer_norm(y + h, Vd(V_DEC_LN1_G), Vd(V_DEC_LN1_B))

    q = jnp.dot(y, W(W_DCA_Q), preferred_element_type=jnp.float32) + Vd(V_DCA_BQ)
    k = jnp.dot(enc, W(W_DCA_K), preferred_element_type=jnp.float32) + Vd(V_DCA_BK)
    v = jnp.dot(enc, W(W_DCA_V), preferred_element_type=jnp.float32) + Vd(V_DCA_BV)
    ctx = mha(q, k, v, T_DEC, S, lambda b: ekb_ref[b])
    h = jnp.dot(ctx, W(W_DCA_O), preferred_element_type=jnp.float32) + Vd(V_DCA_BO)
    y = _layer_norm(y + h, Vd(V_DEC_LN2_G), Vd(V_DEC_LN2_B))

    hf = jnp.dot(y, wffn1_ref[D:2 * D, :],
                 preferred_element_type=jnp.float32) + bffn[1:2, :]
    hf = jax.nn.gelu(hf, approximate=True)
    hf = jnp.dot(hf, wffn2_ref[FFN_DIM:2 * FFN_DIM, :],
                 preferred_element_type=jnp.float32) + Vd(V_DEC_FC2_B)
    dec = _layer_norm(y + hf, Vd(V_DEC_LN3_G), Vd(V_DEC_LN3_B))   # [B*T, D]

    # ========================= pointer generator ============================
    hg = jnp.maximum(jnp.dot(dec, pgw1_ref[...],
                             preferred_element_type=jnp.float32) + pgb12[0:1, :], 0.0)
    hg = jnp.maximum(jnp.dot(hg, pgw2_ref[...],
                             preferred_element_type=jnp.float32) + pgb12[1:2, :], 0.0)
    gen = jnp.dot(hg, pgw3_ref[...],
                  preferred_element_type=jnp.float32) + pgb3              # [B*T, n_ont]
    decp = jnp.dot(dec, W(W_PG_C), preferred_element_type=jnp.float32) + Vd(V_PG_BC)

    copies = []
    for b in range(B):                                  # copy scores per batch element
        cb = lax.dot_general(decp[b * T_DEC:(b + 1) * T_DEC, :],
                             enc[b * S:(b + 1) * S, :],
                             (((1,), (1,)), ((), ())),
                             preferred_element_type=jnp.float32) * copy_scale
        copies.append(cb + ekb_ref[b])
    copy = jnp.concatenate(copies, axis=0)                                # [B*T, S]

    # joint gen/copy softmax — EXACT normalization for the returned probabilities
    m = jnp.maximum(jnp.max(gen, axis=-1, keepdims=True),
                    jnp.max(copy, axis=-1, keepdims=True))
    eg = jnp.exp(gen - m)
    ec = jnp.exp(copy - m)
    denom = jnp.sum(eg, axis=-1, keepdims=True) + jnp.sum(ec, axis=-1, keepdims=True)
    inv = 1.0 / denom
    pgen = eg * inv
    pcopy = ec * inv

    # scatter to vocab: gen via ontology one-hot (built in-kernel); copy via the
    # source one-hot already built for the embedding gather.
    ont1h = (ont_ids_ref[...] ==
             lax.broadcasted_iota(jnp.int32, (N_ONT, V), 1)).astype(jnp.float32)
    pv_gen = jnp.dot(pgen, ont1h, preferred_element_type=jnp.float32)     # [B*T, V]
    for b in range(B):
        pv_copy = jnp.dot(pcopy[b * T_DEC:(b + 1) * T_DEC, :],
                          src_oh[b * S:(b + 1) * S, :],
                          preferred_element_type=jnp.float32)             # [T, V]
        o_ref[b] = pv_gen[b * T_DEC:(b + 1) * T_DEC, :] + pv_copy


# ------------------------------ model wrapper --------------------------------
def seq2seq_copy_pointer_forward(params, input_ids, attn_mask, sp_ids, sp_mask):
    # key-padding additive biases
    enc_kbias = ((1.0 - attn_mask.astype(jnp.float32)) * NEG_INF)[:, None, :]      # [B,1,S]
    dec_kbias = ((1.0 - sp_mask[:, :T_DEC].astype(jnp.float32))
                 * NEG_INF)[:, None, :]                                            # [B,1,T]
    # ids as int columns (compared against lane iota in-kernel)
    src_ids_col = input_ids.astype(jnp.int32).reshape(B * S, 1)
    dec_ids_col = sp_ids[:, :T_DEC].astype(jnp.int32).reshape(B * T_DEC, 1)
    ont_ids_col = jnp.asarray(ONTOLOGY_VOCAB_IDS, jnp.int32)[:, None]
    # BART-style positional offset of 2
    pos_rows = params["pos_emb"][2:2 + max(S, T_DEC)]

    return pl.pallas_call(
        _fused_forward_kernel,
        out_shape=jax.ShapeDtypeStruct((B, T_DEC, VOCAB_SIZE), jnp.float32),
    )(src_ids_col, dec_ids_col, ont_ids_col, enc_kbias, dec_kbias,
      params["tok_emb"], pos_rows,
      params["w_dd"], params["w_ffn1"], params["w_ffn2"],
      params["pg_w1"], params["pg_w2"], params["pg_w3"],
      params["vec_d"], params["b_ffn"], params["pg_b12"], params["pg_b3"])


# ------------------------------- parameters ----------------------------------
def init_params(key):
    keys = iter(jax.random.split(key, 16))

    def nrm(shape):
        return jax.random.normal(next(keys), shape, jnp.float32) * 0.02

    vec_d = jnp.zeros((N_VECD, D_MODEL), jnp.float32)
    for r in LN_GAIN_ROWS:                      # LayerNorm gains = 1, all biases = 0
        vec_d = vec_d.at[r].set(1.0)

    return dict(
        tok_emb=nrm((VOCAB_SIZE, D_MODEL)),
        pos_emb=nrm((MAX_POS, D_MODEL)),
        w_dd=nrm((N_WDD * D_MODEL, D_MODEL)),
        w_ffn1=nrm((2 * D_MODEL, FFN_DIM)),
        w_ffn2=nrm((2 * FFN_DIM, D_MODEL)),
        pg_w1=nrm((D_MODEL, PG_HIDDEN[0])),
        pg_w2=nrm((PG_HIDDEN[0], PG_HIDDEN[1])),
        pg_w3=nrm((PG_HIDDEN[1], PG_HIDDEN[2])),
        vec_d=vec_d,
        b_ffn=jnp.zeros((2, FFN_DIM), jnp.float32),
        pg_b12=jnp.zeros((2, PG_HIDDEN[0]), jnp.float32),
        pg_b3=jnp.zeros((1, PG_HIDDEN[2]), jnp.float32),
    )


# ---------------------------------- main --------------------------------------
if __name__ == "__main__":
    root = jax.random.PRNGKey(0)
    k_params, k_src, k_tgt = jax.random.split(root, 3)
    params = init_params(k_params)

    # source input ids with some padding on the second example
    input_ids = jax.random.randint(k_src, (B, S), 3, VOCAB_SIZE, dtype=jnp.int32)
    input_ids = input_ids.at[1, 6:].set(PAD_ID)
    attn_mask = (input_ids != PAD_ID).astype(jnp.int32)

    # gold semantic parse ids (teacher forcing): BOS then ontology tokens
    sp_body = jax.random.randint(k_tgt, (B, MAX_SEQ_LEN - 1),
                                 min(ONTOLOGY_VOCAB_IDS),
                                 max(ONTOLOGY_VOCAB_IDS) + 1, dtype=jnp.int32)
    semantic_parse_ids = jnp.concatenate(
        [jnp.full((B, 1), BOS_ID, jnp.int32), sp_body], axis=1)
    semantic_parse_attn_mask = jnp.ones((B, MAX_SEQ_LEN), jnp.int32)

    fwd = jax.jit(seq2seq_copy_pointer_forward)
    vocab_probs = fwd(params, input_ids, attn_mask,
                      semantic_parse_ids, semantic_parse_attn_mask)
    vocab_probs = jax.block_until_ready(vocab_probs)

    assert vocab_probs.shape == (B, T_DEC, VOCAB_SIZE)
    # every output distribution must sum to ~1 (exact joint-softmax normalization)
    row_sums = jnp.sum(vocab_probs, axis=-1)
    assert bool(jnp.all(jnp.abs(row_sums - 1.0) < 1e-3)), row_sums
    assert bool(jnp.all(vocab_probs >= 0.0))

    print("KERNEL_OK")
</pallas_src>

<mosaic_0001>
module attributes {stable_mosaic.version = 11 : i64} {
  func.func @_fused_forward_kernel(%arg0: memref<16x1xi32, #tpu.memory_space<vmem>>, %arg1: memref<16x1xi32, #tpu.memory_space<vmem>>, %arg2: memref<16x1xi32, #tpu.memory_space<vmem>>, %arg3: memref<2x1x8xf32, #tpu.memory_space<vmem>>, %arg4: memref<2x1x8xf32, #tpu.memory_space<vmem>>, %arg5: memref<128x32xf32, #tpu.memory_space<vmem>>, %arg6: memref<8x32xf32, #tpu.memory_space<vmem>>, %arg7: memref<416x32xf32, #tpu.memory_space<vmem>>, %arg8: memref<64x64xf32, #tpu.memory_space<vmem>>, %arg9: memref<128x32xf32, #tpu.memory_space<vmem>>, %arg10: memref<32x512xf32, #tpu.memory_space<vmem>>, %arg11: memref<512x512xf32, #tpu.memory_space<vmem>>, %arg12: memref<512x16xf32, #tpu.memory_space<vmem>>, %arg13: memref<32x32xf32, #tpu.memory_space<vmem>>, %arg14: memref<2x64xf32, #tpu.memory_space<vmem>>, %arg15: memref<2x512xf32, #tpu.memory_space<vmem>>, %arg16: memref<1x16xf32, #tpu.memory_space<vmem>>, %arg17: memref<2x8x128xf32, #tpu.memory_space<vmem>>) attributes {dimension_semantics = [], scalar_prefetch = 0 : i64, scratch_operands = 0 : i64, tpu.core_type = #tpu.core_type<tc>} {
    %c0 = arith.constant 0 : index
    %c0_0 = arith.constant 0 : index
    %0 = vector.load %arg7[%c0, %c0_0] : memref<416x32xf32, #tpu.memory_space<vmem>>, vector<416x32xf32>
    %c0_1 = arith.constant 0 : index
    %c0_2 = arith.constant 0 : index
    %1 = vector.load %arg13[%c0_1, %c0_2] : memref<32x32xf32, #tpu.memory_space<vmem>>, vector<32x32xf32>
    %c0_3 = arith.constant 0 : index
    %c0_4 = arith.constant 0 : index
    %2 = vector.load %arg14[%c0_3, %c0_4] : memref<2x64xf32, #tpu.memory_space<vmem>>, vector<2x64xf32>
    %c0_5 = arith.constant 0 : index
    %c0_6 = arith.constant 0 : index
    %3 = vector.load %arg15[%c0_5, %c0_6] : memref<2x512xf32, #tpu.memory_space<vmem>>, vector<2x512xf32>
    %c0_7 = arith.constant 0 : index
    %c0_8 = arith.constant 0 : index
    %4 = vector.load %arg16[%c0_7, %c0_8] : memref<1x16xf32, #tpu.memory_space<vmem>>, vector<1x16xf32>
    %c0_9 = arith.constant 0 : index
    %c0_10 = arith.constant 0 : index
    %5 = vector.load %arg5[%c0_9, %c0_10] : memref<128x32xf32, #tpu.memory_space<vmem>>, vector<128x32xf32>
    %c0_11 = arith.constant 0 : index
    %c0_12 = arith.constant 0 : index
    %6 = vector.load %arg6[%c0_11, %c0_12] : memref<8x32xf32, #tpu.memory_space<vmem>>, vector<8x32xf32>
    %c0_13 = arith.constant 0 : index
    %c0_14 = arith.constant 0 : index
    %7 = vector.load %arg0[%c0_13, %c0_14] : memref<16x1xi32, #tpu.memory_space<vmem>>, vector<16x1xi32>
    %8 = tpu.iota {dimensions = array<i32: 1>} : vector<16x128xi32>
    %9 = vector.broadcast %7 : vector<16x1xi32> to vector<16x128xi32>
    %10 = arith.cmpi eq, %9, %8 : vector<16x128xi32>
    %11 = arith.extui %10 : vector<16x128xi1> to vector<16x128xi32>
    %12 = arith.sitofp %11 : vector<16x128xi32> to vector<16x128xf32>
    %c0_15 = arith.constant 0 : index
    %c0_16 = arith.constant 0 : index
    %13 = vector.load %arg1[%c0_15, %c0_16] : memref<16x1xi32, #tpu.memory_space<vmem>>, vector<16x1xi32>
    %14 = tpu.iota {dimensions = array<i32: 1>} : vector<16x128xi32>
    %15 = vector.broadcast %13 : vector<16x1xi32> to vector<16x128xi32>
    %16 = arith.cmpi eq, %15, %14 : vector<16x128xi32>
    %17 = arith.extui %16 : vector<16x128xi1> to vector<16x128xi32>
    %18 = arith.sitofp %17 : vector<16x128xi32> to vector<16x128xf32>
    %19 = tpu.concatenate %6, %6 in 0 : vector<8x32xf32>, vector<8x32xf32> -> vector<16x32xf32>
    %20 = tpu.concatenate %6, %6 in 0 : vector<8x32xf32>, vector<8x32xf32> -> vector<16x32xf32>
    %cst = arith.constant dense<0.000000e+00> : vector<16x32xf32>
    %21 = tpu.matmul %12, %5, %cst {dimension_numbers = #tpu.dot_dimension_numbers<[1], [0], [0], [1], [0, 0, 1, 1], [], []>} : vector<16x128xf32>, vector<128x32xf32>, vector<16x32xf32> -> vector<16x32xf32>
    %22 = arith.addf %21, %19 : vector<16x32xf32>
    %cst_17 = arith.constant dense<0.000000e+00> : vector<16x32xf32>
    %23 = tpu.matmul %18, %5, %cst_17 {dimension_numbers = #tpu.dot_dimension_numbers<[1], [0], [0], [1], [0, 0, 1, 1], [], []>} : vector<16x128xf32>, vector<128x32xf32>, vector<16x32xf32> -> vector<16x32xf32>
    %24 = arith.addf %23, %20 : vector<16x32xf32>
    %25 = vector.extract_strided_slice %1 {offsets = [0, 0], sizes = [1, 32], strides = [1, 1]} : vector<32x32xf32> to vector<1x32xf32>
    %26 = vector.extract_strided_slice %1 {offsets = [1, 0], sizes = [1, 32], strides = [1, 1]} : vector<32x32xf32> to vector<1x32xf32>
    %cst_18 = arith.constant dense<0.000000e+00> : vector<16xf32>
    %27 = vector.multi_reduction <add>, %22, %cst_18 [1] : vector<16x32xf32> to vector<16xf32>
    %28 = vector.shape_cast %27 : vector<16xf32> to vector<16x1xf32>
    %cst_19 = arith.constant 3.200000e+01 : f32
    %29 = vector.broadcast %cst_19 : f32 to vector<16x1xf32>
    %30 = arith.divf %28, %29 : vector<16x1xf32>
    %31 = vector.broadcast %30 : vector<16x1xf32> to vector<16x32xf32>
    %32 = arith.subf %22, %31 : vector<16x32xf32>
    %33 = arith.mulf %32, %32 : vector<16x32xf32>
    %cst_20 = arith.constant dense<0.000000e+00> : vector<16xf32>
    %34 = vector.multi_reduction <add>, %33, %cst_20 [1] : vector<16x32xf32> to vector<16xf32>
    %35 = vector.shape_cast %34 : vector<16xf32> to vector<16x1xf32>
    %cst_21 = arith.constant 3.200000e+01 : f32
    %36 = vector.broadcast %cst_21 : f32 to vector<16x1xf32>
    %37 = arith.divf %35, %36 : vector<16x1xf32>
    %38 = vector.broadcast %30 : vector<16x1xf32> to vector<16x32xf32>
    %39 = arith.subf %22, %38 : vector<16x32xf32>
    %cst_22 = arith.constant 9.99999974E-6 : f32
    %40 = vector.broadcast %cst_22 : f32 to vector<16x1xf32>
    %41 = arith.addf %37, %40 : vector<16x1xf32>
    %42 = math.rsqrt %41 : vector<16x1xf32>
    %43 = vector.broadcast %42 : vector<16x1xf32> to vector<16x32xf32>
    %44 = arith.mulf %39, %43 : vector<16x32xf32>
    %45 = vector.broadcast %25 : vector<1x32xf32> to vector<16x32xf32>
    %46 = arith.mulf %44, %45 : vector<16x32xf32>
    %47 = vector.broadcast %26 : vector<1x32xf32> to vector<16x32xf32>
    %48 = arith.addf %46, %47 : vector<16x32xf32>
    %49 = vector.extract_strided_slice %0 {offsets = [0, 0], sizes = [32, 32], strides = [1, 1]} : vector<416x32xf32> to vector<32x32xf32>
    %cst_23 = arith.constant dense<0.000000e+00> : vector<16x32xf32>
    %50 = tpu.matmul %48, %49, %cst_23 {dimension_numbers = #tpu.dot_dimension_numbers<[1], [0], [0], [1], [0, 0, 1, 1], [], []>} : vector<16x32xf32>, vector<32x32xf32>, vector<16x32xf32> -> vector<16x32xf32>
    %51 = vector.extract_strided_slice %1 {offsets = [2, 0], sizes = [1, 32], strides = [1, 1]} : vector<32x32xf32> to vector<1x32xf32>
    %52 = vector.broadcast %51 : vector<1x32xf32> to vector<16x32xf32>
    %53 = arith.addf %50, %52 : vector<16x32xf32>
    %54 = vector.extract_strided_slice %0 {offsets = [32, 0], sizes = [32, 32], strides = [1, 1]} : vector<416x32xf32> to vector<32x32xf32>
    %cst_24 = arith.constant dense<0.000000e+00> : vector<16x32xf32>
    %55 = tpu.matmul %48, %54, %cst_24 {dimension_numbers = #tpu.dot_dimension_numbers<[1], [0], [0], [1], [0, 0, 1, 1], [], []>} : vector<16x32xf32>, vector<32x32xf32>, vector<16x32xf32> -> vector<16x32xf32>
    %56 = vector.extract_strided_slice %1 {offsets = [3, 0], sizes = [1, 32], strides = [1, 1]} : vector<32x32xf32> to vector<1x32xf32>
    %57 = vector.broadcast %56 : vector<1x32xf32> to vector<16x32xf32>
    %58 = arith.addf %55, %57 : vector<16x32xf32>
    %59 = vector.extract_strided_slice %0 {offsets = [64, 0], sizes = [32, 32], strides = [1, 1]} : vector<416x32xf32> to vector<32x32xf32>
    %cst_25 = arith.constant dense<0.000000e+00> : vector<16x32xf32>
    %60 = tpu.matmul %48, %59, %cst_25 {dimension_numbers = #tpu.dot_dimension_numbers<[1], [0], [0], [1], [0, 0, 1, 1], [], []>} : vector<16x32xf32>, vector<32x32xf32>, vector<16x32xf32> -> vector<16x32xf32>
    %61 = vector.extract_strided_slice %1 {offsets = [4, 0], sizes = [1, 32], strides = [1, 1]} : vector<32x32xf32> to vector<1x32xf32>
    %62 = vector.broadcast %61 : vector<1x32xf32> to vector<16x32xf32>
    %63 = arith.addf %60, %62 : vector<16x32xf32>
    %64 = vector.extract_strided_slice %53 {offsets = [0, 0], sizes = [8, 32], strides = [1, 1]} : vector<16x32xf32> to vector<8x32xf32>
    %65 = vector.extract_strided_slice %58 {offsets = [0, 0], sizes = [8, 32], strides = [1, 1]} : vector<16x32xf32> to vector<8x32xf32>
    %66 = vector.extract_strided_slice %63 {offsets = [0, 0], sizes = [8, 32], strides = [1, 1]} : vector<16x32xf32> to vector<8x32xf32>
    %c0_26 = arith.constant 0 : index
    %c0_27 = arith.constant 0 : index
    %c0_28 = arith.constant 0 : index
    %67 = vector.load %arg3[%c0_26, %c0_27, %c0_28] : memref<2x1x8xf32, #tpu.memory_space<vmem>>, vector<1x1x8xf32>
    %68 = vector.shape_cast %67 : vector<1x1x8xf32> to vector<1x8xf32>
    %69 = vector.extract_strided_slice %64 {offsets = [0, 0], sizes = [8, 8], strides = [1, 1]} : vector<8x32xf32> to vector<8x8xf32>
    %70 = vector.extract_strided_slice %65 {offsets = [0, 0], sizes = [8, 8], strides = [1, 1]} : vector<8x32xf32> to vector<8x8xf32>
    %cst_29 = arith.constant dense<0.000000e+00> : vector<8x8xf32>
    %71 = tpu.matmul %69, %70, %cst_29 {dimension_numbers = #tpu.dot_dimension_numbers<[1], [1], [0], [0], [0, 0, 1, 0], [], []>} : vector<8x8xf32>, vector<8x8xf32>, vector<8x8xf32> -> vector<8x8xf32>
    %cst_30 = arith.constant 0.353553385 : f32
    %72 = vector.broadcast %cst_30 : f32 to vector<8x8xf32>
    %73 = arith.mulf %71, %72 : vector<8x8xf32>
    %74 = vector.broadcast %68 : vector<1x8xf32> to vector<8x8xf32>
    %75 = arith.addf %73, %74 : vector<8x8xf32>
    %cst_31 = arith.constant dense<0xFF800000> : vector<8xf32>
    %76 = vector.multi_reduction <maximumf>, %75, %cst_31 [1] : vector<8x8xf32> to vector<8xf32>
    %77 = vector.shape_cast %76 : vector<8xf32> to vector<8x1xf32>
    %78 = vector.broadcast %77 : vector<8x1xf32> to vector<8x8xf32>
    %79 = arith.subf %75, %78 : vector<8x8xf32>
    %80 = math.exp %79 : vector<8x8xf32>
    %cst_32 = arith.constant dense<0.000000e+00> : vector<8xf32>
    %81 = vector.multi_reduction <add>, %80, %cst_32 [1] : vector<8x8xf32> to vector<8xf32>
    %82 = vector.shape_cast %81 : vector<8xf32> to vector<8x1xf32>
    %83 = tpu.reciprocal %82 {approx = true} : vector<8x1xf32> -> vector<8x1xf32>
    %84 = vector.broadcast %83 : vector<8x1xf32> to vector<8x8xf32>
    %85 = arith.mulf %80, %84 : vector<8x8xf32>
    %86 = vector.extract_strided_slice %66 {offsets = [0, 0], sizes = [8, 8], strides = [1, 1]} : vector<8x32xf32> to vector<8x8xf32>
    %cst_33 = arith.constant dense<0.000000e+00> : vector<8x8xf32>
    %87 = tpu.matmul %85, %86, %cst_33 {dimension_numbers = #tpu.dot_dimension_numbers<[1], [0], [0], [1], [0, 0, 1, 1], [], []>} : vector<8x8xf32>, vector<8x8xf32>, vector<8x8xf32> -> vector<8x8xf32>
    %88 = vector.extract_strided_slice %64 {offsets = [0, 8], sizes = [8, 8], strides = [1, 1]} : vector<8x32xf32> to vector<8x8xf32>
    %89 = vector.extract_strided_slice %65 {offsets = [0, 8], sizes = [8, 8], strides = [1, 1]} : vector<8x32xf32> to vector<8x8xf32>
    %cst_34 = arith.constant dense<0.000000e+00> : vector<8x8xf32>
    %90 = tpu.matmul %88, %89, %cst_34 {dimension_numbers = #tpu.dot_dimension_numbers<[1], [1], [0], [0], [0, 0, 1, 0], [], []>} : vector<8x8xf32>, vector<8x8xf32>, vector<8x8xf32> -> vector<8x8xf32>
    %cst_35 = arith.constant 0.353553385 : f32
    %91 = vector.broadcast %cst_35 : f32 to vector<8x8xf32>
    %92 = arith.mulf %90, %91 : vector<8x8xf32>
    %93 = vector.broadcast %68 : vector<1x8xf32> to vector<8x8xf32>
    %94 = arith.addf %92, %93 : vector<8x8xf32>
    %cst_36 = arith.constant dense<0xFF800000> : vector<8xf32>
    %95 = vector.multi_reduction <maximumf>, %94, %cst_36 [1] : vector<8x8xf32> to vector<8xf32>
    %96 = vector.shape_cast %95 : vector<8xf32> to vector<8x1xf32>
    %97 = vector.broadcast %96 : vector<8x1xf32> to vector<8x8xf32>
    %98 = arith.subf %94, %97 : vector<8x8xf32>
    %99 = math.exp %98 : vector<8x8xf32>
    %cst_37 = arith.constant dense<0.000000e+00> : vector<8xf32>
    %100 = vector.multi_reduction <add>, %99, %cst_37 [1] : vector<8x8xf32> to vector<8xf32>
    %101 = vector.shape_cast %100 : vector<8xf32> to vector<8x1xf32>
    %102 = tpu.reciprocal %101 {approx = true} : vector<8x1xf32> -> vector<8x1xf32>
    %103 = vector.broadcast %102 : vector<8x1xf32> to vector<8x8xf32>
    %104 = arith.mulf %99, %103 : vector<8x8xf32>
    %105 = vector.extract_strided_slice %66 {offsets = [0, 8], sizes = [8, 8], strides = [1, 1]} : vector<8x32xf32> to vector<8x8xf32>
    %cst_38 = arith.constant dense<0.000000e+00> : vector<8x8xf32>
    %106 = tpu.matmul %104, %105, %cst_38 {dimension_numbers = #tpu.dot_dimension_numbers<[1], [0], [0], [1], [0, 0, 1, 1], [], []>} : vector<8x8xf32>, vector<8x8xf32>, vector<8x8xf32> -> vector<8x8xf32>
    %107 = vector.extract_strided_slice %64 {offsets = [0, 16], sizes = [8, 8], strides = [1, 1]} : vector<8x32xf32> to vector<8x8xf32>
    %108 = vector.extract_strided_slice %65 {offsets = [0, 16], sizes = [8, 8], strides = [1, 1]} : vector<8x32xf32> to vector<8x8xf32>
    %cst_39 = arith.constant dense<0.000000e+00> : vector<8x8xf32>
    %109 = tpu.matmul %107, %108, %cst_39 {dimension_numbers = #tpu.dot_dimension_numbers<[1], [1], [0], [0], [0, 0, 1, 0], [], []>} : vector<8x8xf32>, vector<8x8xf32>, vector<8x8xf32> -> vector<8x8xf32>
    %cst_40 = arith.constant 0.353553385 : f32
    %110 = vector.broadcast %cst_40 : f32 to vector<8x8xf32>
    %111 = arith.mulf %109, %110 : vector<8x8xf32>
    %112 = vector.broadcast %68 : vector<1x8xf32> to vector<8x8xf32>
    %113 = arith.addf %111, %112 : vector<8x8xf32>
    %cst_41 = arith.constant dense<0xFF800000> : vector<8xf32>
    %114 = vector.multi_reduction <maximumf>, %113, %cst_41 [1] : vector<8x8xf32> to vector<8xf32>
    %115 = vector.shape_cast %114 : vector<8xf32> to vector<8x1xf32>
    %116 = vector.broadcast %115 : vector<8x1xf32> to vector<8x8xf32>
    %117 = arith.subf %113, %116 : vector<8x8xf32>
    %118 = math.exp %117 : vector<8x8xf32>
    %cst_42 = arith.constant dense<0.000000e+00> : vector<8xf32>
    %119 = vector.multi_reduction <add>, %118, %cst_42 [1] : vector<8x8xf32> to vector<8xf32>
    %120 = vector.shape_cast %119 : vector<8xf32> to vector<8x1xf32>
    %121 = tpu.reciprocal %120 {approx = true} : vector<8x1xf32> -> vector<8x1xf32>
    %122 = vector.broadcast %121 : vector<8x1xf32> to vector<8x8xf32>
    %123 = arith.mulf %118, %122 : vector<8x8xf32>
    %124 = vector.extract_strided_slice %66 {offsets = [0, 16], sizes = [8, 8], strides = [1, 1]} : vector<8x32xf32> to vector<8x8xf32>
    %cst_43 = arith.constant dense<0.000000e+00> : vector<8x8xf32>
    %125 = tpu.matmul %123, %124, %cst_43 {dimension_numbers = #tpu.dot_dimension_numbers<[1], [0], [0], [1], [0, 0, 1, 1], [], []>} : vector<8x8xf32>, vector<8x8xf32>, vector<8x8xf32> -> vector<8x8xf32>
    %126 = vector.extract_strided_slice %64 {offsets = [0, 24], sizes = [8, 8], strides = [1, 1]} : vector<8x32xf32> to vector<8x8xf32>
    %127 = vector.extract_strided_slice %65 {offsets = [0, 24], sizes = [8, 8], strides = [1, 1]} : vector<8x32xf32> to vector<8x8xf32>
    %cst_44 = arith.constant dense<0.000000e+00> : vector<8x8xf32>
    %128 = tpu.matmul %126, %127, %cst_44 {dimension_numbers = #tpu.dot_dimension_numbers<[1], [1], [0], [0], [0, 0, 1, 0], [], []>} : vector<8x8xf32>, vector<8x8xf32>, vector<8x8xf32> -> vector<8x8xf32>
    %cst_45 = arith.constant 0.353553385 : f32
    %129 = vector.broadcast %cst_45 : f32 to vector<8x8xf32>
    %130 = arith.mulf %128, %129 : vector<8x8xf32>
    %131 = vector.broadcast %68 : vector<1x8xf32> to vector<8x8xf32>
    %132 = arith.addf %130, %131 : vector<8x8xf32>
    %cst_46 = arith.constant dense<0xFF800000> : vector<8xf32>
    %133 = vector.multi_reduction <maximumf>, %132, %cst_46 [1] : vector<8x8xf32> to vector<8xf32>
    %134 = vector.shape_cast %133 : vector<8xf32> to vector<8x1xf32>
    %135 = vector.broadcast %134 : vector<8x1xf32> to vector<8x8xf32>
    %136 = arith.subf %132, %135 : vector<8x8xf32>
    %137 = math.exp %136 : vector<8x8xf32>
    %cst_47 = arith.constant dense<0.000000e+00> : vector<8xf32>
    %138 = vector.multi_reduction <add>, %137, %cst_47 [1] : vector<8x8xf32> to vector<8xf32>
    %139 = vector.shape_cast %138 : vector<8xf32> to vector<8x1xf32>
    %140 = tpu.reciprocal %139 {approx = true} : vector<8x1xf32> -> vector<8x1xf32>
    %141 = vector.broadcast %140 : vector<8x1xf32> to vector<8x8xf32>
    %142 = arith.mulf %137, %141 : vector<8x8xf32>
    %143 = vector.extract_strided_slice %66 {offsets = [0, 24], sizes = [8, 8], strides = [1, 1]} : vector<8x32xf32> to vector<8x8xf32>
    %cst_48 = arith.constant dense<0.000000e+00> : vector<8x8xf32>
    %144 = tpu.matmul %142, %143, %cst_48 {dimension_numbers = #tpu.dot_dimension_numbers<[1], [0], [0], [1], [0, 0, 1, 1], [], []>} : vector<8x8xf32>, vector<8x8xf32>, vector<8x8xf32> -> vector<8x8xf32>
    %145 = tpu.concatenate %87, %106, %125, %144 in 1 : vector<8x8xf32>, vector<8x8xf32>, vector<8x8xf32>, vector<8x8xf32> -> vector<8x32xf32>
    %146 = vector.extract_strided_slice %53 {offsets = [8, 0], sizes = [8, 32], strides = [1, 1]} : vector<16x32xf32> to vector<8x32xf32>
    %147 = vector.extract_strided_slice %58 {offsets = [8, 0], sizes = [8, 32], strides = [1, 1]} : vector<16x32xf32> to vector<8x32xf32>
    %148 = vector.extract_strided_slice %63 {offsets = [8, 0], sizes = [8, 32], strides = [1, 1]} : vector<16x32xf32> to vector<8x32xf32>
    %c1 = arith.constant 1 : index
    %c0_49 = arith.constant 0 : index
    %c0_50 = arith.constant 0 : index
    %149 = vector.load %arg3[%c1, %c0_49, %c0_50] : memref<2x1x8xf32, #tpu.memory_space<vmem>>, vector<1x1x8xf32>
    %150 = vector.shape_cast %149 : vector<1x1x8xf32> to vector<1x8xf32>
    %151 = vector.extract_strided_slice %146 {offsets = [0, 0], sizes = [8, 8], strides = [1, 1]} : vector<8x32xf32> to vector<8x8xf32>
    %152 = vector.extract_strided_slice %147 {offsets = [0, 0], sizes = [8, 8], strides = [1, 1]} : vector<8x32xf32> to vector<8x8xf32>
    %cst_51 = arith.constant dense<0.000000e+00> : vector<8x8xf32>
    %153 = tpu.matmul %151, %152, %cst_51 {dimension_numbers = #tpu.dot_dimension_numbers<[1], [1], [0], [0], [0, 0, 1, 0], [], []>} : vector<8x8xf32>, vector<8x8xf32>, vector<8x8xf32> -> vector<8x8xf32>
    %cst_52 = arith.constant 0.353553385 : f32
    %154 = vector.broadcast %cst_52 : f32 to vector<8x8xf32>
    %155 = arith.mulf %153, %154 : vector<8x8xf32>
    %156 = vector.broadcast %150 : vector<1x8xf32> to vector<8x8xf32>
    %157 = arith.addf %155, %156 : vector<8x8xf32>
    %cst_53 = arith.constant dense<0xFF800000> : vector<8xf32>
    %158 = vector.multi_reduction <maximumf>, %157, %cst_53 [1] : vector<8x8xf32> to vector<8xf32>
    %159 = vector.shape_cast %158 : vector<8xf32> to vector<8x1xf32>
    %160 = vector.broadcast %159 : vector<8x1xf32> to vector<8x8xf32>
    %161 = arith.subf %157, %160 : vector<8x8xf32>
    %162 = math.exp %161 : vector<8x8xf32>
    %cst_54 = arith.constant dense<0.000000e+00> : vector<8xf32>
    %163 = vector.multi_reduction <add>, %162, %cst_54 [1] : vector<8x8xf32> to vector<8xf32>
    %164 = vector.shape_cast %163 : vector<8xf32> to vector<8x1xf32>
    %165 = tpu.reciprocal %164 {approx = true} : vector<8x1xf32> -> vector<8x1xf32>
    %166 = vector.broadcast %165 : vector<8x1xf32> to vector<8x8xf32>
    %167 = arith.mulf %162, %166 : vector<8x8xf32>
    %168 = vector.extract_strided_slice %148 {offsets = [0, 0], sizes = [8, 8], strides = [1, 1]} : vector<8x32xf32> to vector<8x8xf32>
    %cst_55 = arith.constant dense<0.000000e+00> : vector<8x8xf32>
    %169 = tpu.matmul %167, %168, %cst_55 {dimension_numbers = #tpu.dot_dimension_numbers<[1], [0], [0], [1], [0, 0, 1, 1], [], []>} : vector<8x8xf32>, vector<8x8xf32>, vector<8x8xf32> -> vector<8x8xf32>
    %170 = vector.extract_strided_slice %146 {offsets = [0, 8], sizes = [8, 8], strides = [1, 1]} : vector<8x32xf32> to vector<8x8xf32>
    %171 = vector.extract_strided_slice %147 {offsets = [0, 8], sizes = [8, 8], strides = [1, 1]} : vector<8x32xf32> to vector<8x8xf32>
    %cst_56 = arith.constant dense<0.000000e+00> : vector<8x8xf32>
    %172 = tpu.matmul %170, %171, %cst_56 {dimension_numbers = #tpu.dot_dimension_numbers<[1], [1], [0], [0], [0, 0, 1, 0], [], []>} : vector<8x8xf32>, vector<8x8xf32>, vector<8x8xf32> -> vector<8x8xf32>
    %cst_57 = arith.constant 0.353553385 : f32
    %173 = vector.broadcast %cst_57 : f32 to vector<8x8xf32>
    %174 = arith.mulf %172, %173 : vector<8x8xf32>
    %175 = vector.broadcast %150 : vector<1x8xf32> to vector<8x8xf32>
    %176 = arith.addf %174, %175 : vector<8x8xf32>
    %cst_58 = arith.constant dense<0xFF800000> : vector<8xf32>
    %177 = vector.multi_reduction <maximumf>, %176, %cst_58 [1] : vector<8x8xf32> to vector<8xf32>
    %178 = vector.shape_cast %177 : vector<8xf32> to vector<8x1xf32>
    %179 = vector.broadcast %178 : vector<8x1xf32> to vector<8x8xf32>
    %180 = arith.subf %176, %179 : vector<8x8xf32>
    %181 = math.exp %180 : vector<8x8xf32>
    %cst_59 = arith.constant dense<0.000000e+00> : vector<8xf32>
    %182 = vector.multi_reduction <add>, %181, %cst_59 [1] : vector<8x8xf32> to vector<8xf32>
    %183 = vector.shape_cast %182 : vector<8xf32> to vector<8x1xf32>
    %184 = tpu.reciprocal %183 {approx = true} : vector<8x1xf32> -> vector<8x1xf32>
    %185 = vector.broadcast %184 : vector<8x1xf32> to vector<8x8xf32>
    %186 = arith.mulf %181, %185 : vector<8x8xf32>
    %187 = vector.extract_strided_slice %148 {offsets = [0, 8], sizes = [8, 8], strides = [1, 1]} : vector<8x32xf32> to vector<8x8xf32>
    %cst_60 = arith.constant dense<0.000000e+00> : vector<8x8xf32>
    %188 = tpu.matmul %186, %187, %cst_60 {dimension_numbers = #tpu.dot_dimension_numbers<[1], [0], [0], [1], [0, 0, 1, 1], [], []>} : vector<8x8xf32>, vector<8x8xf32>, vector<8x8xf32> -> vector<8x8xf32>
    %189 = vector.extract_strided_slice %146 {offsets = [0, 16], sizes = [8, 8], strides = [1, 1]} : vector<8x32xf32> to vector<8x8xf32>
    %190 = vector.extract_strided_slice %147 {offsets = [0, 16], sizes = [8, 8], strides = [1, 1]} : vector<8x32xf32> to vector<8x8xf32>
    %cst_61 = arith.constant dense<0.000000e+00> : vector<8x8xf32>
    %191 = tpu.matmul %189, %190, %cst_61 {dimension_numbers = #tpu.dot_dimension_numbers<[1], [1], [0], [0], [0, 0, 1, 0], [], []>} : vector<8x8xf32>, vector<8x8xf32>, vector<8x8xf32> -> vector<8x8xf32>
    %cst_62 = arith.constant 0.353553385 : f32
    %192 = vector.broadcast %cst_62 : f32 to vector<8x8xf32>
    %193 = arith.mulf %191, %192 : vector<8x8xf32>
    %194 = vector.broadcast %150 : vector<1x8xf32> to vector<8x8xf32>
    %195 = arith.addf %193, %194 : vector<8x8xf32>
    %cst_63 = arith.constant dense<0xFF800000> : vector<8xf32>
    %196 = vector.multi_reduction <maximumf>, %195, %cst_63 [1] : vector<8x8xf32> to vector<8xf32>
    %197 = vector.shape_cast %196 : vector<8xf32> to vector<8x1xf32>
    %198 = vector.broadcast %197 : vector<8x1xf32> to vector<8x8xf32>
    %199 = arith.subf %195, %198 : vector<8x8xf32>
    %200 = math.exp %199 : vector<8x8xf32>
    %cst_64 = arith.constant dense<0.000000e+00> : vector<8xf32>
    %201 = vector.multi_reduction <add>, %200, %cst_64 [1] : vector<8x8xf32> to vector<8xf32>
    %202 = vector.shape_cast %201 : vector<8xf32> to vector<8x1xf32>
    %203 = tpu.reciprocal %202 {approx = true} : vector<8x1xf32> -> vector<8x1xf32>
    %204 = vector.broadcast %203 : vector<8x1xf32> to vector<8x8xf32>
    %205 = arith.mulf %200, %204 : vector<8x8xf32>
    %206 = vector.extract_strided_slice %148 {offsets = [0, 16], sizes = [8, 8], strides = [1, 1]} : vector<8x32xf32> to vector<8x8xf32>
    %cst_65 = arith.constant dense<0.000000e+00> : vector<8x8xf32>
    %207 = tpu.matmul %205, %206, %cst_65 {dimension_numbers = #tpu.dot_dimension_numbers<[1], [0], [0], [1], [0, 0, 1, 1], [], []>} : vector<8x8xf32>, vector<8x8xf32>, vector<8x8xf32> -> vector<8x8xf32>
    %208 = vector.extract_strided_slice %146 {offsets = [0, 24], sizes = [8, 8], strides = [1, 1]} : vector<8x32xf32> to vector<8x8xf32>
    %209 = vector.extract_strided_slice %147 {offsets = [0, 24], sizes = [8, 8], strides = [1, 1]} : vector<8x32xf32> to vector<8x8xf32>
    %cst_66 = arith.constant dense<0.000000e+00> : vector<8x8xf32>
    %210 = tpu.matmul %208, %209, %cst_66 {dimension_numbers = #tpu.dot_dimension_numbers<[1], [1], [0], [0], [0, 0, 1, 0], [], []>} : vector<8x8xf32>, vector<8x8xf32>, vector<8x8xf32> -> vector<8x8xf32>
    %cst_67 = arith.constant 0.353553385 : f32
    %211 = vector.broadcast %cst_67 : f32 to vector<8x8xf32>
    %212 = arith.mulf %210, %211 : vector<8x8xf32>
    %213 = vector.broadcast %150 : vector<1x8xf32> to vector<8x8xf32>
    %214 = arith.addf %212, %213 : vector<8x8xf32>
    %cst_68 = arith.constant dense<0xFF800000> : vector<8xf32>
    %215 = vector.multi_reduction <maximumf>, %214, %cst_68 [1] : vector<8x8xf32> to vector<8xf32>
    %216 = vector.shape_cast %215 : vector<8xf32> to vector<8x1xf32>
    %217 = vector.broadcast %216 : vector<8x1xf32> to vector<8x8xf32>
    %218 = arith.subf %214, %217 : vector<8x8xf32>
    %219 = math.exp %218 : vector<8x8xf32>
    %cst_69 = arith.constant dense<0.000000e+00> : vector<8xf32>
    %220 = vector.multi_reduction <add>, %219, %cst_69 [1] : vector<8x8xf32> to vector<8xf32>
    %221 = vector.shape_cast %220 : vector<8xf32> to vector<8x1xf32>
    %222 = tpu.reciprocal %221 {approx = true} : vector<8x1xf32> -> vector<8x1xf32>
    %223 = vector.broadcast %222 : vector<8x1xf32> to vector<8x8xf32>
    %224 = arith.mulf %219, %223 : vector<8x8xf32>
    %225 = vector.extract_strided_slice %148 {offsets = [0, 24], sizes = [8, 8], strides = [1, 1]} : vector<8x32xf32> to vector<8x8xf32>
    %cst_70 = arith.constant dense<0.000000e+00> : vector<8x8xf32>
    %226 = tpu.matmul %224, %225, %cst_70 {dimension_numbers = #tpu.dot_dimension_numbers<[1], [0], [0], [1], [0, 0, 1, 1], [], []>} : vector<8x8xf32>, vector<8x8xf32>, vector<8x8xf32> -> vector<8x8xf32>
    %227 = tpu.concatenate %169, %188, %207, %226 in 1 : vector<8x8xf32>, vector<8x8xf32>, vector<8x8xf32>, vector<8x8xf32> -> vector<8x32xf32>
    %228 = tpu.concatenate %145, %227 in 0 : vector<8x32xf32>, vector<8x32xf32> -> vector<16x32xf32>
    %229 = vector.extract_strided_slice %0 {offsets = [96, 0], sizes = [32, 32], strides = [1, 1]} : vector<416x32xf32> to vector<32x32xf32>
    %cst_71 = arith.constant dense<0.000000e+00> : vector<16x32xf32>
    %230 = tpu.matmul %228, %229, %cst_71 {dimension_numbers = #tpu.dot_dimension_numbers<[1], [0], [0], [1], [0, 0, 1, 1], [], []>} : vector<16x32xf32>, vector<32x32xf32>, vector<16x32xf32> -> vector<16x32xf32>
    %231 = vector.extract_strided_slice %1 {offsets = [5, 0], sizes = [1, 32], strides = [1, 1]} : vector<32x32xf32> to vector<1x32xf32>
    %232 = vector.broadcast %231 : vector<1x32xf32> to vector<16x32xf32>
    %233 = arith.addf %230, %232 : vector<16x32xf32>
    %234 = arith.addf %48, %233 : vector<16x32xf32>
    %235 = vector.extract_strided_slice %1 {offsets = [6, 0], sizes = [1, 32], strides = [1, 1]} : vector<32x32xf32> to vector<1x32xf32>
    %236 = vector.extract_strided_slice %1 {offsets = [7, 0], sizes = [1, 32], strides = [1, 1]} : vector<32x32xf32> to vector<1x32xf32>
    %cst_72 = arith.constant dense<0.000000e+00> : vector<16xf32>
    %237 = vector.multi_reduction <add>, %234, %cst_72 [1] : vector<16x32xf32> to vector<16xf32>
    %238 = vector.shape_cast %237 : vector<16xf32> to vector<16x1xf32>
    %cst_73 = arith.constant 3.200000e+01 : f32
    %239 = vector.broadcast %cst_73 : f32 to vector<16x1xf32>
    %240 = arith.divf %238, %239 : vector<16x1xf32>
    %241 = vector.broadcast %240 : vector<16x1xf32> to vector<16x32xf32>
    %242 = arith.subf %234, %241 : vector<16x32xf32>
    %243 = arith.mulf %242, %242 : vector<16x32xf32>
    %cst_74 = arith.constant dense<0.000000e+00> : vector<16xf32>
    %244 = vector.multi_reduction <add>, %243, %cst_74 [1] : vector<16x32xf32> to vector<16xf32>
    %245 = vector.shape_cast %244 : vector<16xf32> to vector<16x1xf32>
    %cst_75 = arith.constant 3.200000e+01 : f32
    %246 = vector.broadcast %cst_75 : f32 to vector<16x1xf32>
    %247 = arith.divf %245, %246 : vector<16x1xf32>
    %248 = vector.broadcast %240 : vector<16x1xf32> to vector<16x32xf32>
    %249 = arith.subf %234, %248 : vector<16x32xf32>
    %cst_76 = arith.constant 9.99999974E-6 : f32
    %250 = vector.broadcast %cst_76 : f32 to vector<16x1xf32>
    %251 = arith.addf %247, %250 : vector<16x1xf32>
    %252 = math.rsqrt %251 : vector<16x1xf32>
    %253 = vector.broadcast %252 : vector<16x1xf32> to vector<16x32xf32>
    %254 = arith.mulf %249, %253 : vector<16x32xf32>
    %255 = vector.broadcast %235 : vector<1x32xf32> to vector<16x32xf32>
    %256 = arith.mulf %254, %255 : vector<16x32xf32>
    %257 = vector.broadcast %236 : vector<1x32xf32> to vector<16x32xf32>
    %258 = arith.addf %256, %257 : vector<16x32xf32>
    %c0_77 = arith.constant 0 : index
    %c0_78 = arith.constant 0 : index
    %259 = vector.load %arg8[%c0_77, %c0_78] : memref<64x64xf32, #tpu.memory_space<vmem>>, vector<32x64xf32>
    %cst_79 = arith.constant dense<0.000000e+00> : vector<16x64xf32>
    %260 = tpu.matmul %258, %259, %cst_79 {dimension_numbers = #tpu.dot_dimension_numbers<[1], [0], [0], [1], [0, 0, 1, 1], [], []>} : vector<16x32xf32>, vector<32x64xf32>, vector<16x64xf32> -> vector<16x64xf32>
    %261 = vector.extract_strided_slice %2 {offsets = [0, 0], sizes = [1, 64], strides = [1, 1]} : vector<2x64xf32> to vector<1x64xf32>
    %262 = vector.broadcast %261 : vector<1x64xf32> to vector<16x64xf32>
    %263 = arith.addf %260, %262 : vector<16x64xf32>
    %264 = arith.mulf %263, %263 : vector<16x64xf32>
    %265 = arith.mulf %263, %264 : vector<16x64xf32>
    %cst_80 = arith.constant 4.471500e-02 : f32
    %266 = vector.broadcast %cst_80 : f32 to vector<16x64xf32>
    %267 = arith.mulf %266, %265 : vector<16x64xf32>
    %268 = arith.addf %263, %267 : vector<16x64xf32>
    %cst_81 = arith.constant 0.797884583 : f32
    %269 = vector.broadcast %cst_81 : f32 to vector<16x64xf32>
    %270 = arith.mulf %269, %268 : vector<16x64xf32>
    %271 = math.tanh %270 : vector<16x64xf32>
    %cst_82 = arith.constant 1.000000e+00 : f32
    %272 = vector.broadcast %cst_82 : f32 to vector<16x64xf32>
    %273 = arith.addf %272, %271 : vector<16x64xf32>
    %cst_83 = arith.constant 5.000000e-01 : f32
    %274 = vector.broadcast %cst_83 : f32 to vector<16x64xf32>
    %275 = arith.mulf %274, %273 : vector<16x64xf32>
    %276 = arith.mulf %263, %275 : vector<16x64xf32>
    %c0_84 = arith.constant 0 : index
    %c0_85 = arith.constant 0 : index
    %277 = vector.load %arg9[%c0_84, %c0_85] : memref<128x32xf32, #tpu.memory_space<vmem>>, vector<64x32xf32>
    %cst_86 = arith.constant dense<0.000000e+00> : vector<16x32xf32>
    %278 = tpu.matmul %276, %277, %cst_86 {dimension_numbers = #tpu.dot_dimension_numbers<[1], [0], [0], [1], [0, 0, 1, 1], [], []>} : vector<16x64xf32>, vector<64x32xf32>, vector<16x32xf32> -> vector<16x32xf32>
    %279 = vector.extract_strided_slice %1 {offsets = [8, 0], sizes = [1, 32], strides = [1, 1]} : vector<32x32xf32> to vector<1x32xf32>
    %280 = vector.broadcast %279 : vector<1x32xf32> to vector<16x32xf32>
    %281 = arith.addf %278, %280 : vector<16x32xf32>
    %282 = arith.addf %258, %281 : vector<16x32xf32>
    %283 = vector.extract_strided_slice %1 {offsets = [9, 0], sizes = [1, 32], strides = [1, 1]} : vector<32x32xf32> to vector<1x32xf32>
    %284 = vector.extract_strided_slice %1 {offsets = [10, 0], sizes = [1, 32], strides = [1, 1]} : vector<32x32xf32> to vector<1x32xf32>
    %cst_87 = arith.constant dense<0.000000e+00> : vector<16xf32>
    %285 = vector.multi_reduction <add>, %282, %cst_87 [1] : vector<16x32xf32> to vector<16xf32>
    %286 = vector.shape_cast %285 : vector<16xf32> to vector<16x1xf32>
    %cst_88 = arith.constant 3.200000e+01 : f32
    %287 = vector.broadcast %cst_88 : f32 to vector<16x1xf32>
    %288 = arith.divf %286, %287 : vector<16x1xf32>
    %289 = vector.broadcast %288 : vector<16x1xf32> to vector<16x32xf32>
    %290 = arith.subf %282, %289 : vector<16x32xf32>
    %291 = arith.mulf %290, %290 : vector<16x32xf32>
    %cst_89 = arith.constant dense<0.000000e+00> : vector<16xf32>
    %292 = vector.multi_reduction <add>, %291, %cst_89 [1] : vector<16x32xf32> to vector<16xf32>
    %293 = vector.shape_cast %292 : vector<16xf32> to vector<16x1xf32>
    %cst_90 = arith.constant 3.200000e+01 : f32
    %294 = vector.broadcast %cst_90 : f32 to vector<16x1xf32>
    %295 = arith.divf %293, %294 : vector<16x1xf32>
    %296 = vector.broadcast %288 : vector<16x1xf32> to vector<16x32xf32>
    %297 = arith.subf %282, %296 : vector<16x32xf32>
    %cst_91 = arith.constant 9.99999974E-6 : f32
    %298 = vector.broadcast %cst_91 : f32 to vector<16x1xf32>
    %299 = arith.addf %295, %298 : vector<16x1xf32>
    %300 = math.rsqrt %299 : vector<16x1xf32>
    %301 = vector.broadcast %300 : vector<16x1xf32> to vector<16x32xf32>
    %302 = arith.mulf %297, %301 : vector<16x32xf32>
    %303 = vector.broadcast %283 : vector<1x32xf32> to vector<16x32xf32>
    %304 = arith.mulf %302, %303 : vector<16x32xf32>
    %305 = vector.broadcast %284 : vector<1x32xf32> to vector<16x32xf32>
    %306 = arith.addf %304, %305 : vector<16x32xf32>
    %307 = tpu.iota {dimensions = array<i32: 0>} : vector<8x8xi32>
    %308 = tpu.iota {dimensions = array<i32: 1>} : vector<8x8xi32>
    %309 = arith.cmpi sge, %307, %308 : vector<8x8xi32>
    %cst_92 = arith.constant 0.000000e+00 : f32
    %cst_93 = arith.constant -1.000000e+09 : f32
    %310 = vector.broadcast %cst_92 : f32 to vector<8x8xf32>
    %311 = vector.broadcast %cst_93 : f32 to vector<8x8xf32>
    %312 = arith.select %309, %310, %311 : vector<8x8xi1>, vector<8x8xf32>
    %313 = vector.extract_strided_slice %1 {offsets = [11, 0], sizes = [1, 32], strides = [1, 1]} : vector<32x32xf32> to vector<1x32xf32>
    %314 = vector.extract_strided_slice %1 {offsets = [12, 0], sizes = [1, 32], strides = [1, 1]} : vector<32x32xf32> to vector<1x32xf32>
    %cst_94 = arith.constant dense<0.000000e+00> : vector<16xf32>
    %315 = vector.multi_reduction <add>, %24, %cst_94 [1] : vector<16x32xf32> to vector<16xf32>
    %316 = vector.shape_cast %315 : vector<16xf32> to vector<16x1xf32>
    %cst_95 = arith.constant 3.200000e+01 : f32
    %317 = vector.broadcast %cst_95 : f32 to vector<16x1xf32>
    %318 = arith.divf %316, %317 : vector<16x1xf32>
    %319 = vector.broadcast %318 : vector<16x1xf32> to vector<16x32xf32>
    %320 = arith.subf %24, %319 : vector<16x32xf32>
    %321 = arith.mulf %320, %320 : vector<16x32xf32>
    %cst_96 = arith.constant dense<0.000000e+00> : vector<16xf32>
    %322 = vector.multi_reduction <add>, %321, %cst_96 [1] : vector<16x32xf32> to vector<16xf32>
    %323 = vector.shape_cast %322 : vector<16xf32> to vector<16x1xf32>
    %cst_97 = arith.constant 3.200000e+01 : f32
    %324 = vector.broadcast %cst_97 : f32 to vector<16x1xf32>
    %325 = arith.divf %323, %324 : vector<16x1xf32>
    %326 = vector.broadcast %318 : vector<16x1xf32> to vector<16x32xf32>
    %327 = arith.subf %24, %326 : vector<16x32xf32>
    %cst_98 = arith.constant 9.99999974E-6 : f32
    %328 = vector.broadcast %cst_98 : f32 to vector<16x1xf32>
    %329 = arith.addf %325, %328 : vector<16x1xf32>
    %330 = math.rsqrt %329 : vector<16x1xf32>
    %331 = vector.broadcast %330 : vector<16x1xf32> to vector<16x32xf32>
    %332 = arith.mulf %327, %331 : vector<16x32xf32>
    %333 = vector.broadcast %313 : vector<1x32xf32> to vector<16x32xf32>
    %334 = arith.mulf %332, %333 : vector<16x32xf32>
    %335 = vector.broadcast %314 : vector<1x32xf32> to vector<16x32xf32>
    %336 = arith.addf %334, %335 : vector<16x32xf32>
    %337 = vector.extract_strided_slice %0 {offsets = [128, 0], sizes = [32, 32], strides = [1, 1]} : vector<416x32xf32> to vector<32x32xf32>
    %cst_99 = arith.constant dense<0.000000e+00> : vector<16x32xf32>
    %338 = tpu.matmul %336, %337, %cst_99 {dimension_numbers = #tpu.dot_dimension_numbers<[1], [0], [0], [1], [0, 0, 1, 1], [], []>} : vector<16x32xf32>, vector<32x32xf32>, vector<16x32xf32> -> vector<16x32xf32>
    %339 = vector.extract_strided_slice %1 {offsets = [13, 0], sizes = [1, 32], strides = [1, 1]} : vector<32x32xf32> to vector<1x32xf32>
    %340 = vector.broadcast %339 : vector<1x32xf32> to vector<16x32xf32>
    %341 = arith.addf %338, %340 : vector<16x32xf32>
    %342 = vector.extract_strided_slice %0 {offsets = [160, 0], sizes = [32, 32], strides = [1, 1]} : vector<416x32xf32> to vector<32x32xf32>
    %cst_100 = arith.constant dense<0.000000e+00> : vector<16x32xf32>
    %343 = tpu.matmul %336, %342, %cst_100 {dimension_numbers = #tpu.dot_dimension_numbers<[1], [0], [0], [1], [0, 0, 1, 1], [], []>} : vector<16x32xf32>, vector<32x32xf32>, vector<16x32xf32> -> vector<16x32xf32>
    %344 = vector.extract_strided_slice %1 {offsets = [14, 0], sizes = [1, 32], strides = [1, 1]} : vector<32x32xf32> to vector<1x32xf32>
    %345 = vector.broadcast %344 : vector<1x32xf32> to vector<16x32xf32>
    %346 = arith.addf %343, %345 : vector<16x32xf32>
    %347 = vector.extract_strided_slice %0 {offsets = [192, 0], sizes = [32, 32], strides = [1, 1]} : vector<416x32xf32> to vector<32x32xf32>
    %cst_101 = arith.constant dense<0.000000e+00> : vector<16x32xf32>
    %348 = tpu.matmul %336, %347, %cst_101 {dimension_numbers = #tpu.dot_dimension_numbers<[1], [0], [0], [1], [0, 0, 1, 1], [], []>} : vector<16x32xf32>, vector<32x32xf32>, vector<16x32xf32> -> vector<16x32xf32>
    %349 = vector.extract_strided_slice %1 {offsets = [15, 0], sizes = [1, 32], strides = [1, 1]} : vector<32x32xf32> to vector<1x32xf32>
    %350 = vector.broadcast %349 : vector<1x32xf32> to vector<16x32xf32>
    %351 = arith.addf %348, %350 : vector<16x32xf32>
    %352 = vector.extract_strided_slice %341 {offsets = [0, 0], sizes = [8, 32], strides = [1, 1]} : vector<16x32xf32> to vector<8x32xf32>
    %353 = vector.extract_strided_slice %346 {offsets = [0, 0], sizes = [8, 32], strides = [1, 1]} : vector<16x32xf32> to vector<8x32xf32>
    %354 = vector.extract_strided_slice %351 {offsets = [0, 0], sizes = [8, 32], strides = [1, 1]} : vector<16x32xf32> to vector<8x32xf32>
    %c0_102 = arith.constant 0 : index
    %c0_103 = arith.constant 0 : index
    %c0_104 = arith.constant 0 : index
    %355 = vector.load %arg4[%c0_102, %c0_103, %c0_104] : memref<2x1x8xf32, #tpu.memory_space<vmem>>, vector<1x1x8xf32>
    %356 = vector.shape_cast %355 : vector<1x1x8xf32> to vector<1x8xf32>
    %357 = vector.broadcast %356 : vector<1x8xf32> to vector<8x8xf32>
    %358 = arith.addf %312, %357 : vector<8x8xf32>
    %359 = vector.extract_strided_slice %352 {offsets = [0, 0], sizes = [8, 8], strides = [1, 1]} : vector<8x32xf32> to vector<8x8xf32>
    %360 = vector.extract_strided_slice %353 {offsets = [0, 0], sizes = [8, 8], strides = [1, 1]} : vector<8x32xf32> to vector<8x8xf32>
    %cst_105 = arith.constant dense<0.000000e+00> : vector<8x8xf32>
    %361 = tpu.matmul %359, %360, %cst_105 {dimension_numbers = #tpu.dot_dimension_numbers<[1], [1], [0], [0], [0, 0, 1, 0], [], []>} : vector<8x8xf32>, vector<8x8xf32>, vector<8x8xf32> -> vector<8x8xf32>
    %cst_106 = arith.constant 0.353553385 : f32
    %362 = vector.broadcast %cst_106 : f32 to vector<8x8xf32>
    %363 = arith.mulf %361, %362 : vector<8x8xf32>
    %364 = arith.addf %363, %358 : vector<8x8xf32>
    %cst_107 = arith.constant dense<0xFF800000> : vector<8xf32>
    %365 = vector.multi_reduction <maximumf>, %364, %cst_107 [1] : vector<8x8xf32> to vector<8xf32>
    %366 = vector.shape_cast %365 : vector<8xf32> to vector<8x1xf32>
    %367 = vector.broadcast %366 : vector<8x1xf32> to vector<8x8xf32>
    %368 = arith.subf %364, %367 : vector<8x8xf32>
    %369 = math.exp %368 : vector<8x8xf32>
    %cst_108 = arith.constant dense<0.000000e+00> : vector<8xf32>
    %370 = vector.multi_reduction <add>, %369, %cst_108 [1] : vector<8x8xf32> to vector<8xf32>
    %371 = vector.shape_cast %370 : vector<8xf32> to vector<8x1xf32>
    %372 = tpu.reciprocal %371 {approx = true} : vector<8x1xf32> -> vector<8x1xf32>
    %373 = vector.broadcast %372 : vector<8x1xf32> to vector<8x8xf32>
    %374 = arith.mulf %369, %373 : vector<8x8xf32>
    %375 = vector.extract_strided_slice %354 {offsets = [0, 0], sizes = [8, 8], strides = [1, 1]} : vector<8x32xf32> to vector<8x8xf32>
    %cst_109 = arith.constant dense<0.000000e+00> : vector<8x8xf32>
    %376 = tpu.matmul %374, %375, %cst_109 {dimension_numbers = #tpu.dot_dimension_numbers<[1], [0], [0], [1], [0, 0, 1, 1], [], []>} : vector<8x8xf32>, vector<8x8xf32>, vector<8x8xf32> -> vector<8x8xf32>
    %377 = vector.extract_strided_slice %352 {offsets = [0, 8], sizes = [8, 8], strides = [1, 1]} : vector<8x32xf32> to vector<8x8xf32>
    %378 = vector.extract_strided_slice %353 {offsets = [0, 8], sizes = [8, 8], strides = [1, 1]} : vector<8x32xf32> to vector<8x8xf32>
    %cst_110 = arith.constant dense<0.000000e+00> : vector<8x8xf32>
    %379 = tpu.matmul %377, %378, %cst_110 {dimension_numbers = #tpu.dot_dimension_numbers<[1], [1], [0], [0], [0, 0, 1, 0], [], []>} : vector<8x8xf32>, vector<8x8xf32>, vector<8x8xf32> -> vector<8x8xf32>
    %cst_111 = arith.constant 0.353553385 : f32
    %380 = vector.broadcast %cst_111 : f32 to vector<8x8xf32>
    %381 = arith.mulf %379, %380 : vector<8x8xf32>
    %382 = arith.addf %381, %358 : vector<8x8xf32>
    %cst_112 = arith.constant dense<0xFF800000> : vector<8xf32>
    %383 = vector.multi_reduction <maximumf>, %382, %cst_112 [1] : vector<8x8xf32> to vector<8xf32>
    %384 = vector.shape_cast %383 : vector<8xf32> to vector<8x1xf32>
    %385 = vector.broadcast %384 : vector<8x1xf32> to vector<8x8xf32>
    %386 = arith.subf %382, %385 : vector<8x8xf32>
    %387 = math.exp %386 : vector<8x8xf32>
    %cst_113 = arith.constant dense<0.000000e+00> : vector<8xf32>
    %388 = vector.multi_reduction <add>, %387, %cst_113 [1] : vector<8x8xf32> to vector<8xf32>
    %389 = vector.shape_cast %388 : vector<8xf32> to vector<8x1xf32>
    %390 = tpu.reciprocal %389 {approx = true} : vector<8x1xf32> -> vector<8x1xf32>
    %391 = vector.broadcast %390 : vector<8x1xf32> to vector<8x8xf32>
    %392 = arith.mulf %387, %391 : vector<8x8xf32>
    %393 = vector.extract_strided_slice %354 {offsets = [0, 8], sizes = [8, 8], strides = [1, 1]} : vector<8x32xf32> to vector<8x8xf32>
    %cst_114 = arith.constant dense<0.000000e+00> : vector<8x8xf32>
    %394 = tpu.matmul %392, %393, %cst_114 {dimension_numbers = #tpu.dot_dimension_numbers<[1], [0], [0], [1], [0, 0, 1, 1], [], []>} : vector<8x8xf32>, vector<8x8xf32>, vector<8x8xf32> -> vector<8x8xf32>
    %395 = vector.extract_strided_slice %352 {offsets = [0, 16], sizes = [8, 8], strides = [1, 1]} : vector<8x32xf32> to vector<8x8xf32>
    %396 = vector.extract_strided_slice %353 {offsets = [0, 16], sizes = [8, 8], strides = [1, 1]} : vector<8x32xf32> to vector<8x8xf32>
    %cst_115 = arith.constant dense<0.000000e+00> : vector<8x8xf32>
    %397 = tpu.matmul %395, %396, %cst_115 {dimension_numbers = #tpu.dot_dimension_numbers<[1], [1], [0], [0], [0, 0, 1, 0], [], []>} : vector<8x8xf32>, vector<8x8xf32>, vector<8x8xf32> -> vector<8x8xf32>
    %cst_116 = arith.constant 0.353553385 : f32
    %398 = vector.broadcast %cst_116 : f32 to vector<8x8xf32>
    %399 = arith.mulf %397, %398 : vector<8x8xf32>
    %400 = arith.addf %399, %358 : vector<8x8xf32>
    %cst_117 = arith.constant dense<0xFF800000> : vector<8xf32>
    %401 = vector.multi_reduction <maximumf>, %400, %cst_117 [1] : vector<8x8xf32> to vector<8xf32>
    %402 = vector.shape_cast %401 : vector<8xf32> to vector<8x1xf32>
    %403 = vector.broadcast %402 : vector<8x1xf32> to vector<8x8xf32>
    %404 = arith.subf %400, %403 : vector<8x8xf32>
    %405 = math.exp %404 : vector<8x8xf32>
    %cst_118 = arith.constant dense<0.000000e+00> : vector<8xf32>
    %406 = vector.multi_reduction <add>, %405, %cst_118 [1] : vector<8x8xf32> to vector<8xf32>
    %407 = vector.shape_cast %406 : vector<8xf32> to vector<8x1xf32>
    %408 = tpu.reciprocal %407 {approx = true} : vector<8x1xf32> -> vector<8x1xf32>
    %409 = vector.broadcast %408 : vector<8x1xf32> to vector<8x8xf32>
    %410 = arith.mulf %405, %409 : vector<8x8xf32>
    %411 = vector.extract_strided_slice %354 {offsets = [0, 16], sizes = [8, 8], strides = [1, 1]} : vector<8x32xf32> to vector<8x8xf32>
    %cst_119 = arith.constant dense<0.000000e+00> : vector<8x8xf32>
    %412 = tpu.matmul %410, %411, %cst_119 {dimension_numbers = #tpu.dot_dimension_numbers<[1], [0], [0], [1], [0, 0, 1, 1], [], []>} : vector<8x8xf32>, vector<8x8xf32>, vector<8x8xf32> -> vector<8x8xf32>
    %413 = vector.extract_strided_slice %352 {offsets = [0, 24], sizes = [8, 8], strides = [1, 1]} : vector<8x32xf32> to vector<8x8xf32>
    %414 = vector.extract_strided_slice %353 {offsets = [0, 24], sizes = [8, 8], strides = [1, 1]} : vector<8x32xf32> to vector<8x8xf32>
    %cst_120 = arith.constant dense<0.000000e+00> : vector<8x8xf32>
    %415 = tpu.matmul %413, %414, %cst_120 {dimension_numbers = #tpu.dot_dimension_numbers<[1], [1], [0], [0], [0, 0, 1, 0], [], []>} : vector<8x8xf32>, vector<8x8xf32>, vector<8x8xf32> -> vector<8x8xf32>
    %cst_121 = arith.constant 0.353553385 : f32
    %416 = vector.broadcast %cst_121 : f32 to vector<8x8xf32>
    %417 = arith.mulf %415, %416 : vector<8x8xf32>
    %418 = arith.addf %417, %358 : vector<8x8xf32>
    %cst_122 = arith.constant dense<0xFF800000> : vector<8xf32>
    %419 = vector.multi_reduction <maximumf>, %418, %cst_122 [1] : vector<8x8xf32> to vector<8xf32>
    %420 = vector.shape_cast %419 : vector<8xf32> to vector<8x1xf32>
    %421 = vector.broadcast %420 : vector<8x1xf32> to vector<8x8xf32>
    %422 = arith.subf %418, %421 : vector<8x8xf32>
    %423 = math.exp %422 : vector<8x8xf32>
    %cst_123 = arith.constant dense<0.000000e+00> : vector<8xf32>
    %424 = vector.multi_reduction <add>, %423, %cst_123 [1] : vector<8x8xf32> to vector<8xf32>
    %425 = vector.shape_cast %424 : vector<8xf32> to vector<8x1xf32>
    %426 = tpu.reciprocal %425 {approx = true} : vector<8x1xf32> -> vector<8x1xf32>
    %427 = vector.broadcast %426 : vector<8x1xf32> to vector<8x8xf32>
    %428 = arith.mulf %423, %427 : vector<8x8xf32>
    %429 = vector.extract_strided_slice %354 {offsets = [0, 24], sizes = [8, 8], strides = [1, 1]} : vector<8x32xf32> to vector<8x8xf32>
    %cst_124 = arith.constant dense<0.000000e+00> : vector<8x8xf32>
    %430 = tpu.matmul %428, %429, %cst_124 {dimension_numbers = #tpu.dot_dimension_numbers<[1], [0], [0], [1], [0, 0, 1, 1], [], []>} : vector<8x8xf32>, vector<8x8xf32>, vector<8x8xf32> -> vector<8x8xf32>
    %431 = tpu.concatenate %376, %394, %412, %430 in 1 : vector<8x8xf32>, vector<8x8xf32>, vector<8x8xf32>, vector<8x8xf32> -> vector<8x32xf32>
    %432 = vector.extract_strided_slice %341 {offsets = [8, 0], sizes = [8, 32], strides = [1, 1]} : vector<16x32xf32> to vector<8x32xf32>
    %433 = vector.extract_strided_slice %346 {offsets = [8, 0], sizes = [8, 32], strides = [1, 1]} : vector<16x32xf32> to vector<8x32xf32>
    %434 = vector.extract_strided_slice %351 {offsets = [8, 0], sizes = [8, 32], strides = [1, 1]} : vector<16x32xf32> to vector<8x32xf32>
    %c1_125 = arith.constant 1 : index
    %c0_126 = arith.constant 0 : index
    %c0_127 = arith.constant 0 : index
    %435 = vector.load %arg4[%c1_125, %c0_126, %c0_127] : memref<2x1x8xf32, #tpu.memory_space<vmem>>, vector<1x1x8xf32>
    %436 = vector.shape_cast %435 : vector<1x1x8xf32> to vector<1x8xf32>
    %437 = vector.broadcast %436 : vector<1x8xf32> to vector<8x8xf32>
    %438 = arith.addf %312, %437 : vector<8x8xf32>
    %439 = vector.extract_strided_slice %432 {offsets = [0, 0], sizes = [8, 8], strides = [1, 1]} : vector<8x32xf32> to vector<8x8xf32>
    %440 = vector.extract_strided_slice %433 {offsets = [0, 0], sizes = [8, 8], strides = [1, 1]} : vector<8x32xf32> to vector<8x8xf32>
    %cst_128 = arith.constant dense<0.000000e+00> : vector<8x8xf32>
    %441 = tpu.matmul %439, %440, %cst_128 {dimension_numbers = #tpu.dot_dimension_numbers<[1], [1], [0], [0], [0, 0, 1, 0], [], []>} : vector<8x8xf32>, vector<8x8xf32>, vector<8x8xf32> -> vector<8x8xf32>
    %cst_129 = arith.constant 0.353553385 : f32
    %442 = vector.broadcast %cst_129 : f32 to vector<8x8xf32>
    %443 = arith.mulf %441, %442 : vector<8x8xf32>
    %444 = arith.addf %443, %438 : vector<8x8xf32>
    %cst_130 = arith.constant dense<0xFF800000> : vector<8xf32>
    %445 = vector.multi_reduction <maximumf>, %444, %cst_130 [1] : vector<8x8xf32> to vector<8xf32>
    %446 = vector.shape_cast %445 : vector<8xf32> to vector<8x1xf32>
    %447 = vector.broadcast %446 : vector<8x1xf32> to vector<8x8xf32>
    %448 = arith.subf %444, %447 : vector<8x8xf32>
    %449 = math.exp %448 : vector<8x8xf32>
    %cst_131 = arith.constant dense<0.000000e+00> : vector<8xf32>
    %450 = vector.multi_reduction <add>, %449, %cst_131 [1] : vector<8x8xf32> to vector<8xf32>
    %451 = vector.shape_cast %450 : vector<8xf32> to vector<8x1xf32>
    %452 = tpu.reciprocal %451 {approx = true} : vector<8x1xf32> -> vector<8x1xf32>
    %453 = vector.broadcast %452 : vector<8x1xf32> to vector<8x8xf32>
    %454 = arith.mulf %449, %453 : vector<8x8xf32>
    %455 = vector.extract_strided_slice %434 {offsets = [0, 0], sizes = [8, 8], strides = [1, 1]} : vector<8x32xf32> to vector<8x8xf32>
    %cst_132 = arith.constant dense<0.000000e+00> : vector<8x8xf32>
    %456 = tpu.matmul %454, %455, %cst_132 {dimension_numbers = #tpu.dot_dimension_numbers<[1], [0], [0], [1], [0, 0, 1, 1], [], []>} : vector<8x8xf32>, vector<8x8xf32>, vector<8x8xf32> -> vector<8x8xf32>
    %457 = vector.extract_strided_slice %432 {offsets = [0, 8], sizes = [8, 8], strides = [1, 1]} : vector<8x32xf32> to vector<8x8xf32>
    %458 = vector.extract_strided_slice %433 {offsets = [0, 8], sizes = [8, 8], strides = [1, 1]} : vector<8x32xf32> to vector<8x8xf32>
    %cst_133 = arith.constant dense<0.000000e+00> : vector<8x8xf32>
    %459 = tpu.matmul %457, %458, %cst_133 {dimension_numbers = #tpu.dot_dimension_numbers<[1], [1], [0], [0], [0, 0, 1, 0], [], []>} : vector<8x8xf32>, vector<8x8xf32>, vector<8x8xf32> -> vector<8x8xf32>
    %cst_134 = arith.constant 0.353553385 : f32
    %460 = vector.broadcast %cst_134 : f32 to vector<8x8xf32>
    %461 = arith.mulf %459, %460 : vector<8x8xf32>
    %462 = arith.addf %461, %438 : vector<8x8xf32>
    %cst_135 = arith.constant dense<0xFF800000> : vector<8xf32>
    %463 = vector.multi_reduction <maximumf>, %462, %cst_135 [1] : vector<8x8xf32> to vector<8xf32>
    %464 = vector.shape_cast %463 : vector<8xf32> to vector<8x1xf32>
    %465 = vector.broadcast %464 : vector<8x1xf32> to vector<8x8xf32>
    %466 = arith.subf %462, %465 : vector<8x8xf32>
    %467 = math.exp %466 : vector<8x8xf32>
    %cst_136 = arith.constant dense<0.000000e+00> : vector<8xf32>
    %468 = vector.multi_reduction <add>, %467, %cst_136 [1] : vector<8x8xf32> to vector<8xf32>
    %469 = vector.shape_cast %468 : vector<8xf32> to vector<8x1xf32>
    %470 = tpu.reciprocal %469 {approx = true} : vector<8x1xf32> -> vector<8x1xf32>
    %471 = vector.broadcast %470 : vector<8x1xf32> to vector<8x8xf32>
    %472 = arith.mulf %467, %471 : vector<8x8xf32>
    %473 = vector.extract_strided_slice %434 {offsets = [0, 8], sizes = [8, 8], strides = [1, 1]} : vector<8x32xf32> to vector<8x8xf32>
    %cst_137 = arith.constant dense<0.000000e+00> : vector<8x8xf32>
    %474 = tpu.matmul %472, %473, %cst_137 {dimension_numbers = #tpu.dot_dimension_numbers<[1], [0], [0], [1], [0, 0, 1, 1], [], []>} : vector<8x8xf32>, vector<8x8xf32>, vector<8x8xf32> -> vector<8x8xf32>
    %475 = vector.extract_strided_slice %432 {offsets = [0, 16], sizes = [8, 8], strides = [1, 1]} : vector<8x32xf32> to vector<8x8xf32>
    %476 = vector.extract_strided_slice %433 {offsets = [0, 16], sizes = [8, 8], strides = [1, 1]} : vector<8x32xf32> to vector<8x8xf32>
    %cst_138 = arith.constant dense<0.000000e+00> : vector<8x8xf32>
    %477 = tpu.matmul %475, %476, %cst_138 {dimension_numbers = #tpu.dot_dimension_numbers<[1], [1], [0], [0], [0, 0, 1, 0], [], []>} : vector<8x8xf32>, vector<8x8xf32>, vector<8x8xf32> -> vector<8x8xf32>
    %cst_139 = arith.constant 0.353553385 : f32
    %478 = vector.broadcast %cst_139 : f32 to vector<8x8xf32>
    %479 = arith.mulf %477, %478 : vector<8x8xf32>
    %480 = arith.addf %479, %438 : vector<8x8xf32>
    %cst_140 = arith.constant dense<0xFF800000> : vector<8xf32>
    %481 = vector.multi_reduction <maximumf>, %480, %cst_140 [1] : vector<8x8xf32> to vector<8xf32>
    %482 = vector.shape_cast %481 : vector<8xf32> to vector<8x1xf32>
    %483 = vector.broadcast %482 : vector<8x1xf32> to vector<8x8xf32>
    %484 = arith.subf %480, %483 : vector<8x8xf32>
    %485 = math.exp %484 : vector<8x8xf32>
    %cst_141 = arith.constant dense<0.000000e+00> : vector<8xf32>
    %486 = vector.multi_reduction <add>, %485, %cst_141 [1] : vector<8x8xf32> to vector<8xf32>
    %487 = vector.shape_cast %486 : vector<8xf32> to vector<8x1xf32>
    %488 = tpu.reciprocal %487 {approx = true} : vector<8x1xf32> -> vector<8x1xf32>
    %489 = vector.broadcast %488 : vector<8x1xf32> to vector<8x8xf32>
    %490 = arith.mulf %485, %489 : vector<8x8xf32>
    %491 = vector.extract_strided_slice %434 {offsets = [0, 16], sizes = [8, 8], strides = [1, 1]} : vector<8x32xf32> to vector<8x8xf32>
    %cst_142 = arith.constant dense<0.000000e+00> : vector<8x8xf32>
    %492 = tpu.matmul %490, %491, %cst_142 {dimension_numbers = #tpu.dot_dimension_numbers<[1], [0], [0], [1], [0, 0, 1, 1], [], []>} : vector<8x8xf32>, vector<8x8xf32>, vector<8x8xf32> -> vector<8x8xf32>
    %493 = vector.extract_strided_slice %432 {offsets = [0, 24], sizes = [8, 8], strides = [1, 1]} : vector<8x32xf32> to vector<8x8xf32>
    %494 = vector.extract_strided_slice %433 {offsets = [0, 24], sizes = [8, 8], strides = [1, 1]} : vector<8x32xf32> to vector<8x8xf32>
    %cst_143 = arith.constant dense<0.000000e+00> : vector<8x8xf32>
    %495 = tpu.matmul %493, %494, %cst_143 {dimension_numbers = #tpu.dot_dimension_numbers<[1], [1], [0], [0], [0, 0, 1, 0], [], []>} : vector<8x8xf32>, vector<8x8xf32>, vector<8x8xf32> -> vector<8x8xf32>
    %cst_144 = arith.constant 0.353553385 : f32
    %496 = vector.broadcast %cst_144 : f32 to vector<8x8xf32>
    %497 = arith.mulf %495, %496 : vector<8x8xf32>
    %498 = arith.addf %497, %438 : vector<8x8xf32>
    %cst_145 = arith.constant dense<0xFF800000> : vector<8xf32>
    %499 = vector.multi_reduction <maximumf>, %498, %cst_145 [1] : vector<8x8xf32> to vector<8xf32>
    %500 = vector.shape_cast %499 : vector<8xf32> to vector<8x1xf32>
    %501 = vector.broadcast %500 : vector<8x1xf32> to vector<8x8xf32>
    %502 = arith.subf %498, %501 : vector<8x8xf32>
    %503 = math.exp %502 : vector<8x8xf32>
    %cst_146 = arith.constant dense<0.000000e+00> : vector<8xf32>
    %504 = vector.multi_reduction <add>, %503, %cst_146 [1] : vector<8x8xf32> to vector<8xf32>
    %505 = vector.shape_cast %504 : vector<8xf32> to vector<8x1xf32>
    %506 = tpu.reciprocal %505 {approx = true} : vector<8x1xf32> -> vector<8x1xf32>
    %507 = vector.broadcast %506 : vector<8x1xf32> to vector<8x8xf32>
    %508 = arith.mulf %503, %507 : vector<8x8xf32>
    %509 = vector.extract_strided_slice %434 {offsets = [0, 24], sizes = [8, 8], strides = [1, 1]} : vector<8x32xf32> to vector<8x8xf32>
    %cst_147 = arith.constant dense<0.000000e+00> : vector<8x8xf32>
    %510 = tpu.matmul %508, %509, %cst_147 {dimension_numbers = #tpu.dot_dimension_numbers<[1], [0], [0], [1], [0, 0, 1, 1], [], []>} : vector<8x8xf32>, vector<8x8xf32>, vector<8x8xf32> -> vector<8x8xf32>
    %511 = tpu.concatenate %456, %474, %492, %510 in 1 : vector<8x8xf32>, vector<8x8xf32>, vector<8x8xf32>, vector<8x8xf32> -> vector<8x32xf32>
    %512 = tpu.concatenate %431, %511 in 0 : vector<8x32xf32>, vector<8x32xf32> -> vector<16x32xf32>
    %513 = vector.extract_strided_slice %0 {offsets = [224, 0], sizes = [32, 32], strides = [1, 1]} : vector<416x32xf32> to vector<32x32xf32>
    %cst_148 = arith.constant dense<0.000000e+00> : vector<16x32xf32>
    %514 = tpu.matmul %512, %513, %cst_148 {dimension_numbers = #tpu.dot_dimension_numbers<[1], [0], [0], [1], [0, 0, 1, 1], [], []>} : vector<16x32xf32>, vector<32x32xf32>, vector<16x32xf32> -> vector<16x32xf32>
    %515 = vector.extract_strided_slice %1 {offsets = [16, 0], sizes = [1, 32], strides = [1, 1]} : vector<32x32xf32> to vector<1x32xf32>
    %516 = vector.broadcast %515 : vector<1x32xf32> to vector<16x32xf32>
    %517 = arith.addf %514, %516 : vector<16x32xf32>
    %518 = arith.addf %336, %517 : vector<16x32xf32>
    %519 = vector.extract_strided_slice %1 {offsets = [17, 0], sizes = [1, 32], strides = [1, 1]} : vector<32x32xf32> to vector<1x32xf32>
    %520 = vector.extract_strided_slice %1 {offsets = [18, 0], sizes = [1, 32], strides = [1, 1]} : vector<32x32xf32> to vector<1x32xf32>
    %cst_149 = arith.constant dense<0.000000e+00> : vector<16xf32>
    %521 = vector.multi_reduction <add>, %518, %cst_149 [1] : vector<16x32xf32> to vector<16xf32>
    %522 = vector.shape_cast %521 : vector<16xf32> to vector<16x1xf32>
    %cst_150 = arith.constant 3.200000e+01 : f32
    %523 = vector.broadcast %cst_150 : f32 to vector<16x1xf32>
    %524 = arith.divf %522, %523 : vector<16x1xf32>
    %525 = vector.broadcast %524 : vector<16x1xf32> to vector<16x32xf32>
    %526 = arith.subf %518, %525 : vector<16x32xf32>
    %527 = arith.mulf %526, %526 : vector<16x32xf32>
    %cst_151 = arith.constant dense<0.000000e+00> : vector<16xf32>
    %528 = vector.multi_reduction <add>, %527, %cst_151 [1] : vector<16x32xf32> to vector<16xf32>
    %529 = vector.shape_cast %528 : vector<16xf32> to vector<16x1xf32>
    %cst_152 = arith.constant 3.200000e+01 : f32
    %530 = vector.broadcast %cst_152 : f32 to vector<16x1xf32>
    %531 = arith.divf %529, %530 : vector<16x1xf32>
    %532 = vector.broadcast %524 : vector<16x1xf32> to vector<16x32xf32>
    %533 = arith.subf %518, %532 : vector<16x32xf32>
    %cst_153 = arith.constant 9.99999974E-6 : f32
    %534 = vector.broadcast %cst_153 : f32 to vector<16x1xf32>
    %535 = arith.addf %531, %534 : vector<16x1xf32>
    %536 = math.rsqrt %535 : vector<16x1xf32>
    %537 = vector.broadcast %536 : vector<16x1xf32> to vector<16x32xf32>
    %538 = arith.mulf %533, %537 : vector<16x32xf32>
    %539 = vector.broadcast %519 : vector<1x32xf32> to vector<16x32xf32>
    %540 = arith.mulf %538, %539 : vector<16x32xf32>
    %541 = vector.broadcast %520 : vector<1x32xf32> to vector<16x32xf32>
    %542 = arith.addf %540, %541 : vector<16x32xf32>
    %543 = vector.extract_strided_slice %0 {offsets = [256, 0], sizes = [32, 32], strides = [1, 1]} : vector<416x32xf32> to vector<32x32xf32>
    %cst_154 = arith.constant dense<0.000000e+00> : vector<16x32xf32>
    %544 = tpu.matmul %542, %543, %cst_154 {dimension_numbers = #tpu.dot_dimension_numbers<[1], [0], [0], [1], [0, 0, 1, 1], [], []>} : vector<16x32xf32>, vector<32x32xf32>, vector<16x32xf32> -> vector<16x32xf32>
    %545 = vector.extract_strided_slice %1 {offsets = [19, 0], sizes = [1, 32], strides = [1, 1]} : vector<32x32xf32> to vector<1x32xf32>
    %546 = vector.broadcast %545 : vector<1x32xf32> to vector<16x32xf32>
    %547 = arith.addf %544, %546 : vector<16x32xf32>
    %548 = vector.extract_strided_slice %0 {offsets = [288, 0], sizes = [32, 32], strides = [1, 1]} : vector<416x32xf32> to vector<32x32xf32>
    %cst_155 = arith.constant dense<0.000000e+00> : vector<16x32xf32>
    %549 = tpu.matmul %306, %548, %cst_155 {dimension_numbers = #tpu.dot_dimension_numbers<[1], [0], [0], [1], [0, 0, 1, 1], [], []>} : vector<16x32xf32>, vector<32x32xf32>, vector<16x32xf32> -> vector<16x32xf32>
    %550 = vector.extract_strided_slice %1 {offsets = [20, 0], sizes = [1, 32], strides = [1, 1]} : vector<32x32xf32> to vector<1x32xf32>
    %551 = vector.broadcast %550 : vector<1x32xf32> to vector<16x32xf32>
    %552 = arith.addf %549, %551 : vector<16x32xf32>
    %553 = vector.extract_strided_slice %0 {offsets = [320, 0], sizes = [32, 32], strides = [1, 1]} : vector<416x32xf32> to vector<32x32xf32>
    %cst_156 = arith.constant dense<0.000000e+00> : vector<16x32xf32>
    %554 = tpu.matmul %306, %553, %cst_156 {dimension_numbers = #tpu.dot_dimension_numbers<[1], [0], [0], [1], [0, 0, 1, 1], [], []>} : vector<16x32xf32>, vector<32x32xf32>, vector<16x32xf32> -> vector<16x32xf32>
    %555 = vector.extract_strided_slice %1 {offsets = [21, 0], sizes = [1, 32], strides = [1, 1]} : vector<32x32xf32> to vector<1x32xf32>
    %556 = vector.broadcast %555 : vector<1x32xf32> to vector<16x32xf32>
    %557 = arith.addf %554, %556 : vector<16x32xf32>
    %558 = vector.extract_strided_slice %547 {offsets = [0, 0], sizes = [8, 32], strides = [1, 1]} : vector<16x32xf32> to vector<8x32xf32>
    %559 = vector.extract_strided_slice %552 {offsets = [0, 0], sizes = [8, 32], strides = [1, 1]} : vector<16x32xf32> to vector<8x32xf32>
    %560 = vector.extract_strided_slice %557 {offsets = [0, 0], sizes = [8, 32], strides = [1, 1]} : vector<16x32xf32> to vector<8x32xf32>
    %c0_157 = arith.constant 0 : index
    %c0_158 = arith.constant 0 : index
    %c0_159 = arith.constant 0 : index
    %561 = vector.load %arg3[%c0_157, %c0_158, %c0_159] : memref<2x1x8xf32, #tpu.memory_space<vmem>>, vector<1x1x8xf32>
    %562 = vector.shape_cast %561 : vector<1x1x8xf32> to vector<1x8xf32>
    %563 = vector.extract_strided_slice %558 {offsets = [0, 0], sizes = [8, 8], strides = [1, 1]} : vector<8x32xf32> to vector<8x8xf32>
    %564 = vector.extract_strided_slice %559 {offsets = [0, 0], sizes = [8, 8], strides = [1, 1]} : vector<8x32xf32> to vector<8x8xf32>
    %cst_160 = arith.constant dense<0.000000e+00> : vector<8x8xf32>
    %565 = tpu.matmul %563, %564, %cst_160 {dimension_numbers = #tpu.dot_dimension_numbers<[1], [1], [0], [0], [0, 0, 1, 0], [], []>} : vector<8x8xf32>, vector<8x8xf32>, vector<8x8xf32> -> vector<8x8xf32>
    %cst_161 = arith.constant 0.353553385 : f32
    %566 = vector.broadcast %cst_161 : f32 to vector<8x8xf32>
    %567 = arith.mulf %565, %566 : vector<8x8xf32>
    %568 = vector.broadcast %562 : vector<1x8xf32> to vector<8x8xf32>
    %569 = arith.addf %567, %568 : vector<8x8xf32>
    %cst_162 = arith.constant dense<0xFF800000> : vector<8xf32>
    %570 = vector.multi_reduction <maximumf>, %569, %cst_162 [1] : vector<8x8xf32> to vector<8xf32>
    %571 = vector.shape_cast %570 : vector<8xf32> to vector<8x1xf32>
    %572 = vector.broadcast %571 : vector<8x1xf32> to vector<8x8xf32>
    %573 = arith.subf %569, %572 : vector<8x8xf32>
    %574 = math.exp %573 : vector<8x8xf32>
    %cst_163 = arith.constant dense<0.000000e+00> : vector<8xf32>
    %575 = vector.multi_reduction <add>, %574, %cst_163 [1] : vector<8x8xf32> to vector<8xf32>
    %576 = vector.shape_cast %575 : vector<8xf32> to vector<8x1xf32>
    %577 = tpu.reciprocal %576 {approx = true} : vector<8x1xf32> -> vector<8x1xf32>
    %578 = vector.broadcast %577 : vector<8x1xf32> to vector<8x8xf32>
    %579 = arith.mulf %574, %578 : vector<8x8xf32>
    %580 = vector.extract_strided_slice %560 {offsets = [0, 0], sizes = [8, 8], strides = [1, 1]} : vector<8x32xf32> to vector<8x8xf32>
    %cst_164 = arith.constant dense<0.000000e+00> : vector<8x8xf32>
    %581 = tpu.matmul %579, %580, %cst_164 {dimension_numbers = #tpu.dot_dimension_numbers<[1], [0], [0], [1], [0, 0, 1, 1], [], []>} : vector<8x8xf32>, vector<8x8xf32>, vector<8x8xf32> -> vector<8x8xf32>
    %582 = vector.extract_strided_slice %558 {offsets = [0, 8], sizes = [8, 8], strides = [1, 1]} : vector<8x32xf32> to vector<8x8xf32>
    %583 = vector.extract_strided_slice %559 {offsets = [0, 8], sizes = [8, 8], strides = [1, 1]} : vector<8x32xf32> to vector<8x8xf32>
    %cst_165 = arith.constant dense<0.000000e+00> : vector<8x8xf32>
    %584 = tpu.matmul %582, %583, %cst_165 {dimension_numbers = #tpu.dot_dimension_numbers<[1], [1], [0], [0], [0, 0, 1, 0], [], []>} : vector<8x8xf32>, vector<8x8xf32>, vector<8x8xf32> -> vector<8x8xf32>
    %cst_166 = arith.constant 0.353553385 : f32
    %585 = vector.broadcast %cst_166 : f32 to vector<8x8xf32>
    %586 = arith.mulf %584, %585 : vector<8x8xf32>
    %587 = vector.broadcast %562 : vector<1x8xf32> to vector<8x8xf32>
    %588 = arith.addf %586, %587 : vector<8x8xf32>
    %cst_167 = arith.constant dense<0xFF800000> : vector<8xf32>
    %589 = vector.multi_reduction <maximumf>, %588, %cst_167 [1] : vector<8x8xf32> to vector<8xf32>
    %590 = vector.shape_cast %589 : vector<8xf32> to vector<8x1xf32>
    %591 = vector.broadcast %590 : vector<8x1xf32> to vector<8x8xf32>
    %592 = arith.subf %588, %591 : vector<8x8xf32>
    %593 = math.exp %592 : vector<8x8xf32>
    %cst_168 = arith.constant dense<0.000000e+00> : vector<8xf32>
    %594 = vector.multi_reduction <add>, %593, %cst_168 [1] : vector<8x8xf32> to vector<8xf32>
    %595 = vector.shape_cast %594 : vector<8xf32> to vector<8x1xf32>
    %596 = tpu.reciprocal %595 {approx = true} : vector<8x1xf32> -> vector<8x1xf32>
    %597 = vector.broadcast %596 : vector<8x1xf32> to vector<8x8xf32>
    %598 = arith.mulf %593, %597 : vector<8x8xf32>
    %599 = vector.extract_strided_slice %560 {offsets = [0, 8], sizes = [8, 8], strides = [1, 1]} : vector<8x32xf32> to vector<8x8xf32>
    %cst_169 = arith.constant dense<0.000000e+00> : vector<8x8xf32>
    %600 = tpu.matmul %598, %599, %cst_169 {dimension_numbers = #tpu.dot_dimension_numbers<[1], [0], [0], [1], [0, 0, 1, 1], [], []>} : vector<8x8xf32>, vector<8x8xf32>, vector<8x8xf32> -> vector<8x8xf32>
    %601 = vector.extract_strided_slice %558 {offsets = [0, 16], sizes = [8, 8], strides = [1, 1]} : vector<8x32xf32> to vector<8x8xf32>
    %602 = vector.extract_strided_slice %559 {offsets = [0, 16], sizes = [8, 8], strides = [1, 1]} : vector<8x32xf32> to vector<8x8xf32>
    %cst_170 = arith.constant dense<0.000000e+00> : vector<8x8xf32>
    %603 = tpu.matmul %601, %602, %cst_170 {dimension_numbers = #tpu.dot_dimension_numbers<[1], [1], [0], [0], [0, 0, 1, 0], [], []>} : vector<8x8xf32>, vector<8x8xf32>, vector<8x8xf32> -> vector<8x8xf32>
    %cst_171 = arith.constant 0.353553385 : f32
    %604 = vector.broadcast %cst_171 : f32 to vector<8x8xf32>
    %605 = arith.mulf %603, %604 : vector<8x8xf32>
    %606 = vector.broadcast %562 : vector<1x8xf32> to vector<8x8xf32>
    %607 = arith.addf %605, %606 : vector<8x8xf32>
    %cst_172 = arith.constant dense<0xFF800000> : vector<8xf32>
    %608 = vector.multi_reduction <maximumf>, %607, %cst_172 [1] : vector<8x8xf32> to vector<8xf32>
    %609 = vector.shape_cast %608 : vector<8xf32> to vector<8x1xf32>
    %610 = vector.broadcast %609 : vector<8x1xf32> to vector<8x8xf32>
    %611 = arith.subf %607, %610 : vector<8x8xf32>
    %612 = math.exp %611 : vector<8x8xf32>
    %cst_173 = arith.constant dense<0.000000e+00> : vector<8xf32>
    %613 = vector.multi_reduction <add>, %612, %cst_173 [1] : vector<8x8xf32> to vector<8xf32>
    %614 = vector.shape_cast %613 : vector<8xf32> to vector<8x1xf32>
    %615 = tpu.reciprocal %614 {approx = true} : vector<8x1xf32> -> vector<8x1xf32>
    %616 = vector.broadcast %615 : vector<8x1xf32> to vector<8x8xf32>
    %617 = arith.mulf %612, %616 : vector<8x8xf32>
    %618 = vector.extract_strided_slice %560 {offsets = [0, 16], sizes = [8, 8], strides = [1, 1]} : vector<8x32xf32> to vector<8x8xf32>
    %cst_174 = arith.constant dense<0.000000e+00> : vector<8x8xf32>
    %619 = tpu.matmul %617, %618, %cst_174 {dimension_numbers = #tpu.dot_dimension_numbers<[1], [0], [0], [1], [0, 0, 1, 1], [], []>} : vector<8x8xf32>, vector<8x8xf32>, vector<8x8xf32> -> vector<8x8xf32>
    %620 = vector.extract_strided_slice %558 {offsets = [0, 24], sizes = [8, 8], strides = [1, 1]} : vector<8x32xf32> to vector<8x8xf32>
    %621 = vector.extract_strided_slice %559 {offsets = [0, 24], sizes = [8, 8], strides = [1, 1]} : vector<8x32xf32> to vector<8x8xf32>
    %cst_175 = arith.constant dense<0.000000e+00> : vector<8x8xf32>
    %622 = tpu.matmul %620, %621, %cst_175 {dimension_numbers = #tpu.dot_dimension_numbers<[1], [1], [0], [0], [0, 0, 1, 0], [], []>} : vector<8x8xf32>, vector<8x8xf32>, vector<8x8xf32> -> vector<8x8xf32>
    %cst_176 = arith.constant 0.353553385 : f32
    %623 = vector.broadcast %cst_176 : f32 to vector<8x8xf32>
    %624 = arith.mulf %622, %623 : vector<8x8xf32>
    %625 = vector.broadcast %562 : vector<1x8xf32> to vector<8x8xf32>
    %626 = arith.addf %624, %625 : vector<8x8xf32>
    %cst_177 = arith.constant dense<0xFF800000> : vector<8xf32>
    %627 = vector.multi_reduction <maximumf>, %626, %cst_177 [1] : vector<8x8xf32> to vector<8xf32>
    %628 = vector.shape_cast %627 : vector<8xf32> to vector<8x1xf32>
    %629 = vector.broadcast %628 : vector<8x1xf32> to vector<8x8xf32>
    %630 = arith.subf %626, %629 : vector<8x8xf32>
    %631 = math.exp %630 : vector<8x8xf32>
    %cst_178 = arith.constant dense<0.000000e+00> : vector<8xf32>
    %632 = vector.multi_reduction <add>, %631, %cst_178 [1] : vector<8x8xf32> to vector<8xf32>
    %633 = vector.shape_cast %632 : vector<8xf32> to vector<8x1xf32>
    %634 = tpu.reciprocal %633 {approx = true} : vector<8x1xf32> -> vector<8x1xf32>
    %635 = vector.broadcast %634 : vector<8x1xf32> to vector<8x8xf32>
    %636 = arith.mulf %631, %635 : vector<8x8xf32>
    %637 = vector.extract_strided_slice %560 {offsets = [0, 24], sizes = [8, 8], strides = [1, 1]} : vector<8x32xf32> to vector<8x8xf32>
    %cst_179 = arith.constant dense<0.000000e+00> : vector<8x8xf32>
    %638 = tpu.matmul %636, %637, %cst_179 {dimension_numbers = #tpu.dot_dimension_numbers<[1], [0], [0], [1], [0, 0, 1, 1], [], []>} : vector<8x8xf32>, vector<8x8xf32>, vector<8x8xf32> -> vector<8x8xf32>
    %639 = tpu.concatenate %581, %600, %619, %638 in 1 : vector<8x8xf32>, vector<8x8xf32>, vector<8x8xf32>, vector<8x8xf32> -> vector<8x32xf32>
    %640 = vector.extract_strided_slice %547 {offsets = [8, 0], sizes = [8, 32], strides = [1, 1]} : vector<16x32xf32> to vector<8x32xf32>
    %641 = vector.extract_strided_slice %552 {offsets = [8, 0], sizes = [8, 32], strides = [1, 1]} : vector<16x32xf32> to vector<8x32xf32>
    %642 = vector.extract_strided_slice %557 {offsets = [8, 0], sizes = [8, 32], strides = [1, 1]} : vector<16x32xf32> to vector<8x32xf32>
    %c1_180 = arith.constant 1 : index
    %c0_181 = arith.constant 0 : index
    %c0_182 = arith.constant 0 : index
    %643 = vector.load %arg3[%c1_180, %c0_181, %c0_182] : memref<2x1x8xf32, #tpu.memory_space<vmem>>, vector<1x1x8xf32>
    %644 = vector.shape_cast %643 : vector<1x1x8xf32> to vector<1x8xf32>
    %645 = vector.extract_strided_slice %640 {offsets = [0, 0], sizes = [8, 8], strides = [1, 1]} : vector<8x32xf32> to vector<8x8xf32>
    %646 = vector.extract_strided_slice %641 {offsets = [0, 0], sizes = [8, 8], strides = [1, 1]} : vector<8x32xf32> to vector<8x8xf32>
    %cst_183 = arith.constant dense<0.000000e+00> : vector<8x8xf32>
    %647 = tpu.matmul %645, %646, %cst_183 {dimension_numbers = #tpu.dot_dimension_numbers<[1], [1], [0], [0], [0, 0, 1, 0], [], []>} : vector<8x8xf32>, vector<8x8xf32>, vector<8x8xf32> -> vector<8x8xf32>
    %cst_184 = arith.constant 0.353553385 : f32
    %648 = vector.broadcast %cst_184 : f32 to vector<8x8xf32>
    %649 = arith.mulf %647, %648 : vector<8x8xf32>
    %650 = vector.broadcast %644 : vector<1x8xf32> to vector<8x8xf32>
    %651 = arith.addf %649, %650 : vector<8x8xf32>
    %cst_185 = arith.constant dense<0xFF800000> : vector<8xf32>
    %652 = vector.multi_reduction <maximumf>, %651, %cst_185 [1] : vector<8x8xf32> to vector<8xf32>
    %653 = vector.shape_cast %652 : vector<8xf32> to vector<8x1xf32>
    %654 = vector.broadcast %653 : vector<8x1xf32> to vector<8x8xf32>
    %655 = arith.subf %651, %654 : vector<8x8xf32>
    %656 = math.exp %655 : vector<8x8xf32>
    %cst_186 = arith.constant dense<0.000000e+00> : vector<8xf32>
    %657 = vector.multi_reduction <add>, %656, %cst_186 [1] : vector<8x8xf32> to vector<8xf32>
    %658 = vector.shape_cast %657 : vector<8xf32> to vector<8x1xf32>
    %659 = tpu.reciprocal %658 {approx = true} : vector<8x1xf32> -> vector<8x1xf32>
    %660 = vector.broadcast %659 : vector<8x1xf32> to vector<8x8xf32>
    %661 = arith.mulf %656, %660 : vector<8x8xf32>
    %662 = vector.extract_strided_slice %642 {offsets = [0, 0], sizes = [8, 8], strides = [1, 1]} : vector<8x32xf32> to vector<8x8xf32>
    %cst_187 = arith.constant dense<0.000000e+00> : vector<8x8xf32>
    %663 = tpu.matmul %661, %662, %cst_187 {dimension_numbers = #tpu.dot_dimension_numbers<[1], [0], [0], [1], [0, 0, 1, 1], [], []>} : vector<8x8xf32>, vector<8x8xf32>, vector<8x8xf32> -> vector<8x8xf32>
    %664 = vector.extract_strided_slice %640 {offsets = [0, 8], sizes = [8, 8], strides = [1, 1]} : vector<8x32xf32> to vector<8x8xf32>
    %665 = vector.extract_strided_slice %641 {offsets = [0, 8], sizes = [8, 8], strides = [1, 1]} : vector<8x32xf32> to vector<8x8xf32>
    %cst_188 = arith.constant dense<0.000000e+00> : vector<8x8xf32>
    %666 = tpu.matmul %664, %665, %cst_188 {dimension_numbers = #tpu.dot_dimension_numbers<[1], [1], [0], [0], [0, 0, 1, 0], [], []>} : vector<8x8xf32>, vector<8x8xf32>, vector<8x8xf32> -> vector<8x8xf32>
    %cst_189 = arith.constant 0.353553385 : f32
    %667 = vector.broadcast %cst_189 : f32 to vector<8x8xf32>
    %668 = arith.mulf %666, %667 : vector<8x8xf32>
    %669 = vector.broadcast %644 : vector<1x8xf32> to vector<8x8xf32>
    %670 = arith.addf %668, %669 : vector<8x8xf32>
    %cst_190 = arith.constant dense<0xFF800000> : vector<8xf32>
    %671 = vector.multi_reduction <maximumf>, %670, %cst_190 [1] : vector<8x8xf32> to vector<8xf32>
    %672 = vector.shape_cast %671 : vector<8xf32> to vector<8x1xf32>
    %673 = vector.broadcast %672 : vector<8x1xf32> to vector<8x8xf32>
    %674 = arith.subf %670, %673 : vector<8x8xf32>
    %675 = math.exp %674 : vector<8x8xf32>
    %cst_191 = arith.constant dense<0.000000e+00> : vector<8xf32>
    %676 = vector.multi_reduction <add>, %675, %cst_191 [1] : vector<8x8xf32> to vector<8xf32>
    %677 = vector.shape_cast %676 : vector<8xf32> to vector<8x1xf32>
    %678 = tpu.reciprocal %677 {approx = true} : vector<8x1xf32> -> vector<8x1xf32>
    %679 = vector.broadcast %678 : vector<8x1xf32> to vector<8x8xf32>
    %680 = arith.mulf %675, %679 : vector<8x8xf32>
    %681 = vector.extract_strided_slice %642 {offsets = [0, 8], sizes = [8, 8], strides = [1, 1]} : vector<8x32xf32> to vector<8x8xf32>
    %cst_192 = arith.constant dense<0.000000e+00> : vector<8x8xf32>
    %682 = tpu.matmul %680, %681, %cst_192 {dimension_numbers = #tpu.dot_dimension_numbers<[1], [0], [0], [1], [0, 0, 1, 1], [], []>} : vector<8x8xf32>, vector<8x8xf32>, vector<8x8xf32> -> vector<8x8xf32>
    %683 = vector.extract_strided_slice %640 {offsets = [0, 16], sizes = [8, 8], strides = [1, 1]} : vector<8x32xf32> to vector<8x8xf32>
    %684 = vector.extract_strided_slice %641 {offsets = [0, 16], sizes = [8, 8], strides = [1, 1]} : vector<8x32xf32> to vector<8x8xf32>
    %cst_193 = arith.constant dense<0.000000e+00> : vector<8x8xf32>
    %685 = tpu.matmul %683, %684, %cst_193 {dimension_numbers = #tpu.dot_dimension_numbers<[1], [1], [0], [0], [0, 0, 1, 0], [], []>} : vector<8x8xf32>, vector<8x8xf32>, vector<8x8xf32> -> vector<8x8xf32>
    %cst_194 = arith.constant 0.353553385 : f32
    %686 = vector.broadcast %cst_194 : f32 to vector<8x8xf32>
    %687 = arith.mulf %685, %686 : vector<8x8xf32>
    %688 = vector.broadcast %644 : vector<1x8xf32> to vector<8x8xf32>
    %689 = arith.addf %687, %688 : vector<8x8xf32>
    %cst_195 = arith.constant dense<0xFF800000> : vector<8xf32>
    %690 = vector.multi_reduction <maximumf>, %689, %cst_195 [1] : vector<8x8xf32> to vector<8xf32>
    %691 = vector.shape_cast %690 : vector<8xf32> to vector<8x1xf32>
    %692 = vector.broadcast %691 : vector<8x1xf32> to vector<8x8xf32>
    %693 = arith.subf %689, %692 : vector<8x8xf32>
    %694 = math.exp %693 : vector<8x8xf32>
    %cst_196 = arith.constant dense<0.000000e+00> : vector<8xf32>
    %695 = vector.multi_reduction <add>, %694, %cst_196 [1] : vector<8x8xf32> to vector<8xf32>
    %696 = vector.shape_cast %695 : vector<8xf32> to vector<8x1xf32>
    %697 = tpu.reciprocal %696 {approx = true} : vector<8x1xf32> -> vector<8x1xf32>
    %698 = vector.broadcast %697 : vector<8x1xf32> to vector<8x8xf32>
    %699 = arith.mulf %694, %698 : vector<8x8xf32>
    %700 = vector.extract_strided_slice %642 {offsets = [0, 16], sizes = [8, 8], strides = [1, 1]} : vector<8x32xf32> to vector<8x8xf32>
    %cst_197 = arith.constant dense<0.000000e+00> : vector<8x8xf32>
    %701 = tpu.matmul %699, %700, %cst_197 {dimension_numbers = #tpu.dot_dimension_numbers<[1], [0], [0], [1], [0, 0, 1, 1], [], []>} : vector<8x8xf32>, vector<8x8xf32>, vector<8x8xf32> -> vector<8x8xf32>
    %702 = vector.extract_strided_slice %640 {offsets = [0, 24], sizes = [8, 8], strides = [1, 1]} : vector<8x32xf32> to vector<8x8xf32>
    %703 = vector.extract_strided_slice %641 {offsets = [0, 24], sizes = [8, 8], strides = [1, 1]} : vector<8x32xf32> to vector<8x8xf32>
    %cst_198 = arith.constant dense<0.000000e+00> : vector<8x8xf32>
    %704 = tpu.matmul %702, %703, %cst_198 {dimension_numbers = #tpu.dot_dimension_numbers<[1], [1], [0], [0], [0, 0, 1, 0], [], []>} : vector<8x8xf32>, vector<8x8xf32>, vector<8x8xf32> -> vector<8x8xf32>
    %cst_199 = arith.constant 0.353553385 : f32
    %705 = vector.broadcast %cst_199 : f32 to vector<8x8xf32>
    %706 = arith.mulf %704, %705 : vector<8x8xf32>
    %707 = vector.broadcast %644 : vector<1x8xf32> to vector<8x8xf32>
    %708 = arith.addf %706, %707 : vector<8x8xf32>
    %cst_200 = arith.constant dense<0xFF800000> : vector<8xf32>
    %709 = vector.multi_reduction <maximumf>, %708, %cst_200 [1] : vector<8x8xf32> to vector<8xf32>
    %710 = vector.shape_cast %709 : vector<8xf32> to vector<8x1xf32>
    %711 = vector.broadcast %710 : vector<8x1xf32> to vector<8x8xf32>
    %712 = arith.subf %708, %711 : vector<8x8xf32>
    %713 = math.exp %712 : vector<8x8xf32>
    %cst_201 = arith.constant dense<0.000000e+00> : vector<8xf32>
    %714 = vector.multi_reduction <add>, %713, %cst_201 [1] : vector<8x8xf32> to vector<8xf32>
    %715 = vector.shape_cast %714 : vector<8xf32> to vector<8x1xf32>
    %716 = tpu.reciprocal %715 {approx = true} : vector<8x1xf32> -> vector<8x1xf32>
    %717 = vector.broadcast %716 : vector<8x1xf32> to vector<8x8xf32>
    %718 = arith.mulf %713, %717 : vector<8x8xf32>
    %719 = vector.extract_strided_slice %642 {offsets = [0, 24], sizes = [8, 8], strides = [1, 1]} : vector<8x32xf32> to vector<8x8xf32>
    %cst_202 = arith.constant dense<0.000000e+00> : vector<8x8xf32>
    %720 = tpu.matmul %718, %719, %cst_202 {dimension_numbers = #tpu.dot_dimension_numbers<[1], [0], [0], [1], [0, 0, 1, 1], [], []>} : vector<8x8xf32>, vector<8x8xf32>, vector<8x8xf32> -> vector<8x8xf32>
    %721 = tpu.concatenate %663, %682, %701, %720 in 1 : vector<8x8xf32>, vector<8x8xf32>, vector<8x8xf32>, vector<8x8xf32> -> vector<8x32xf32>
    %722 = tpu.concatenate %639, %721 in 0 : vector<8x32xf32>, vector<8x32xf32> -> vector<16x32xf32>
    %723 = vector.extract_strided_slice %0 {offsets = [352, 0], sizes = [32, 32], strides = [1, 1]} : vector<416x32xf32> to vector<32x32xf32>
    %cst_203 = arith.constant dense<0.000000e+00> : vector<16x32xf32>
    %724 = tpu.matmul %722, %723, %cst_203 {dimension_numbers = #tpu.dot_dimension_numbers<[1], [0], [0], [1], [0, 0, 1, 1], [], []>} : vector<16x32xf32>, vector<32x32xf32>, vector<16x32xf32> -> vector<16x32xf32>
    %725 = vector.extract_strided_slice %1 {offsets = [22, 0], sizes = [1, 32], strides = [1, 1]} : vector<32x32xf32> to vector<1x32xf32>
    %726 = vector.broadcast %725 : vector<1x32xf32> to vector<16x32xf32>
    %727 = arith.addf %724, %726 : vector<16x32xf32>
    %728 = arith.addf %542, %727 : vector<16x32xf32>
    %729 = vector.extract_strided_slice %1 {offsets = [23, 0], sizes = [1, 32], strides = [1, 1]} : vector<32x32xf32> to vector<1x32xf32>
    %730 = vector.extract_strided_slice %1 {offsets = [24, 0], sizes = [1, 32], strides = [1, 1]} : vector<32x32xf32> to vector<1x32xf32>
    %cst_204 = arith.constant dense<0.000000e+00> : vector<16xf32>
    %731 = vector.multi_reduction <add>, %728, %cst_204 [1] : vector<16x32xf32> to vector<16xf32>
    %732 = vector.shape_cast %731 : vector<16xf32> to vector<16x1xf32>
    %cst_205 = arith.constant 3.200000e+01 : f32
    %733 = vector.broadcast %cst_205 : f32 to vector<16x1xf32>
    %734 = arith.divf %732, %733 : vector<16x1xf32>
    %735 = vector.broadcast %734 : vector<16x1xf32> to vector<16x32xf32>
    %736 = arith.subf %728, %735 : vector<16x32xf32>
    %737 = arith.mulf %736, %736 : vector<16x32xf32>
    %cst_206 = arith.constant dense<0.000000e+00> : vector<16xf32>
    %738 = vector.multi_reduction <add>, %737, %cst_206 [1] : vector<16x32xf32> to vector<16xf32>
    %739 = vector.shape_cast %738 : vector<16xf32> to vector<16x1xf32>
    %cst_207 = arith.constant 3.200000e+01 : f32
    %740 = vector.broadcast %cst_207 : f32 to vector<16x1xf32>
    %741 = arith.divf %739, %740 : vector<16x1xf32>
    %742 = vector.broadcast %734 : vector<16x1xf32> to vector<16x32xf32>
    %743 = arith.subf %728, %742 : vector<16x32xf32>
    %cst_208 = arith.constant 9.99999974E-6 : f32
    %744 = vector.broadcast %cst_208 : f32 to vector<16x1xf32>
    %745 = arith.addf %741, %744 : vector<16x1xf32>
    %746 = math.rsqrt %745 : vector<16x1xf32>
    %747 = vector.broadcast %746 : vector<16x1xf32> to vector<16x32xf32>
    %748 = arith.mulf %743, %747 : vector<16x32xf32>
    %749 = vector.broadcast %729 : vector<1x32xf32> to vector<16x32xf32>
    %750 = arith.mulf %748, %749 : vector<16x32xf32>
    %751 = vector.broadcast %730 : vector<1x32xf32> to vector<16x32xf32>
    %752 = arith.addf %750, %751 : vector<16x32xf32>
    %c32 = arith.constant 32 : index
    %c0_209 = arith.constant 0 : index
    %753 = vector.load %arg8[%c32, %c0_209] : memref<64x64xf32, #tpu.memory_space<vmem>>, vector<32x64xf32>
    %cst_210 = arith.constant dense<0.000000e+00> : vector<16x64xf32>
    %754 = tpu.matmul %752, %753, %cst_210 {dimension_numbers = #tpu.dot_dimension_numbers<[1], [0], [0], [1], [0, 0, 1, 1], [], []>} : vector<16x32xf32>, vector<32x64xf32>, vector<16x64xf32> -> vector<16x64xf32>
    %755 = vector.extract_strided_slice %2 {offsets = [1, 0], sizes = [1, 64], strides = [1, 1]} : vector<2x64xf32> to vector<1x64xf32>
    %756 = vector.broadcast %755 : vector<1x64xf32> to vector<16x64xf32>
    %757 = arith.addf %754, %756 : vector<16x64xf32>
    %758 = arith.mulf %757, %757 : vector<16x64xf32>
    %759 = arith.mulf %757, %758 : vector<16x64xf32>
    %cst_211 = arith.constant 4.471500e-02 : f32
    %760 = vector.broadcast %cst_211 : f32 to vector<16x64xf32>
    %761 = arith.mulf %760, %759 : vector<16x64xf32>
    %762 = arith.addf %757, %761 : vector<16x64xf32>
    %cst_212 = arith.constant 0.797884583 : f32
    %763 = vector.broadcast %cst_212 : f32 to vector<16x64xf32>
    %764 = arith.mulf %763, %762 : vector<16x64xf32>
    %765 = math.tanh %764 : vector<16x64xf32>
    %cst_213 = arith.constant 1.000000e+00 : f32
    %766 = vector.broadcast %cst_213 : f32 to vector<16x64xf32>
    %767 = arith.addf %766, %765 : vector<16x64xf32>
    %cst_214 = arith.constant 5.000000e-01 : f32
    %768 = vector.broadcast %cst_214 : f32 to vector<16x64xf32>
    %769 = arith.mulf %768, %767 : vector<16x64xf32>
    %770 = arith.mulf %757, %769 : vector<16x64xf32>
    %c64 = arith.constant 64 : index
    %c0_215 = arith.constant 0 : index
    %771 = vector.load %arg9[%c64, %c0_215] : memref<128x32xf32, #tpu.memory_space<vmem>>, vector<64x32xf32>
    %cst_216 = arith.constant dense<0.000000e+00> : vector<16x32xf32>
    %772 = tpu.matmul %770, %771, %cst_216 {dimension_numbers = #tpu.dot_dimension_numbers<[1], [0], [0], [1], [0, 0, 1, 1], [], []>} : vector<16x64xf32>, vector<64x32xf32>, vector<16x32xf32> -> vector<16x32xf32>
    %773 = vector.extract_strided_slice %1 {offsets = [25, 0], sizes = [1, 32], strides = [1, 1]} : vector<32x32xf32> to vector<1x32xf32>
    %774 = vector.broadcast %773 : vector<1x32xf32> to vector<16x32xf32>
    %775 = arith.addf %772, %774 : vector<16x32xf32>
    %776 = arith.addf %752, %775 : vector<16x32xf32>
    %777 = vector.extract_strided_slice %1 {offsets = [26, 0], sizes = [1, 32], strides = [1, 1]} : vector<32x32xf32> to vector<1x32xf32>
    %778 = vector.extract_strided_slice %1 {offsets = [27, 0], sizes = [1, 32], strides = [1, 1]} : vector<32x32xf32> to vector<1x32xf32>
    %cst_217 = arith.constant dense<0.000000e+00> : vector<16xf32>
    %779 = vector.multi_reduction <add>, %776, %cst_217 [1] : vector<16x32xf32> to vector<16xf32>
    %780 = vector.shape_cast %779 : vector<16xf32> to vector<16x1xf32>
    %cst_218 = arith.constant 3.200000e+01 : f32
    %781 = vector.broadcast %cst_218 : f32 to vector<16x1xf32>
    %782 = arith.divf %780, %781 : vector<16x1xf32>
    %783 = vector.broadcast %782 : vector<16x1xf32> to vector<16x32xf32>
    %784 = arith.subf %776, %783 : vector<16x32xf32>
    %785 = arith.mulf %784, %784 : vector<16x32xf32>
    %cst_219 = arith.constant dense<0.000000e+00> : vector<16xf32>
    %786 = vector.multi_reduction <add>, %785, %cst_219 [1] : vector<16x32xf32> to vector<16xf32>
    %787 = vector.shape_cast %786 : vector<16xf32> to vector<16x1xf32>
    %cst_220 = arith.constant 3.200000e+01 : f32
    %788 = vector.broadcast %cst_220 : f32 to vector<16x1xf32>
    %789 = arith.divf %787, %788 : vector<16x1xf32>
    %790 = vector.broadcast %782 : vector<16x1xf32> to vector<16x32xf32>
    %791 = arith.subf %776, %790 : vector<16x32xf32>
    %cst_221 = arith.constant 9.99999974E-6 : f32
    %792 = vector.broadcast %cst_221 : f32 to vector<16x1xf32>
    %793 = arith.addf %789, %792 : vector<16x1xf32>
    %794 = math.rsqrt %793 : vector<16x1xf32>
    %795 = vector.broadcast %794 : vector<16x1xf32> to vector<16x32xf32>
    %796 = arith.mulf %791, %795 : vector<16x32xf32>
    %797 = vector.broadcast %777 : vector<1x32xf32> to vector<16x32xf32>
    %798 = arith.mulf %796, %797 : vector<16x32xf32>
    %799 = vector.broadcast %778 : vector<1x32xf32> to vector<16x32xf32>
    %800 = arith.addf %798, %799 : vector<16x32xf32>
    %c0_222 = arith.constant 0 : index
    %c0_223 = arith.constant 0 : index
    %801 = vector.load %arg10[%c0_222, %c0_223] : memref<32x512xf32, #tpu.memory_space<vmem>>, vector<32x512xf32>
    %cst_224 = arith.constant dense<0.000000e+00> : vector<16x512xf32>
    %802 = tpu.matmul %800, %801, %cst_224 {dimension_numbers = #tpu.dot_dimension_numbers<[1], [0], [0], [1], [0, 0, 1, 1], [], []>} : vector<16x32xf32>, vector<32x512xf32>, vector<16x512xf32> -> vector<16x512xf32>
    %803 = vector.extract_strided_slice %3 {offsets = [0, 0], sizes = [1, 512], strides = [1, 1]} : vector<2x512xf32> to vector<1x512xf32>
    %804 = vector.broadcast %803 : vector<1x512xf32> to vector<16x512xf32>
    %805 = arith.addf %802, %804 : vector<16x512xf32>
    %cst_225 = arith.constant 0.000000e+00 : f32
    %806 = vector.broadcast %cst_225 : f32 to vector<16x512xf32>
    %807 = arith.maximumf %805, %806 : vector<16x512xf32>
    %c0_226 = arith.constant 0 : index
    %c0_227 = arith.constant 0 : index
    %808 = vector.load %arg11[%c0_226, %c0_227] : memref<512x512xf32, #tpu.memory_space<vmem>>, vector<512x512xf32>
    %cst_228 = arith.constant dense<0.000000e+00> : vector<16x512xf32>
    %809 = tpu.matmul %807, %808, %cst_228 {dimension_numbers = #tpu.dot_dimension_numbers<[1], [0], [0], [1], [0, 0, 1, 1], [], []>} : vector<16x512xf32>, vector<512x512xf32>, vector<16x512xf32> -> vector<16x512xf32>
    %810 = vector.extract_strided_slice %3 {offsets = [1, 0], sizes = [1, 512], strides = [1, 1]} : vector<2x512xf32> to vector<1x512xf32>
    %811 = vector.broadcast %810 : vector<1x512xf32> to vector<16x512xf32>
    %812 = arith.addf %809, %811 : vector<16x512xf32>
    %cst_229 = arith.constant 0.000000e+00 : f32
    %813 = vector.broadcast %cst_229 : f32 to vector<16x512xf32>
    %814 = arith.maximumf %812, %813 : vector<16x512xf32>
    %c0_230 = arith.constant 0 : index
    %c0_231 = arith.constant 0 : index
    %815 = vector.load %arg12[%c0_230, %c0_231] : memref<512x16xf32, #tpu.memory_space<vmem>>, vector<512x16xf32>
    %cst_232 = arith.constant dense<0.000000e+00> : vector<16x16xf32>
    %816 = tpu.matmul %814, %815, %cst_232 {dimension_numbers = #tpu.dot_dimension_numbers<[1], [0], [0], [1], [0, 0, 1, 1], [], []>} : vector<16x512xf32>, vector<512x16xf32>, vector<16x16xf32> -> vector<16x16xf32>
    %817 = vector.broadcast %4 : vector<1x16xf32> to vector<16x16xf32>
    %818 = arith.addf %816, %817 : vector<16x16xf32>
    %819 = vector.extract_strided_slice %0 {offsets = [384, 0], sizes = [32, 32], strides = [1, 1]} : vector<416x32xf32> to vector<32x32xf32>
    %cst_233 = arith.constant dense<0.000000e+00> : vector<16x32xf32>
    %820 = tpu.matmul %800, %819, %cst_233 {dimension_numbers = #tpu.dot_dimension_numbers<[1], [0], [0], [1], [0, 0, 1, 1], [], []>} : vector<16x32xf32>, vector<32x32xf32>, vector<16x32xf32> -> vector<16x32xf32>
    %821 = vector.extract_strided_slice %1 {offsets = [28, 0], sizes = [1, 32], strides = [1, 1]} : vector<32x32xf32> to vector<1x32xf32>
    %822 = vector.broadcast %821 : vector<1x32xf32> to vector<16x32xf32>
    %823 = arith.addf %820, %822 : vector<16x32xf32>
    %824 = vector.extract_strided_slice %823 {offsets = [0, 0], sizes = [8, 32], strides = [1, 1]} : vector<16x32xf32> to vector<8x32xf32>
    %825 = vector.extract_strided_slice %306 {offsets = [0, 0], sizes = [8, 32], strides = [1, 1]} : vector<16x32xf32> to vector<8x32xf32>
    %cst_234 = arith.constant dense<0.000000e+00> : vector<8x8xf32>
    %826 = tpu.matmul %824, %825, %cst_234 {dimension_numbers = #tpu.dot_dimension_numbers<[1], [1], [0], [0], [0, 0, 1, 0], [], []>} : vector<8x32xf32>, vector<8x32xf32>, vector<8x8xf32> -> vector<8x8xf32>
    %cst_235 = arith.constant 0.176776692 : f32
    %827 = vector.broadcast %cst_235 : f32 to vector<8x8xf32>
    %828 = arith.mulf %826, %827 : vector<8x8xf32>
    %c0_236 = arith.constant 0 : index
    %c0_237 = arith.constant 0 : index
    %c0_238 = arith.constant 0 : index
    %829 = vector.load %arg3[%c0_236, %c0_237, %c0_238] : memref<2x1x8xf32, #tpu.memory_space<vmem>>, vector<1x1x8xf32>
    %830 = vector.shape_cast %829 : vector<1x1x8xf32> to vector<1x8xf32>
    %831 = vector.broadcast %830 : vector<1x8xf32> to vector<8x8xf32>
    %832 = arith.addf %828, %831 : vector<8x8xf32>
    %833 = vector.extract_strided_slice %823 {offsets = [8, 0], sizes = [8, 32], strides = [1, 1]} : vector<16x32xf32> to vector<8x32xf32>
    %834 = vector.extract_strided_slice %306 {offsets = [8, 0], sizes = [8, 32], strides = [1, 1]} : vector<16x32xf32> to vector<8x32xf32>
    %cst_239 = arith.constant dense<0.000000e+00> : vector<8x8xf32>
    %835 = tpu.matmul %833, %834, %cst_239 {dimension_numbers = #tpu.dot_dimension_numbers<[1], [1], [0], [0], [0, 0, 1, 0], [], []>} : vector<8x32xf32>, vector<8x32xf32>, vector<8x8xf32> -> vector<8x8xf32>
    %cst_240 = arith.constant 0.176776692 : f32
    %836 = vector.broadcast %cst_240 : f32 to vector<8x8xf32>
    %837 = arith.mulf %835, %836 : vector<8x8xf32>
    %c1_241 = arith.constant 1 : index
    %c0_242 = arith.constant 0 : index
    %c0_243 = arith.constant 0 : index
    %838 = vector.load %arg3[%c1_241, %c0_242, %c0_243] : memref<2x1x8xf32, #tpu.memory_space<vmem>>, vector<1x1x8xf32>
    %839 = vector.shape_cast %838 : vector<1x1x8xf32> to vector<1x8xf32>
    %840 = vector.broadcast %839 : vector<1x8xf32> to vector<8x8xf32>
    %841 = arith.addf %837, %840 : vector<8x8xf32>
    %842 = tpu.concatenate %832, %841 in 0 : vector<8x8xf32>, vector<8x8xf32> -> vector<16x8xf32>
    %cst_244 = arith.constant dense<0xFF800000> : vector<16xf32>
    %843 = vector.multi_reduction <maximumf>, %818, %cst_244 [1] : vector<16x16xf32> to vector<16xf32>
    %844 = vector.shape_cast %843 : vector<16xf32> to vector<16x1xf32>
    %cst_245 = arith.constant dense<0xFF800000> : vector<16xf32>
    %845 = vector.multi_reduction <maximumf>, %842, %cst_245 [1] : vector<16x8xf32> to vector<16xf32>
    %846 = vector.shape_cast %845 : vector<16xf32> to vector<16x1xf32>
    %847 = arith.maximumf %844, %846 : vector<16x1xf32>
    %848 = vector.broadcast %847 : vector<16x1xf32> to vector<16x16xf32>
    %849 = arith.subf %818, %848 : vector<16x16xf32>
    %850 = math.exp %849 : vector<16x16xf32>
    %851 = vector.broadcast %847 : vector<16x1xf32> to vector<16x8xf32>
    %852 = arith.subf %842, %851 : vector<16x8xf32>
    %853 = math.exp %852 : vector<16x8xf32>
    %cst_246 = arith.constant dense<0.000000e+00> : vector<16xf32>
    %854 = vector.multi_reduction <add>, %850, %cst_246 [1] : vector<16x16xf32> to vector<16xf32>
    %855 = vector.shape_cast %854 : vector<16xf32> to vector<16x1xf32>
    %cst_247 = arith.constant dense<0.000000e+00> : vector<16xf32>
    %856 = vector.multi_reduction <add>, %853, %cst_247 [1] : vector<16x8xf32> to vector<16xf32>
    %857 = vector.shape_cast %856 : vector<16xf32> to vector<16x1xf32>
    %858 = arith.addf %855, %857 : vector<16x1xf32>
    %cst_248 = arith.constant 1.000000e+00 : f32
    %859 = vector.broadcast %cst_248 : f32 to vector<16x1xf32>
    %860 = arith.divf %859, %858 : vector<16x1xf32>
    %861 = vector.broadcast %860 : vector<16x1xf32> to vector<16x16xf32>
    %862 = arith.mulf %850, %861 : vector<16x16xf32>
    %863 = vector.broadcast %860 : vector<16x1xf32> to vector<16x8xf32>
    %864 = arith.mulf %853, %863 : vector<16x8xf32>
    %c0_249 = arith.constant 0 : index
    %c0_250 = arith.constant 0 : index
    %865 = vector.load %arg2[%c0_249, %c0_250] : memref<16x1xi32, #tpu.memory_space<vmem>>, vector<16x1xi32>
    %866 = tpu.iota {dimensions = array<i32: 1>} : vector<16x128xi32>
    %867 = vector.broadcast %865 : vector<16x1xi32> to vector<16x128xi32>
    %868 = arith.cmpi eq, %867, %866 : vector<16x128xi32>
    %869 = arith.extui %868 : vector<16x128xi1> to vector<16x128xi32>
    %870 = arith.sitofp %869 : vector<16x128xi32> to vector<16x128xf32>
    %cst_251 = arith.constant dense<0.000000e+00> : vector<16x128xf32>
    %871 = tpu.matmul %862, %870, %cst_251 {dimension_numbers = #tpu.dot_dimension_numbers<[1], [0], [0], [1], [0, 0, 1, 1], [], []>} : vector<16x16xf32>, vector<16x128xf32>, vector<16x128xf32> -> vector<16x128xf32>
    %872 = vector.extract_strided_slice %864 {offsets = [0, 0], sizes = [8, 8], strides = [1, 1]} : vector<16x8xf32> to vector<8x8xf32>
    %873 = vector.extract_strided_slice %12 {offsets = [0, 0], sizes = [8, 128], strides = [1, 1]} : vector<16x128xf32> to vector<8x128xf32>
    %cst_252 = arith.constant dense<0.000000e+00> : vector<8x128xf32>
    %874 = tpu.matmul %872, %873, %cst_252 {dimension_numbers = #tpu.dot_dimension_numbers<[1], [0], [0], [1], [0, 0, 1, 1], [], []>} : vector<8x8xf32>, vector<8x128xf32>, vector<8x128xf32> -> vector<8x128xf32>
    %875 = vector.extract_strided_slice %871 {offsets = [0, 0], sizes = [8, 128], strides = [1, 1]} : vector<16x128xf32> to vector<8x128xf32>
    %876 = arith.addf %875, %874 : vector<8x128xf32>
    %c0_253 = arith.constant 0 : index
    %c0_254 = arith.constant 0 : index
    %c0_255 = arith.constant 0 : index
    %877 = vector.load %arg17[%c0_253, %c0_254, %c0_255] : memref<2x8x128xf32, #tpu.memory_space<vmem>>, vector<1x8x128xf32>
    %878 = vector.shape_cast %877 : vector<1x8x128xf32> to vector<8x128xf32>
    %879 = vector.shape_cast %876 : vector<8x128xf32> to vector<1x8x128xf32>
    tpu.vector_store %arg17[%c0_253, %c0_254, %c0_255], %879 {strides = array<i32>} : memref<2x8x128xf32, #tpu.memory_space<vmem>>, vector<1x8x128xf32>,
    %880 = vector.extract_strided_slice %864 {offsets = [8, 0], sizes = [8, 8], strides = [1, 1]} : vector<16x8xf32> to vector<8x8xf32>
    %881 = vector.extract_strided_slice %12 {offsets = [8, 0], sizes = [8, 128], strides = [1, 1]} : vector<16x128xf32> to vector<8x128xf32>
    %cst_256 = arith.constant dense<0.000000e+00> : vector<8x128xf32>
    %882 = tpu.matmul %880, %881, %cst_256 {dimension_numbers = #tpu.dot_dimension_numbers<[1], [0], [0], [1], [0, 0, 1, 1], [], []>} : vector<8x8xf32>, vector<8x128xf32>, vector<8x128xf32> -> vector<8x128xf32>
    %883 = vector.extract_strided_slice %871 {offsets = [8, 0], sizes = [8, 128], strides = [1, 1]} : vector<16x128xf32> to vector<8x128xf32>
    %884 = arith.addf %883, %882 : vector<8x128xf32>
    %c1_257 = arith.constant 1 : index
    %c0_258 = arith.constant 0 : index
    %c0_259 = arith.constant 0 : index
    %885 = vector.load %arg17[%c1_257, %c0_258, %c0_259] : memref<2x8x128xf32, #tpu.memory_space<vmem>>, vector<1x8x128xf32>
    %886 = vector.shape_cast %885 : vector<1x8x128xf32> to vector<8x128xf32>
    %887 = vector.shape_cast %884 : vector<8x128xf32> to vector<1x8x128xf32>
    tpu.vector_store %arg17[%c1_257, %c0_258, %c0_259], %887 {strides = array<i32>} : memref<2x8x128xf32, #tpu.memory_space<vmem>>, vector<1x8x128xf32>,
    return
  }
}

</mosaic_0001>

<llo_original>
// kernel: seq2seq_copy_pointer_forward.1
$region0: #{seq2seq_copy_pointer_forward.1}
  #allocation0 [shape = 'u32[]', space=smem, size = 0x4, offset = 0x4, fixed_abs, tag = 'smem constant byte address 0x4 - core index']
  #allocation1 [shape = 'u32[144,128]{1,0:T(1,128)}', space=vmem, size = 0x12000, scoped, tag = 'internal scratch']
  %s0 = inlined_call_operand.vmem [shape: s32[16,1], index: 0, kind: input, shape index: {}]
  %s1 = inlined_call_operand.vmem [shape: s32[16,1], index: 1, kind: input, shape index: {}]
  %s2 = inlined_call_operand.vmem [shape: s32[16,1], index: 2, kind: input, shape index: {}]
  %s3 = inlined_call_operand.vmem [shape: f32[2,1,8], index: 3, kind: input, shape index: {}]
  %s4 = inlined_call_operand.vmem [shape: f32[2,1,8], index: 4, kind: input, shape index: {}]
  %s5 = inlined_call_operand.vmem [shape: f32[128,32], index: 5, kind: input, shape index: {}]
  %s6 = inlined_call_operand.vmem [shape: f32[8,32], index: 6, kind: input, shape index: {}]
  %s7 = inlined_call_operand.vmem [shape: f32[416,32], index: 7, kind: input, shape index: {}]
  %s8 = inlined_call_operand.vmem [shape: f32[64,64], index: 8, kind: input, shape index: {}]
  %s9 = inlined_call_operand.vmem [shape: f32[128,32], index: 9, kind: input, shape index: {}]
  %s10 = inlined_call_operand.vmem [shape: f32[32,512], index: 10, kind: input, shape index: {}]
  %s11 = inlined_call_operand.hbm [shape: f32[512,512], index: 11, kind: input, shape index: {}]
  %s12 = inlined_call_operand.vmem [shape: f32[512,16], index: 12, kind: input, shape index: {}]
  %s13 = inlined_call_operand.vmem [shape: f32[32,32], index: 13, kind: input, shape index: {}]
  %s14 = inlined_call_operand.vmem [shape: f32[2,64], index: 14, kind: input, shape index: {}]
  %s15 = inlined_call_operand.vmem [shape: f32[2,512], index: 15, kind: input, shape index: {}]
  %s16 = inlined_call_operand.vmem [shape: f32[1,16], index: 16, kind: input, shape index: {}]
  %s17 = inlined_call_operand.hbm [shape: f32[2,8,128], index: 17, kind: output, shape index: {}]
  %s18 = sld [smem:[#allocation0]]
  $region82: #{seq2seq_copy_pointer_forward.1} parent=0
    _
  %s20 = ssub.s32 1, %s18
  %s21 = scalar_select 0, %s20, %s18
  $region1: #{seq2seq_copy_pointer_forward.1} parent=0
    #allocation2 [shape = 'u8[1048576]{0}', space=vmem, size = 0x100000, scoped, tag = 'input window, operand 11, single buffered']
    #allocation3 [shape = 's32[1]{0}', space=sflag, size = 0x4, scoped, tag = 'scoped memory for seq2seq_copy_pointer_forward.1']
    #allocation4 [shape = 's32[1]{0}', space=sflag, size = 0x4, scoped, tag = 'scoped memory for seq2seq_copy_pointer_forward.1']
    #allocation5 [shape = 'u8[8192]{0}', space=vmem, size = 0x2000, scoped, tag = 'output window, operand 0, single buffered']
    %22 = vsyncpa [#allocation3], 0
    %23 = vsyncpa [#allocation4], 0
    // Predicated region
    $region2: #{seq2seq_copy_pointer_forward.1} parent=1 // pred_check
      _
    $region3: #{seq2seq_copy_pointer_forward.1} parent=1 // pred_check_branch
      %25 = sbr.rel (0) target = $region5
    $region4: #{seq2seq_copy_pointer_forward.1} parent=1 // pred_region
      _
    $region5: #{seq2seq_copy_pointer_forward.1} parent=1 // pred_fallthru
      _
    // Predicated region
    $region6: #{seq2seq_copy_pointer_forward.1} parent=1 // pred_check
      _
    $region7: #{seq2seq_copy_pointer_forward.1} parent=1 // pred_check_branch
      %27 = sbr.rel (0) target = $region9
    $region8: #{seq2seq_copy_pointer_forward.1} parent=1 // pred_region
      _
    $region9: #{seq2seq_copy_pointer_forward.1} parent=1 // pred_fallthru
      _
    // Predicated region
    $region10: #{seq2seq_copy_pointer_forward.1} parent=1 // pred_check
      _
    $region11: #{seq2seq_copy_pointer_forward.1} parent=1 // pred_check_branch
      %29 = sbr.rel (0) target = $region13
    $region12: #{seq2seq_copy_pointer_forward.1} parent=1 // pred_region
      _
    $region13: #{seq2seq_copy_pointer_forward.1} parent=1 // pred_fallthru
      _
    // Predicated region
    $region14: #{seq2seq_copy_pointer_forward.1} parent=1 // pred_check
      _
    $region15: #{seq2seq_copy_pointer_forward.1} parent=1 // pred_check_branch
      %31 = sbr.rel (0) target = $region17
    $region16: #{seq2seq_copy_pointer_forward.1} parent=1 // pred_region
      _
    $region17: #{seq2seq_copy_pointer_forward.1} parent=1 // pred_fallthru
      _
    // Predicated region
    $region18: #{seq2seq_copy_pointer_forward.1} parent=1 // pred_check
      _
    $region19: #{seq2seq_copy_pointer_forward.1} parent=1 // pred_check_branch
      %33 = sbr.rel (0) target = $region21
    $region20: #{seq2seq_copy_pointer_forward.1} parent=1 // pred_region
      _
    $region21: #{seq2seq_copy_pointer_forward.1} parent=1 // pred_fallthru
      _
    // Predicated region
    $region22: #{seq2seq_copy_pointer_forward.1} parent=1 // pred_check
      _
    $region23: #{seq2seq_copy_pointer_forward.1} parent=1 // pred_check_branch
      %35 = sbr.rel (0) target = $region25
    $region24: #{seq2seq_copy_pointer_forward.1} parent=1 // pred_region
      _
    $region25: #{seq2seq_copy_pointer_forward.1} parent=1 // pred_fallthru
      _
    // Predicated region
    $region26: #{seq2seq_copy_pointer_forward.1} parent=1 // pred_check
      _
    $region27: #{seq2seq_copy_pointer_forward.1} parent=1 // pred_check_branch
      %37 = sbr.rel (0) target = $region29
    $region28: #{seq2seq_copy_pointer_forward.1} parent=1 // pred_region
      _
    $region29: #{seq2seq_copy_pointer_forward.1} parent=1 // pred_fallthru
      _
    // Predicated region
    $region30: #{seq2seq_copy_pointer_forward.1} parent=1 // pred_check
      _
    $region31: #{seq2seq_copy_pointer_forward.1} parent=1 // pred_check_branch
      %39 = sbr.rel (0) target = $region33
    $region32: #{seq2seq_copy_pointer_forward.1} parent=1 // pred_region
      _
    $region33: #{seq2seq_copy_pointer_forward.1} parent=1 // pred_fallthru
      _
    // Predicated region
    $region34: #{seq2seq_copy_pointer_forward.1} parent=1 // pred_check
      _
    $region35: #{seq2seq_copy_pointer_forward.1} parent=1 // pred_check_branch
      %41 = sbr.rel (0) target = $region37
    $region36: #{seq2seq_copy_pointer_forward.1} parent=1 // pred_region
      _
    $region37: #{seq2seq_copy_pointer_forward.1} parent=1 // pred_fallthru
      _
    // Predicated region
    $region38: #{seq2seq_copy_pointer_forward.1} parent=1 // pred_check
      _
    $region39: #{seq2seq_copy_pointer_forward.1} parent=1 // pred_check_branch
      %43 = sbr.rel (0) target = $region41
    $region40: #{seq2seq_copy_pointer_forward.1} parent=1 // pred_region
      _
    $region41: #{seq2seq_copy_pointer_forward.1} parent=1 // pred_fallthru
      _
    // Predicated region
    $region42: #{seq2seq_copy_pointer_forward.1} parent=1 // pred_check
      _
    $region43: #{seq2seq_copy_pointer_forward.1} parent=1 // pred_check_branch
      %45 = sbr.rel (0) target = $region45
    $region44: #{seq2seq_copy_pointer_forward.1} parent=1 // pred_region
      _
    $region45: #{seq2seq_copy_pointer_forward.1} parent=1 // pred_fallthru
      _
    // Predicated region
    $region46: #{seq2seq_copy_pointer_forward.1} parent=1 // pred_check
      _
    $region47: #{seq2seq_copy_pointer_forward.1} parent=1 // pred_check_branch
      %47 = sbr.rel (0) target = $region49
    $region48: #{seq2seq_copy_pointer_forward.1} parent=1 // pred_region
      %s49 = ssub.s32 32768, 32768
      %50 = vsyncadd [#allocation3], %s49
      %s51 = sshll.u32 [#allocation2], 4
      %s52 = int_to_ptr.vmem [resolvable:$true] %s51
      %57 = dma.hbm_to_vmem [thread:$0]  %s11, 32768, %s52, [#allocation3], 512, 512, 32
    $region49: #{seq2seq_copy_pointer_forward.1} parent=1 // pred_fallthru
      _
    // Predicated region
    $region50: #{seq2seq_copy_pointer_forward.1} parent=1 // pred_check
      _
    $region51: #{seq2seq_copy_pointer_forward.1} parent=1 // pred_check_branch
      %59 = sbr.rel (0) target = $region53
    $region52: #{seq2seq_copy_pointer_forward.1} parent=1 // pred_region
      _
    $region53: #{seq2seq_copy_pointer_forward.1} parent=1 // pred_fallthru
      _
    // Predicated region
    $region54: #{seq2seq_copy_pointer_forward.1} parent=1 // pred_check
      _
    $region55: #{seq2seq_copy_pointer_forward.1} parent=1 // pred_check_branch
      %61 = sbr.rel (0) target = $region57
    $region56: #{seq2seq_copy_pointer_forward.1} parent=1 // pred_region
      _
    $region57: #{seq2seq_copy_pointer_forward.1} parent=1 // pred_fallthru
      _
    // Predicated region
    $region58: #{seq2seq_copy_pointer_forward.1} parent=1 // pred_check
      _
    $region59: #{seq2seq_copy_pointer_forward.1} parent=1 // pred_check_branch
      %63 = sbr.rel (0) target = $region61
    $region60: #{seq2seq_copy_pointer_forward.1} parent=1 // pred_region
      _
    $region61: #{seq2seq_copy_pointer_forward.1} parent=1 // pred_fallthru
      _
    // Predicated region
    $region62: #{seq2seq_copy_pointer_forward.1} parent=1 // pred_check
      _
    $region63: #{seq2seq_copy_pointer_forward.1} parent=1 // pred_check_branch
      %65 = sbr.rel (0) target = $region65
    $region64: #{seq2seq_copy_pointer_forward.1} parent=1 // pred_region
      _
    $region65: #{seq2seq_copy_pointer_forward.1} parent=1 // pred_fallthru
      _
    // Predicated region
    $region66: #{seq2seq_copy_pointer_forward.1} parent=1 // pred_check
      _
    $region67: #{seq2seq_copy_pointer_forward.1} parent=1 // pred_check_branch
      %67 = sbr.rel (0) target = $region69
    $region68: #{seq2seq_copy_pointer_forward.1} parent=1 // pred_region
      _
    $region69: #{seq2seq_copy_pointer_forward.1} parent=1 // pred_fallthru
      _
    // Predicated region
    $region70: #{seq2seq_copy_pointer_forward.1} parent=1 // pred_check
      _
    $region71: #{seq2seq_copy_pointer_forward.1} parent=1 // pred_check_branch
      %69 = sbr.rel (0) target = $region73
    $region72: #{seq2seq_copy_pointer_forward.1} parent=1 // pred_region
      %70 = dma.done [#allocation3], 32768
    $region73: #{seq2seq_copy_pointer_forward.1} parent=1 // pred_fallthru
      _
    %v71 = vld [vmem:[%s7] sm:$0xff]
    %v72 = vld [vmem:[%s7 + $0x8] sm:$0xff]
    %v73 = vld [vmem:[%s7 + $0x10] sm:$0xff]
    %v74 = vld [vmem:[%s7 + $0x18] sm:$0xff]
    %v75 = vld [vmem:[%s7 + $0x20] sm:$0xff]
    %v76 = vld [vmem:[%s7 + $0x28] sm:$0xff]
    %v77 = vld [vmem:[%s7 + $0x30] sm:$0xff]
    %v78 = vld [vmem:[%s7 + $0x38] sm:$0xff]
    %v79 = vld [vmem:[%s7 + $0x40] sm:$0xff]
    %v80 = vld [vmem:[%s7 + $0x48] sm:$0xff]
    %v81 = vld [vmem:[%s7 + $0x50] sm:$0xff]
    %v82 = vld [vmem:[%s7 + $0x58] sm:$0xff]
    %v83 = vld [vmem:[%s7 + $0x60] sm:$0xff]
    %v84 = vld [vmem:[%s7 + $0x68] sm:$0xff]
    %v85 = vld [vmem:[%s7 + $0x70] sm:$0xff]
    %v86 = vld [vmem:[%s7 + $0x78] sm:$0xff]
    %v87 = vld [vmem:[%s7 + $0x80] sm:$0xff]
    %v88 = vld [vmem:[%s7 + $0x88] sm:$0xff]
    %v89 = vld [vmem:[%s7 + $0x90] sm:$0xff]
    %v90 = vld [vmem:[%s7 + $0x98] sm:$0xff]
    %v91 = vld [vmem:[%s7 + $0xa0] sm:$0xff]
    %v92 = vld [vmem:[%s7 + $0xa8] sm:$0xff]
    %v93 = vld [vmem:[%s7 + $0xb0] sm:$0xff]
    %v94 = vld [vmem:[%s7 + $0xb8] sm:$0xff]
    %v95 = vld [vmem:[%s7 + $0xc0] sm:$0xff]
    %v96 = vld [vmem:[%s7 + $0xc8] sm:$0xff]
    %v97 = vld [vmem:[%s7 + $0xd0] sm:$0xff]
    %v98 = vld [vmem:[%s7 + $0xd8] sm:$0xff]
    %v99 = vld [vmem:[%s7 + $0xe0] sm:$0xff]
    %v100 = vld [vmem:[%s7 + $0xe8] sm:$0xff]
    %v101 = vld [vmem:[%s7 + $0xf0] sm:$0xff]
    %v102 = vld [vmem:[%s7 + $0xf8] sm:$0xff]
    %v103 = vld [vmem:[%s7 + $0x100] sm:$0xff]
    %v104 = vld [vmem:[%s7 + $0x108] sm:$0xff]
    %v105 = vld [vmem:[%s7 + $0x110] sm:$0xff]
    %v106 = vld [vmem:[%s7 + $0x118] sm:$0xff]
    %v107 = vld [vmem:[%s7 + $0x120] sm:$0xff]
    %v108 = vld [vmem:[%s7 + $0x128] sm:$0xff]
    %v109 = vld [vmem:[%s7 + $0x130] sm:$0xff]
    %v110 = vld [vmem:[%s7 + $0x138] sm:$0xff]
    %v111 = vld [vmem:[%s7 + $0x140] sm:$0xff]
    %v112 = vld [vmem:[%s7 + $0x148] sm:$0xff]
    %v113 = vld [vmem:[%s7 + $0x150] sm:$0xff]
    %v114 = vld [vmem:[%s7 + $0x158] sm:$0xff]
    %v115 = vld [vmem:[%s7 + $0x160] sm:$0xff]
    %v116 = vld [vmem:[%s7 + $0x168] sm:$0xff]
    %v117 = vld [vmem:[%s7 + $0x170] sm:$0xff]
    %v118 = vld [vmem:[%s7 + $0x178] sm:$0xff]
    %v119 = vld [vmem:[%s7 + $0x180] sm:$0xff]
    %v120 = vld [vmem:[%s7 + $0x188] sm:$0xff]
    %v121 = vld [vmem:[%s7 + $0x190] sm:$0xff]
    %v122 = vld [vmem:[%s7 + $0x198] sm:$0xff]
    %v123 = vld [vmem:[%s13] sm:$0xff]
    %v124 = vld [vmem:[%s13 + $0x8] sm:$0xff]
    %v125 = vld [vmem:[%s13 + $0x10] sm:$0xff]
    %v126 = vld [vmem:[%s13 + $0x18] sm:$0xff]
    %v127 = vld [vmem:[%s14] sm:$0x3]
    %v128 = vld [vmem:[%s15] sm:$0xff]
    %v129 = vld [vmem:[%s16] sm:$0x1]
    %v130 = vld [vmem:[%s5] sm:$0xff]
    %v131 = vld [vmem:[%s5 + $0x8] sm:$0xff]
    %v132 = vld [vmem:[%s5 + $0x10] sm:$0xff]
    %v133 = vld [vmem:[%s5 + $0x18] sm:$0xff]
    %v134 = vld [vmem:[%s5 + $0x20] sm:$0xff]
    %v135 = vld [vmem:[%s5 + $0x28] sm:$0xff]
    %v136 = vld [vmem:[%s5 + $0x30] sm:$0xff]
    %v137 = vld [vmem:[%s5 + $0x38] sm:$0xff]
    %v138 = vld [vmem:[%s5 + $0x40] sm:$0xff]
    %v139 = vld [vmem:[%s5 + $0x48] sm:$0xff]
    %v140 = vld [vmem:[%s5 + $0x50] sm:$0xff]
    %v141 = vld [vmem:[%s5 + $0x58] sm:$0xff]
    %v142 = vld [vmem:[%s5 + $0x60] sm:$0xff]
    %v143 = vld [vmem:[%s5 + $0x68] sm:$0xff]
    %v144 = vld [vmem:[%s5 + $0x70] sm:$0xff]
    %v145 = vld [vmem:[%s5 + $0x78] sm:$0xff]
    %v146 = vld [vmem:[%s6] sm:$0xff]
    %v147 = vld [vmem:[%s0] sm:$0xff]
    %v148 = vld [vmem:[%s0 + $0x8] sm:$0xff]
    %v149 = vlaneseq
    %v150 = vand.u32 %v149, 127
    %151 = vset.pattern.permute.xlu0 0
    %152 = vperm.xlu0 %151, %v147
    %v153 = vpop.permute.xlu0 %152
    %154 = vset.pattern.permute.xlu0 0
    %155 = vperm.xlu0 %154, %v148
    %v156 = vpop.permute.xlu0 %155
    %vm157 = vcmp.eq.s32.totalorder %v153, %v150
    %vm158 = vcmp.eq.s32.totalorder %v156, %v150
    %v159 = vsel %vm157, 1, 0
    %v160 = vsel %vm158, 1, 0
    %v161 = vcvt.s32.f32 %v159
    %v162 = vcvt.s32.f32 %v160
    %v163 = vld [vmem:[%s1] sm:$0xff]
    %v164 = vld [vmem:[%s1 + $0x8] sm:$0xff]
    %165 = vset.pattern.permute.xlu0 0
    %166 = vperm.xlu0 %165, %v163
    %v167 = vpop.permute.xlu0 %166
    %168 = vset.pattern.permute.xlu0 0
    %169 = vperm.xlu0 %168, %v164
    %v170 = vpop.permute.xlu0 %169
    %vm171 = vcmp.eq.s32.totalorder %v167, %v150
    %vm172 = vcmp.eq.s32.totalorder %v170, %v150
    %v173 = vsel %vm171, 1, 0
    %v174 = vsel %vm172, 1, 0
    %v175 = vcvt.s32.f32 %v173
    %v176 = vcvt.s32.f32 %v174
    %177 = vmatprep.subr.mxu0 0.0
    %178 = vmatpush1.msra.mxu0 %v145
    %179 = vmatprep.subr.mxu0 0.0
    %180 = vmatpush1.msra.mxu0 %v144
    %181 = vmatprep.subr.mxu0 0.0
    %182 = vmatpush1.msra.mxu0 %v143
    %183 = vmatprep.subr.mxu0 0.0
    %184 = vmatpush1.msra.mxu0 %v142
    %185 = vmatprep.subr.mxu0 0.0
    %186 = vmatpush1.msra.mxu0 %v141
    %187 = vmatprep.subr.mxu0 0.0
    %188 = vmatpush1.msra.mxu0 %v140
    %189 = vmatprep.subr.mxu0 0.0
    %190 = vmatpush1.msra.mxu0 %v139
    %191 = vmatprep.subr.mxu0 0.0
    %192 = vmatpush1.msra.mxu0 %v138
    %193 = vmatprep.subr.mxu0 0.0
    %194 = vmatpush1.msra.mxu0 %v137
    %195 = vmatprep.subr.mxu0 0.0
    %196 = vmatpush1.msra.mxu0 %v136
    %197 = vmatprep.subr.mxu0 0.0
    %198 = vmatpush1.msra.mxu0 %v135
    %199 = vmatprep.subr.mxu0 0.0
    %200 = vmatpush1.msra.mxu0 %v134
    %201 = vmatprep.subr.mxu0 0.0
    %202 = vmatpush1.msra.mxu0 %v133
    %203 = vmatprep.subr.mxu0 0.0
    %204 = vmatpush1.msra.mxu0 %v132
    %205 = vmatprep.subr.mxu0 0.0
    %206 = vmatpush1.msra.mxu0 %v131
    %207 = vmatprep.subr.mxu0 0.0
    %208 = vmatpush1.msra.mxu0 %v130
    %209 = vmatprep.subr.mxu0 0.0
    %210 = vmatpush2.msra.mxu0 0.0
    %211 = vmatprep.subr.mxu0 0.0
    %212 = vmatpush2.msra.mxu0 0.0
    %213 = vmatprep.subr.mxu0 0.0
    %214 = vmatpush2.msra.mxu0 0.0
    %215 = vmatprep.subr.mxu0 0.0
    %216 = vmatpush2.msra.mxu0 0.0
    %217 = vmatprep.subr.mxu0 0.0
    %218 = vmatpush2.msra.mxu0 0.0
    %219 = vmatprep.subr.mxu0 0.0
    %220 = vmatpush2.msra.mxu0 0.0
    %221 = vmatprep.subr.mxu0 0.0
    %222 = vmatpush2.msra.mxu0 0.0
    %223 = vmatprep.subr.mxu0 0.0
    %224 = vmatpush2.msra.mxu0 0.0
    %225 = vmatprep.subr.mxu0 0.0
    %226 = vmatpush2.msra.mxu0 0.0
    %227 = vmatprep.subr.mxu0 0.0
    %228 = vmatpush2.msra.mxu0 0.0
    %229 = vmatprep.subr.mxu0 0.0
    %230 = vmatpush2.msra.mxu0 0.0
    %231 = vmatprep.subr.mxu0 0.0
    %232 = vmatpush2.msra.mxu0 0.0
    %233 = vmatprep.subr.mxu0 0.0
    %234 = vmatpush2.msra.mxu0 0.0
    %235 = vmatprep.subr.mxu0 0.0
    %236 = vmatpush2.msra.mxu0 0.0
    %237 = vmatprep.subr.mxu0 0.0
    %238 = vmatpush2.msra.mxu0 0.0
    %239 = vmatprep.subr.mxu0 0.0
    %240 = vmatpush2.msra.mxu0 0.0
    %241 = vmatprep.mubr.f32.mxu0 0.0
    %242 = vmatmul.mubr.f32.gmra.mxu0 %v161
    %v243 = vpop.f32.mrf.mxu0
    %v244 = vadd.f32 %v146, %v243
    %v245 = vpop.f32.mrf.mxu0
    %246 = vmatprep.mubr.f32.mxu0 0.0
    %247 = vmatmul.mubr.f32.gmra.mxu0 %v162
    %v248 = vpop.f32.mrf.mxu0
    %v249 = vadd.f32 %v146, %v248
    %v250 = vpop.f32.mrf.mxu0
    %251 = vdwg.mxu0
    %252 = vmatprep.subr.mxu0 0.0
    %253 = vmatpush1.msra.mxu0 %v145
    %254 = vmatprep.subr.mxu0 0.0
    %255 = vmatpush1.msra.mxu0 %v144
    %256 = vmatprep.subr.mxu0 0.0
    %257 = vmatpush1.msra.mxu0 %v143
    %258 = vmatprep.subr.mxu0 0.0
    %259 = vmatpush1.msra.mxu0 %v142
    %260 = vmatprep.subr.mxu0 0.0
    %261 = vmatpush1.msra.mxu0 %v141
    %262 = vmatprep.subr.mxu0 0.0
    %263 = vmatpush1.msra.mxu0 %v140
    %264 = vmatprep.subr.mxu0 0.0
    %265 = vmatpush1.msra.mxu0 %v139
    %266 = vmatprep.subr.mxu0 0.0
    %267 = vmatpush1.msra.mxu0 %v138
    %268 = vmatprep.subr.mxu0 0.0
    %269 = vmatpush1.msra.mxu0 %v137
    %270 = vmatprep.subr.mxu0 0.0
    %271 = vmatpush1.msra.mxu0 %v136
    %272 = vmatprep.subr.mxu0 0.0
    %273 = vmatpush1.msra.mxu0 %v135
    %274 = vmatprep.subr.mxu0 0.0
    %275 = vmatpush1.msra.mxu0 %v134
    %276 = vmatprep.subr.mxu0 0.0
    %277 = vmatpush1.msra.mxu0 %v133
    %278 = vmatprep.subr.mxu0 0.0
    %279 = vmatpush1.msra.mxu0 %v132
    %280 = vmatprep.subr.mxu0 0.0
    %281 = vmatpush1.msra.mxu0 %v131
    %282 = vmatprep.subr.mxu0 0.0
    %283 = vmatpush1.msra.mxu0 %v130
    %284 = vmatprep.subr.mxu0 0.0
    %285 = vmatpush2.msra.mxu0 0.0
    %286 = vmatprep.subr.mxu0 0.0
    %287 = vmatpush2.msra.mxu0 0.0
    %288 = vmatprep.subr.mxu0 0.0
    %289 = vmatpush2.msra.mxu0 0.0
    %290 = vmatprep.subr.mxu0 0.0
    %291 = vmatpush2.msra.mxu0 0.0
    %292 = vmatprep.subr.mxu0 0.0
    %293 = vmatpush2.msra.mxu0 0.0
    %294 = vmatprep.subr.mxu0 0.0
    %295 = vmatpush2.msra.mxu0 0.0
    %296 = vmatprep.subr.mxu0 0.0
    %297 = vmatpush2.msra.mxu0 0.0
    %298 = vmatprep.subr.mxu0 0.0
    %299 = vmatpush2.msra.mxu0 0.0
    %300 = vmatprep.subr.mxu0 0.0
    %301 = vmatpush2.msra.mxu0 0.0
    %302 = vmatprep.subr.mxu0 0.0
    %303 = vmatpush2.msra.mxu0 0.0
    %304 = vmatprep.subr.mxu0 0.0
    %305 = vmatpush2.msra.mxu0 0.0
    %306 = vmatprep.subr.mxu0 0.0
    %307 = vmatpush2.msra.mxu0 0.0
    %308 = vmatprep.subr.mxu0 0.0
    %309 = vmatpush2.msra.mxu0 0.0
    %310 = vmatprep.subr.mxu0 0.0
    %311 = vmatpush2.msra.mxu0 0.0
    %312 = vmatprep.subr.mxu0 0.0
    %313 = vmatpush2.msra.mxu0 0.0
    %314 = vmatprep.subr.mxu0 0.0
    %315 = vmatpush2.msra.mxu0 0.0
    %316 = vmatprep.mubr.f32.mxu0 0.0
    %317 = vmatmul.mubr.f32.gmra.mxu0 %v175
    %v318 = vpop.f32.mrf.mxu0
    %v319 = vadd.f32 %v146, %v318
    %v320 = vpop.f32.mrf.mxu0
    %321 = vmatprep.mubr.f32.mxu0 0.0
    %322 = vmatmul.mubr.f32.gmra.mxu0 %v176
    %v323 = vpop.f32.mrf.mxu0
    %v324 = vadd.f32 %v146, %v323
    %v325 = vpop.f32.mrf.mxu0
    %326 = vdwg.mxu0
    %vm327 = vcmask 261120
    %v328 = vsel %vm327, %v244, 0.0
    %329 = vadd.xlane.f32.xlu0 %v328
    %v330 = vpop.xlane.xlu0 %329
    %v331 = vsel %vm327, %v249, 0.0
    %332 = vadd.xlane.f32.xlu0 %v331
    %v333 = vpop.xlane.xlu0 %332
    %v334 = vrcp.pop 32.0
    %v335 = vmul.f32 %v330, %v334
    %v336 = vmul.f32 %v333, %v334
    %v337 = vsub.f32 %v244, %v335
    %v338 = vsub.f32 %v249, %v336
    %v339 = vmul.f32 %v337, %v337
    %v340 = vmul.f32 %v338, %v338
    %v341 = vsel %vm327, %v339, 0.0
    %342 = vadd.xlane.f32.xlu0 %v341
    %v343 = vpop.xlane.xlu0 %342
    %v344 = vsel %vm327, %v340, 0.0
    %345 = vadd.xlane.f32.xlu0 %v344
    %v346 = vpop.xlane.xlu0 %345
    %v347 = vmul.f32 %v343, %v334
    %v348 = vmul.f32 %v346, %v334
    %v349 = vadd.f32 %v347, 1e-05
    %v350 = vadd.f32 %v348, 1e-05
    %v351 = vrsqrt.pop %v349
    %v352 = vrsqrt.pop %v350
    %v353 = vmul.f32 %v337, %v351
    %v354 = vmul.f32 %v338, %v352
    %v355 = vlaneseq
    %v356 = vshrl.u32 %v355, 7
    %v357 = vsub.s32 0, %v356
    %v358 = vrot.slane %v123, %v357
    %v359 = vmul.f32 %v353, %v358
    %v360 = vmul.f32 %v354, %v358
    %v361 = vlaneseq
    %v362 = vshrl.u32 %v361, 7
    %v363 = vsub.s32 1, %v362
    %v364 = vrot.slane %v123, %v363
    %v365 = vadd.f32 %v359, %v364
    %v366 = vadd.f32 %v360, %v364
    %v367 = vlaneseq
    %v368 = vshrl.u32 %v367, 7
    %v369 = vsub.s32 2, %v368
    %v370 = vrot.slane %v123, %v369
    %v372 = vsel %vm327, %v365, 0
    %v375 = vsel %vm327, %v366, 0
    %377 = vmatprep.subr.mxu0 0.0
    %378 = vmatpush1.msra.mxu0 0.0
    %379 = vmatprep.subr.mxu0 0.0
    %380 = vmatpush1.msra.mxu0 0.0
    %381 = vmatprep.subr.mxu0 0.0
    %382 = vmatpush1.msra.mxu0 0.0
    %383 = vmatprep.subr.mxu0 0.0
    %384 = vmatpush1.msra.mxu0 0.0
    %385 = vmatprep.subr.mxu0 0.0
    %386 = vmatpush1.msra.mxu0 0.0
    %387 = vmatprep.subr.mxu0 0.0
    %388 = vmatpush1.msra.mxu0 0.0
    %389 = vmatprep.subr.mxu0 0.0
    %390 = vmatpush1.msra.mxu0 0.0
    %391 = vmatprep.subr.mxu0 0.0
    %392 = vmatpush1.msra.mxu0 0.0
    %393 = vmatprep.subr.mxu0 0.0
    %394 = vmatpush1.msra.mxu0 0.0
    %395 = vmatprep.subr.mxu0 0.0
    %396 = vmatpush1.msra.mxu0 0.0
    %397 = vmatprep.subr.mxu0 0.0
    %398 = vmatpush1.msra.mxu0 0.0
    %399 = vmatprep.subr.mxu0 0.0
    %400 = vmatpush1.msra.mxu0 0.0
    %401 = vmatprep.subr.mxu0 0.0
    %402 = vmatpush1.msra.mxu0 %v74
    %403 = vmatprep.subr.mxu0 0.0
    %404 = vmatpush1.msra.mxu0 %v73
    %405 = vmatprep.subr.mxu0 0.0
    %406 = vmatpush1.msra.mxu0 %v72
    %407 = vmatprep.subr.mxu0 0.0
    %408 = vmatpush1.msra.mxu0 %v71
    %409 = vmatprep.subr.mxu0 0.0
    %410 = vmatpush2.msra.mxu0 0.0
    %411 = vmatprep.subr.mxu0 0.0
    %412 = vmatpush2.msra.mxu0 0.0
    %413 = vmatprep.subr.mxu0 0.0
    %414 = vmatpush2.msra.mxu0 0.0
    %415 = vmatprep.subr.mxu0 0.0
    %416 = vmatpush2.msra.mxu0 0.0
    %417 = vmatprep.subr.mxu0 0.0
    %418 = vmatpush2.msra.mxu0 0.0
    %419 = vmatprep.subr.mxu0 0.0
    %420 = vmatpush2.msra.mxu0 0.0
    %421 = vmatprep.subr.mxu0 0.0
    %422 = vmatpush2.msra.mxu0 0.0
    %423 = vmatprep.subr.mxu0 0.0
    %424 = vmatpush2.msra.mxu0 0.0
    %425 = vmatprep.subr.mxu0 0.0
    %426 = vmatpush2.msra.mxu0 0.0
    %427 = vmatprep.subr.mxu0 0.0
    %428 = vmatpush2.msra.mxu0 0.0
    %429 = vmatprep.subr.mxu0 0.0
    %430 = vmatpush2.msra.mxu0 0.0
    %431 = vmatprep.subr.mxu0 0.0
    %432 = vmatpush2.msra.mxu0 0.0
    %433 = vmatprep.subr.mxu0 0.0
    %434 = vmatpush2.msra.mxu0 0.0
    %435 = vmatprep.subr.mxu0 0.0
    %436 = vmatpush2.msra.mxu0 0.0
    %437 = vmatprep.subr.mxu0 0.0
    %438 = vmatpush2.msra.mxu0 0.0
    %439 = vmatprep.subr.mxu0 0.0
    %440 = vmatpush2.msra.mxu0 0.0
    %441 = vmatprep.mubr.f32.mxu0 0.0
    %442 = vmatmul.mubr.f32.gmra.mxu0 %v372
    %v443 = vpop.f32.mrf.mxu0
    %v444 = vadd.f32 %v370, %v443
    %v445 = vpop.f32.mrf.mxu0
    %446 = vmatprep.mubr.f32.mxu0 0.0
    %447 = vmatmul.mubr.f32.gmra.mxu0 %v375
    %v448 = vpop.f32.mrf.mxu0
    %v449 = vadd.f32 %v370, %v448
    %v450 = vpop.f32.mrf.mxu0
    %451 = vdwg.mxu0
    %v452 = vlaneseq
    %v453 = vshrl.u32 %v452, 7
    %v454 = vsub.s32 3, %v453
    %v455 = vrot.slane %v123, %v454
    %456 = vmatprep.subr.mxu0 0.0
    %457 = vmatpush1.msra.mxu0 0.0
    %458 = vmatprep.subr.mxu0 0.0
    %459 = vmatpush1.msra.mxu0 0.0
    %460 = vmatprep.subr.mxu0 0.0
    %461 = vmatpush1.msra.mxu0 0.0
    %462 = vmatprep.subr.mxu0 0.0
    %463 = vmatpush1.msra.mxu0 0.0
    %464 = vmatprep.subr.mxu0 0.0
    %465 = vmatpush1.msra.mxu0 0.0
    %466 = vmatprep.subr.mxu0 0.0
    %467 = vmatpush1.msra.mxu0 0.0
    %468 = vmatprep.subr.mxu0 0.0
    %469 = vmatpush1.msra.mxu0 0.0
    %470 = vmatprep.subr.mxu0 0.0
    %471 = vmatpush1.msra.mxu0 0.0
    %472 = vmatprep.subr.mxu0 0.0
    %473 = vmatpush1.msra.mxu0 0.0
    %474 = vmatprep.subr.mxu0 0.0
    %475 = vmatpush1.msra.mxu0 0.0
    %476 = vmatprep.subr.mxu0 0.0
    %477 = vmatpush1.msra.mxu0 0.0
    %478 = vmatprep.subr.mxu0 0.0
    %479 = vmatpush1.msra.mxu0 0.0
    %480 = vmatprep.subr.mxu0 0.0
    %481 = vmatpush1.msra.mxu0 %v78
    %482 = vmatprep.subr.mxu0 0.0
    %483 = vmatpush1.msra.mxu0 %v77
    %484 = vmatprep.subr.mxu0 0.0
    %485 = vmatpush1.msra.mxu0 %v76
    %486 = vmatprep.subr.mxu0 0.0
    %487 = vmatpush1.msra.mxu0 %v75
    %488 = vmatprep.subr.mxu0 0.0
    %489 = vmatpush2.msra.mxu0 0.0
    %490 = vmatprep.subr.mxu0 0.0
    %491 = vmatpush2.msra.mxu0 0.0
    %492 = vmatprep.subr.mxu0 0.0
    %493 = vmatpush2.msra.mxu0 0.0
    %494 = vmatprep.subr.mxu0 0.0
    %495 = vmatpush2.msra.mxu0 0.0
    %496 = vmatprep.subr.mxu0 0.0
    %497 = vmatpush2.msra.mxu0 0.0
    %498 = vmatprep.subr.mxu0 0.0
    %499 = vmatpush2.msra.mxu0 0.0
    %500 = vmatprep.subr.mxu0 0.0
    %501 = vmatpush2.msra.mxu0 0.0
    %502 = vmatprep.subr.mxu0 0.0
    %503 = vmatpush2.msra.mxu0 0.0
    %504 = vmatprep.subr.mxu0 0.0
    %505 = vmatpush2.msra.mxu0 0.0
    %506 = vmatprep.subr.mxu0 0.0
    %507 = vmatpush2.msra.mxu0 0.0
    %508 = vmatprep.subr.mxu0 0.0
    %509 = vmatpush2.msra.mxu0 0.0
    %510 = vmatprep.subr.mxu0 0.0
    %511 = vmatpush2.msra.mxu0 0.0
    %512 = vmatprep.subr.mxu0 0.0
    %513 = vmatpush2.msra.mxu0 0.0
    %514 = vmatprep.subr.mxu0 0.0
    %515 = vmatpush2.msra.mxu0 0.0
    %516 = vmatprep.subr.mxu0 0.0
    %517 = vmatpush2.msra.mxu0 0.0
    %518 = vmatprep.subr.mxu0 0.0
    %519 = vmatpush2.msra.mxu0 0.0
    %520 = vmatprep.mubr.f32.mxu0 0.0
    %521 = vmatmul.mubr.f32.gmra.mxu0 %v372
    %v522 = vpop.f32.mrf.mxu0
    %v523 = vadd.f32 %v455, %v522
    %v524 = vpop.f32.mrf.mxu0
    %525 = vmatprep.mubr.f32.mxu0 0.0
    %526 = vmatmul.mubr.f32.gmra.mxu0 %v375
    %v527 = vpop.f32.mrf.mxu0
    %v528 = vadd.f32 %v455, %v527
    %v529 = vpop.f32.mrf.mxu0
    %530 = vdwg.mxu0
    %v531 = vlaneseq
    %v532 = vshrl.u32 %v531, 7
    %v533 = vsub.s32 4, %v532
    %v534 = vrot.slane %v123, %v533
    %535 = vmatprep.subr.mxu0 0.0
    %536 = vmatpush1.msra.mxu0 0.0
    %537 = vmatprep.subr.mxu0 0.0
    %538 = vmatpush1.msra.mxu0 0.0
    %539 = vmatprep.subr.mxu0 0.0
    %540 = vmatpush1.msra.mxu0 0.0
    %541 = vmatprep.subr.mxu0 0.0
    %542 = vmatpush1.msra.mxu0 0.0
    %543 = vmatprep.subr.mxu0 0.0
    %544 = vmatpush1.msra.mxu0 0.0
    %545 = vmatprep.subr.mxu0 0.0
    %546 = vmatpush1.msra.mxu0 0.0
    %547 = vmatprep.subr.mxu0 0.0
    %548 = vmatpush1.msra.mxu0 0.0
    %549 = vmatprep.subr.mxu0 0.0
    %550 = vmatpush1.msra.mxu0 0.0
    %551 = vmatprep.subr.mxu0 0.0
    %552 = vmatpush1.msra.mxu0 0.0
    %553 = vmatprep.subr.mxu0 0.0
    %554 = vmatpush1.msra.mxu0 0.0
    %555 = vmatprep.subr.mxu0 0.0
    %556 = vmatpush1.msra.mxu0 0.0
    %557 = vmatprep.subr.mxu0 0.0
    %558 = vmatpush1.msra.mxu0 0.0
    %559 = vmatprep.subr.mxu0 0.0
    %560 = vmatpush1.msra.mxu0 %v82
    %561 = vmatprep.subr.mxu0 0.0
    %562 = vmatpush1.msra.mxu0 %v81
    %563 = vmatprep.subr.mxu0 0.0
    %564 = vmatpush1.msra.mxu0 %v80
    %565 = vmatprep.subr.mxu0 0.0
    %566 = vmatpush1.msra.mxu0 %v79
    %567 = vmatprep.subr.mxu0 0.0
    %568 = vmatpush2.msra.mxu0 0.0
    %569 = vmatprep.subr.mxu0 0.0
    %570 = vmatpush2.msra.mxu0 0.0
    %571 = vmatprep.subr.mxu0 0.0
    %572 = vmatpush2.msra.mxu0 0.0
    %573 = vmatprep.subr.mxu0 0.0
    %574 = vmatpush2.msra.mxu0 0.0
    %575 = vmatprep.subr.mxu0 0.0
    %576 = vmatpush2.msra.mxu0 0.0
    %577 = vmatprep.subr.mxu0 0.0
    %578 = vmatpush2.msra.mxu0 0.0
    %579 = vmatprep.subr.mxu0 0.0
    %580 = vmatpush2.msra.mxu0 0.0
    %581 = vmatprep.subr.mxu0 0.0
    %582 = vmatpush2.msra.mxu0 0.0
    %583 = vmatprep.subr.mxu0 0.0
    %584 = vmatpush2.msra.mxu0 0.0
    %585 = vmatprep.subr.mxu0 0.0
    %586 = vmatpush2.msra.mxu0 0.0
    %587 = vmatprep.subr.mxu0 0.0
    %588 = vmatpush2.msra.mxu0 0.0
    %589 = vmatprep.subr.mxu0 0.0
    %590 = vmatpush2.msra.mxu0 0.0
    %591 = vmatprep.subr.mxu0 0.0
    %592 = vmatpush2.msra.mxu0 0.0
    %593 = vmatprep.subr.mxu0 0.0
    %594 = vmatpush2.msra.mxu0 0.0
    %595 = vmatprep.subr.mxu0 0.0
    %596 = vmatpush2.msra.mxu0 0.0
    %597 = vmatprep.subr.mxu0 0.0
    %598 = vmatpush2.msra.mxu0 0.0
    %599 = vmatprep.mubr.f32.mxu0 0.0
    %600 = vmatmul.mubr.f32.gmra.mxu0 %v372
    %v601 = vpop.f32.mrf.mxu0
    %v602 = vadd.f32 %v534, %v601
    %v603 = vpop.f32.mrf.mxu0
    %604 = vmatprep.mubr.f32.mxu0 0.0
    %605 = vmatmul.mubr.f32.gmra.mxu0 %v375
    %v606 = vpop.f32.mrf.mxu0
    %v607 = vadd.f32 %v534, %v606
    %v608 = vpop.f32.mrf.mxu0
    %609 = vdwg.mxu0
    %v610 = vld [vmem:[%s3] sm:$0x1]
    %vm611 = vcmask 64512
    %v613 = vsel %vm611, %v444, 0
    %v616 = vsel %vm611, %v523, 0
    %618 = vmatprep.subr.mxu0 0.0
    %619 = vmatpush1.xpose.msra.mxu0 0.0
    %620 = vmatprep.subr.mxu0 0.0
    %621 = vmatpush1.xpose.msra.mxu0 0.0
    %622 = vmatprep.subr.mxu0 0.0
    %623 = vmatpush1.xpose.msra.mxu0 0.0
    %624 = vmatprep.subr.mxu0 0.0
    %625 = vmatpush1.xpose.msra.mxu0 0.0
    %626 = vmatprep.subr.mxu0 0.0
    %627 = vmatpush1.xpose.msra.mxu0 0.0
    %628 = vmatprep.subr.mxu0 0.0
    %629 = vmatpush1.xpose.msra.mxu0 0.0
    %630 = vmatprep.subr.mxu0 0.0
    %631 = vmatpush1.xpose.msra.mxu0 0.0
    %632 = vmatprep.subr.mxu0 0.0
    %633 = vmatpush1.xpose.msra.mxu0 0.0
    %634 = vmatprep.subr.mxu0 0.0
    %635 = vmatpush1.xpose.msra.mxu0 0.0
    %636 = vmatprep.subr.mxu0 0.0
    %637 = vmatpush1.xpose.msra.mxu0 0.0
    %638 = vmatprep.subr.mxu0 0.0
    %639 = vmatpush1.xpose.msra.mxu0 0.0
    %640 = vmatprep.subr.mxu0 0.0
    %641 = vmatpush1.xpose.msra.mxu0 0.0
    %642 = vmatprep.subr.mxu0 0.0
    %643 = vmatpush1.xpose.msra.mxu0 0.0
    %644 = vmatprep.subr.mxu0 0.0
    %645 = vmatpush1.xpose.msra.mxu0 0.0
    %646 = vmatprep.subr.mxu0 0.0
    %647 = vmatpush1.xpose.msra.mxu0 0.0
    %648 = vmatprep.subr.mxu0 0.0
    %649 = vmatpush1.xpose.msra.mxu0 %v616
    %650 = vmatprep.subr.mxu0 0.0
    %651 = vmatpush2.xpose.msra.mxu0 0.0
    %652 = vmatprep.subr.mxu0 0.0
    %653 = vmatpush2.xpose.msra.mxu0 0.0
    %654 = vmatprep.subr.mxu0 0.0
    %655 = vmatpush2.xpose.msra.mxu0 0.0
    %656 = vmatprep.subr.mxu0 0.0
    %657 = vmatpush2.xpose.msra.mxu0 0.0
    %658 = vmatprep.subr.mxu0 0.0
    %659 = vmatpush2.xpose.msra.mxu0 0.0
    %660 = vmatprep.subr.mxu0 0.0
    %661 = vmatpush2.xpose.msra.mxu0 0.0
    %662 = vmatprep.subr.mxu0 0.0
    %663 = vmatpush2.xpose.msra.mxu0 0.0
    %664 = vmatprep.subr.mxu0 0.0
    %665 = vmatpush2.xpose.msra.mxu0 0.0
    %666 = vmatprep.subr.mxu0 0.0
    %667 = vmatpush2.xpose.msra.mxu0 0.0
    %668 = vmatprep.subr.mxu0 0.0
    %669 = vmatpush2.xpose.msra.mxu0 0.0
    %670 = vmatprep.subr.mxu0 0.0
    %671 = vmatpush2.xpose.msra.mxu0 0.0
    %672 = vmatprep.subr.mxu0 0.0
    %673 = vmatpush2.xpose.msra.mxu0 0.0
    %674 = vmatprep.subr.mxu0 0.0
    %675 = vmatpush2.xpose.msra.mxu0 0.0
    %676 = vmatprep.subr.mxu0 0.0
    %677 = vmatpush2.xpose.msra.mxu0 0.0
    %678 = vmatprep.subr.mxu0 0.0
    %679 = vmatpush2.xpose.msra.mxu0 0.0
    %680 = vmatprep.subr.mxu0 0.0
    %681 = vmatpush2.xpose.msra.mxu0 0.0
    %682 = vmatprep.mubr.f32.mxu0 0.0
    %683 = vmatmul.mubr.f32.gmra.mxu0 %v613
    %v684 = vpop.f32.mrf.mxu0
    %v685 = vadd.f32 0.0, %v684
    %v686 = vpop.f32.mrf.mxu0
    %687 = vdwg.mxu0
    %v688 = vmul.f32 %v685, 0.35355338
    %v690 = vlaneseq
    %v691 = vshrl.u32 %v690, 7
    %v692 = vsub.s32 0, %v691
    %v693 = vrot.slane %v610, %v692
    %v695 = vadd.f32 %v688, %v693
    %v696 = vsel %vm611, %v695, -inf
    %697 = vmax.xlane.f32.xlu0 %v696
    %v698 = vpop.xlane.xlu0 %697
    %v699 = vsub.f32 %v695, %v698
    %v700 = vmul.f32 %v699, 1.442695
    %v701 = vpow.pop %v700
    %v702 = vsel %vm611, %v701, 0.0
    %703 = vadd.xlane.f32.xlu0 %v702
    %v704 = vpop.xlane.xlu0 %703
    %v705 = vrcp.pop %v704
    %v706 = vmul.f32 %v701, %v705
    %v708 = vsel %vm611, %v706, 0
    %710 = vmatprep.subr.mxu0 0.0
    %711 = vmatpush1.msra.mxu0 0.0
    %712 = vmatprep.subr.mxu0 0.0
    %713 = vmatpush1.msra.mxu0 0.0
    %714 = vmatprep.subr.mxu0 0.0
    %715 = vmatpush1.msra.mxu0 0.0
    %716 = vmatprep.subr.mxu0 0.0
    %717 = vmatpush1.msra.mxu0 0.0
    %718 = vmatprep.subr.mxu0 0.0
    %719 = vmatpush1.msra.mxu0 0.0
    %720 = vmatprep.subr.mxu0 0.0
    %721 = vmatpush1.msra.mxu0 0.0
    %722 = vmatprep.subr.mxu0 0.0
    %723 = vmatpush1.msra.mxu0 0.0
    %724 = vmatprep.subr.mxu0 0.0
    %725 = vmatpush1.msra.mxu0 0.0
    %726 = vmatprep.subr.mxu0 0.0
    %727 = vmatpush1.msra.mxu0 0.0
    %728 = vmatprep.subr.mxu0 0.0
    %729 = vmatpush1.msra.mxu0 0.0
    %730 = vmatprep.subr.mxu0 0.0
    %731 = vmatpush1.msra.mxu0 0.0
    %732 = vmatprep.subr.mxu0 0.0
    %733 = vmatpush1.msra.mxu0 0.0
    %734 = vmatprep.subr.mxu0 0.0
    %735 = vmatpush1.msra.mxu0 0.0
    %736 = vmatprep.subr.mxu0 0.0
    %737 = vmatpush1.msra.mxu0 0.0
    %738 = vmatprep.subr.mxu0 0.0
    %739 = vmatpush1.msra.mxu0 0.0
    %740 = vmatprep.subr.mxu0 0.0
    %741 = vmatpush1.msra.mxu0 %v602
    %742 = vmatprep.subr.mxu0 0.0
    %743 = vmatpush2.msra.mxu0 0.0
    %744 = vmatprep.subr.mxu0 0.0
    %745 = vmatpush2.msra.mxu0 0.0
    %746 = vmatprep.subr.mxu0 0.0
    %747 = vmatpush2.msra.mxu0 0.0
    %748 = vmatprep.subr.mxu0 0.0
    %749 = vmatpush2.msra.mxu0 0.0
    %750 = vmatprep.subr.mxu0 0.0
    %751 = vmatpush2.msra.mxu0 0.0
    %752 = vmatprep.subr.mxu0 0.0
    %753 = vmatpush2.msra.mxu0 0.0
    %754 = vmatprep.subr.mxu0 0.0
    %755 = vmatpush2.msra.mxu0 0.0
    %756 = vmatprep.subr.mxu0 0.0
    %757 = vmatpush2.msra.mxu0 0.0
    %758 = vmatprep.subr.mxu0 0.0
    %759 = vmatpush2.msra.mxu0 0.0
    %760 = vmatprep.subr.mxu0 0.0
    %761 = vmatpush2.msra.mxu0 0.0
    %762 = vmatprep.subr.mxu0 0.0
    %763 = vmatpush2.msra.mxu0 0.0
    %764 = vmatprep.subr.mxu0 0.0
    %765 = vmatpush2.msra.mxu0 0.0
    %766 = vmatprep.subr.mxu0 0.0
    %767 = vmatpush2.msra.mxu0 0.0
    %768 = vmatprep.subr.mxu0 0.0
    %769 = vmatpush2.msra.mxu0 0.0
    %770 = vmatprep.subr.mxu0 0.0
    %771 = vmatpush2.msra.mxu0 0.0
    %772 = vmatprep.subr.mxu0 0.0
    %773 = vmatpush2.msra.mxu0 0.0
    %774 = vmatprep.mubr.f32.mxu0 0.0
    %775 = vmatmul.mubr.f32.gmra.mxu0 %v708
    %v776 = vpop.f32.mrf.mxu0
    %v777 = vadd.f32 0.0, %v776
    %v778 = vpop.f32.mrf.mxu0
    %779 = vdwg.mxu0
    %780 = vrot.lane.b32.xlu0 %v444, 120
    %v781 = vpop.permute.xlu0 %780
    %782 = vrot.lane.b32.xlu0 %v523, 120
    %v783 = vpop.permute.xlu0 %782
    %v784 = vsel %vm611, %v781, 0
    %v786 = vsel %vm611, %v783, 0
    %788 = vmatprep.subr.mxu0 0.0
    %789 = vmatpush1.xpose.msra.mxu0 0.0
    %790 = vmatprep.subr.mxu0 0.0
    %791 = vmatpush1.xpose.msra.mxu0 0.0
    %792 = vmatprep.subr.mxu0 0.0
    %793 = vmatpush1.xpose.msra.mxu0 0.0
    %794 = vmatprep.subr.mxu0 0.0
    %795 = vmatpush1.xpose.msra.mxu0 0.0
    %796 = vmatprep.subr.mxu0 0.0
    %797 = vmatpush1.xpose.msra.mxu0 0.0
    %798 = vmatprep.subr.mxu0 0.0
    %799 = vmatpush1.xpose.msra.mxu0 0.0
    %800 = vmatprep.subr.mxu0 0.0
    %801 = vmatpush1.xpose.msra.mxu0 0.0
    %802 = vmatprep.subr.mxu0 0.0
    %803 = vmatpush1.xpose.msra.mxu0 0.0
    %804 = vmatprep.subr.mxu0 0.0
    %805 = vmatpush1.xpose.msra.mxu0 0.0
    %806 = vmatprep.subr.mxu0 0.0
    %807 = vmatpush1.xpose.msra.mxu0 0.0
    %808 = vmatprep.subr.mxu0 0.0
    %809 = vmatpush1.xpose.msra.mxu0 0.0
    %810 = vmatprep.subr.mxu0 0.0
    %811 = vmatpush1.xpose.msra.mxu0 0.0
    %812 = vmatprep.subr.mxu0 0.0
    %813 = vmatpush1.xpose.msra.mxu0 0.0
    %814 = vmatprep.subr.mxu0 0.0
    %815 = vmatpush1.xpose.msra.mxu0 0.0
    %816 = vmatprep.subr.mxu0 0.0
    %817 = vmatpush1.xpose.msra.mxu0 0.0
    %818 = vmatprep.subr.mxu0 0.0
    %819 = vmatpush1.xpose.msra.mxu0 %v786
    %820 = vmatprep.subr.mxu0 0.0
    %821 = vmatpush2.xpose.msra.mxu0 0.0
    %822 = vmatprep.subr.mxu0 0.0
    %823 = vmatpush2.xpose.msra.mxu0 0.0
    %824 = vmatprep.subr.mxu0 0.0
    %825 = vmatpush2.xpose.msra.mxu0 0.0
    %826 = vmatprep.subr.mxu0 0.0
    %827 = vmatpush2.xpose.msra.mxu0 0.0
    %828 = vmatprep.subr.mxu0 0.0
    %829 = vmatpush2.xpose.msra.mxu0 0.0
    %830 = vmatprep.subr.mxu0 0.0
    %831 = vmatpush2.xpose.msra.mxu0 0.0
    %832 = vmatprep.subr.mxu0 0.0
    %833 = vmatpush2.xpose.msra.mxu0 0.0
    %834 = vmatprep.subr.mxu0 0.0
    %835 = vmatpush2.xpose.msra.mxu0 0.0
    %836 = vmatprep.subr.mxu0 0.0
    %837 = vmatpush2.xpose.msra.mxu0 0.0
    %838 = vmatprep.subr.mxu0 0.0
    %839 = vmatpush2.xpose.msra.mxu0 0.0
    %840 = vmatprep.subr.mxu0 0.0
    %841 = vmatpush2.xpose.msra.mxu0 0.0
    %842 = vmatprep.subr.mxu0 0.0
    %843 = vmatpush2.xpose.msra.mxu0 0.0
    %844 = vmatprep.subr.mxu0 0.0
    %845 = vmatpush2.xpose.msra.mxu0 0.0
    %846 = vmatprep.subr.mxu0 0.0
    %847 = vmatpush2.xpose.msra.mxu0 0.0
    %848 = vmatprep.subr.mxu0 0.0
    %849 = vmatpush2.xpose.msra.mxu0 0.0
    %850 = vmatprep.subr.mxu0 0.0
    %851 = vmatpush2.xpose.msra.mxu0 0.0
    %852 = vmatprep.mubr.f32.mxu0 0.0
    %853 = vmatmul.mubr.f32.gmra.mxu0 %v784
    %v854 = vpop.f32.mrf.mxu0
    %v855 = vadd.f32 0.0, %v854
    %v856 = vpop.f32.mrf.mxu0
    %857 = vdwg.mxu0
    %v858 = vmul.f32 %v855, 0.35355338
    %v859 = vadd.f32 %v858, %v693
    %v860 = vsel %vm611, %v859, -inf
    %861 = vmax.xlane.f32.xlu0 %v860
    %v862 = vpop.xlane.xlu0 %861
    %v863 = vsub.f32 %v859, %v862
    %v864 = vmul.f32 %v863, 1.442695
    %v865 = vpow.pop %v864
    %v866 = vsel %vm611, %v865, 0.0
    %867 = vadd.xlane.f32.xlu0 %v866
    %v868 = vpop.xlane.xlu0 %867
    %v869 = vrcp.pop %v868
    %v870 = vmul.f32 %v865, %v869
    %872 = vrot.lane.b32.xlu0 %v602, 120
    %v873 = vpop.permute.xlu0 %872
    %v876 = vsel %vm611, %v870, 0
    %878 = vmatprep.subr.mxu0 0.0
    %879 = vmatpush1.msra.mxu0 0.0
    %880 = vmatprep.subr.mxu0 0.0
    %881 = vmatpush1.msra.mxu0 0.0
    %882 = vmatprep.subr.mxu0 0.0
    %883 = vmatpush1.msra.mxu0 0.0
    %884 = vmatprep.subr.mxu0 0.0
    %885 = vmatpush1.msra.mxu0 0.0
    %886 = vmatprep.subr.mxu0 0.0
    %887 = vmatpush1.msra.mxu0 0.0
    %888 = vmatprep.subr.mxu0 0.0
    %889 = vmatpush1.msra.mxu0 0.0
    %890 = vmatprep.subr.mxu0 0.0
    %891 = vmatpush1.msra.mxu0 0.0
    %892 = vmatprep.subr.mxu0 0.0
    %893 = vmatpush1.msra.mxu0 0.0
    %894 = vmatprep.subr.mxu0 0.0
    %895 = vmatpush1.msra.mxu0 0.0
    %896 = vmatprep.subr.mxu0 0.0
    %897 = vmatpush1.msra.mxu0 0.0
    %898 = vmatprep.subr.mxu0 0.0
    %899 = vmatpush1.msra.mxu0 0.0
    %900 = vmatprep.subr.mxu0 0.0
    %901 = vmatpush1.msra.mxu0 0.0
    %902 = vmatprep.subr.mxu0 0.0
    %903 = vmatpush1.msra.mxu0 0.0
    %904 = vmatprep.subr.mxu0 0.0
    %905 = vmatpush1.msra.mxu0 0.0
    %906 = vmatprep.subr.mxu0 0.0
    %907 = vmatpush1.msra.mxu0 0.0
    %908 = vmatprep.subr.mxu0 0.0
    %909 = vmatpush1.msra.mxu0 %v873
    %910 = vmatprep.subr.mxu0 0.0
    %911 = vmatpush2.msra.mxu0 0.0
    %912 = vmatprep.subr.mxu0 0.0
    %913 = vmatpush2.msra.mxu0 0.0
    %914 = vmatprep.subr.mxu0 0.0
    %915 = vmatpush2.msra.mxu0 0.0
    %916 = vmatprep.subr.mxu0 0.0
    %917 = vmatpush2.msra.mxu0 0.0
    %918 = vmatprep.subr.mxu0 0.0
    %919 = vmatpush2.msra.mxu0 0.0
    %920 = vmatprep.subr.mxu0 0.0
    %921 = vmatpush2.msra.mxu0 0.0
    %922 = vmatprep.subr.mxu0 0.0
    %923 = vmatpush2.msra.mxu0 0.0
    %924 = vmatprep.subr.mxu0 0.0
    %925 = vmatpush2.msra.mxu0 0.0
    %926 = vmatprep.subr.mxu0 0.0
    %927 = vmatpush2.msra.mxu0 0.0
    %928 = vmatprep.subr.mxu0 0.0
    %929 = vmatpush2.msra.mxu0 0.0
    %930 = vmatprep.subr.mxu0 0.0
    %931 = vmatpush2.msra.mxu0 0.0
    %932 = vmatprep.subr.mxu0 0.0
    %933 = vmatpush2.msra.mxu0 0.0
    %934 = vmatprep.subr.mxu0 0.0
    %935 = vmatpush2.msra.mxu0 0.0
    %936 = vmatprep.subr.mxu0 0.0
    %937 = vmatpush2.msra.mxu0 0.0
    %938 = vmatprep.subr.mxu0 0.0
    %939 = vmatpush2.msra.mxu0 0.0
    %940 = vmatprep.subr.mxu0 0.0
    %941 = vmatpush2.msra.mxu0 0.0
    %942 = vmatprep.mubr.f32.mxu0 0.0
    %943 = vmatmul.mubr.f32.gmra.mxu0 %v876
    %v944 = vpop.f32.mrf.mxu0
    %v945 = vadd.f32 0.0, %v944
    %v946 = vpop.f32.mrf.mxu0
    %947 = vdwg.mxu0
    %948 = vrot.lane.b32.xlu0 %v444, 112
    %v949 = vpop.permute.xlu0 %948
    %950 = vrot.lane.b32.xlu0 %v523, 112
    %v951 = vpop.permute.xlu0 %950
    %v952 = vsel %vm611, %v949, 0
    %v954 = vsel %vm611, %v951, 0
    %956 = vmatprep.subr.mxu0 0.0
    %957 = vmatpush1.xpose.msra.mxu0 0.0
    %958 = vmatprep.subr.mxu0 0.0
    %959 = vmatpush1.xpose.msra.mxu0 0.0
    %960 = vmatprep.subr.mxu0 0.0
    %961 = vmatpush1.xpose.msra.mxu0 0.0
    %962 = vmatprep.subr.mxu0 0.0
    %963 = vmatpush1.xpose.msra.mxu0 0.0
    %964 = vmatprep.subr.mxu0 0.0
    %965 = vmatpush1.xpose.msra.mxu0 0.0
    %966 = vmatprep.subr.mxu0 0.0
    %967 = vmatpush1.xpose.msra.mxu0 0.0
    %968 = vmatprep.subr.mxu0 0.0
    %969 = vmatpush1.xpose.msra.mxu0 0.0
    %970 = vmatprep.subr.mxu0 0.0
    %971 = vmatpush1.xpose.msra.mxu0 0.0
    %972 = vmatprep.subr.mxu0 0.0
    %973 = vmatpush1.xpose.msra.mxu0 0.0
    %974 = vmatprep.subr.mxu0 0.0
    %975 = vmatpush1.xpose.msra.mxu0 0.0
    %976 = vmatprep.subr.mxu0 0.0
    %977 = vmatpush1.xpose.msra.mxu0 0.0
    %978 = vmatprep.subr.mxu0 0.0
    %979 = vmatpush1.xpose.msra.mxu0 0.0
    %980 = vmatprep.subr.mxu0 0.0
    %981 = vmatpush1.xpose.msra.mxu0 0.0
    %982 = vmatprep.subr.mxu0 0.0
    %983 = vmatpush1.xpose.msra.mxu0 0.0
    %984 = vmatprep.subr.mxu0 0.0
    %985 = vmatpush1.xpose.msra.mxu0 0.0
    %986 = vmatprep.subr.mxu0 0.0
    %987 = vmatpush1.xpose.msra.mxu0 %v954
    %988 = vmatprep.subr.mxu0 0.0
    %989 = vmatpush2.xpose.msra.mxu0 0.0
    %990 = vmatprep.subr.mxu0 0.0
    %991 = vmatpush2.xpose.msra.mxu0 0.0
    %992 = vmatprep.subr.mxu0 0.0
    %993 = vmatpush2.xpose.msra.mxu0 0.0
    %994 = vmatprep.subr.mxu0 0.0
    %995 = vmatpush2.xpose.msra.mxu0 0.0
    %996 = vmatprep.subr.mxu0 0.0
    %997 = vmatpush2.xpose.msra.mxu0 0.0
    %998 = vmatprep.subr.mxu0 0.0
    %999 = vmatpush2.xpose.msra.mxu0 0.0
    %1000 = vmatprep.subr.mxu0 0.0
    %1001 = vmatpush2.xpose.msra.mxu0 0.0
    %1002 = vmatprep.subr.mxu0 0.0
    %1003 = vmatpush2.xpose.msra.mxu0 0.0
    %1004 = vmatprep.subr.mxu0 0.0
    %1005 = vmatpush2.xpose.msra.mxu0 0.0
    %1006 = vmatprep.subr.mxu0 0.0
    %1007 = vmatpush2.xpose.msra.mxu0 0.0
    %1008 = vmatprep.subr.mxu0 0.0
    %1009 = vmatpush2.xpose.msra.mxu0 0.0
    %1010 = vmatprep.subr.mxu0 0.0
    %1011 = vmatpush2.xpose.msra.mxu0 0.0
    %1012 = vmatprep.subr.mxu0 0.0
    %1013 = vmatpush2.xpose.msra.mxu0 0.0
    %1014 = vmatprep.subr.mxu0 0.0
    %1015 = vmatpush2.xpose.msra.mxu0 0.0
    %1016 = vmatprep.subr.mxu0 0.0
    %1017 = vmatpush2.xpose.msra.mxu0 0.0
    %1018 = vmatprep.subr.mxu0 0.0
    %1019 = vmatpush2.xpose.msra.mxu0 0.0
    %1020 = vmatprep.mubr.f32.mxu0 0.0
    %1021 = vmatmul.mubr.f32.gmra.mxu0 %v952
    %v1022 = vpop.f32.mrf.mxu0
    %v1023 = vadd.f32 0.0, %v1022
    %v1024 = vpop.f32.mrf.mxu0
    %1025 = vdwg.mxu0
    %v1026 = vmul.f32 %v1023, 0.35355338
    %v1027 = vadd.f32 %v1026, %v693
    %v1028 = vsel %vm611, %v1027, -inf
    %1029 = vmax.xlane.f32.xlu0 %v1028
    %v1030 = vpop.xlane.xlu0 %1029
    %v1031 = vsub.f32 %v1027, %v1030
    %v1032 = vmul.f32 %v1031, 1.442695
    %v1033 = vpow.pop %v1032
    %v1034 = vsel %vm611, %v1033, 0.0
    %1035 = vadd.xlane.f32.xlu0 %v1034
    %v1036 = vpop.xlane.xlu0 %1035
    %v1037 = vrcp.pop %v1036
    %v1038 = vmul.f32 %v1033, %v1037
    %1039 = vrot.lane.b32.xlu0 %v602, 112
    %v1040 = vpop.permute.xlu0 %1039
    %v1043 = vsel %vm611, %v1038, 0
    %1045 = vmatprep.subr.mxu0 0.0
    %1046 = vmatpush1.msra.mxu0 0.0
    %1047 = vmatprep.subr.mxu0 0.0
    %1048 = vmatpush1.msra.mxu0 0.0
    %1049 = vmatprep.subr.mxu0 0.0
    %1050 = vmatpush1.msra.mxu0 0.0
    %1051 = vmatprep.subr.mxu0 0.0
    %1052 = vmatpush1.msra.mxu0 0.0
    %1053 = vmatprep.subr.mxu0 0.0
    %1054 = vmatpush1.msra.mxu0 0.0
    %1055 = vmatprep.subr.mxu0 0.0
    %1056 = vmatpush1.msra.mxu0 0.0
    %1057 = vmatprep.subr.mxu0 0.0
    %1058 = vmatpush1.msra.mxu0 0.0
    %1059 = vmatprep.subr.mxu0 0.0
    %1060 = vmatpush1.msra.mxu0 0.0
    %1061 = vmatprep.subr.mxu0 0.0
    %1062 = vmatpush1.msra.mxu0 0.0
    %1063 = vmatprep.subr.mxu0 0.0
    %1064 = vmatpush1.msra.mxu0 0.0
    %1065 = vmatprep.subr.mxu0 0.0
    %1066 = vmatpush1.msra.mxu0 0.0
    %1067 = vmatprep.subr.mxu0 0.0
    %1068 = vmatpush1.msra.mxu0 0.0
    %1069 = vmatprep.subr.mxu0 0.0
    %1070 = vmatpush1.msra.mxu0 0.0
    %1071 = vmatprep.subr.mxu0 0.0
    %1072 = vmatpush1.msra.mxu0 0.0
    %1073 = vmatprep.subr.mxu0 0.0
    %1074 = vmatpush1.msra.mxu0 0.0
    %1075 = vmatprep.subr.mxu0 0.0
    %1076 = vmatpush1.msra.mxu0 %v1040
    %1077 = vmatprep.subr.mxu0 0.0
    %1078 = vmatpush2.msra.mxu0 0.0
    %1079 = vmatprep.subr.mxu0 0.0
    %1080 = vmatpush2.msra.mxu0 0.0
    %1081 = vmatprep.subr.mxu0 0.0
    %1082 = vmatpush2.msra.mxu0 0.0
    %1083 = vmatprep.subr.mxu0 0.0
    %1084 = vmatpush2.msra.mxu0 0.0
    %1085 = vmatprep.subr.mxu0 0.0
    %1086 = vmatpush2.msra.mxu0 0.0
    %1087 = vmatprep.subr.mxu0 0.0
    %1088 = vmatpush2.msra.mxu0 0.0
    %1089 = vmatprep.subr.mxu0 0.0
    %1090 = vmatpush2.msra.mxu0 0.0
    %1091 = vmatprep.subr.mxu0 0.0
    %1092 = vmatpush2.msra.mxu0 0.0
    %1093 = vmatprep.subr.mxu0 0.0
    %1094 = vmatpush2.msra.mxu0 0.0
    %1095 = vmatprep.subr.mxu0 0.0
    %1096 = vmatpush2.msra.mxu0 0.0
    %1097 = vmatprep.subr.mxu0 0.0
    %1098 = vmatpush2.msra.mxu0 0.0
    %1099 = vmatprep.subr.mxu0 0.0
    %1100 = vmatpush2.msra.mxu0 0.0
    %1101 = vmatprep.subr.mxu0 0.0
    %1102 = vmatpush2.msra.mxu0 0.0
    %1103 = vmatprep.subr.mxu0 0.0
    %1104 = vmatpush2.msra.mxu0 0.0
    %1105 = vmatprep.subr.mxu0 0.0
    %1106 = vmatpush2.msra.mxu0 0.0
    %1107 = vmatprep.subr.mxu0 0.0
    %1108 = vmatpush2.msra.mxu0 0.0
    %1109 = vmatprep.mubr.f32.mxu0 0.0
    %1110 = vmatmul.mubr.f32.gmra.mxu0 %v1043
    %v1111 = vpop.f32.mrf.mxu0
    %v1112 = vadd.f32 0.0, %v1111
    %v1113 = vpop.f32.mrf.mxu0
    %1114 = vdwg.mxu0
    %1115 = vrot.lane.b32.xlu0 %v444, 104
    %v1116 = vpop.permute.xlu0 %1115
    %1117 = vrot.lane.b32.xlu0 %v523, 104
    %v1118 = vpop.permute.xlu0 %1117
    %v1119 = vsel %vm611, %v1116, 0
    %v1121 = vsel %vm611, %v1118, 0
    %1123 = vmatprep.subr.mxu0 0.0
    %1124 = vmatpush1.xpose.msra.mxu0 0.0
    %1125 = vmatprep.subr.mxu0 0.0
    %1126 = vmatpush1.xpose.msra.mxu0 0.0
    %1127 = vmatprep.subr.mxu0 0.0
    %1128 = vmatpush1.xpose.msra.mxu0 0.0
    %1129 = vmatprep.subr.mxu0 0.0
    %1130 = vmatpush1.xpose.msra.mxu0 0.0
    %1131 = vmatprep.subr.mxu0 0.0
    %1132 = vmatpush1.xpose.msra.mxu0 0.0
    %1133 = vmatprep.subr.mxu0 0.0
    %1134 = vmatpush1.xpose.msra.mxu0 0.0
    %1135 = vmatprep.subr.mxu0 0.0
    %1136 = vmatpush1.xpose.msra.mxu0 0.0
    %1137 = vmatprep.subr.mxu0 0.0
    %1138 = vmatpush1.xpose.msra.mxu0 0.0
    %1139 = vmatprep.subr.mxu0 0.0
    %1140 = vmatpush1.xpose.msra.mxu0 0.0
    %1141 = vmatprep.subr.mxu0 0.0
    %1142 = vmatpush1.xpose.msra.mxu0 0.0
    %1143 = vmatprep.subr.mxu0 0.0
    %1144 = vmatpush1.xpose.msra.mxu0 0.0
    %1145 = vmatprep.subr.mxu0 0.0
    %1146 = vmatpush1.xpose.msra.mxu0 0.0
    %1147 = vmatprep.subr.mxu0 0.0
    %1148 = vmatpush1.xpose.msra.mxu0 0.0
    %1149 = vmatprep.subr.mxu0 0.0
    %1150 = vmatpush1.xpose.msra.mxu0 0.0
    %1151 = vmatprep.subr.mxu0 0.0
    %1152 = vmatpush1.xpose.msra.mxu0 0.0
    %1153 = vmatprep.subr.mxu0 0.0
    %1154 = vmatpush1.xpose.msra.mxu0 %v1121
    %1155 = vmatprep.subr.mxu0 0.0
    %1156 = vmatpush2.xpose.msra.mxu0 0.0
    %1157 = vmatprep.subr.mxu0 0.0
    %1158 = vmatpush2.xpose.msra.mxu0 0.0
    %1159 = vmatprep.subr.mxu0 0.0
    %1160 = vmatpush2.xpose.msra.mxu0 0.0
    %1161 = vmatprep.subr.mxu0 0.0
    %1162 = vmatpush2.xpose.msra.mxu0 0.0
    %1163 = vmatprep.subr.mxu0 0.0
    %1164 = vmatpush2.xpose.msra.mxu0 0.0
    %1165 = vmatprep.subr.mxu0 0.0
    %1166 = vmatpush2.xpose.msra.mxu0 0.0
    %1167 = vmatprep.subr.mxu0 0.0
    %1168 = vmatpush2.xpose.msra.mxu0 0.0
    %1169 = vmatprep.subr.mxu0 0.0
    %1170 = vmatpush2.xpose.msra.mxu0 0.0
    %1171 = vmatprep.subr.mxu0 0.0
    %1172 = vmatpush2.xpose.msra.mxu0 0.0
    %1173 = vmatprep.subr.mxu0 0.0
    %1174 = vmatpush2.xpose.msra.mxu0 0.0
    %1175 = vmatprep.subr.mxu0 0.0
    %1176 = vmatpush2.xpose.msra.mxu0 0.0
    %1177 = vmatprep.subr.mxu0 0.0
    %1178 = vmatpush2.xpose.msra.mxu0 0.0
    %1179 = vmatprep.subr.mxu0 0.0
    %1180 = vmatpush2.xpose.msra.mxu0 0.0
    %1181 = vmatprep.subr.mxu0 0.0
    %1182 = vmatpush2.xpose.msra.mxu0 0.0
    %1183 = vmatprep.subr.mxu0 0.0
    %1184 = vmatpush2.xpose.msra.mxu0 0.0
    %1185 = vmatprep.subr.mxu0 0.0
    %1186 = vmatpush2.xpose.msra.mxu0 0.0
    %1187 = vmatprep.mubr.f32.mxu0 0.0
    %1188 = vmatmul.mubr.f32.gmra.mxu0 %v1119
    %v1189 = vpop.f32.mrf.mxu0
    %v1190 = vadd.f32 0.0, %v1189
    %v1191 = vpop.f32.mrf.mxu0
    %1192 = vdwg.mxu0
    %v1193 = vmul.f32 %v1190, 0.35355338
    %v1194 = vadd.f32 %v1193, %v693
    %v1195 = vsel %vm611, %v1194, -inf
    %1196 = vmax.xlane.f32.xlu0 %v1195
    %v1197 = vpop.xlane.xlu0 %1196
    %v1198 = vsub.f32 %v1194, %v1197
    %v1199 = vmul.f32 %v1198, 1.442695
    %v1200 = vpow.pop %v1199
    %v1201 = vsel %vm611, %v1200, 0.0
    %1202 = vadd.xlane.f32.xlu0 %v1201
    %v1203 = vpop.xlane.xlu0 %1202
    %v1204 = vrcp.pop %v1203
    %v1205 = vmul.f32 %v1200, %v1204
    %1206 = vrot.lane.b32.xlu0 %v602, 104
    %v1207 = vpop.permute.xlu0 %1206
    %v1210 = vsel %vm611, %v1205, 0
    %1212 = vmatprep.subr.mxu0 0.0
    %1213 = vmatpush1.msra.mxu0 0.0
    %1214 = vmatprep.subr.mxu0 0.0
    %1215 = vmatpush1.msra.mxu0 0.0
    %1216 = vmatprep.subr.mxu0 0.0
    %1217 = vmatpush1.msra.mxu0 0.0
    %1218 = vmatprep.subr.mxu0 0.0
    %1219 = vmatpush1.msra.mxu0 0.0
    %1220 = vmatprep.subr.mxu0 0.0
    %1221 = vmatpush1.msra.mxu0 0.0
    %1222 = vmatprep.subr.mxu0 0.0
    %1223 = vmatpush1.msra.mxu0 0.0
    %1224 = vmatprep.subr.mxu0 0.0
    %1225 = vmatpush1.msra.mxu0 0.0
    %1226 = vmatprep.subr.mxu0 0.0
    %1227 = vmatpush1.msra.mxu0 0.0
    %1228 = vmatprep.subr.mxu0 0.0
    %1229 = vmatpush1.msra.mxu0 0.0
    %1230 = vmatprep.subr.mxu0 0.0
    %1231 = vmatpush1.msra.mxu0 0.0
    %1232 = vmatprep.subr.mxu0 0.0
    %1233 = vmatpush1.msra.mxu0 0.0
    %1234 = vmatprep.subr.mxu0 0.0
    %1235 = vmatpush1.msra.mxu0 0.0
    %1236 = vmatprep.subr.mxu0 0.0
    %1237 = vmatpush1.msra.mxu0 0.0
    %1238 = vmatprep.subr.mxu0 0.0
    %1239 = vmatpush1.msra.mxu0 0.0
    %1240 = vmatprep.subr.mxu0 0.0
    %1241 = vmatpush1.msra.mxu0 0.0
    %1242 = vmatprep.subr.mxu0 0.0
    %1243 = vmatpush1.msra.mxu0 %v1207
    %1244 = vmatprep.subr.mxu0 0.0
    %1245 = vmatpush2.msra.mxu0 0.0
    %1246 = vmatprep.subr.mxu0 0.0
    %1247 = vmatpush2.msra.mxu0 0.0
    %1248 = vmatprep.subr.mxu0 0.0
    %1249 = vmatpush2.msra.mxu0 0.0
    %1250 = vmatprep.subr.mxu0 0.0
    %1251 = vmatpush2.msra.mxu0 0.0
    %1252 = vmatprep.subr.mxu0 0.0
    %1253 = vmatpush2.msra.mxu0 0.0
    %1254 = vmatprep.subr.mxu0 0.0
    %1255 = vmatpush2.msra.mxu0 0.0
    %1256 = vmatprep.subr.mxu0 0.0
    %1257 = vmatpush2.msra.mxu0 0.0
    %1258 = vmatprep.subr.mxu0 0.0
    %1259 = vmatpush2.msra.mxu0 0.0
    %1260 = vmatprep.subr.mxu0 0.0
    %1261 = vmatpush2.msra.mxu0 0.0
    %1262 = vmatprep.subr.mxu0 0.0
    %1263 = vmatpush2.msra.mxu0 0.0
    %1264 = vmatprep.subr.mxu0 0.0
    %1265 = vmatpush2.msra.mxu0 0.0
    %1266 = vmatprep.subr.mxu0 0.0
    %1267 = vmatpush2.msra.mxu0 0.0
    %1268 = vmatprep.subr.mxu0 0.0
    %1269 = vmatpush2.msra.mxu0 0.0
    %1270 = vmatprep.subr.mxu0 0.0
    %1271 = vmatpush2.msra.mxu0 0.0
    %1272 = vmatprep.subr.mxu0 0.0
    %1273 = vmatpush2.msra.mxu0 0.0
    %1274 = vmatprep.subr.mxu0 0.0
    %1275 = vmatpush2.msra.mxu0 0.0
    %1276 = vmatprep.mubr.f32.mxu0 0.0
    %1277 = vmatmul.mubr.f32.gmra.mxu0 %v1210
    %v1278 = vpop.f32.mrf.mxu0
    %v1279 = vadd.f32 0.0, %v1278
    %v1280 = vpop.f32.mrf.mxu0
    %1281 = vdwg.mxu0
    %1283 = vrot.lane.b32.xlu0 %v945, 8
    %v1284 = vpop.permute.xlu0 %1283
    %1287 = vrot.lane.b32.xlu0 %v1112, 16
    %v1288 = vpop.permute.xlu0 %1287
    %1291 = vrot.lane.b32.xlu0 %v1279, 24
    %v1292 = vpop.permute.xlu0 %1291
    %v1294 = vsel %vm611, %v777, %v1284
    %vm1295 = vcmask 130048
    %v1296 = vsel %vm1295, %v1294, %v1288
    %vm1297 = vcmask 195584
    %v1298 = vsel %vm1297, %v1296, %v1292
    %s1299 = scalar_lea.vmem %s3, 1
    %v1300 = vld [vmem:[%s1299] sm:$0x1]
    %v1302 = vsel %vm611, %v449, 0
    %v1305 = vsel %vm611, %v528, 0
    %1307 = vmatprep.subr.mxu0 0.0
    %1308 = vmatpush1.xpose.msra.mxu0 0.0
    %1309 = vmatprep.subr.mxu0 0.0
    %1310 = vmatpush1.xpose.msra.mxu0 0.0
    %1311 = vmatprep.subr.mxu0 0.0
    %1312 = vmatpush1.xpose.msra.mxu0 0.0
    %1313 = vmatprep.subr.mxu0 0.0
    %1314 = vmatpush1.xpose.msra.mxu0 0.0
    %1315 = vmatprep.subr.mxu0 0.0
    %1316 = vmatpush1.xpose.msra.mxu0 0.0
    %1317 = vmatprep.subr.mxu0 0.0
    %1318 = vmatpush1.xpose.msra.mxu0 0.0
    %1319 = vmatprep.subr.mxu0 0.0
    %1320 = vmatpush1.xpose.msra.mxu0 0.0
    %1321 = vmatprep.subr.mxu0 0.0
    %1322 = vmatpush1.xpose.msra.mxu0 0.0
    %1323 = vmatprep.subr.mxu0 0.0
    %1324 = vmatpush1.xpose.msra.mxu0 0.0
    %1325 = vmatprep.subr.mxu0 0.0
    %1326 = vmatpush1.xpose.msra.mxu0 0.0
    %1327 = vmatprep.subr.mxu0 0.0
    %1328 = vmatpush1.xpose.msra.mxu0 0.0
    %1329 = vmatprep.subr.mxu0 0.0
    %1330 = vmatpush1.xpose.msra.mxu0 0.0
    %1331 = vmatprep.subr.mxu0 0.0
    %1332 = vmatpush1.xpose.msra.mxu0 0.0
    %1333 = vmatprep.subr.mxu0 0.0
    %1334 = vmatpush1.xpose.msra.mxu0 0.0
    %1335 = vmatprep.subr.mxu0 0.0
    %1336 = vmatpush1.xpose.msra.mxu0 0.0
    %1337 = vmatprep.subr.mxu0 0.0
    %1338 = vmatpush1.xpose.msra.mxu0 %v1305
    %1339 = vmatprep.subr.mxu0 0.0
    %1340 = vmatpush2.xpose.msra.mxu0 0.0
    %1341 = vmatprep.subr.mxu0 0.0
    %1342 = vmatpush2.xpose.msra.mxu0 0.0
    %1343 = vmatprep.subr.mxu0 0.0
    %1344 = vmatpush2.xpose.msra.mxu0 0.0
    %1345 = vmatprep.subr.mxu0 0.0
    %1346 = vmatpush2.xpose.msra.mxu0 0.0
    %1347 = vmatprep.subr.mxu0 0.0
    %1348 = vmatpush2.xpose.msra.mxu0 0.0
    %1349 = vmatprep.subr.mxu0 0.0
    %1350 = vmatpush2.xpose.msra.mxu0 0.0
    %1351 = vmatprep.subr.mxu0 0.0
    %1352 = vmatpush2.xpose.msra.mxu0 0.0
    %1353 = vmatprep.subr.mxu0 0.0
    %1354 = vmatpush2.xpose.msra.mxu0 0.0
    %1355 = vmatprep.subr.mxu0 0.0
    %1356 = vmatpush2.xpose.msra.mxu0 0.0
    %1357 = vmatprep.subr.mxu0 0.0
    %1358 = vmatpush2.xpose.msra.mxu0 0.0
    %1359 = vmatprep.subr.mxu0 0.0
    %1360 = vmatpush2.xpose.msra.mxu0 0.0
    %1361 = vmatprep.subr.mxu0 0.0
    %1362 = vmatpush2.xpose.msra.mxu0 0.0
    %1363 = vmatprep.subr.mxu0 0.0
    %1364 = vmatpush2.xpose.msra.mxu0 0.0
    %1365 = vmatprep.subr.mxu0 0.0
    %1366 = vmatpush2.xpose.msra.mxu0 0.0
    %1367 = vmatprep.subr.mxu0 0.0
    %1368 = vmatpush2.xpose.msra.mxu0 0.0
    %1369 = vmatprep.subr.mxu0 0.0
    %1370 = vmatpush2.xpose.msra.mxu0 0.0
    %1371 = vmatprep.mubr.f32.mxu0 0.0
    %1372 = vmatmul.mubr.f32.gmra.mxu0 %v1302
    %v1373 = vpop.f32.mrf.mxu0
    %v1374 = vadd.f32 0.0, %v1373
    %v1375 = vpop.f32.mrf.mxu0
    %1376 = vdwg.mxu0
    %v1377 = vmul.f32 %v1374, 0.35355338
    %v1379 = vlaneseq
    %v1380 = vshrl.u32 %v1379, 7
    %v1381 = vsub.s32 0, %v1380
    %v1382 = vrot.slane %v1300, %v1381
    %v1384 = vadd.f32 %v1377, %v1382
    %v1385 = vsel %vm611, %v1384, -inf
    %1386 = vmax.xlane.f32.xlu0 %v1385
    %v1387 = vpop.xlane.xlu0 %1386
    %v1388 = vsub.f32 %v1384, %v1387
    %v1389 = vmul.f32 %v1388, 1.442695
    %v1390 = vpow.pop %v1389
    %v1391 = vsel %vm611, %v1390, 0.0
    %1392 = vadd.xlane.f32.xlu0 %v1391
    %v1393 = vpop.xlane.xlu0 %1392
    %v1394 = vrcp.pop %v1393
    %v1395 = vmul.f32 %v1390, %v1394
    %v1397 = vsel %vm611, %v1395, 0
    %1399 = vmatprep.subr.mxu0 0.0
    %1400 = vmatpush1.msra.mxu0 0.0
    %1401 = vmatprep.subr.mxu0 0.0
    %1402 = vmatpush1.msra.mxu0 0.0
    %1403 = vmatprep.subr.mxu0 0.0
    %1404 = vmatpush1.msra.mxu0 0.0
    %1405 = vmatprep.subr.mxu0 0.0
    %1406 = vmatpush1.msra.mxu0 0.0
    %1407 = vmatprep.subr.mxu0 0.0
    %1408 = vmatpush1.msra.mxu0 0.0
    %1409 = vmatprep.subr.mxu0 0.0
    %1410 = vmatpush1.msra.mxu0 0.0
    %1411 = vmatprep.subr.mxu0 0.0
    %1412 = vmatpush1.msra.mxu0 0.0
    %1413 = vmatprep.subr.mxu0 0.0
    %1414 = vmatpush1.msra.mxu0 0.0
    %1415 = vmatprep.subr.mxu0 0.0
    %1416 = vmatpush1.msra.mxu0 0.0
    %1417 = vmatprep.subr.mxu0 0.0
    %1418 = vmatpush1.msra.mxu0 0.0
    %1419 = vmatprep.subr.mxu0 0.0
    %1420 = vmatpush1.msra.mxu0 0.0
    %1421 = vmatprep.subr.mxu0 0.0
    %1422 = vmatpush1.msra.mxu0 0.0
    %1423 = vmatprep.subr.mxu0 0.0
    %1424 = vmatpush1.msra.mxu0 0.0
    %1425 = vmatprep.subr.mxu0 0.0
    %1426 = vmatpush1.msra.mxu0 0.0
    %1427 = vmatprep.subr.mxu0 0.0
    %1428 = vmatpush1.msra.mxu0 0.0
    %1429 = vmatprep.subr.mxu0 0.0
    %1430 = vmatpush1.msra.mxu0 %v607
    %1431 = vmatprep.subr.mxu0 0.0
    %1432 = vmatpush2.msra.mxu0 0.0
    %1433 = vmatprep.subr.mxu0 0.0
    %1434 = vmatpush2.msra.mxu0 0.0
    %1435 = vmatprep.subr.mxu0 0.0
    %1436 = vmatpush2.msra.mxu0 0.0
    %1437 = vmatprep.subr.mxu0 0.0
    %1438 = vmatpush2.msra.mxu0 0.0
    %1439 = vmatprep.subr.mxu0 0.0
    %1440 = vmatpush2.msra.mxu0 0.0
    %1441 = vmatprep.subr.mxu0 0.0
    %1442 = vmatpush2.msra.mxu0 0.0
    %1443 = vmatprep.subr.mxu0 0.0
    %1444 = vmatpush2.msra.mxu0 0.0
    %1445 = vmatprep.subr.mxu0 0.0
    %1446 = vmatpush2.msra.mxu0 0.0
    %1447 = vmatprep.subr.mxu0 0.0
    %1448 = vmatpush2.msra.mxu0 0.0
    %1449 = vmatprep.subr.mxu0 0.0
    %1450 = vmatpush2.msra.mxu0 0.0
    %1451 = vmatprep.subr.mxu0 0.0
    %1452 = vmatpush2.msra.mxu0 0.0
    %1453 = vmatprep.subr.mxu0 0.0
    %1454 = vmatpush2.msra.mxu0 0.0
    %1455 = vmatprep.subr.mxu0 0.0
    %1456 = vmatpush2.msra.mxu0 0.0
    %1457 = vmatprep.subr.mxu0 0.0
    %1458 = vmatpush2.msra.mxu0 0.0
    %1459 = vmatprep.subr.mxu0 0.0
    %1460 = vmatpush2.msra.mxu0 0.0
    %1461 = vmatprep.subr.mxu0 0.0
    %1462 = vmatpush2.msra.mxu0 0.0
    %1463 = vmatprep.mubr.f32.mxu0 0.0
    %1464 = vmatmul.mubr.f32.gmra.mxu0 %v1397
    %v1465 = vpop.f32.mrf.mxu0
    %v1466 = vadd.f32 0.0, %v1465
    %v1467 = vpop.f32.mrf.mxu0
    %1468 = vdwg.mxu0
    %1469 = vrot.lane.b32.xlu0 %v449, 120
    %v1470 = vpop.permute.xlu0 %1469
    %1471 = vrot.lane.b32.xlu0 %v528, 120
    %v1472 = vpop.permute.xlu0 %1471
    %v1473 = vsel %vm611, %v1470, 0
    %v1475 = vsel %vm611, %v1472, 0
    %1477 = vmatprep.subr.mxu0 0.0
    %1478 = vmatpush1.xpose.msra.mxu0 0.0
    %1479 = vmatprep.subr.mxu0 0.0
    %1480 = vmatpush1.xpose.msra.mxu0 0.0
    %1481 = vmatprep.subr.mxu0 0.0
    %1482 = vmatpush1.xpose.msra.mxu0 0.0
    %1483 = vmatprep.subr.mxu0 0.0
    %1484 = vmatpush1.xpose.msra.mxu0 0.0
    %1485 = vmatprep.subr.mxu0 0.0
    %1486 = vmatpush1.xpose.msra.mxu0 0.0
    %1487 = vmatprep.subr.mxu0 0.0
    %1488 = vmatpush1.xpose.msra.mxu0 0.0
    %1489 = vmatprep.subr.mxu0 0.0
    %1490 = vmatpush1.xpose.msra.mxu0 0.0
    %1491 = vmatprep.subr.mxu0 0.0
    %1492 = vmatpush1.xpose.msra.mxu0 0.0
    %1493 = vmatprep.subr.mxu0 0.0
    %1494 = vmatpush1.xpose.msra.mxu0 0.0
    %1495 = vmatprep.subr.mxu0 0.0
    %1496 = vmatpush1.xpose.msra.mxu0 0.0
    %1497 = vmatprep.subr.mxu0 0.0
    %1498 = vmatpush1.xpose.msra.mxu0 0.0
    %1499 = vmatprep.subr.mxu0 0.0
    %1500 = vmatpush1.xpose.msra.mxu0 0.0
    %1501 = vmatprep.subr.mxu0 0.0
    %1502 = vmatpush1.xpose.msra.mxu0 0.0
    %1503 = vmatprep.subr.mxu0 0.0
    %1504 = vmatpush1.xpose.msra.mxu0 0.0
    %1505 = vmatprep.subr.mxu0 0.0
    %1506 = vmatpush1.xpose.msra.mxu0 0.0
    %1507 = vmatprep.subr.mxu0 0.0
    %1508 = vmatpush1.xpose.msra.mxu0 %v1475
    %1509 = vmatprep.subr.mxu0 0.0
    %1510 = vmatpush2.xpose.msra.mxu0 0.0
    %1511 = vmatprep.subr.mxu0 0.0
    %1512 = vmatpush2.xpose.msra.mxu0 0.0
    %1513 = vmatprep.subr.mxu0 0.0
    %1514 = vmatpush2.xpose.msra.mxu0 0.0
    %1515 = vmatprep.subr.mxu0 0.0
    %1516 = vmatpush2.xpose.msra.mxu0 0.0
    %1517 = vmatprep.subr.mxu0 0.0
    %1518 = vmatpush2.xpose.msra.mxu0 0.0
    %1519 = vmatprep.subr.mxu0 0.0
    %1520 = vmatpush2.xpose.msra.mxu0 0.0
    %1521 = vmatprep.subr.mxu0 0.0
    %1522 = vmatpush2.xpose.msra.mxu0 0.0
    %1523 = vmatprep.subr.mxu0 0.0
    %1524 = vmatpush2.xpose.msra.mxu0 0.0
    %1525 = vmatprep.subr.mxu0 0.0
    %1526 = vmatpush2.xpose.msra.mxu0 0.0
    %1527 = vmatprep.subr.mxu0 0.0
    %1528 = vmatpush2.xpose.msra.mxu0 0.0
    %1529 = vmatprep.subr.mxu0 0.0
    %1530 = vmatpush2.xpose.msra.mxu0 0.0
    %1531 = vmatprep.subr.mxu0 0.0
    %1532 = vmatpush2.xpose.msra.mxu0 0.0
    %1533 = vmatprep.subr.mxu0 0.0
    %1534 = vmatpush2.xpose.msra.mxu0 0.0
    %1535 = vmatprep.subr.mxu0 0.0
    %1536 = vmatpush2.xpose.msra.mxu0 0.0
    %1537 = vmatprep.subr.mxu0 0.0
    %1538 = vmatpush2.xpose.msra.mxu0 0.0
    %1539 = vmatprep.subr.mxu0 0.0
    %1540 = vmatpush2.xpose.msra.mxu0 0.0
    %1541 = vmatprep.mubr.f32.mxu0 0.0
    %1542 = vmatmul.mubr.f32.gmra.mxu0 %v1473
    %v1543 = vpop.f32.mrf.mxu0
    %v1544 = vadd.f32 0.0, %v1543
    %v1545 = vpop.f32.mrf.mxu0
    %1546 = vdwg.mxu0
    %v1547 = vmul.f32 %v1544, 0.35355338
    %v1548 = vadd.f32 %v1547, %v1382
    %v1549 = vsel %vm611, %v1548, -inf
    %1550 = vmax.xlane.f32.xlu0 %v1549
    %v1551 = vpop.xlane.xlu0 %1550
    %v1552 = vsub.f32 %v1548, %v1551
    %v1553 = vmul.f32 %v1552, 1.442695
    %v1554 = vpow.pop %v1553
    %v1555 = vsel %vm611, %v1554, 0.0
    %1556 = vadd.xlane.f32.xlu0 %v1555
    %v1557 = vpop.xlane.xlu0 %1556
    %v1558 = vrcp.pop %v1557
    %v1559 = vmul.f32 %v1554, %v1558
    %1561 = vrot.lane.b32.xlu0 %v607, 120
    %v1562 = vpop.permute.xlu0 %1561
    %v1565 = vsel %vm611, %v1559, 0
    %1567 = vmatprep.subr.mxu0 0.0
    %1568 = vmatpush1.msra.mxu0 0.0
    %1569 = vmatprep.subr.mxu0 0.0
    %1570 = vmatpush1.msra.mxu0 0.0
    %1571 = vmatprep.subr.mxu0 0.0
    %1572 = vmatpush1.msra.mxu0 0.0
    %1573 = vmatprep.subr.mxu0 0.0
    %1574 = vmatpush1.msra.mxu0 0.0
    %1575 = vmatprep.subr.mxu0 0.0
    %1576 = vmatpush1.msra.mxu0 0.0
    %1577 = vmatprep.subr.mxu0 0.0
    %1578 = vmatpush1.msra.mxu0 0.0
    %1579 = vmatprep.subr.mxu0 0.0
    %1580 = vmatpush1.msra.mxu0 0.0
    %1581 = vmatprep.subr.mxu0 0.0
    %1582 = vmatpush1.msra.mxu0 0.0
    %1583 = vmatprep.subr.mxu0 0.0
    %1584 = vmatpush1.msra.mxu0 0.0
    %1585 = vmatprep.subr.mxu0 0.0
    %1586 = vmatpush1.msra.mxu0 0.0
    %1587 = vmatprep.subr.mxu0 0.0
    %1588 = vmatpush1.msra.mxu0 0.0
    %1589 = vmatprep.subr.mxu0 0.0
    %1590 = vmatpush1.msra.mxu0 0.0
    %1591 = vmatprep.subr.mxu0 0.0
    %1592 = vmatpush1.msra.mxu0 0.0
    %1593 = vmatprep.subr.mxu0 0.0
    %1594 = vmatpush1.msra.mxu0 0.0
    %1595 = vmatprep.subr.mxu0 0.0
    %1596 = vmatpush1.msra.mxu0 0.0
    %1597 = vmatprep.subr.mxu0 0.0
    %1598 = vmatpush1.msra.mxu0 %v1562
    %1599 = vmatprep.subr.mxu0 0.0
    %1600 = vmatpush2.msra.mxu0 0.0
    %1601 = vmatprep.subr.mxu0 0.0
    %1602 = vmatpush2.msra.mxu0 0.0
    %1603 = vmatprep.subr.mxu0 0.0
    %1604 = vmatpush2.msra.mxu0 0.0
    %1605 = vmatprep.subr.mxu0 0.0
    %1606 = vmatpush2.msra.mxu0 0.0
    %1607 = vmatprep.subr.mxu0 0.0
    %1608 = vmatpush2.msra.mxu0 0.0
    %1609 = vmatprep.subr.mxu0 0.0
    %1610 = vmatpush2.msra.mxu0 0.0
    %1611 = vmatprep.subr.mxu0 0.0
    %1612 = vmatpush2.msra.mxu0 0.0
    %1613 = vmatprep.subr.mxu0 0.0
    %1614 = vmatpush2.msra.mxu0 0.0
    %1615 = vmatprep.subr.mxu0 0.0
    %1616 = vmatpush2.msra.mxu0 0.0
    %1617 = vmatprep.subr.mxu0 0.0
    %1618 = vmatpush2.msra.mxu0 0.0
    %1619 = vmatprep.subr.mxu0 0.0
    %1620 = vmatpush2.msra.mxu0 0.0
    %1621 = vmatprep.subr.mxu0 0.0
    %1622 = vmatpush2.msra.mxu0 0.0
    %1623 = vmatprep.subr.mxu0 0.0
    %1624 = vmatpush2.msra.mxu0 0.0
    %1625 = vmatprep.subr.mxu0 0.0
    %1626 = vmatpush2.msra.mxu0 0.0
    %1627 = vmatprep.subr.mxu0 0.0
    %1628 = vmatpush2.msra.mxu0 0.0
    %1629 = vmatprep.subr.mxu0 0.0
    %1630 = vmatpush2.msra.mxu0 0.0
    %1631 = vmatprep.mubr.f32.mxu0 0.0
    %1632 = vmatmul.mubr.f32.gmra.mxu0 %v1565
    %v1633 = vpop.f32.mrf.mxu0
    %v1634 = vadd.f32 0.0, %v1633
    %v1635 = vpop.f32.mrf.mxu0
    %1636 = vdwg.mxu0
    %1637 = vrot.lane.b32.xlu0 %v449, 112
    %v1638 = vpop.permute.xlu0 %1637
    %1639 = vrot.lane.b32.xlu0 %v528, 112
    %v1640 = vpop.permute.xlu0 %1639
    %v1641 = vsel %vm611, %v1638, 0
    %v1643 = vsel %vm611, %v1640, 0
    %1645 = vmatprep.subr.mxu0 0.0
    %1646 = vmatpush1.xpose.msra.mxu0 0.0
    %1647 = vmatprep.subr.mxu0 0.0
    %1648 = vmatpush1.xpose.msra.mxu0 0.0
    %1649 = vmatprep.subr.mxu0 0.0
    %1650 = vmatpush1.xpose.msra.mxu0 0.0
    %1651 = vmatprep.subr.mxu0 0.0
    %1652 = vmatpush1.xpose.msra.mxu0 0.0
    %1653 = vmatprep.subr.mxu0 0.0
    %1654 = vmatpush1.xpose.msra.mxu0 0.0
    %1655 = vmatprep.subr.mxu0 0.0
    %1656 = vmatpush1.xpose.msra.mxu0 0.0
    %1657 = vmatprep.subr.mxu0 0.0
    %1658 = vmatpush1.xpose.msra.mxu0 0.0
    %1659 = vmatprep.subr.mxu0 0.0
    %1660 = vmatpush1.xpose.msra.mxu0 0.0
    %1661 = vmatprep.subr.mxu0 0.0
    %1662 = vmatpush1.xpose.msra.mxu0 0.0
    %1663 = vmatprep.subr.mxu0 0.0
    %1664 = vmatpush1.xpose.msra.mxu0 0.0
    %1665 = vmatprep.subr.mxu0 0.0
    %1666 = vmatpush1.xpose.msra.mxu0 0.0
    %1667 = vmatprep.subr.mxu0 0.0
    %1668 = vmatpush1.xpose.msra.mxu0 0.0
    %1669 = vmatprep.subr.mxu0 0.0
    %1670 = vmatpush1.xpose.msra.mxu0 0.0
    %1671 = vmatprep.subr.mxu0 0.0
    %1672 = vmatpush1.xpose.msra.mxu0 0.0
    %1673 = vmatprep.subr.mxu0 0.0
    %1674 = vmatpush1.xpose.msra.mxu0 0.0
    %1675 = vmatprep.subr.mxu0 0.0
    %1676 = vmatpush1.xpose.msra.mxu0 %v1643
    %1677 = vmatprep.subr.mxu0 0.0
    %1678 = vmatpush2.xpose.msra.mxu0 0.0
    %1679 = vmatprep.subr.mxu0 0.0
    %1680 = vmatpush2.xpose.msra.mxu0 0.0
    %1681 = vmatprep.subr.mxu0 0.0
    %1682 = vmatpush2.xpose.msra.mxu0 0.0
    %1683 = vmatprep.subr.mxu0 0.0
    %1684 = vmatpush2.xpose.msra.mxu0 0.0
    %1685 = vmatprep.subr.mxu0 0.0
    %1686 = vmatpush2.xpose.msra.mxu0 0.0
    %1687 = vmatprep.subr.mxu0 0.0
    %1688 = vmatpush2.xpose.msra.mxu0 0.0
    %1689 = vmatprep.subr.mxu0 0.0
    %1690 = vmatpush2.xpose.msra.mxu0 0.0
    %1691 = vmatprep.subr.mxu0 0.0
    %1692 = vmatpush2.xpose.msra.mxu0 0.0
    %1693 = vmatprep.subr.mxu0 0.0
    %1694 = vmatpush2.xpose.msra.mxu0 0.0
    %1695 = vmatprep.subr.mxu0 0.0
    %1696 = vmatpush2.xpose.msra.mxu0 0.0
    %1697 = vmatprep.subr.mxu0 0.0
    %1698 = vmatpush2.xpose.msra.mxu0 0.0
    %1699 = vmatprep.subr.mxu0 0.0
    %1700 = vmatpush2.xpose.msra.mxu0 0.0
    %1701 = vmatprep.subr.mxu0 0.0
    %1702 = vmatpush2.xpose.msra.mxu0 0.0
    %1703 = vmatprep.subr.mxu0 0.0
    %1704 = vmatpush2.xpose.msra.mxu0 0.0
    %1705 = vmatprep.subr.mxu0 0.0
    %1706 = vmatpush2.xpose.msra.mxu0 0.0
    %1707 = vmatprep.subr.mxu0 0.0
    %1708 = vmatpush2.xpose.msra.mxu0 0.0
    %1709 = vmatprep.mubr.f32.mxu0 0.0
    %1710 = vmatmul.mubr.f32.gmra.mxu0 %v1641
    %v1711 = vpop.f32.mrf.mxu0
    %v1712 = vadd.f32 0.0, %v1711
    %v1713 = vpop.f32.mrf.mxu0
    %1714 = vdwg.mxu0
    %v1715 = vmul.f32 %v1712, 0.35355338
    %v1716 = vadd.f32 %v1715, %v1382
    %v1717 = vsel %vm611, %v1716, -inf
    %1718 = vmax.xlane.f32.xlu0 %v1717
    %v1719 = vpop.xlane.xlu0 %1718
    %v1720 = vsub.f32 %v1716, %v1719
    %v1721 = vmul.f32 %v1720, 1.442695
    %v1722 = vpow.pop %v1721
    %v1723 = vsel %vm611, %v1722, 0.0
    %1724 = vadd.xlane.f32.xlu0 %v1723
    %v1725 = vpop.xlane.xlu0 %1724
    %v1726 = vrcp.pop %v1725
    %v1727 = vmul.f32 %v1722, %v1726
    %1728 = vrot.lane.b32.xlu0 %v607, 112
    %v1729 = vpop.permute.xlu0 %1728
    %v1732 = vsel %vm611, %v1727, 0
    %1734 = vmatprep.subr.mxu0 0.0
    %1735 = vmatpush1.msra.mxu0 0.0
    %1736 = vmatprep.subr.mxu0 0.0
    %1737 = vmatpush1.msra.mxu0 0.0
    %1738 = vmatprep.subr.mxu0 0.0
    %1739 = vmatpush1.msra.mxu0 0.0
    %1740 = vmatprep.subr.mxu0 0.0
    %1741 = vmatpush1.msra.mxu0 0.0
    %1742 = vmatprep.subr.mxu0 0.0
    %1743 = vmatpush1.msra.mxu0 0.0
    %1744 = vmatprep.subr.mxu0 0.0
    %1745 = vmatpush1.msra.mxu0 0.0
    %1746 = vmatprep.subr.mxu0 0.0
    %1747 = vmatpush1.msra.mxu0 0.0
    %1748 = vmatprep.subr.mxu0 0.0
    %1749 = vmatpush1.msra.mxu0 0.0
    %1750 = vmatprep.subr.mxu0 0.0
    %1751 = vmatpush1.msra.mxu0 0.0
    %1752 = vmatprep.subr.mxu0 0.0
    %1753 = vmatpush1.msra.mxu0 0.0
    %1754 = vmatprep.subr.mxu0 0.0
    %1755 = vmatpush1.msra.mxu0 0.0
    %1756 = vmatprep.subr.mxu0 0.0
    %1757 = vmatpush1.msra.mxu0 0.0
    %1758 = vmatprep.subr.mxu0 0.0
    %1759 = vmatpush1.msra.mxu0 0.0
    %1760 = vmatprep.subr.mxu0 0.0
    %1761 = vmatpush1.msra.mxu0 0.0
    %1762 = vmatprep.subr.mxu0 0.0
    %1763 = vmatpush1.msra.mxu0 0.0
    %1764 = vmatprep.subr.mxu0 0.0
    %1765 = vmatpush1.msra.mxu0 %v1729
    %1766 = vmatprep.subr.mxu0 0.0
    %1767 = vmatpush2.msra.mxu0 0.0
    %1768 = vmatprep.subr.mxu0 0.0
    %1769 = vmatpush2.msra.mxu0 0.0
    %1770 = vmatprep.subr.mxu0 0.0
    %1771 = vmatpush2.msra.mxu0 0.0
    %1772 = vmatprep.subr.mxu0 0.0
    %1773 = vmatpush2.msra.mxu0 0.0
    %1774 = vmatprep.subr.mxu0 0.0
    %1775 = vmatpush2.msra.mxu0 0.0
    %1776 = vmatprep.subr.mxu0 0.0
    %1777 = vmatpush2.msra.mxu0 0.0
    %1778 = vmatprep.subr.mxu0 0.0
    %1779 = vmatpush2.msra.mxu0 0.0
    %1780 = vmatprep.subr.mxu0 0.0
    %1781 = vmatpush2.msra.mxu0 0.0
    %1782 = vmatprep.subr.mxu0 0.0
    %1783 = vmatpush2.msra.mxu0 0.0
    %1784 = vmatprep.subr.mxu0 0.0
    %1785 = vmatpush2.msra.mxu0 0.0
    %1786 = vmatprep.subr.mxu0 0.0
    %1787 = vmatpush2.msra.mxu0 0.0
    %1788 = vmatprep.subr.mxu0 0.0
    %1789 = vmatpush2.msra.mxu0 0.0
    %1790 = vmatprep.subr.mxu0 0.0
    %1791 = vmatpush2.msra.mxu0 0.0
    %1792 = vmatprep.subr.mxu0 0.0
    %1793 = vmatpush2.msra.mxu0 0.0
    %1794 = vmatprep.subr.mxu0 0.0
    %1795 = vmatpush2.msra.mxu0 0.0
    %1796 = vmatprep.subr.mxu0 0.0
    %1797 = vmatpush2.msra.mxu0 0.0
    %1798 = vmatprep.mubr.f32.mxu0 0.0
    %1799 = vmatmul.mubr.f32.gmra.mxu0 %v1732
    %v1800 = vpop.f32.mrf.mxu0
    %v1801 = vadd.f32 0.0, %v1800
    %v1802 = vpop.f32.mrf.mxu0
    %1803 = vdwg.mxu0
    %1804 = vrot.lane.b32.xlu0 %v449, 104
    %v1805 = vpop.permute.xlu0 %1804
    %1806 = vrot.lane.b32.xlu0 %v528, 104
    %v1807 = vpop.permute.xlu0 %1806
    %v1808 = vsel %vm611, %v1805, 0
    %v1810 = vsel %vm611, %v1807, 0
    %1812 = vmatprep.subr.mxu0 0.0
    %1813 = vmatpush1.xpose.msra.mxu0 0.0
    %1814 = vmatprep.subr.mxu0 0.0
    %1815 = vmatpush1.xpose.msra.mxu0 0.0
    %1816 = vmatprep.subr.mxu0 0.0
    %1817 = vmatpush1.xpose.msra.mxu0 0.0
    %1818 = vmatprep.subr.mxu0 0.0
    %1819 = vmatpush1.xpose.msra.mxu0 0.0
    %1820 = vmatprep.subr.mxu0 0.0
    %1821 = vmatpush1.xpose.msra.mxu0 0.0
    %1822 = vmatprep.subr.mxu0 0.0
    %1823 = vmatpush1.xpose.msra.mxu0 0.0
    %1824 = vmatprep.subr.mxu0 0.0
    %1825 = vmatpush1.xpose.msra.mxu0 0.0
    %1826 = vmatprep.subr.mxu0 0.0
    %1827 = vmatpush1.xpose.msra.mxu0 0.0
    %1828 = vmatprep.subr.mxu0 0.0
    %1829 = vmatpush1.xpose.msra.mxu0 0.0
    %1830 = vmatprep.subr.mxu0 0.0
    %1831 = vmatpush1.xpose.msra.mxu0 0.0
    %1832 = vmatprep.subr.mxu0 0.0
    %1833 = vmatpush1.xpose.msra.mxu0 0.0
    %1834 = vmatprep.subr.mxu0 0.0
    %1835 = vmatpush1.xpose.msra.mxu0 0.0
    %1836 = vmatprep.subr.mxu0 0.0
    %1837 = vmatpush1.xpose.msra.mxu0 0.0
    %1838 = vmatprep.subr.mxu0 0.0
    %1839 = vmatpush1.xpose.msra.mxu0 0.0
    %1840 = vmatprep.subr.mxu0 0.0
    %1841 = vmatpush1.xpose.msra.mxu0 0.0
    %1842 = vmatprep.subr.mxu0 0.0
    %1843 = vmatpush1.xpose.msra.mxu0 %v1810
    %1844 = vmatprep.subr.mxu0 0.0
    %1845 = vmatpush2.xpose.msra.mxu0 0.0
    %1846 = vmatprep.subr.mxu0 0.0
    %1847 = vmatpush2.xpose.msra.mxu0 0.0
    %1848 = vmatprep.subr.mxu0 0.0
    %1849 = vmatpush2.xpose.msra.mxu0 0.0
    %1850 = vmatprep.subr.mxu0 0.0
    %1851 = vmatpush2.xpose.msra.mxu0 0.0
    %1852 = vmatprep.subr.mxu0 0.0
    %1853 = vmatpush2.xpose.msra.mxu0 0.0
    %1854 = vmatprep.subr.mxu0 0.0
    %1855 = vmatpush2.xpose.msra.mxu0 0.0
    %1856 = vmatprep.subr.mxu0 0.0
    %1857 = vmatpush2.xpose.msra.mxu0 0.0
    %1858 = vmatprep.subr.mxu0 0.0
    %1859 = vmatpush2.xpose.msra.mxu0 0.0
    %1860 = vmatprep.subr.mxu0 0.0
    %1861 = vmatpush2.xpose.msra.mxu0 0.0
    %1862 = vmatprep.subr.mxu0 0.0
    %1863 = vmatpush2.xpose.msra.mxu0 0.0
    %1864 = vmatprep.subr.mxu0 0.0
    %1865 = vmatpush2.xpose.msra.mxu0 0.0
    %1866 = vmatprep.subr.mxu0 0.0
    %1867 = vmatpush2.xpose.msra.mxu0 0.0
    %1868 = vmatprep.subr.mxu0 0.0
    %1869 = vmatpush2.xpose.msra.mxu0 0.0
    %1870 = vmatprep.subr.mxu0 0.0
    %1871 = vmatpush2.xpose.msra.mxu0 0.0
    %1872 = vmatprep.subr.mxu0 0.0
    %1873 = vmatpush2.xpose.msra.mxu0 0.0
    %1874 = vmatprep.subr.mxu0 0.0
    %1875 = vmatpush2.xpose.msra.mxu0 0.0
    %1876 = vmatprep.mubr.f32.mxu0 0.0
    %1877 = vmatmul.mubr.f32.gmra.mxu0 %v1808
    %v1878 = vpop.f32.mrf.mxu0
    %v1879 = vadd.f32 0.0, %v1878
    %v1880 = vpop.f32.mrf.mxu0
    %1881 = vdwg.mxu0
    %v1882 = vmul.f32 %v1879, 0.35355338
    %v1883 = vadd.f32 %v1882, %v1382
    %v1884 = vsel %vm611, %v1883, -inf
    %1885 = vmax.xlane.f32.xlu0 %v1884
    %v1886 = vpop.xlane.xlu0 %1885
    %v1887 = vsub.f32 %v1883, %v1886
    %v1888 = vmul.f32 %v1887, 1.442695
    %v1889 = vpow.pop %v1888
    %v1890 = vsel %vm611, %v1889, 0.0
    %1891 = vadd.xlane.f32.xlu0 %v1890
    %v1892 = vpop.xlane.xlu0 %1891
    %v1893 = vrcp.pop %v1892
    %v1894 = vmul.f32 %v1889, %v1893
    %1895 = vrot.lane.b32.xlu0 %v607, 104
    %v1896 = vpop.permute.xlu0 %1895
    %v1899 = vsel %vm611, %v1894, 0
    %1901 = vmatprep.subr.mxu0 0.0
    %1902 = vmatpush1.msra.mxu0 0.0
    %1903 = vmatprep.subr.mxu0 0.0
    %1904 = vmatpush1.msra.mxu0 0.0
    %1905 = vmatprep.subr.mxu0 0.0
    %1906 = vmatpush1.msra.mxu0 0.0
    %1907 = vmatprep.subr.mxu0 0.0
    %1908 = vmatpush1.msra.mxu0 0.0
    %1909 = vmatprep.subr.mxu0 0.0
    %1910 = vmatpush1.msra.mxu0 0.0
    %1911 = vmatprep.subr.mxu0 0.0
    %1912 = vmatpush1.msra.mxu0 0.0
    %1913 = vmatprep.subr.mxu0 0.0
    %1914 = vmatpush1.msra.mxu0 0.0
    %1915 = vmatprep.subr.mxu0 0.0
    %1916 = vmatpush1.msra.mxu0 0.0
    %1917 = vmatprep.subr.mxu0 0.0
    %1918 = vmatpush1.msra.mxu0 0.0
    %1919 = vmatprep.subr.mxu0 0.0
    %1920 = vmatpush1.msra.mxu0 0.0
    %1921 = vmatprep.subr.mxu0 0.0
    %1922 = vmatpush1.msra.mxu0 0.0
    %1923 = vmatprep.subr.mxu0 0.0
    %1924 = vmatpush1.msra.mxu0 0.0
    %1925 = vmatprep.subr.mxu0 0.0
    %1926 = vmatpush1.msra.mxu0 0.0
    %1927 = vmatprep.subr.mxu0 0.0
    %1928 = vmatpush1.msra.mxu0 0.0
    %1929 = vmatprep.subr.mxu0 0.0
    %1930 = vmatpush1.msra.mxu0 0.0
    %1931 = vmatprep.subr.mxu0 0.0
    %1932 = vmatpush1.msra.mxu0 %v1896
    %1933 = vmatprep.subr.mxu0 0.0
    %1934 = vmatpush2.msra.mxu0 0.0
    %1935 = vmatprep.subr.mxu0 0.0
    %1936 = vmatpush2.msra.mxu0 0.0
    %1937 = vmatprep.subr.mxu0 0.0
    %1938 = vmatpush2.msra.mxu0 0.0
    %1939 = vmatprep.subr.mxu0 0.0
    %1940 = vmatpush2.msra.mxu0 0.0
    %1941 = vmatprep.subr.mxu0 0.0
    %1942 = vmatpush2.msra.mxu0 0.0
    %1943 = vmatprep.subr.mxu0 0.0
    %1944 = vmatpush2.msra.mxu0 0.0
    %1945 = vmatprep.subr.mxu0 0.0
    %1946 = vmatpush2.msra.mxu0 0.0
    %1947 = vmatprep.subr.mxu0 0.0
    %1948 = vmatpush2.msra.mxu0 0.0
    %1949 = vmatprep.subr.mxu0 0.0
    %1950 = vmatpush2.msra.mxu0 0.0
    %1951 = vmatprep.subr.mxu0 0.0
    %1952 = vmatpush2.msra.mxu0 0.0
    %1953 = vmatprep.subr.mxu0 0.0
    %1954 = vmatpush2.msra.mxu0 0.0
    %1955 = vmatprep.subr.mxu0 0.0
    %1956 = vmatpush2.msra.mxu0 0.0
    %1957 = vmatprep.subr.mxu0 0.0
    %1958 = vmatpush2.msra.mxu0 0.0
    %1959 = vmatprep.subr.mxu0 0.0
    %1960 = vmatpush2.msra.mxu0 0.0
    %1961 = vmatprep.subr.mxu0 0.0
    %1962 = vmatpush2.msra.mxu0 0.0
    %1963 = vmatprep.subr.mxu0 0.0
    %1964 = vmatpush2.msra.mxu0 0.0
    %1965 = vmatprep.mubr.f32.mxu0 0.0
    %1966 = vmatmul.mubr.f32.gmra.mxu0 %v1899
    %v1967 = vpop.f32.mrf.mxu0
    %v1968 = vadd.f32 0.0, %v1967
    %v1969 = vpop.f32.mrf.mxu0
    %1970 = vdwg.mxu0
    %1972 = vrot.lane.b32.xlu0 %v1634, 8
    %v1973 = vpop.permute.xlu0 %1972
    %1976 = vrot.lane.b32.xlu0 %v1801, 16
    %v1977 = vpop.permute.xlu0 %1976
    %1980 = vrot.lane.b32.xlu0 %v1968, 24
    %v1981 = vpop.permute.xlu0 %1980
    %v1983 = vsel %vm611, %v1466, %v1973
    %v1984 = vsel %vm1295, %v1983, %v1977
    %v1985 = vsel %vm1297, %v1984, %v1981
    %v1986 = vlaneseq
    %v1987 = vshrl.u32 %v1986, 7
    %v1988 = vsub.s32 5, %v1987
    %v1989 = vrot.slane %v123, %v1988
    %v1991 = vsel %vm327, %v1298, 0
    %v1994 = vsel %vm327, %v1985, 0
    %1996 = vmatprep.subr.mxu0 0.0
    %1997 = vmatpush1.msra.mxu0 0.0
    %1998 = vmatprep.subr.mxu0 0.0
    %1999 = vmatpush1.msra.mxu0 0.0
    %2000 = vmatprep.subr.mxu0 0.0
    %2001 = vmatpush1.msra.mxu0 0.0
    %2002 = vmatprep.subr.mxu0 0.0
    %2003 = vmatpush1.msra.mxu0 0.0
    %2004 = vmatprep.subr.mxu0 0.0
    %2005 = vmatpush1.msra.mxu0 0.0
    %2006 = vmatprep.subr.mxu0 0.0
    %2007 = vmatpush1.msra.mxu0 0.0
    %2008 = vmatprep.subr.mxu0 0.0
    %2009 = vmatpush1.msra.mxu0 0.0
    %2010 = vmatprep.subr.mxu0 0.0
    %2011 = vmatpush1.msra.mxu0 0.0
    %2012 = vmatprep.subr.mxu0 0.0
    %2013 = vmatpush1.msra.mxu0 0.0
    %2014 = vmatprep.subr.mxu0 0.0
    %2015 = vmatpush1.msra.mxu0 0.0
    %2016 = vmatprep.subr.mxu0 0.0
    %2017 = vmatpush1.msra.mxu0 0.0
    %2018 = vmatprep.subr.mxu0 0.0
    %2019 = vmatpush1.msra.mxu0 0.0
    %2020 = vmatprep.subr.mxu0 0.0
    %2021 = vmatpush1.msra.mxu0 %v86
    %2022 = vmatprep.subr.mxu0 0.0
    %2023 = vmatpush1.msra.mxu0 %v85
    %2024 = vmatprep.subr.mxu0 0.0
    %2025 = vmatpush1.msra.mxu0 %v84
    %2026 = vmatprep.subr.mxu0 0.0
    %2027 = vmatpush1.msra.mxu0 %v83
    %2028 = vmatprep.subr.mxu0 0.0
    %2029 = vmatpush2.msra.mxu0 0.0
    %2030 = vmatprep.subr.mxu0 0.0
    %2031 = vmatpush2.msra.mxu0 0.0
    %2032 = vmatprep.subr.mxu0 0.0
    %2033 = vmatpush2.msra.mxu0 0.0
    %2034 = vmatprep.subr.mxu0 0.0
    %2035 = vmatpush2.msra.mxu0 0.0
    %2036 = vmatprep.subr.mxu0 0.0
    %2037 = vmatpush2.msra.mxu0 0.0
    %2038 = vmatprep.subr.mxu0 0.0
    %2039 = vmatpush2.msra.mxu0 0.0
    %2040 = vmatprep.subr.mxu0 0.0
    %2041 = vmatpush2.msra.mxu0 0.0
    %2042 = vmatprep.subr.mxu0 0.0
    %2043 = vmatpush2.msra.mxu0 0.0
    %2044 = vmatprep.subr.mxu0 0.0
    %2045 = vmatpush2.msra.mxu0 0.0
    %2046 = vmatprep.subr.mxu0 0.0
    %2047 = vmatpush2.msra.mxu0 0.0
    %2048 = vmatprep.subr.mxu0 0.0
    %2049 = vmatpush2.msra.mxu0 0.0
    %2050 = vmatprep.subr.mxu0 0.0
    %2051 = vmatpush2.msra.mxu0 0.0
    %2052 = vmatprep.subr.mxu0 0.0
    %2053 = vmatpush2.msra.mxu0 0.0
    %2054 = vmatprep.subr.mxu0 0.0
    %2055 = vmatpush2.msra.mxu0 0.0
    %2056 = vmatprep.subr.mxu0 0.0
    %2057 = vmatpush2.msra.mxu0 0.0
    %2058 = vmatprep.subr.mxu0 0.0
    %2059 = vmatpush2.msra.mxu0 0.0
    %2060 = vmatprep.mubr.f32.mxu0 0.0
    %2061 = vmatmul.mubr.f32.gmra.mxu0 %v1991
    %v2062 = vpop.f32.mrf.mxu0
    %v2063 = vadd.f32 %v1989, %v2062
    %v2064 = vpop.f32.mrf.mxu0
    %2065 = vmatprep.mubr.f32.mxu0 0.0
    %2066 = vmatmul.mubr.f32.gmra.mxu0 %v1994
    %v2067 = vpop.f32.mrf.mxu0
    %v2068 = vadd.f32 %v1989, %v2067
    %v2069 = vpop.f32.mrf.mxu0
    %2070 = vdwg.mxu0
    %v2071 = vadd.f32 %v365, %v2063
    %v2072 = vadd.f32 %v366, %v2068
    %v2073 = vsel %vm327, %v2071, 0.0
    %2074 = vadd.xlane.f32.xlu0 %v2073
    %v2075 = vpop.xlane.xlu0 %2074
    %v2076 = vsel %vm327, %v2072, 0.0
    %2077 = vadd.xlane.f32.xlu0 %v2076
    %v2078 = vpop.xlane.xlu0 %2077
    %v2079 = vmul.f32 %v2075, %v334
    %v2080 = vmul.f32 %v2078, %v334
    %v2081 = vsub.f32 %v2071, %v2079
    %v2082 = vsub.f32 %v2072, %v2080
    %v2083 = vmul.f32 %v2081, %v2081
    %v2084 = vmul.f32 %v2082, %v2082
    %v2085 = vsel %vm327, %v2083, 0.0
    %2086 = vadd.xlane.f32.xlu0 %v2085
    %v2087 = vpop.xlane.xlu0 %2086
    %v2088 = vsel %vm327, %v2084, 0.0
    %2089 = vadd.xlane.f32.xlu0 %v2088
    %v2090 = vpop.xlane.xlu0 %2089
    %v2091 = vmul.f32 %v2087, %v334
    %v2092 = vmul.f32 %v2090, %v334
    %v2093 = vadd.f32 %v2091, 1e-05
    %v2094 = vadd.f32 %v2092, 1e-05
    %v2095 = vrsqrt.pop %v2093
    %v2096 = vrsqrt.pop %v2094
    %v2097 = vmul.f32 %v2081, %v2095
    %v2098 = vmul.f32 %v2082, %v2096
    %v2099 = vlaneseq
    %v2100 = vshrl.u32 %v2099, 7
    %v2101 = vsub.s32 6, %v2100
    %v2102 = vrot.slane %v123, %v2101
    %v2103 = vmul.f32 %v2097, %v2102
    %v2104 = vmul.f32 %v2098, %v2102
    %v2105 = vlaneseq
    %v2106 = vshrl.u32 %v2105, 7
    %v2107 = vsub.s32 7, %v2106
    %v2108 = vrot.slane %v123, %v2107
    %v2109 = vadd.f32 %v2103, %v2108
    %v2110 = vadd.f32 %v2104, %v2108
    %v2111 = vld [vmem:[%s8] sm:$0xff]
    %v2112 = vld [vmem:[%s8 + $0x8] sm:$0xff]
    %v2113 = vld [vmem:[%s8 + $0x10] sm:$0xff]
    %v2114 = vld [vmem:[%s8 + $0x18] sm:$0xff]
    %v2115 = vlaneseq
    %v2116 = vshrl.u32 %v2115, 7
    %v2117 = vsub.s32 0, %v2116
    %v2118 = vrot.slane %v127, %v2117
    %v2120 = vsel %vm327, %v2109, 0
    %v2123 = vsel %vm327, %v2110, 0
    %2125 = vmatprep.subr.mxu0 0.0
    %2126 = vmatpush1.msra.mxu0 0.0
    %2127 = vmatprep.subr.mxu0 0.0
    %2128 = vmatpush1.msra.mxu0 0.0
    %2129 = vmatprep.subr.mxu0 0.0
    %2130 = vmatpush1.msra.mxu0 0.0
    %2131 = vmatprep.subr.mxu0 0.0
    %2132 = vmatpush1.msra.mxu0 0.0
    %2133 = vmatprep.subr.mxu0 0.0
    %2134 = vmatpush1.msra.mxu0 0.0
    %2135 = vmatprep.subr.mxu0 0.0
    %2136 = vmatpush1.msra.mxu0 0.0
    %2137 = vmatprep.subr.mxu0 0.0
    %2138 = vmatpush1.msra.mxu0 0.0
    %2139 = vmatprep.subr.mxu0 0.0
    %2140 = vmatpush1.msra.mxu0 0.0
    %2141 = vmatprep.subr.mxu0 0.0
    %2142 = vmatpush1.msra.mxu0 0.0
    %2143 = vmatprep.subr.mxu0 0.0
    %2144 = vmatpush1.msra.mxu0 0.0
    %2145 = vmatprep.subr.mxu0 0.0
    %2146 = vmatpush1.msra.mxu0 0.0
    %2147 = vmatprep.subr.mxu0 0.0
    %2148 = vmatpush1.msra.mxu0 0.0
    %2149 = vmatprep.subr.mxu0 0.0
    %2150 = vmatpush1.msra.mxu0 %v2114
    %2151 = vmatprep.subr.mxu0 0.0
    %2152 = vmatpush1.msra.mxu0 %v2113
    %2153 = vmatprep.subr.mxu0 0.0
    %2154 = vmatpush1.msra.mxu0 %v2112
    %2155 = vmatprep.subr.mxu0 0.0
    %2156 = vmatpush1.msra.mxu0 %v2111
    %2157 = vmatprep.subr.mxu0 0.0
    %2158 = vmatpush2.msra.mxu0 0.0
    %2159 = vmatprep.subr.mxu0 0.0
    %2160 = vmatpush2.msra.mxu0 0.0
    %2161 = vmatprep.subr.mxu0 0.0
    %2162 = vmatpush2.msra.mxu0 0.0
    %2163 = vmatprep.subr.mxu0 0.0
    %2164 = vmatpush2.msra.mxu0 0.0
    %2165 = vmatprep.subr.mxu0 0.0
    %2166 = vmatpush2.msra.mxu0 0.0
    %2167 = vmatprep.subr.mxu0 0.0
    %2168 = vmatpush2.msra.mxu0 0.0
    %2169 = vmatprep.subr.mxu0 0.0
    %2170 = vmatpush2.msra.mxu0 0.0
    %2171 = vmatprep.subr.mxu0 0.0
    %2172 = vmatpush2.msra.mxu0 0.0
    %2173 = vmatprep.subr.mxu0 0.0
    %2174 = vmatpush2.msra.mxu0 0.0
    %2175 = vmatprep.subr.mxu0 0.0
    %2176 = vmatpush2.msra.mxu0 0.0
    %2177 = vmatprep.subr.mxu0 0.0
    %2178 = vmatpush2.msra.mxu0 0.0
    %2179 = vmatprep.subr.mxu0 0.0
    %2180 = vmatpush2.msra.mxu0 0.0
    %2181 = vmatprep.subr.mxu0 0.0
    %2182 = vmatpush2.msra.mxu0 0.0
    %2183 = vmatprep.subr.mxu0 0.0
    %2184 = vmatpush2.msra.mxu0 0.0
    %2185 = vmatprep.subr.mxu0 0.0
    %2186 = vmatpush2.msra.mxu0 0.0
    %2187 = vmatprep.subr.mxu0 0.0
    %2188 = vmatpush2.msra.mxu0 0.0
    %2189 = vmatprep.mubr.f32.mxu0 0.0
    %2190 = vmatmul.mubr.f32.gmra.mxu0 %v2120
    %v2191 = vpop.f32.mrf.mxu0
    %v2192 = vadd.f32 %v2118, %v2191
    %v2193 = vpop.f32.mrf.mxu0
    %2194 = vmatprep.mubr.f32.mxu0 0.0
    %2195 = vmatmul.mubr.f32.gmra.mxu0 %v2123
    %v2196 = vpop.f32.mrf.mxu0
    %v2197 = vadd.f32 %v2118, %v2196
    %v2198 = vpop.f32.mrf.mxu0
    %2199 = vdwg.mxu0
    %v2200 = vmul.f32 %v2192, %v2192
    %v2201 = vmul.f32 %v2197, %v2197
    %v2202 = vmul.f32 %v2192, %v2200
    %v2203 = vmul.f32 %v2197, %v2201
    %v2204 = vmul.f32 %v2202, 0.044715
    %v2205 = vmul.f32 %v2203, 0.044715
    %v2206 = vadd.f32 %v2192, %v2204
    %v2207 = vadd.f32 %v2197, %v2205
    %v2208 = vmul.f32 %v2206, 0.7978846
    %v2209 = vmul.f32 %v2207, 0.7978846
    %v2210 = vtanh.pop %v2208
    %v2211 = vtanh.pop %v2209
    %v2212 = vadd.f32 %v2210, 1.0
    %v2213 = vadd.f32 %v2211, 1.0
    %v2214 = vmul.f32 %v2212, 0.5
    %v2215 = vmul.f32 %v2213, 0.5
    %v2216 = vmul.f32 %v2192, %v2214
    %v2217 = vmul.f32 %v2197, %v2215
    %v2218 = vld [vmem:[%s9] sm:$0xff]
    %v2219 = vld [vmem:[%s9 + $0x8] sm:$0xff]
    %v2220 = vld [vmem:[%s9 + $0x10] sm:$0xff]
    %v2221 = vld [vmem:[%s9 + $0x18] sm:$0xff]
    %v2222 = vld [vmem:[%s9 + $0x20] sm:$0xff]
    %v2223 = vld [vmem:[%s9 + $0x28] sm:$0xff]
    %v2224 = vld [vmem:[%s9 + $0x30] sm:$0xff]
    %v2225 = vld [vmem:[%s9 + $0x38] sm:$0xff]
    %v2226 = vlaneseq
    %v2227 = vshrl.u32 %v2226, 7
    %v2228 = vsub.s32 0, %v2227
    %v2229 = vrot.slane %v124, %v2228
    %vm2230 = vcmask 523264
    %v2232 = vsel %vm2230, %v2216, 0
    %v2235 = vsel %vm2230, %v2217, 0
    %2237 = vmatprep.subr.mxu0 0.0
    %2238 = vmatpush1.msra.mxu0 0.0
    %2239 = vmatprep.subr.mxu0 0.0
    %2240 = vmatpush1.msra.mxu0 0.0
    %2241 = vmatprep.subr.mxu0 0.0
    %2242 = vmatpush1.msra.mxu0 0.0
    %2243 = vmatprep.subr.mxu0 0.0
    %2244 = vmatpush1.msra.mxu0 0.0
    %2245 = vmatprep.subr.mxu0 0.0
    %2246 = vmatpush1.msra.mxu0 0.0
    %2247 = vmatprep.subr.mxu0 0.0
    %2248 = vmatpush1.msra.mxu0 0.0
    %2249 = vmatprep.subr.mxu0 0.0
    %2250 = vmatpush1.msra.mxu0 0.0
    %2251 = vmatprep.subr.mxu0 0.0
    %2252 = vmatpush1.msra.mxu0 0.0
    %2253 = vmatprep.subr.mxu0 0.0
    %2254 = vmatpush1.msra.mxu0 %v2225
    %2255 = vmatprep.subr.mxu0 0.0
    %2256 = vmatpush1.msra.mxu0 %v2224
    %2257 = vmatprep.subr.mxu0 0.0
    %2258 = vmatpush1.msra.mxu0 %v2223
    %2259 = vmatprep.subr.mxu0 0.0
    %2260 = vmatpush1.msra.mxu0 %v2222
    %2261 = vmatprep.subr.mxu0 0.0
    %2262 = vmatpush1.msra.mxu0 %v2221
    %2263 = vmatprep.subr.mxu0 0.0
    %2264 = vmatpush1.msra.mxu0 %v2220
    %2265 = vmatprep.subr.mxu0 0.0
    %2266 = vmatpush1.msra.mxu0 %v2219
    %2267 = vmatprep.subr.mxu0 0.0
    %2268 = vmatpush1.msra.mxu0 %v2218
    %2269 = vmatprep.subr.mxu0 0.0
    %2270 = vmatpush2.msra.mxu0 0.0
    %2271 = vmatprep.subr.mxu0 0.0
    %2272 = vmatpush2.msra.mxu0 0.0
    %2273 = vmatprep.subr.mxu0 0.0
    %2274 = vmatpush2.msra.mxu0 0.0
    %2275 = vmatprep.subr.mxu0 0.0
    %2276 = vmatpush2.msra.mxu0 0.0
    %2277 = vmatprep.subr.mxu0 0.0
    %2278 = vmatpush2.msra.mxu0 0.0
    %2279 = vmatprep.subr.mxu0 0.0
    %2280 = vmatpush2.msra.mxu0 0.0
    %2281 = vmatprep.subr.mxu0 0.0
    %2282 = vmatpush2.msra.mxu0 0.0
    %2283 = vmatprep.subr.mxu0 0.0
    %2284 = vmatpush2.msra.mxu0 0.0
    %2285 = vmatprep.subr.mxu0 0.0
    %2286 = vmatpush2.msra.mxu0 0.0
    %2287 = vmatprep.subr.mxu0 0.0
    %2288 = vmatpush2.msra.mxu0 0.0
    %2289 = vmatprep.subr.mxu0 0.0
    %2290 = vmatpush2.msra.mxu0 0.0
    %2291 = vmatprep.subr.mxu0 0.0
    %2292 = vmatpush2.msra.mxu0 0.0
    %2293 = vmatprep.subr.mxu0 0.0
    %2294 = vmatpush2.msra.mxu0 0.0
    %2295 = vmatprep.subr.mxu0 0.0
    %2296 = vmatpush2.msra.mxu0 0.0
    %2297 = vmatprep.subr.mxu0 0.0
    %2298 = vmatpush2.msra.mxu0 0.0
    %2299 = vmatprep.subr.mxu0 0.0
    %2300 = vmatpush2.msra.mxu0 0.0
    %2301 = vmatprep.mubr.f32.mxu0 0.0
    %2302 = vmatmul.mubr.f32.gmra.mxu0 %v2232
    %v2303 = vpop.f32.mrf.mxu0
    %v2304 = vadd.f32 %v2229, %v2303
    %v2305 = vpop.f32.mrf.mxu0
    %2306 = vmatprep.mubr.f32.mxu0 0.0
    %2307 = vmatmul.mubr.f32.gmra.mxu0 %v2235
    %v2308 = vpop.f32.mrf.mxu0
    %v2309 = vadd.f32 %v2229, %v2308
    %v2310 = vpop.f32.mrf.mxu0
    %2311 = vdwg.mxu0
    %v2312 = vadd.f32 %v2109, %v2304
    %v2313 = vadd.f32 %v2110, %v2309
    %v2314 = vsel %vm327, %v2312, 0.0
    %2315 = vadd.xlane.f32.xlu0 %v2314
    %v2316 = vpop.xlane.xlu0 %2315
    %v2317 = vsel %vm327, %v2313, 0.0
    %2318 = vadd.xlane.f32.xlu0 %v2317
    %v2319 = vpop.xlane.xlu0 %2318
    %v2320 = vmul.f32 %v2316, %v334
    %v2321 = vmul.f32 %v2319, %v334
    %v2322 = vsub.f32 %v2312, %v2320
    %v2323 = vsub.f32 %v2313, %v2321
    %v2324 = vmul.f32 %v2322, %v2322
    %v2325 = vmul.f32 %v2323, %v2323
    %v2326 = vsel %vm327, %v2324, 0.0
    %2327 = vadd.xlane.f32.xlu0 %v2326
    %v2328 = vpop.xlane.xlu0 %2327
    %v2329 = vsel %vm327, %v2325, 0.0
    %2330 = vadd.xlane.f32.xlu0 %v2329
    %v2331 = vpop.xlane.xlu0 %2330
    %v2332 = vmul.f32 %v2328, %v334
    %v2333 = vmul.f32 %v2331, %v334
    %v2334 = vadd.f32 %v2332, 1e-05
    %v2335 = vadd.f32 %v2333, 1e-05
    %v2336 = vrsqrt.pop %v2334
    %v2337 = vrsqrt.pop %v2335
    %v2338 = vmul.f32 %v2322, %v2336
    %v2339 = vmul.f32 %v2323, %v2337
    %v2340 = vlaneseq
    %v2341 = vshrl.u32 %v2340, 7
    %v2342 = vsub.s32 1, %v2341
    %v2343 = vrot.slane %v124, %v2342
    %v2344 = vmul.f32 %v2338, %v2343
    %v2345 = vmul.f32 %v2339, %v2343
    %v2346 = vlaneseq
    %v2347 = vshrl.u32 %v2346, 7
    %v2348 = vsub.s32 2, %v2347
    %v2349 = vrot.slane %v124, %v2348
    %v2350 = vadd.f32 %v2344, %v2349
    %v2351 = vadd.f32 %v2345, %v2349
    %v2352 = vlaneseq
    %v2353 = vshrl.u32 %v2352, 7
    %vm2354 = vcmp.ge.s32.totalorder %v2353, %v150
    %v2355 = vsel %vm2354, 0.0, -1e+09
    %v2356 = vsel %vm327, %v319, 0.0
    %2357 = vadd.xlane.f32.xlu0 %v2356
    %v2358 = vpop.xlane.xlu0 %2357
    %v2359 = vsel %vm327, %v324, 0.0
    %2360 = vadd.xlane.f32.xlu0 %v2359
    %v2361 = vpop.xlane.xlu0 %2360
    %v2362 = vmul.f32 %v2358, %v334
    %v2363 = vmul.f32 %v2361, %v334
    %v2364 = vsub.f32 %v319, %v2362
    %v2365 = vsub.f32 %v324, %v2363
    %v2366 = vmul.f32 %v2364, %v2364
    %v2367 = vmul.f32 %v2365, %v2365
    %v2368 = vsel %vm327, %v2366, 0.0
    %2369 = vadd.xlane.f32.xlu0 %v2368
    %v2370 = vpop.xlane.xlu0 %2369
    %v2371 = vsel %vm327, %v2367, 0.0
    %2372 = vadd.xlane.f32.xlu0 %v2371
    %v2373 = vpop.xlane.xlu0 %2372
    %v2374 = vmul.f32 %v2370, %v334
    %v2375 = vmul.f32 %v2373, %v334
    %v2376 = vadd.f32 %v2374, 1e-05
    %v2377 = vadd.f32 %v2375, 1e-05
    %v2378 = vrsqrt.pop %v2376
    %v2379 = vrsqrt.pop %v2377
    %v2380 = vmul.f32 %v2364, %v2378
    %v2381 = vmul.f32 %v2365, %v2379
    %v2382 = vlaneseq
    %v2383 = vshrl.u32 %v2382, 7
    %v2384 = vsub.s32 3, %v2383
    %v2385 = vrot.slane %v124, %v2384
    %v2386 = vmul.f32 %v2380, %v2385
    %v2387 = vmul.f32 %v2381, %v2385
    %v2388 = vlaneseq
    %v2389 = vshrl.u32 %v2388, 7
    %v2390 = vsub.s32 4, %v2389
    %v2391 = vrot.slane %v124, %v2390
    %v2392 = vadd.f32 %v2386, %v2391
    %v2393 = vadd.f32 %v2387, %v2391
    %v2394 = vlaneseq
    %v2395 = vshrl.u32 %v2394, 7
    %v2396 = vsub.s32 5, %v2395
    %v2397 = vrot.slane %v124, %v2396
    %v2399 = vsel %vm327, %v2392, 0
    %v2402 = vsel %vm327, %v2393, 0
    %2404 = vmatprep.subr.mxu0 0.0
    %2405 = vmatpush1.msra.mxu0 0.0
    %2406 = vmatprep.subr.mxu0 0.0
    %2407 = vmatpush1.msra.mxu0 0.0
    %2408 = vmatprep.subr.mxu0 0.0
    %2409 = vmatpush1.msra.mxu0 0.0
    %2410 = vmatprep.subr.mxu0 0.0
    %2411 = vmatpush1.msra.mxu0 0.0
    %2412 = vmatprep.subr.mxu0 0.0
    %2413 = vmatpush1.msra.mxu0 0.0
    %2414 = vmatprep.subr.mxu0 0.0
    %2415 = vmatpush1.msra.mxu0 0.0
    %2416 = vmatprep.subr.mxu0 0.0
    %2417 = vmatpush1.msra.mxu0 0.0
    %2418 = vmatprep.subr.mxu0 0.0
    %2419 = vmatpush1.msra.mxu0 0.0
    %2420 = vmatprep.subr.mxu0 0.0
    %2421 = vmatpush1.msra.mxu0 0.0
    %2422 = vmatprep.subr.mxu0 0.0
    %2423 = vmatpush1.msra.mxu0 0.0
    %2424 = vmatprep.subr.mxu0 0.0
    %2425 = vmatpush1.msra.mxu0 0.0
    %2426 = vmatprep.subr.mxu0 0.0
    %2427 = vmatpush1.msra.mxu0 0.0
    %2428 = vmatprep.subr.mxu0 0.0
    %2429 = vmatpush1.msra.mxu0 %v90
    %2430 = vmatprep.subr.mxu0 0.0
    %2431 = vmatpush1.msra.mxu0 %v89
    %2432 = vmatprep.subr.mxu0 0.0
    %2433 = vmatpush1.msra.mxu0 %v88
    %2434 = vmatprep.subr.mxu0 0.0
    %2435 = vmatpush1.msra.mxu0 %v87
    %2436 = vmatprep.subr.mxu0 0.0
    %2437 = vmatpush2.msra.mxu0 0.0
    %2438 = vmatprep.subr.mxu0 0.0
    %2439 = vmatpush2.msra.mxu0 0.0
    %2440 = vmatprep.subr.mxu0 0.0
    %2441 = vmatpush2.msra.mxu0 0.0
    %2442 = vmatprep.subr.mxu0 0.0
    %2443 = vmatpush2.msra.mxu0 0.0
    %2444 = vmatprep.subr.mxu0 0.0
    %2445 = vmatpush2.msra.mxu0 0.0
    %2446 = vmatprep.subr.mxu0 0.0
    %2447 = vmatpush2.msra.mxu0 0.0
    %2448 = vmatprep.subr.mxu0 0.0
    %2449 = vmatpush2.msra.mxu0 0.0
    %2450 = vmatprep.subr.mxu0 0.0
    %2451 = vmatpush2.msra.mxu0 0.0
    %2452 = vmatprep.subr.mxu0 0.0
    %2453 = vmatpush2.msra.mxu0 0.0
    %2454 = vmatprep.subr.mxu0 0.0
    %2455 = vmatpush2.msra.mxu0 0.0
    %2456 = vmatprep.subr.mxu0 0.0
    %2457 = vmatpush2.msra.mxu0 0.0
    %2458 = vmatprep.subr.mxu0 0.0
    %2459 = vmatpush2.msra.mxu0 0.0
    %2460 = vmatprep.subr.mxu0 0.0
    %2461 = vmatpush2.msra.mxu0 0.0
    %2462 = vmatprep.subr.mxu0 0.0
    %2463 = vmatpush2.msra.mxu0 0.0
    %2464 = vmatprep.subr.mxu0 0.0
    %2465 = vmatpush2.msra.mxu0 0.0
    %2466 = vmatprep.subr.mxu0 0.0
    %2467 = vmatpush2.msra.mxu0 0.0
    %2468 = vmatprep.mubr.f32.mxu0 0.0
    %2469 = vmatmul.mubr.f32.gmra.mxu0 %v2399
    %v2470 = vpop.f32.mrf.mxu0
    %v2471 = vadd.f32 %v2397, %v2470
    %v2472 = vpop.f32.mrf.mxu0
    %2473 = vmatprep.mubr.f32.mxu0 0.0
    %2474 = vmatmul.mubr.f32.gmra.mxu0 %v2402
    %v2475 = vpop.f32.mrf.mxu0
    %v2476 = vadd.f32 %v2397, %v2475
    %v2477 = vpop.f32.mrf.mxu0
    %2478 = vdwg.mxu0
    %v2479 = vlaneseq
    %v2480 = vshrl.u32 %v2479, 7
    %v2481 = vsub.s32 6, %v2480
    %v2482 = vrot.slane %v124, %v2481
    %2483 = vmatprep.subr.mxu0 0.0
    %2484 = vmatpush1.msra.mxu0 0.0
    %2485 = vmatprep.subr.mxu0 0.0
    %2486 = vmatpush1.msra.mxu0 0.0
    %2487 = vmatprep.subr.mxu0 0.0
    %2488 = vmatpush1.msra.mxu0 0.0
    %2489 = vmatprep.subr.mxu0 0.0
    %2490 = vmatpush1.msra.mxu0 0.0
    %2491 = vmatprep.subr.mxu0 0.0
    %2492 = vmatpush1.msra.mxu0 0.0
    %2493 = vmatprep.subr.mxu0 0.0
    %2494 = vmatpush1.msra.mxu0 0.0
    %2495 = vmatprep.subr.mxu0 0.0
    %2496 = vmatpush1.msra.mxu0 0.0
    %2497 = vmatprep.subr.mxu0 0.0
    %2498 = vmatpush1.msra.mxu0 0.0
    %2499 = vmatprep.subr.mxu0 0.0
    %2500 = vmatpush1.msra.mxu0 0.0
    %2501 = vmatprep.subr.mxu0 0.0
    %2502 = vmatpush1.msra.mxu0 0.0
    %2503 = vmatprep.subr.mxu0 0.0
    %2504 = vmatpush1.msra.mxu0 0.0
    %2505 = vmatprep.subr.mxu0 0.0
    %2506 = vmatpush1.msra.mxu0 0.0
    %2507 = vmatprep.subr.mxu0 0.0
    %2508 = vmatpush1.msra.mxu0 %v94
    %2509 = vmatprep.subr.mxu0 0.0
    %2510 = vmatpush1.msra.mxu0 %v93
    %2511 = vmatprep.subr.mxu0 0.0
    %2512 = vmatpush1.msra.mxu0 %v92
    %2513 = vmatprep.subr.mxu0 0.0
    %2514 = vmatpush1.msra.mxu0 %v91
    %2515 = vmatprep.subr.mxu0 0.0
    %2516 = vmatpush2.msra.mxu0 0.0
    %2517 = vmatprep.subr.mxu0 0.0
    %2518 = vmatpush2.msra.mxu0 0.0
    %2519 = vmatprep.subr.mxu0 0.0
    %2520 = vmatpush2.msra.mxu0 0.0
    %2521 = vmatprep.subr.mxu0 0.0
    %2522 = vmatpush2.msra.mxu0 0.0
    %2523 = vmatprep.subr.mxu0 0.0
    %2524 = vmatpush2.msra.mxu0 0.0
    %2525 = vmatprep.subr.mxu0 0.0
    %2526 = vmatpush2.msra.mxu0 0.0
    %2527 = vmatprep.subr.mxu0 0.0
    %2528 = vmatpush2.msra.mxu0 0.0
    %2529 = vmatprep.subr.mxu0 0.0
    %2530 = vmatpush2.msra.mxu0 0.0
    %2531 = vmatprep.subr.mxu0 0.0
    %2532 = vmatpush2.msra.mxu0 0.0
    %2533 = vmatprep.subr.mxu0 0.0
    %2534 = vmatpush2.msra.mxu0 0.0
    %2535 = vmatprep.subr.mxu0 0.0
    %2536 = vmatpush2.msra.mxu0 0.0
    %2537 = vmatprep.subr.mxu0 0.0
    %2538 = vmatpush2.msra.mxu0 0.0
    %2539 = vmatprep.subr.mxu0 0.0
    %2540 = vmatpush2.msra.mxu0 0.0
    %2541 = vmatprep.subr.mxu0 0.0
    %2542 = vmatpush2.msra.mxu0 0.0
    %2543 = vmatprep.subr.mxu0 0.0
    %2544 = vmatpush2.msra.mxu0 0.0
    %2545 = vmatprep.subr.mxu0 0.0
    %2546 = vmatpush2.msra.mxu0 0.0
    %2547 = vmatprep.mubr.f32.mxu0 0.0
    %2548 = vmatmul.mubr.f32.gmra.mxu0 %v2399
    %v2549 = vpop.f32.mrf.mxu0
    %v2550 = vadd.f32 %v2482, %v2549
    %v2551 = vpop.f32.mrf.mxu0
    %2552 = vmatprep.mubr.f32.mxu0 0.0
    %2553 = vmatmul.mubr.f32.gmra.mxu0 %v2402
    %v2554 = vpop.f32.mrf.mxu0
    %v2555 = vadd.f32 %v2482, %v2554
    %v2556 = vpop.f32.mrf.mxu0
    %2557 = vdwg.mxu0
    %v2558 = vlaneseq
    %v2559 = vshrl.u32 %v2558, 7
    %v2560 = vsub.s32 7, %v2559
    %v2561 = vrot.slane %v124, %v2560
    %2562 = vmatprep.subr.mxu0 0.0
    %2563 = vmatpush1.msra.mxu0 0.0
    %2564 = vmatprep.subr.mxu0 0.0
    %2565 = vmatpush1.msra.mxu0 0.0
    %2566 = vmatprep.subr.mxu0 0.0
    %2567 = vmatpush1.msra.mxu0 0.0
    %2568 = vmatprep.subr.mxu0 0.0
    %2569 = vmatpush1.msra.mxu0 0.0
    %2570 = vmatprep.subr.mxu0 0.0
    %2571 = vmatpush1.msra.mxu0 0.0
    %2572 = vmatprep.subr.mxu0 0.0
    %2573 = vmatpush1.msra.mxu0 0.0
    %2574 = vmatprep.subr.mxu0 0.0
    %2575 = vmatpush1.msra.mxu0 0.0
    %2576 = vmatprep.subr.mxu0 0.0
    %2577 = vmatpush1.msra.mxu0 0.0
    %2578 = vmatprep.subr.mxu0 0.0
    %2579 = vmatpush1.msra.mxu0 0.0
    %2580 = vmatprep.subr.mxu0 0.0
    %2581 = vmatpush1.msra.mxu0 0.0
    %2582 = vmatprep.subr.mxu0 0.0
    %2583 = vmatpush1.msra.mxu0 0.0
    %2584 = vmatprep.subr.mxu0 0.0
    %2585 = vmatpush1.msra.mxu0 0.0
    %2586 = vmatprep.subr.mxu0 0.0
    %2587 = vmatpush1.msra.mxu0 %v98
    %2588 = vmatprep.subr.mxu0 0.0
    %2589 = vmatpush1.msra.mxu0 %v97
    %2590 = vmatprep.subr.mxu0 0.0
    %2591 = vmatpush1.msra.mxu0 %v96
    %2592 = vmatprep.subr.mxu0 0.0
    %2593 = vmatpush1.msra.mxu0 %v95
    %2594 = vmatprep.subr.mxu0 0.0
    %2595 = vmatpush2.msra.mxu0 0.0
    %2596 = vmatprep.subr.mxu0 0.0
    %2597 = vmatpush2.msra.mxu0 0.0
    %2598 = vmatprep.subr.mxu0 0.0
    %2599 = vmatpush2.msra.mxu0 0.0
    %2600 = vmatprep.subr.mxu0 0.0
    %2601 = vmatpush2.msra.mxu0 0.0
    %2602 = vmatprep.subr.mxu0 0.0
    %2603 = vmatpush2.msra.mxu0 0.0
    %2604 = vmatprep.subr.mxu0 0.0
    %2605 = vmatpush2.msra.mxu0 0.0
    %2606 = vmatprep.subr.mxu0 0.0
    %2607 = vmatpush2.msra.mxu0 0.0
    %2608 = vmatprep.subr.mxu0 0.0
    %2609 = vmatpush2.msra.mxu0 0.0
    %2610 = vmatprep.subr.mxu0 0.0
    %2611 = vmatpush2.msra.mxu0 0.0
    %2612 = vmatprep.subr.mxu0 0.0
    %2613 = vmatpush2.msra.mxu0 0.0
    %2614 = vmatprep.subr.mxu0 0.0
    %2615 = vmatpush2.msra.mxu0 0.0
    %2616 = vmatprep.subr.mxu0 0.0
    %2617 = vmatpush2.msra.mxu0 0.0
    %2618 = vmatprep.subr.mxu0 0.0
    %2619 = vmatpush2.msra.mxu0 0.0
    %2620 = vmatprep.subr.mxu0 0.0
    %2621 = vmatpush2.msra.mxu0 0.0
    %2622 = vmatprep.subr.mxu0 0.0
    %2623 = vmatpush2.msra.mxu0 0.0
    %2624 = vmatprep.subr.mxu0 0.0
    %2625 = vmatpush2.msra.mxu0 0.0
    %2626 = vmatprep.mubr.f32.mxu0 0.0
    %2627 = vmatmul.mubr.f32.gmra.mxu0 %v2399
    %v2628 = vpop.f32.mrf.mxu0
    %v2629 = vadd.f32 %v2561, %v2628
    %v2630 = vpop.f32.mrf.mxu0
    %2631 = vmatprep.mubr.f32.mxu0 0.0
    %2632 = vmatmul.mubr.f32.gmra.mxu0 %v2402
    %v2633 = vpop.f32.mrf.mxu0
    %v2634 = vadd.f32 %v2561, %v2633
    %v2635 = vpop.f32.mrf.mxu0
    %2636 = vdwg.mxu0
    %v2637 = vld [vmem:[%s4] sm:$0x1]
    %v2639 = vlaneseq
    %v2640 = vshrl.u32 %v2639, 7
    %v2641 = vsub.s32 0, %v2640
    %v2642 = vrot.slane %v2637, %v2641
    %v2644 = vadd.f32 %v2355, %v2642
    %v2646 = vsel %vm611, %v2471, 0
    %v2649 = vsel %vm611, %v2550, 0
    %2651 = vmatprep.subr.mxu0 0.0
    %2652 = vmatpush1.xpose.msra.mxu0 0.0
    %2653 = vmatprep.subr.mxu0 0.0
    %2654 = vmatpush1.xpose.msra.mxu0 0.0
    %2655 = vmatprep.subr.mxu0 0.0
    %2656 = vmatpush1.xpose.msra.mxu0 0.0
    %2657 = vmatprep.subr.mxu0 0.0
    %2658 = vmatpush1.xpose.msra.mxu0 0.0
    %2659 = vmatprep.subr.mxu0 0.0
    %2660 = vmatpush1.xpose.msra.mxu0 0.0
    %2661 = vmatprep.subr.mxu0 0.0
    %2662 = vmatpush1.xpose.msra.mxu0 0.0
    %2663 = vmatprep.subr.mxu0 0.0
    %2664 = vmatpush1.xpose.msra.mxu0 0.0
    %2665 = vmatprep.subr.mxu0 0.0
    %2666 = vmatpush1.xpose.msra.mxu0 0.0
    %2667 = vmatprep.subr.mxu0 0.0
    %2668 = vmatpush1.xpose.msra.mxu0 0.0
    %2669 = vmatprep.subr.mxu0 0.0
    %2670 = vmatpush1.xpose.msra.mxu0 0.0
    %2671 = vmatprep.subr.mxu0 0.0
    %2672 = vmatpush1.xpose.msra.mxu0 0.0
    %2673 = vmatprep.subr.mxu0 0.0
    %2674 = vmatpush1.xpose.msra.mxu0 0.0
    %2675 = vmatprep.subr.mxu0 0.0
    %2676 = vmatpush1.xpose.msra.mxu0 0.0
    %2677 = vmatprep.subr.mxu0 0.0
    %2678 = vmatpush1.xpose.msra.mxu0 0.0
    %2679 = vmatprep.subr.mxu0 0.0
    %2680 = vmatpush1.xpose.msra.mxu0 0.0
    %2681 = vmatprep.subr.mxu0 0.0
    %2682 = vmatpush1.xpose.msra.mxu0 %v2649
    %2683 = vmatprep.subr.mxu0 0.0
    %2684 = vmatpush2.xpose.msra.mxu0 0.0
    %2685 = vmatprep.subr.mxu0 0.0
    %2686 = vmatpush2.xpose.msra.mxu0 0.0
    %2687 = vmatprep.subr.mxu0 0.0
    %2688 = vmatpush2.xpose.msra.mxu0 0.0
    %2689 = vmatprep.subr.mxu0 0.0
    %2690 = vmatpush2.xpose.msra.mxu0 0.0
    %2691 = vmatprep.subr.mxu0 0.0
    %2692 = vmatpush2.xpose.msra.mxu0 0.0
    %2693 = vmatprep.subr.mxu0 0.0
    %2694 = vmatpush2.xpose.msra.mxu0 0.0
    %2695 = vmatprep.subr.mxu0 0.0
    %2696 = vmatpush2.xpose.msra.mxu0 0.0
    %2697 = vmatprep.subr.mxu0 0.0
    %2698 = vmatpush2.xpose.msra.mxu0 0.0
    %2699 = vmatprep.subr.mxu0 0.0
    %2700 = vmatpush2.xpose.msra.mxu0 0.0
    %2701 = vmatprep.subr.mxu0 0.0
    %2702 = vmatpush2.xpose.msra.mxu0 0.0
    %2703 = vmatprep.subr.mxu0 0.0
    %2704 = vmatpush2.xpose.msra.mxu0 0.0
    %2705 = vmatprep.subr.mxu0 0.0
    %2706 = vmatpush2.xpose.msra.mxu0 0.0
    %2707 = vmatprep.subr.mxu0 0.0
    %2708 = vmatpush2.xpose.msra.mxu0 0.0
    %2709 = vmatprep.subr.mxu0 0.0
    %2710 = vmatpush2.xpose.msra.mxu0 0.0
    %2711 = vmatprep.subr.mxu0 0.0
    %2712 = vmatpush2.xpose.msra.mxu0 0.0
    %2713 = vmatprep.subr.mxu0 0.0
    %2714 = vmatpush2.xpose.msra.mxu0 0.0
    %2715 = vmatprep.mubr.f32.mxu0 0.0
    %2716 = vmatmul.mubr.f32.gmra.mxu0 %v2646
    %v2717 = vpop.f32.mrf.mxu0
    %v2718 = vadd.f32 0.0, %v2717
    %v2719 = vpop.f32.mrf.mxu0
    %2720 = vdwg.mxu0
    %v2721 = vmul.f32 %v2718, 0.35355338
    %v2722 = vadd.f32 %v2721, %v2644
    %v2723 = vsel %vm611, %v2722, -inf
    %2724 = vmax.xlane.f32.xlu0 %v2723
    %v2725 = vpop.xlane.xlu0 %2724
    %v2726 = vsub.f32 %v2722, %v2725
    %v2727 = vmul.f32 %v2726, 1.442695
    %v2728 = vpow.pop %v2727
    %v2729 = vsel %vm611, %v2728, 0.0
    %2730 = vadd.xlane.f32.xlu0 %v2729
    %v2731 = vpop.xlane.xlu0 %2730
    %v2732 = vrcp.pop %v2731
    %v2733 = vmul.f32 %v2728, %v2732
    %v2735 = vsel %vm611, %v2733, 0
    %2737 = vmatprep.subr.mxu0 0.0
    %2738 = vmatpush1.msra.mxu0 0.0
    %2739 = vmatprep.subr.mxu0 0.0
    %2740 = vmatpush1.msra.mxu0 0.0
    %2741 = vmatprep.subr.mxu0 0.0
    %2742 = vmatpush1.msra.mxu0 0.0
    %2743 = vmatprep.subr.mxu0 0.0
    %2744 = vmatpush1.msra.mxu0 0.0
    %2745 = vmatprep.subr.mxu0 0.0
    %2746 = vmatpush1.msra.mxu0 0.0
    %2747 = vmatprep.subr.mxu0 0.0
    %2748 = vmatpush1.msra.mxu0 0.0
    %2749 = vmatprep.subr.mxu0 0.0
    %2750 = vmatpush1.msra.mxu0 0.0
    %2751 = vmatprep.subr.mxu0 0.0
    %2752 = vmatpush1.msra.mxu0 0.0
    %2753 = vmatprep.subr.mxu0 0.0
    %2754 = vmatpush1.msra.mxu0 0.0
    %2755 = vmatprep.subr.mxu0 0.0
    %2756 = vmatpush1.msra.mxu0 0.0
    %2757 = vmatprep.subr.mxu0 0.0
    %2758 = vmatpush1.msra.mxu0 0.0
    %2759 = vmatprep.subr.mxu0 0.0
    %2760 = vmatpush1.msra.mxu0 0.0
    %2761 = vmatprep.subr.mxu0 0.0
    %2762 = vmatpush1.msra.mxu0 0.0
    %2763 = vmatprep.subr.mxu0 0.0
    %2764 = vmatpush1.msra.mxu0 0.0
    %2765 = vmatprep.subr.mxu0 0.0
    %2766 = vmatpush1.msra.mxu0 0.0
    %2767 = vmatprep.subr.mxu0 0.0
    %2768 = vmatpush1.msra.mxu0 %v2629
    %2769 = vmatprep.subr.mxu0 0.0
    %2770 = vmatpush2.msra.mxu0 0.0
    %2771 = vmatprep.subr.mxu0 0.0
    %2772 = vmatpush2.msra.mxu0 0.0
    %2773 = vmatprep.subr.mxu0 0.0
    %2774 = vmatpush2.msra.mxu0 0.0
    %2775 = vmatprep.subr.mxu0 0.0
    %2776 = vmatpush2.msra.mxu0 0.0
    %2777 = vmatprep.subr.mxu0 0.0
    %2778 = vmatpush2.msra.mxu0 0.0
    %2779 = vmatprep.subr.mxu0 0.0
    %2780 = vmatpush2.msra.mxu0 0.0
    %2781 = vmatprep.subr.mxu0 0.0
    %2782 = vmatpush2.msra.mxu0 0.0
    %2783 = vmatprep.subr.mxu0 0.0
    %2784 = vmatpush2.msra.mxu0 0.0
    %2785 = vmatprep.subr.mxu0 0.0
    %2786 = vmatpush2.msra.mxu0 0.0
    %2787 = vmatprep.subr.mxu0 0.0
    %2788 = vmatpush2.msra.mxu0 0.0
    %2789 = vmatprep.subr.mxu0 0.0
    %2790 = vmatpush2.msra.mxu0 0.0
    %2791 = vmatprep.subr.mxu0 0.0
    %2792 = vmatpush2.msra.mxu0 0.0
    %2793 = vmatprep.subr.mxu0 0.0
    %2794 = vmatpush2.msra.mxu0 0.0
    %2795 = vmatprep.subr.mxu0 0.0
    %2796 = vmatpush2.msra.mxu0 0.0
    %2797 = vmatprep.subr.mxu0 0.0
    %2798 = vmatpush2.msra.mxu0 0.0
    %2799 = vmatprep.subr.mxu0 0.0
    %2800 = vmatpush2.msra.mxu0 0.0
    %2801 = vmatprep.mubr.f32.mxu0 0.0
    %2802 = vmatmul.mubr.f32.gmra.mxu0 %v2735
    %v2803 = vpop.f32.mrf.mxu0
    %v2804 = vadd.f32 0.0, %v2803
    %v2805 = vpop.f32.mrf.mxu0
    %2806 = vdwg.mxu0
    %2807 = vrot.lane.b32.xlu0 %v2471, 120
    %v2808 = vpop.permute.xlu0 %2807
    %2809 = vrot.lane.b32.xlu0 %v2550, 120
    %v2810 = vpop.permute.xlu0 %2809
    %v2811 = vsel %vm611, %v2808, 0
    %v2813 = vsel %vm611, %v2810, 0
    %2815 = vmatprep.subr.mxu0 0.0
    %2816 = vmatpush1.xpose.msra.mxu0 0.0
    %2817 = vmatprep.subr.mxu0 0.0
    %2818 = vmatpush1.xpose.msra.mxu0 0.0
    %2819 = vmatprep.subr.mxu0 0.0
    %2820 = vmatpush1.xpose.msra.mxu0 0.0
    %2821 = vmatprep.subr.mxu0 0.0
    %2822 = vmatpush1.xpose.msra.mxu0 0.0
    %2823 = vmatprep.subr.mxu0 0.0
    %2824 = vmatpush1.xpose.msra.mxu0 0.0
    %2825 = vmatprep.subr.mxu0 0.0
    %2826 = vmatpush1.xpose.msra.mxu0 0.0
    %2827 = vmatprep.subr.mxu0 0.0
    %2828 = vmatpush1.xpose.msra.mxu0 0.0
    %2829 = vmatprep.subr.mxu0 0.0
    %2830 = vmatpush1.xpose.msra.mxu0 0.0
    %2831 = vmatprep.subr.mxu0 0.0
    %2832 = vmatpush1.xpose.msra.mxu0 0.0
    %2833 = vmatprep.subr.mxu0 0.0
    %2834 = vmatpush1.xpose.msra.mxu0 0.0
    %2835 = vmatprep.subr.mxu0 0.0
    %2836 = vmatpush1.xpose.msra.mxu0 0.0
    %2837 = vmatprep.subr.mxu0 0.0
    %2838 = vmatpush1.xpose.msra.mxu0 0.0
    %2839 = vmatprep.subr.mxu0 0.0
    %2840 = vmatpush1.xpose.msra.mxu0 0.0
    %2841 = vmatprep.subr.mxu0 0.0
    %2842 = vmatpush1.xpose.msra.mxu0 0.0
    %2843 = vmatprep.subr.mxu0 0.0
    %2844 = vmatpush1.xpose.msra.mxu0 0.0
    %2845 = vmatprep.subr.mxu0 0.0
    %2846 = vmatpush1.xpose.msra.mxu0 %v2813
    %2847 = vmatprep.subr.mxu0 0.0
    %2848 = vmatpush2.xpose.msra.mxu0 0.0
    %2849 = vmatprep.subr.mxu0 0.0
    %2850 = vmatpush2.xpose.msra.mxu0 0.0
    %2851 = vmatprep.subr.mxu0 0.0
    %2852 = vmatpush2.xpose.msra.mxu0 0.0
    %2853 = vmatprep.subr.mxu0 0.0
    %2854 = vmatpush2.xpose.msra.mxu0 0.0
    %2855 = vmatprep.subr.mxu0 0.0
    %2856 = vmatpush2.xpose.msra.mxu0 0.0
    %2857 = vmatprep.subr.mxu0 0.0
    %2858 = vmatpush2.xpose.msra.mxu0 0.0
    %2859 = vmatprep.subr.mxu0 0.0
    %2860 = vmatpush2.xpose.msra.mxu0 0.0
    %2861 = vmatprep.subr.mxu0 0.0
    %2862 = vmatpush2.xpose.msra.mxu0 0.0
    %2863 = vmatprep.subr.mxu0 0.0
    %2864 = vmatpush2.xpose.msra.mxu0 0.0
    %2865 = vmatprep.subr.mxu0 0.0
    %2866 = vmatpush2.xpose.msra.mxu0 0.0
    %2867 = vmatprep.subr.mxu0 0.0
    %2868 = vmatpush2.xpose.msra.mxu0 0.0
    %2869 = vmatprep.subr.mxu0 0.0
    %2870 = vmatpush2.xpose.msra.mxu0 0.0
    %2871 = vmatprep.subr.mxu0 0.0
    %2872 = vmatpush2.xpose.msra.mxu0 0.0
    %2873 = vmatprep.subr.mxu0 0.0
    %2874 = vmatpush2.xpose.msra.mxu0 0.0
    %2875 = vmatprep.subr.mxu0 0.0
    %2876 = vmatpush2.xpose.msra.mxu0 0.0
    %2877 = vmatprep.subr.mxu0 0.0
    %2878 = vmatpush2.xpose.msra.mxu0 0.0
    %2879 = vmatprep.mubr.f32.mxu0 0.0
    %2880 = vmatmul.mubr.f32.gmra.mxu0 %v2811
    %v2881 = vpop.f32.mrf.mxu0
    %v2882 = vadd.f32 0.0, %v2881
    %v2883 = vpop.f32.mrf.mxu0
    %2884 = vdwg.mxu0
    %v2885 = vmul.f32 %v2882, 0.35355338
    %v2886 = vadd.f32 %v2885, %v2644
    %v2887 = vsel %vm611, %v2886, -inf
    %2888 = vmax.xlane.f32.xlu0 %v2887
    %v2889 = vpop.xlane.xlu0 %2888
    %v2890 = vsub.f32 %v2886, %v2889
    %v2891 = vmul.f32 %v2890, 1.442695
    %v2892 = vpow.pop %v2891
    %v2893 = vsel %vm611, %v2892, 0.0
    %2894 = vadd.xlane.f32.xlu0 %v2893
    %v2895 = vpop.xlane.xlu0 %2894
    %v2896 = vrcp.pop %v2895
    %v2897 = vmul.f32 %v2892, %v2896
    %2899 = vrot.lane.b32.xlu0 %v2629, 120
    %v2900 = vpop.permute.xlu0 %2899
    %v2903 = vsel %vm611, %v2897, 0
    %2905 = vmatprep.subr.mxu0 0.0
    %2906 = vmatpush1.msra.mxu0 0.0
    %2907 = vmatprep.subr.mxu0 0.0
    %2908 = vmatpush1.msra.mxu0 0.0
    %2909 = vmatprep.subr.mxu0 0.0
    %2910 = vmatpush1.msra.mxu0 0.0
    %2911 = vmatprep.subr.mxu0 0.0
    %2912 = vmatpush1.msra.mxu0 0.0
    %2913 = vmatprep.subr.mxu0 0.0
    %2914 = vmatpush1.msra.mxu0 0.0
    %2915 = vmatprep.subr.mxu0 0.0
    %2916 = vmatpush1.msra.mxu0 0.0
    %2917 = vmatprep.subr.mxu0 0.0
    %2918 = vmatpush1.msra.mxu0 0.0
    %2919 = vmatprep.subr.mxu0 0.0
    %2920 = vmatpush1.msra.mxu0 0.0
    %2921 = vmatprep.subr.mxu0 0.0
    %2922 = vmatpush1.msra.mxu0 0.0
    %2923 = vmatprep.subr.mxu0 0.0
    %2924 = vmatpush1.msra.mxu0 0.0
    %2925 = vmatprep.subr.mxu0 0.0
    %2926 = vmatpush1.msra.mxu0 0.0
    %2927 = vmatprep.subr.mxu0 0.0
    %2928 = vmatpush1.msra.mxu0 0.0
    %2929 = vmatprep.subr.mxu0 0.0
    %2930 = vmatpush1.msra.mxu0 0.0
    %2931 = vmatprep.subr.mxu0 0.0
    %2932 = vmatpush1.msra.mxu0 0.0
    %2933 = vmatprep.subr.mxu0 0.0
    %2934 = vmatpush1.msra.mxu0 0.0
    %2935 = vmatprep.subr.mxu0 0.0
    %2936 = vmatpush1.msra.mxu0 %v2900
    %2937 = vmatprep.subr.mxu0 0.0
    %2938 = vmatpush2.msra.mxu0 0.0
    %2939 = vmatprep.subr.mxu0 0.0
    %2940 = vmatpush2.msra.mxu0 0.0
    %2941 = vmatprep.subr.mxu0 0.0
    %2942 = vmatpush2.msra.mxu0 0.0
    %2943 = vmatprep.subr.mxu0 0.0
    %2944 = vmatpush2.msra.mxu0 0.0
    %2945 = vmatprep.subr.mxu0 0.0
    %2946 = vmatpush2.msra.mxu0 0.0
    %2947 = vmatprep.subr.mxu0 0.0
    %2948 = vmatpush2.msra.mxu0 0.0
    %2949 = vmatprep.subr.mxu0 0.0
    %2950 = vmatpush2.msra.mxu0 0.0
    %2951 = vmatprep.subr.mxu0 0.0
    %2952 = vmatpush2.msra.mxu0 0.0
    %2953 = vmatprep.subr.mxu0 0.0
    %2954 = vmatpush2.msra.mxu0 0.0
    %2955 = vmatprep.subr.mxu0 0.0
    %2956 = vmatpush2.msra.mxu0 0.0
    %2957 = vmatprep.subr.mxu0 0.0
    %2958 = vmatpush2.msra.mxu0 0.0
    %2959 = vmatprep.subr.mxu0 0.0
    %2960 = vmatpush2.msra.mxu0 0.0
    %2961 = vmatprep.subr.mxu0 0.0
    %2962 = vmatpush2.msra.mxu0 0.0
    %2963 = vmatprep.subr.mxu0 0.0
    %2964 = vmatpush2.msra.mxu0 0.0
    %2965 = vmatprep.subr.mxu0 0.0
    %2966 = vmatpush2.msra.mxu0 0.0
    %2967 = vmatprep.subr.mxu0 0.0
    %2968 = vmatpush2.msra.mxu0 0.0
    %2969 = vmatprep.mubr.f32.mxu0 0.0
    %2970 = vmatmul.mubr.f32.gmra.mxu0 %v2903
    %v2971 = vpop.f32.mrf.mxu0
    %v2972 = vadd.f32 0.0, %v2971
    %v2973 = vpop.f32.mrf.mxu0
    %2974 = vdwg.mxu0
    %2975 = vrot.lane.b32.xlu0 %v2471, 112
    %v2976 = vpop.permute.xlu0 %2975
    %2977 = vrot.lane.b32.xlu0 %v2550, 112
    %v2978 = vpop.permute.xlu0 %2977
    %v2979 = vsel %vm611, %v2976, 0
    %v2981 = vsel %vm611, %v2978, 0
    %2983 = vmatprep.subr.mxu0 0.0
    %2984 = vmatpush1.xpose.msra.mxu0 0.0
    %2985 = vmatprep.subr.mxu0 0.0
    %2986 = vmatpush1.xpose.msra.mxu0 0.0
    %2987 = vmatprep.subr.mxu0 0.0
    %2988 = vmatpush1.xpose.msra.mxu0 0.0
    %2989 = vmatprep.subr.mxu0 0.0
    %2990 = vmatpush1.xpose.msra.mxu0 0.0
    %2991 = vmatprep.subr.mxu0 0.0
    %2992 = vmatpush1.xpose.msra.mxu0 0.0
    %2993 = vmatprep.subr.mxu0 0.0
    %2994 = vmatpush1.xpose.msra.mxu0 0.0
    %2995 = vmatprep.subr.mxu0 0.0
    %2996 = vmatpush1.xpose.msra.mxu0 0.0
    %2997 = vmatprep.subr.mxu0 0.0
    %2998 = vmatpush1.xpose.msra.mxu0 0.0
    %2999 = vmatprep.subr.mxu0 0.0
    %3000 = vmatpush1.xpose.msra.mxu0 0.0
    %3001 = vmatprep.subr.mxu0 0.0
    %3002 = vmatpush1.xpose.msra.mxu0 0.0
    %3003 = vmatprep.subr.mxu0 0.0
    %3004 = vmatpush1.xpose.msra.mxu0 0.0
    %3005 = vmatprep.subr.mxu0 0.0
    %3006 = vmatpush1.xpose.msra.mxu0 0.0
    %3007 = vmatprep.subr.mxu0 0.0
    %3008 = vmatpush1.xpose.msra.mxu0 0.0
    %3009 = vmatprep.subr.mxu0 0.0
    %3010 = vmatpush1.xpose.msra.mxu0 0.0
    %3011 = vmatprep.subr.mxu0 0.0
    %3012 = vmatpush1.xpose.msra.mxu0 0.0
    %3013 = vmatprep.subr.mxu0 0.0
    %3014 = vmatpush1.xpose.msra.mxu0 %v2981
    %3015 = vmatprep.subr.mxu0 0.0
    %3016 = vmatpush2.xpose.msra.mxu0 0.0
    %3017 = vmatprep.subr.mxu0 0.0
    %3018 = vmatpush2.xpose.msra.mxu0 0.0
    %3019 = vmatprep.subr.mxu0 0.0
    %3020 = vmatpush2.xpose.msra.mxu0 0.0
    %3021 = vmatprep.subr.mxu0 0.0
    %3022 = vmatpush2.xpose.msra.mxu0 0.0
    %3023 = vmatprep.subr.mxu0 0.0
    %3024 = vmatpush2.xpose.msra.mxu0 0.0
    %3025 = vmatprep.subr.mxu0 0.0
    %3026 = vmatpush2.xpose.msra.mxu0 0.0
    %3027 = vmatprep.subr.mxu0 0.0
    %3028 = vmatpush2.xpose.msra.mxu0 0.0
    %3029 = vmatprep.subr.mxu0 0.0
    %3030 = vmatpush2.xpose.msra.mxu0 0.0
    %3031 = vmatprep.subr.mxu0 0.0
    %3032 = vmatpush2.xpose.msra.mxu0 0.0
    %3033 = vmatprep.subr.mxu0 0.0
    %3034 = vmatpush2.xpose.msra.mxu0 0.0
    %3035 = vmatprep.subr.mxu0 0.0
    %3036 = vmatpush2.xpose.msra.mxu0 0.0
    %3037 = vmatprep.subr.mxu0 0.0
    %3038 = vmatpush2.xpose.msra.mxu0 0.0
    %3039 = vmatprep.subr.mxu0 0.0
    %3040 = vmatpush2.xpose.msra.mxu0 0.0
    %3041 = vmatprep.subr.mxu0 0.0
    %3042 = vmatpush2.xpose.msra.mxu0 0.0
    %3043 = vmatprep.subr.mxu0 0.0
    %3044 = vmatpush2.xpose.msra.mxu0 0.0
    %3045 = vmatprep.subr.mxu0 0.0
    %3046 = vmatpush2.xpose.msra.mxu0 0.0
    %3047 = vmatprep.mubr.f32.mxu0 0.0
    %3048 = vmatmul.mubr.f32.gmra.mxu0 %v2979
    %v3049 = vpop.f32.mrf.mxu0
    %v3050 = vadd.f32 0.0, %v3049
    %v3051 = vpop.f32.mrf.mxu0
    %3052 = vdwg.mxu0
    %v3053 = vmul.f32 %v3050, 0.35355338
    %v3054 = vadd.f32 %v3053, %v2644
    %v3055 = vsel %vm611, %v3054, -inf
    %3056 = vmax.xlane.f32.xlu0 %v3055
    %v3057 = vpop.xlane.xlu0 %3056
    %v3058 = vsub.f32 %v3054, %v3057
    %v3059 = vmul.f32 %v3058, 1.442695
    %v3060 = vpow.pop %v3059
    %v3061 = vsel %vm611, %v3060, 0.0
    %3062 = vadd.xlane.f32.xlu0 %v3061
    %v3063 = vpop.xlane.xlu0 %3062
    %v3064 = vrcp.pop %v3063
    %v3065 = vmul.f32 %v3060, %v3064
    %3066 = vrot.lane.b32.xlu0 %v2629, 112
    %v3067 = vpop.permute.xlu0 %3066
    %v3070 = vsel %vm611, %v3065, 0
    %3072 = vmatprep.subr.mxu0 0.0
    %3073 = vmatpush1.msra.mxu0 0.0
    %3074 = vmatprep.subr.mxu0 0.0
    %3075 = vmatpush1.msra.mxu0 0.0
    %3076 = vmatprep.subr.mxu0 0.0
    %3077 = vmatpush1.msra.mxu0 0.0
    %3078 = vmatprep.subr.mxu0 0.0
    %3079 = vmatpush1.msra.mxu0 0.0
    %3080 = vmatprep.subr.mxu0 0.0
    %3081 = vmatpush1.msra.mxu0 0.0
    %3082 = vmatprep.subr.mxu0 0.0
    %3083 = vmatpush1.msra.mxu0 0.0
    %3084 = vmatprep.subr.mxu0 0.0
    %3085 = vmatpush1.msra.mxu0 0.0
    %3086 = vmatprep.subr.mxu0 0.0
    %3087 = vmatpush1.msra.mxu0 0.0
    %3088 = vmatprep.subr.mxu0 0.0
    %3089 = vmatpush1.msra.mxu0 0.0
    %3090 = vmatprep.subr.mxu0 0.0
    %3091 = vmatpush1.msra.mxu0 0.0
    %3092 = vmatprep.subr.mxu0 0.0
    %3093 = vmatpush1.msra.mxu0 0.0
    %3094 = vmatprep.subr.mxu0 0.0
    %3095 = vmatpush1.msra.mxu0 0.0
    %3096 = vmatprep.subr.mxu0 0.0
    %3097 = vmatpush1.msra.mxu0 0.0
    %3098 = vmatprep.subr.mxu0 0.0
    %3099 = vmatpush1.msra.mxu0 0.0
    %3100 = vmatprep.subr.mxu0 0.0
    %3101 = vmatpush1.msra.mxu0 0.0
    %3102 = vmatprep.subr.mxu0 0.0
    %3103 = vmatpush1.msra.mxu0 %v3067
    %3104 = vmatprep.subr.mxu0 0.0
    %3105 = vmatpush2.msra.mxu0 0.0
    %3106 = vmatprep.subr.mxu0 0.0
    %3107 = vmatpush2.msra.mxu0 0.0
    %3108 = vmatprep.subr.mxu0 0.0
    %3109 = vmatpush2.msra.mxu0 0.0
    %3110 = vmatprep.subr.mxu0 0.0
    %3111 = vmatpush2.msra.mxu0 0.0
    %3112 = vmatprep.subr.mxu0 0.0
    %3113 = vmatpush2.msra.mxu0 0.0
    %3114 = vmatprep.subr.mxu0 0.0
    %3115 = vmatpush2.msra.mxu0 0.0
    %3116 = vmatprep.subr.mxu0 0.0
    %3117 = vmatpush2.msra.mxu0 0.0
    %3118 = vmatprep.subr.mxu0 0.0
    %3119 = vmatpush2.msra.mxu0 0.0
    %3120 = vmatprep.subr.mxu0 0.0
    %3121 = vmatpush2.msra.mxu0 0.0
    %3122 = vmatprep.subr.mxu0 0.0
    %3123 = vmatpush2.msra.mxu0 0.0
    %3124 = vmatprep.subr.mxu0 0.0
    %3125 = vmatpush2.msra.mxu0 0.0
    %3126 = vmatprep.subr.mxu0 0.0
    %3127 = vmatpush2.msra.mxu0 0.0
    %3128 = vmatprep.subr.mxu0 0.0
    %3129 = vmatpush2.msra.mxu0 0.0
    %3130 = vmatprep.subr.mxu0 0.0
    %3131 = vmatpush2.msra.mxu0 0.0
    %3132 = vmatprep.subr.mxu0 0.0
    %3133 = vmatpush2.msra.mxu0 0.0
    %3134 = vmatprep.subr.mxu0 0.0
    %3135 = vmatpush2.msra.mxu0 0.0
    %3136 = vmatprep.mubr.f32.mxu0 0.0
    %3137 = vmatmul.mubr.f32.gmra.mxu0 %v3070
    %v3138 = vpop.f32.mrf.mxu0
    %v3139 = vadd.f32 0.0, %v3138
    %v3140 = vpop.f32.mrf.mxu0
    %3141 = vdwg.mxu0
    %3142 = vrot.lane.b32.xlu0 %v2471, 104
    %v3143 = vpop.permute.xlu0 %3142
    %3144 = vrot.lane.b32.xlu0 %v2550, 104
    %v3145 = vpop.permute.xlu0 %3144
    %v3146 = vsel %vm611, %v3143, 0
    %v3148 = vsel %vm611, %v3145, 0
    %3150 = vmatprep.subr.mxu0 0.0
    %3151 = vmatpush1.xpose.msra.mxu0 0.0
    %3152 = vmatprep.subr.mxu0 0.0
    %3153 = vmatpush1.xpose.msra.mxu0 0.0
    %3154 = vmatprep.subr.mxu0 0.0
    %3155 = vmatpush1.xpose.msra.mxu0 0.0
    %3156 = vmatprep.subr.mxu0 0.0
    %3157 = vmatpush1.xpose.msra.mxu0 0.0
    %3158 = vmatprep.subr.mxu0 0.0
    %3159 = vmatpush1.xpose.msra.mxu0 0.0
    %3160 = vmatprep.subr.mxu0 0.0
    %3161 = vmatpush1.xpose.msra.mxu0 0.0
    %3162 = vmatprep.subr.mxu0 0.0
    %3163 = vmatpush1.xpose.msra.mxu0 0.0
    %3164 = vmatprep.subr.mxu0 0.0
    %3165 = vmatpush1.xpose.msra.mxu0 0.0
    %3166 = vmatprep.subr.mxu0 0.0
    %3167 = vmatpush1.xpose.msra.mxu0 0.0
    %3168 = vmatprep.subr.mxu0 0.0
    %3169 = vmatpush1.xpose.msra.mxu0 0.0
    %3170 = vmatprep.subr.mxu0 0.0
    %3171 = vmatpush1.xpose.msra.mxu0 0.0
    %3172 = vmatprep.subr.mxu0 0.0
    %3173 = vmatpush1.xpose.msra.mxu0 0.0
    %3174 = vmatprep.subr.mxu0 0.0
    %3175 = vmatpush1.xpose.msra.mxu0 0.0
    %3176 = vmatprep.subr.mxu0 0.0
    %3177 = vmatpush1.xpose.msra.mxu0 0.0
    %3178 = vmatprep.subr.mxu0 0.0
    %3179 = vmatpush1.xpose.msra.mxu0 0.0
    %3180 = vmatprep.subr.mxu0 0.0
    %3181 = vmatpush1.xpose.msra.mxu0 %v3148
    %3182 = vmatprep.subr.mxu0 0.0
    %3183 = vmatpush2.xpose.msra.mxu0 0.0
    %3184 = vmatprep.subr.mxu0 0.0
    %3185 = vmatpush2.xpose.msra.mxu0 0.0
    %3186 = vmatprep.subr.mxu0 0.0
    %3187 = vmatpush2.xpose.msra.mxu0 0.0
    %3188 = vmatprep.subr.mxu0 0.0
    %3189 = vmatpush2.xpose.msra.mxu0 0.0
    %3190 = vmatprep.subr.mxu0 0.0
    %3191 = vmatpush2.xpose.msra.mxu0 0.0
    %3192 = vmatprep.subr.mxu0 0.0
    %3193 = vmatpush2.xpose.msra.mxu0 0.0
    %3194 = vmatprep.subr.mxu0 0.0
    %3195 = vmatpush2.xpose.msra.mxu0 0.0
    %3196 = vmatprep.subr.mxu0 0.0
    %3197 = vmatpush2.xpose.msra.mxu0 0.0
    %3198 = vmatprep.subr.mxu0 0.0
    %3199 = vmatpush2.xpose.msra.mxu0 0.0
    %3200 = vmatprep.subr.mxu0 0.0
    %3201 = vmatpush2.xpose.msra.mxu0 0.0
    %3202 = vmatprep.subr.mxu0 0.0
    %3203 = vmatpush2.xpose.msra.mxu0 0.0
    %3204 = vmatprep.subr.mxu0 0.0
    %3205 = vmatpush2.xpose.msra.mxu0 0.0
    %3206 = vmatprep.subr.mxu0 0.0
    %3207 = vmatpush2.xpose.msra.mxu0 0.0
    %3208 = vmatprep.subr.mxu0 0.0
    %3209 = vmatpush2.xpose.msra.mxu0 0.0
    %3210 = vmatprep.subr.mxu0 0.0
    %3211 = vmatpush2.xpose.msra.mxu0 0.0
    %3212 = vmatprep.subr.mxu0 0.0
    %3213 = vmatpush2.xpose.msra.mxu0 0.0
    %3214 = vmatprep.mubr.f32.mxu0 0.0
    %3215 = vmatmul.mubr.f32.gmra.mxu0 %v3146
    %v3216 = vpop.f32.mrf.mxu0
    %v3217 = vadd.f32 0.0, %v3216
    %v3218 = vpop.f32.mrf.mxu0
    %3219 = vdwg.mxu0
    %v3220 = vmul.f32 %v3217, 0.35355338
    %v3221 = vadd.f32 %v3220, %v2644
    %v3222 = vsel %vm611, %v3221, -inf
    %3223 = vmax.xlane.f32.xlu0 %v3222
    %v3224 = vpop.xlane.xlu0 %3223
    %v3225 = vsub.f32 %v3221, %v3224
    %v3226 = vmul.f32 %v3225, 1.442695
    %v3227 = vpow.pop %v3226
    %v3228 = vsel %vm611, %v3227, 0.0
    %3229 = vadd.xlane.f32.xlu0 %v3228
    %v3230 = vpop.xlane.xlu0 %3229
    %v3231 = vrcp.pop %v3230
    %v3232 = vmul.f32 %v3227, %v3231
    %3233 = vrot.lane.b32.xlu0 %v2629, 104
    %v3234 = vpop.permute.xlu0 %3233
    %v3237 = vsel %vm611, %v3232, 0
    %3239 = vmatprep.subr.mxu0 0.0
    %3240 = vmatpush1.msra.mxu0 0.0
    %3241 = vmatprep.subr.mxu0 0.0
    %3242 = vmatpush1.msra.mxu0 0.0
    %3243 = vmatprep.subr.mxu0 0.0
    %3244 = vmatpush1.msra.mxu0 0.0
    %3245 = vmatprep.subr.mxu0 0.0
    %3246 = vmatpush1.msra.mxu0 0.0
    %3247 = vmatprep.subr.mxu0 0.0
    %3248 = vmatpush1.msra.mxu0 0.0
    %3249 = vmatprep.subr.mxu0 0.0
    %3250 = vmatpush1.msra.mxu0 0.0
    %3251 = vmatprep.subr.mxu0 0.0
    %3252 = vmatpush1.msra.mxu0 0.0
    %3253 = vmatprep.subr.mxu0 0.0
    %3254 = vmatpush1.msra.mxu0 0.0
    %3255 = vmatprep.subr.mxu0 0.0
    %3256 = vmatpush1.msra.mxu0 0.0
    %3257 = vmatprep.subr.mxu0 0.0
    %3258 = vmatpush1.msra.mxu0 0.0
    %3259 = vmatprep.subr.mxu0 0.0
    %3260 = vmatpush1.msra.mxu0 0.0
    %3261 = vmatprep.subr.mxu0 0.0
    %3262 = vmatpush1.msra.mxu0 0.0
    %3263 = vmatprep.subr.mxu0 0.0
    %3264 = vmatpush1.msra.mxu0 0.0
    %3265 = vmatprep.subr.mxu0 0.0
    %3266 = vmatpush1.msra.mxu0 0.0
    %3267 = vmatprep.subr.mxu0 0.0
    %3268 = vmatpush1.msra.mxu0 0.0
    %3269 = vmatprep.subr.mxu0 0.0
    %3270 = vmatpush1.msra.mxu0 %v3234
    %3271 = vmatprep.subr.mxu0 0.0
    %3272 = vmatpush2.msra.mxu0 0.0
    %3273 = vmatprep.subr.mxu0 0.0
    %3274 = vmatpush2.msra.mxu0 0.0
    %3275 = vmatprep.subr.mxu0 0.0
    %3276 = vmatpush2.msra.mxu0 0.0
    %3277 = vmatprep.subr.mxu0 0.0
    %3278 = vmatpush2.msra.mxu0 0.0
    %3279 = vmatprep.subr.mxu0 0.0
    %3280 = vmatpush2.msra.mxu0 0.0
    %3281 = vmatprep.subr.mxu0 0.0
    %3282 = vmatpush2.msra.mxu0 0.0
    %3283 = vmatprep.subr.mxu0 0.0
    %3284 = vmatpush2.msra.mxu0 0.0
    %3285 = vmatprep.subr.mxu0 0.0
    %3286 = vmatpush2.msra.mxu0 0.0
    %3287 = vmatprep.subr.mxu0 0.0
    %3288 = vmatpush2.msra.mxu0 0.0
    %3289 = vmatprep.subr.mxu0 0.0
    %3290 = vmatpush2.msra.mxu0 0.0
    %3291 = vmatprep.subr.mxu0 0.0
    %3292 = vmatpush2.msra.mxu0 0.0
    %3293 = vmatprep.subr.mxu0 0.0
    %3294 = vmatpush2.msra.mxu0 0.0
    %3295 = vmatprep.subr.mxu0 0.0
    %3296 = vmatpush2.msra.mxu0 0.0
    %3297 = vmatprep.subr.mxu0 0.0
    %3298 = vmatpush2.msra.mxu0 0.0
    %3299 = vmatprep.subr.mxu0 0.0
    %3300 = vmatpush2.msra.mxu0 0.0
    %3301 = vmatprep.subr.mxu0 0.0
    %3302 = vmatpush2.msra.mxu0 0.0
    %3303 = vmatprep.mubr.f32.mxu0 0.0
    %3304 = vmatmul.mubr.f32.gmra.mxu0 %v3237
    %v3305 = vpop.f32.mrf.mxu0
    %v3306 = vadd.f32 0.0, %v3305
    %v3307 = vpop.f32.mrf.mxu0
    %3308 = vdwg.mxu0
    %3310 = vrot.lane.b32.xlu0 %v2972, 8
    %v3311 = vpop.permute.xlu0 %3310
    %3314 = vrot.lane.b32.xlu0 %v3139, 16
    %v3315 = vpop.permute.xlu0 %3314
    %3318 = vrot.lane.b32.xlu0 %v3306, 24
    %v3319 = vpop.permute.xlu0 %3318
    %v3321 = vsel %vm611, %v2804, %v3311
    %v3322 = vsel %vm1295, %v3321, %v3315
    %v3323 = vsel %vm1297, %v3322, %v3319
    %s3324 = scalar_lea.vmem %s4, 1
    %v3325 = vld [vmem:[%s3324] sm:$0x1]
    %v3327 = vlaneseq
    %v3328 = vshrl.u32 %v3327, 7
    %v3329 = vsub.s32 0, %v3328
    %v3330 = vrot.slane %v3325, %v3329
    %v3332 = vadd.f32 %v2355, %v3330
    %v3334 = vsel %vm611, %v2476, 0
    %v3337 = vsel %vm611, %v2555, 0
    %3339 = vmatprep.subr.mxu0 0.0
    %3340 = vmatpush1.xpose.msra.mxu0 0.0
    %3341 = vmatprep.subr.mxu0 0.0
    %3342 = vmatpush1.xpose.msra.mxu0 0.0
    %3343 = vmatprep.subr.mxu0 0.0
    %3344 = vmatpush1.xpose.msra.mxu0 0.0
    %3345 = vmatprep.subr.mxu0 0.0
    %3346 = vmatpush1.xpose.msra.mxu0 0.0
    %3347 = vmatprep.subr.mxu0 0.0
    %3348 = vmatpush1.xpose.msra.mxu0 0.0
    %3349 = vmatprep.subr.mxu0 0.0
    %3350 = vmatpush1.xpose.msra.mxu0 0.0
    %3351 = vmatprep.subr.mxu0 0.0
    %3352 = vmatpush1.xpose.msra.mxu0 0.0
    %3353 = vmatprep.subr.mxu0 0.0
    %3354 = vmatpush1.xpose.msra.mxu0 0.0
    %3355 = vmatprep.subr.mxu0 0.0
    %3356 = vmatpush1.xpose.msra.mxu0 0.0
    %3357 = vmatprep.subr.mxu0 0.0
    %3358 = vmatpush1.xpose.msra.mxu0 0.0
    %3359 = vmatprep.subr.mxu0 0.0
    %3360 = vmatpush1.xpose.msra.mxu0 0.0
    %3361 = vmatprep.subr.mxu0 0.0
    %3362 = vmatpush1.xpose.msra.mxu0 0.0
    %3363 = vmatprep.subr.mxu0 0.0
    %3364 = vmatpush1.xpose.msra.mxu0 0.0
    %3365 = vmatprep.subr.mxu0 0.0
    %3366 = vmatpush1.xpose.msra.mxu0 0.0
    %3367 = vmatprep.subr.mxu0 0.0
    %3368 = vmatpush1.xpose.msra.mxu0 0.0
    %3369 = vmatprep.subr.mxu0 0.0
    %3370 = vmatpush1.xpose.msra.mxu0 %v3337
    %3371 = vmatprep.subr.mxu0 0.0
    %3372 = vmatpush2.xpose.msra.mxu0 0.0
    %3373 = vmatprep.subr.mxu0 0.0
    %3374 = vmatpush2.xpose.msra.mxu0 0.0
    %3375 = vmatprep.subr.mxu0 0.0
    %3376 = vmatpush2.xpose.msra.mxu0 0.0
    %3377 = vmatprep.subr.mxu0 0.0
    %3378 = vmatpush2.xpose.msra.mxu0 0.0
    %3379 = vmatprep.subr.mxu0 0.0
    %3380 = vmatpush2.xpose.msra.mxu0 0.0
    %3381 = vmatprep.subr.mxu0 0.0
    %3382 = vmatpush2.xpose.msra.mxu0 0.0
    %3383 = vmatprep.subr.mxu0 0.0
    %3384 = vmatpush2.xpose.msra.mxu0 0.0
    %3385 = vmatprep.subr.mxu0 0.0
    %3386 = vmatpush2.xpose.msra.mxu0 0.0
    %3387 = vmatprep.subr.mxu0 0.0
    %3388 = vmatpush2.xpose.msra.mxu0 0.0
    %3389 = vmatprep.subr.mxu0 0.0
    %3390 = vmatpush2.xpose.msra.mxu0 0.0
    %3391 = vmatprep.subr.mxu0 0.0
    %3392 = vmatpush2.xpose.msra.mxu0 0.0
    %3393 = vmatprep.subr.mxu0 0.0
    %3394 = vmatpush2.xpose.msra.mxu0 0.0
    %3395 = vmatprep.subr.mxu0 0.0
    %3396 = vmatpush2.xpose.msra.mxu0 0.0
    %3397 = vmatprep.subr.mxu0 0.0
    %3398 = vmatpush2.xpose.msra.mxu0 0.0
    %3399 = vmatprep.subr.mxu0 0.0
    %3400 = vmatpush2.xpose.msra.mxu0 0.0
    %3401 = vmatprep.subr.mxu0 0.0
    %3402 = vmatpush2.xpose.msra.mxu0 0.0
    %3403 = vmatprep.mubr.f32.mxu0 0.0
    %3404 = vmatmul.mubr.f32.gmra.mxu0 %v3334
    %v3405 = vpop.f32.mrf.mxu0
    %v3406 = vadd.f32 0.0, %v3405
    %v3407 = vpop.f32.mrf.mxu0
    %3408 = vdwg.mxu0
    %v3409 = vmul.f32 %v3406, 0.35355338
    %v3410 = vadd.f32 %v3409, %v3332
    %v3411 = vsel %vm611, %v3410, -inf
    %3412 = vmax.xlane.f32.xlu0 %v3411
    %v3413 = vpop.xlane.xlu0 %3412
    %v3414 = vsub.f32 %v3410, %v3413
    %v3415 = vmul.f32 %v3414, 1.442695
    %v3416 = vpow.pop %v3415
    %v3417 = vsel %vm611, %v3416, 0.0
    %3418 = vadd.xlane.f32.xlu0 %v3417
    %v3419 = vpop.xlane.xlu0 %3418
    %v3420 = vrcp.pop %v3419
    %v3421 = vmul.f32 %v3416, %v3420
    %v3423 = vsel %vm611, %v3421, 0
    %3425 = vmatprep.subr.mxu0 0.0
    %3426 = vmatpush1.msra.mxu0 0.0
    %3427 = vmatprep.subr.mxu0 0.0
    %3428 = vmatpush1.msra.mxu0 0.0
    %3429 = vmatprep.subr.mxu0 0.0
    %3430 = vmatpush1.msra.mxu0 0.0
    %3431 = vmatprep.subr.mxu0 0.0
    %3432 = vmatpush1.msra.mxu0 0.0
    %3433 = vmatprep.subr.mxu0 0.0
    %3434 = vmatpush1.msra.mxu0 0.0
    %3435 = vmatprep.subr.mxu0 0.0
    %3436 = vmatpush1.msra.mxu0 0.0
    %3437 = vmatprep.subr.mxu0 0.0
    %3438 = vmatpush1.msra.mxu0 0.0
    %3439 = vmatprep.subr.mxu0 0.0
    %3440 = vmatpush1.msra.mxu0 0.0
    %3441 = vmatprep.subr.mxu0 0.0
    %3442 = vmatpush1.msra.mxu0 0.0
    %3443 = vmatprep.subr.mxu0 0.0
    %3444 = vmatpush1.msra.mxu0 0.0
    %3445 = vmatprep.subr.mxu0 0.0
    %3446 = vmatpush1.msra.mxu0 0.0
    %3447 = vmatprep.subr.mxu0 0.0
    %3448 = vmatpush1.msra.mxu0 0.0
    %3449 = vmatprep.subr.mxu0 0.0
    %3450 = vmatpush1.msra.mxu0 0.0
    %3451 = vmatprep.subr.mxu0 0.0
    %3452 = vmatpush1.msra.mxu0 0.0
    %3453 = vmatprep.subr.mxu0 0.0
    %3454 = vmatpush1.msra.mxu0 0.0
    %3455 = vmatprep.subr.mxu0 0.0
    %3456 = vmatpush1.msra.mxu0 %v2634
    %3457 = vmatprep.subr.mxu0 0.0
    %3458 = vmatpush2.msra.mxu0 0.0
    %3459 = vmatprep.subr.mxu0 0.0
    %3460 = vmatpush2.msra.mxu0 0.0
    %3461 = vmatprep.subr.mxu0 0.0
    %3462 = vmatpush2.msra.mxu0 0.0
    %3463 = vmatprep.subr.mxu0 0.0
    %3464 = vmatpush2.msra.mxu0 0.0
    %3465 = vmatprep.subr.mxu0 0.0
    %3466 = vmatpush2.msra.mxu0 0.0
    %3467 = vmatprep.subr.mxu0 0.0
    %3468 = vmatpush2.msra.mxu0 0.0
    %3469 = vmatprep.subr.mxu0 0.0
    %3470 = vmatpush2.msra.mxu0 0.0
    %3471 = vmatprep.subr.mxu0 0.0
    %3472 = vmatpush2.msra.mxu0 0.0
    %3473 = vmatprep.subr.mxu0 0.0
    %3474 = vmatpush2.msra.mxu0 0.0
    %3475 = vmatprep.subr.mxu0 0.0
    %3476 = vmatpush2.msra.mxu0 0.0
    %3477 = vmatprep.subr.mxu0 0.0
    %3478 = vmatpush2.msra.mxu0 0.0
    %3479 = vmatprep.subr.mxu0 0.0
    %3480 = vmatpush2.msra.mxu0 0.0
    %3481 = vmatprep.subr.mxu0 0.0
    %3482 = vmatpush2.msra.mxu0 0.0
    %3483 = vmatprep.subr.mxu0 0.0
    %3484 = vmatpush2.msra.mxu0 0.0
    %3485 = vmatprep.subr.mxu0 0.0
    %3486 = vmatpush2.msra.mxu0 0.0
    %3487 = vmatprep.subr.mxu0 0.0
    %3488 = vmatpush2.msra.mxu0 0.0
    %3489 = vmatprep.mubr.f32.mxu0 0.0
    %3490 = vmatmul.mubr.f32.gmra.mxu0 %v3423
    %v3491 = vpop.f32.mrf.mxu0
    %v3492 = vadd.f32 0.0, %v3491
    %v3493 = vpop.f32.mrf.mxu0
    %3494 = vdwg.mxu0
    %3495 = vrot.lane.b32.xlu0 %v2476, 120
    %v3496 = vpop.permute.xlu0 %3495
    %3497 = vrot.lane.b32.xlu0 %v2555, 120
    %v3498 = vpop.permute.xlu0 %3497
    %v3499 = vsel %vm611, %v3496, 0
    %v3501 = vsel %vm611, %v3498, 0
    %3503 = vmatprep.subr.mxu0 0.0
    %3504 = vmatpush1.xpose.msra.mxu0 0.0
    %3505 = vmatprep.subr.mxu0 0.0
    %3506 = vmatpush1.xpose.msra.mxu0 0.0
    %3507 = vmatprep.subr.mxu0 0.0
    %3508 = vmatpush1.xpose.msra.mxu0 0.0
    %3509 = vmatprep.subr.mxu0 0.0
    %3510 = vmatpush1.xpose.msra.mxu0 0.0
    %3511 = vmatprep.subr.mxu0 0.0
    %3512 = vmatpush1.xpose.msra.mxu0 0.0
    %3513 = vmatprep.subr.mxu0 0.0
    %3514 = vmatpush1.xpose.msra.mxu0 0.0
    %3515 = vmatprep.subr.mxu0 0.0
    %3516 = vmatpush1.xpose.msra.mxu0 0.0
    %3517 = vmatprep.subr.mxu0 0.0
    %3518 = vmatpush1.xpose.msra.mxu0 0.0
    %3519 = vmatprep.subr.mxu0 0.0
    %3520 = vmatpush1.xpose.msra.mxu0 0.0
    %3521 = vmatprep.subr.mxu0 0.0
    %3522 = vmatpush1.xpose.msra.mxu0 0.0
    %3523 = vmatprep.subr.mxu0 0.0
    %3524 = vmatpush1.xpose.msra.mxu0 0.0
    %3525 = vmatprep.subr.mxu0 0.0
    %3526 = vmatpush1.xpose.msra.mxu0 0.0
    %3527 = vmatprep.subr.mxu0 0.0
    %3528 = vmatpush1.xpose.msra.mxu0 0.0
    %3529 = vmatprep.subr.mxu0 0.0
    %3530 = vmatpush1.xpose.msra.mxu0 0.0
    %3531 = vmatprep.subr.mxu0 0.0
    %3532 = vmatpush1.xpose.msra.mxu0 0.0
    %3533 = vmatprep.subr.mxu0 0.0
    %3534 = vmatpush1.xpose.msra.mxu0 %v3501
    %3535 = vmatprep.subr.mxu0 0.0
    %3536 = vmatpush2.xpose.msra.mxu0 0.0
    %3537 = vmatprep.subr.mxu0 0.0
    %3538 = vmatpush2.xpose.msra.mxu0 0.0
    %3539 = vmatprep.subr.mxu0 0.0
    %3540 = vmatpush2.xpose.msra.mxu0 0.0
    %3541 = vmatprep.subr.mxu0 0.0
    %3542 = vmatpush2.xpose.msra.mxu0 0.0
    %3543 = vmatprep.subr.mxu0 0.0
    %3544 = vmatpush2.xpose.msra.mxu0 0.0
    %3545 = vmatprep.subr.mxu0 0.0
    %3546 = vmatpush2.xpose.msra.mxu0 0.0
    %3547 = vmatprep.subr.mxu0 0.0
    %3548 = vmatpush2.xpose.msra.mxu0 0.0
    %3549 = vmatprep.subr.mxu0 0.0
    %3550 = vmatpush2.xpose.msra.mxu0 0.0
    %3551 = vmatprep.subr.mxu0 0.0
    %3552 = vmatpush2.xpose.msra.mxu0 0.0
    %3553 = vmatprep.subr.mxu0 0.0
    %3554 = vmatpush2.xpose.msra.mxu0 0.0
    %3555 = vmatprep.subr.mxu0 0.0
    %3556 = vmatpush2.xpose.msra.mxu0 0.0
    %3557 = vmatprep.subr.mxu0 0.0
    %3558 = vmatpush2.xpose.msra.mxu0 0.0
    %3559 = vmatprep.subr.mxu0 0.0
    %3560 = vmatpush2.xpose.msra.mxu0 0.0
    %3561 = vmatprep.subr.mxu0 0.0
    %3562 = vmatpush2.xpose.msra.mxu0 0.0
    %3563 = vmatprep.subr.mxu0 0.0
    %3564 = vmatpush2.xpose.msra.mxu0 0.0
    %3565 = vmatprep.subr.mxu0 0.0
    %3566 = vmatpush2.xpose.msra.mxu0 0.0
    %3567 = vmatprep.mubr.f32.mxu0 0.0
    %3568 = vmatmul.mubr.f32.gmra.mxu0 %v3499
    %v3569 = vpop.f32.mrf.mxu0
    %v3570 = vadd.f32 0.0, %v3569
    %v3571 = vpop.f32.mrf.mxu0
    %3572 = vdwg.mxu0
    %v3573 = vmul.f32 %v3570, 0.35355338
    %v3574 = vadd.f32 %v3573, %v3332
    %v3575 = vsel %vm611, %v3574, -inf
    %3576 = vmax.xlane.f32.xlu0 %v3575
    %v3577 = vpop.xlane.xlu0 %3576
    %v3578 = vsub.f32 %v3574, %v3577
    %v3579 = vmul.f32 %v3578, 1.442695
    %v3580 = vpow.pop %v3579
    %v3581 = vsel %vm611, %v3580, 0.0
    %3582 = vadd.xlane.f32.xlu0 %v3581
    %v3583 = vpop.xlane.xlu0 %3582
    %v3584 = vrcp.pop %v3583
    %v3585 = vmul.f32 %v3580, %v3584
    %3587 = vrot.lane.b32.xlu0 %v2634, 120
    %v3588 = vpop.permute.xlu0 %3587
    %v3591 = vsel %vm611, %v3585, 0
    %3593 = vmatprep.subr.mxu0 0.0
    %3594 = vmatpush1.msra.mxu0 0.0
    %3595 = vmatprep.subr.mxu0 0.0
    %3596 = vmatpush1.msra.mxu0 0.0
    %3597 = vmatprep.subr.mxu0 0.0
    %3598 = vmatpush1.msra.mxu0 0.0
    %3599 = vmatprep.subr.mxu0 0.0
    %3600 = vmatpush1.msra.mxu0 0.0
    %3601 = vmatprep.subr.mxu0 0.0
    %3602 = vmatpush1.msra.mxu0 0.0
    %3603 = vmatprep.subr.mxu0 0.0
    %3604 = vmatpush1.msra.mxu0 0.0
    %3605 = vmatprep.subr.mxu0 0.0
    %3606 = vmatpush1.msra.mxu0 0.0
    %3607 = vmatprep.subr.mxu0 0.0
    %3608 = vmatpush1.msra.mxu0 0.0
    %3609 = vmatprep.subr.mxu0 0.0
    %3610 = vmatpush1.msra.mxu0 0.0
    %3611 = vmatprep.subr.mxu0 0.0
    %3612 = vmatpush1.msra.mxu0 0.0
    %3613 = vmatprep.subr.mxu0 0.0
    %3614 = vmatpush1.msra.mxu0 0.0
    %3615 = vmatprep.subr.mxu0 0.0
    %3616 = vmatpush1.msra.mxu0 0.0
    %3617 = vmatprep.subr.mxu0 0.0
    %3618 = vmatpush1.msra.mxu0 0.0
    %3619 = vmatprep.subr.mxu0 0.0
    %3620 = vmatpush1.msra.mxu0 0.0
    %3621 = vmatprep.subr.mxu0 0.0
    %3622 = vmatpush1.msra.mxu0 0.0
    %3623 = vmatprep.subr.mxu0 0.0
    %3624 = vmatpush1.msra.mxu0 %v3588
    %3625 = vmatprep.subr.mxu0 0.0
    %3626 = vmatpush2.msra.mxu0 0.0
    %3627 = vmatprep.subr.mxu0 0.0
    %3628 = vmatpush2.msra.mxu0 0.0
    %3629 = vmatprep.subr.mxu0 0.0
    %3630 = vmatpush2.msra.mxu0 0.0
    %3631 = vmatprep.subr.mxu0 0.0
    %3632 = vmatpush2.msra.mxu0 0.0
    %3633 = vmatprep.subr.mxu0 0.0
    %3634 = vmatpush2.msra.mxu0 0.0
    %3635 = vmatprep.subr.mxu0 0.0
    %3636 = vmatpush2.msra.mxu0 0.0
    %3637 = vmatprep.subr.mxu0 0.0
    %3638 = vmatpush2.msra.mxu0 0.0
    %3639 = vmatprep.subr.mxu0 0.0
    %3640 = vmatpush2.msra.mxu0 0.0
    %3641 = vmatprep.subr.mxu0 0.0
    %3642 = vmatpush2.msra.mxu0 0.0
    %3643 = vmatprep.subr.mxu0 0.0
    %3644 = vmatpush2.msra.mxu0 0.0
    %3645 = vmatprep.subr.mxu0 0.0
    %3646 = vmatpush2.msra.mxu0 0.0
    %3647 = vmatprep.subr.mxu0 0.0
    %3648 = vmatpush2.msra.mxu0 0.0
    %3649 = vmatprep.subr.mxu0 0.0
    %3650 = vmatpush2.msra.mxu0 0.0
    %3651 = vmatprep.subr.mxu0 0.0
    %3652 = vmatpush2.msra.mxu0 0.0
    %3653 = vmatprep.subr.mxu0 0.0
    %3654 = vmatpush2.msra.mxu0 0.0
    %3655 = vmatprep.subr.mxu0 0.0
    %3656 = vmatpush2.msra.mxu0 0.0
    %3657 = vmatprep.mubr.f32.mxu0 0.0
    %3658 = vmatmul.mubr.f32.gmra.mxu0 %v3591
    %v3659 = vpop.f32.mrf.mxu0
    %v3660 = vadd.f32 0.0, %v3659
    %v3661 = vpop.f32.mrf.mxu0
    %3662 = vdwg.mxu0
    %3663 = vrot.lane.b32.xlu0 %v2476, 112
    %v3664 = vpop.permute.xlu0 %3663
    %3665 = vrot.lane.b32.xlu0 %v2555, 112
    %v3666 = vpop.permute.xlu0 %3665
    %v3667 = vsel %vm611, %v3664, 0
    %v3669 = vsel %vm611, %v3666, 0
    %3671 = vmatprep.subr.mxu0 0.0
    %3672 = vmatpush1.xpose.msra.mxu0 0.0
    %3673 = vmatprep.subr.mxu0 0.0
    %3674 = vmatpush1.xpose.msra.mxu0 0.0
    %3675 = vmatprep.subr.mxu0 0.0
    %3676 = vmatpush1.xpose.msra.mxu0 0.0
    %3677 = vmatprep.subr.mxu0 0.0
    %3678 = vmatpush1.xpose.msra.mxu0 0.0
    %3679 = vmatprep.subr.mxu0 0.0
    %3680 = vmatpush1.xpose.msra.mxu0 0.0
    %3681 = vmatprep.subr.mxu0 0.0
    %3682 = vmatpush1.xpose.msra.mxu0 0.0
    %3683 = vmatprep.subr.mxu0 0.0
    %3684 = vmatpush1.xpose.msra.mxu0 0.0
    %3685 = vmatprep.subr.mxu0 0.0
    %3686 = vmatpush1.xpose.msra.mxu0 0.0
    %3687 = vmatprep.subr.mxu0 0.0
    %3688 = vmatpush1.xpose.msra.mxu0 0.0
    %3689 = vmatprep.subr.mxu0 0.0
    %3690 = vmatpush1.xpose.msra.mxu0 0.0
    %3691 = vmatprep.subr.mxu0 0.0
    %3692 = vmatpush1.xpose.msra.mxu0 0.0
    %3693 = vmatprep.subr.mxu0 0.0
    %3694 = vmatpush1.xpose.msra.mxu0 0.0
    %3695 = vmatprep.subr.mxu0 0.0
    %3696 = vmatpush1.xpose.msra.mxu0 0.0
    %3697 = vmatprep.subr.mxu0 0.0
    %3698 = vmatpush1.xpose.msra.mxu0 0.0
    %3699 = vmatprep.subr.mxu0 0.0
    %3700 = vmatpush1.xpose.msra.mxu0 0.0
    %3701 = vmatprep.subr.mxu0 0.0
    %3702 = vmatpush1.xpose.msra.mxu0 %v3669
    %3703 = vmatprep.subr.mxu0 0.0
    %3704 = vmatpush2.xpose.msra.mxu0 0.0
    %3705 = vmatprep.subr.mxu0 0.0
    %3706 = vmatpush2.xpose.msra.mxu0 0.0
    %3707 = vmatprep.subr.mxu0 0.0
    %3708 = vmatpush2.xpose.msra.mxu0 0.0
    %3709 = vmatprep.subr.mxu0 0.0
    %3710 = vmatpush2.xpose.msra.mxu0 0.0
    %3711 = vmatprep.subr.mxu0 0.0
    %3712 = vmatpush2.xpose.msra.mxu0 0.0
    %3713 = vmatprep.subr.mxu0 0.0
    %3714 = vmatpush2.xpose.msra.mxu0 0.0
    %3715 = vmatprep.subr.mxu0 0.0
    %3716 = vmatpush2.xpose.msra.mxu0 0.0
    %3717 = vmatprep.subr.mxu0 0.0
    %3718 = vmatpush2.xpose.msra.mxu0 0.0
    %3719 = vmatprep.subr.mxu0 0.0
    %3720 = vmatpush2.xpose.msra.mxu0 0.0
    %3721 = vmatprep.subr.mxu0 0.0
    %3722 = vmatpush2.xpose.msra.mxu0 0.0
    %3723 = vmatprep.subr.mxu0 0.0
    %3724 = vmatpush2.xpose.msra.mxu0 0.0
    %3725 = vmatprep.subr.mxu0 0.0
    %3726 = vmatpush2.xpose.msra.mxu0 0.0
    %3727 = vmatprep.subr.mxu0 0.0
    %3728 = vmatpush2.xpose.msra.mxu0 0.0
    %3729 = vmatprep.subr.mxu0 0.0
    %3730 = vmatpush2.xpose.msra.mxu0 0.0
    %3731 = vmatprep.subr.mxu0 0.0
    %3732 = vmatpush2.xpose.msra.mxu0 0.0
    %3733 = vmatprep.subr.mxu0 0.0
    %3734 = vmatpush2.xpose.msra.mxu0 0.0
    %3735 = vmatprep.mubr.f32.mxu0 0.0
    %3736 = vmatmul.mubr.f32.gmra.mxu0 %v3667
    %v3737 = vpop.f32.mrf.mxu0
    %v3738 = vadd.f32 0.0, %v3737
    %v3739 = vpop.f32.mrf.mxu0
    %3740 = vdwg.mxu0
    %v3741 = vmul.f32 %v3738, 0.35355338
    %v3742 = vadd.f32 %v3741, %v3332
    %v3743 = vsel %vm611, %v3742, -inf
    %3744 = vmax.xlane.f32.xlu0 %v3743
    %v3745 = vpop.xlane.xlu0 %3744
    %v3746 = vsub.f32 %v3742, %v3745
    %v3747 = vmul.f32 %v3746, 1.442695
    %v3748 = vpow.pop %v3747
    %v3749 = vsel %vm611, %v3748, 0.0
    %3750 = vadd.xlane.f32.xlu0 %v3749
    %v3751 = vpop.xlane.xlu0 %3750
    %v3752 = vrcp.pop %v3751
    %v3753 = vmul.f32 %v3748, %v3752
    %3754 = vrot.lane.b32.xlu0 %v2634, 112
    %v3755 = vpop.permute.xlu0 %3754
    %v3758 = vsel %vm611, %v3753, 0
    %3760 = vmatprep.subr.mxu0 0.0
    %3761 = vmatpush1.msra.mxu0 0.0
    %3762 = vmatprep.subr.mxu0 0.0
    %3763 = vmatpush1.msra.mxu0 0.0
    %3764 = vmatprep.subr.mxu0 0.0
    %3765 = vmatpush1.msra.mxu0 0.0
    %3766 = vmatprep.subr.mxu0 0.0
    %3767 = vmatpush1.msra.mxu0 0.0
    %3768 = vmatprep.subr.mxu0 0.0
    %3769 = vmatpush1.msra.mxu0 0.0
    %3770 = vmatprep.subr.mxu0 0.0
    %3771 = vmatpush1.msra.mxu0 0.0
    %3772 = vmatprep.subr.mxu0 0.0
    %3773 = vmatpush1.msra.mxu0 0.0
    %3774 = vmatprep.subr.mxu0 0.0
    %3775 = vmatpush1.msra.mxu0 0.0
    %3776 = vmatprep.subr.mxu0 0.0
    %3777 = vmatpush1.msra.mxu0 0.0
    %3778 = vmatprep.subr.mxu0 0.0
    %3779 = vmatpush1.msra.mxu0 0.0
    %3780 = vmatprep.subr.mxu0 0.0
    %3781 = vmatpush1.msra.mxu0 0.0
    %3782 = vmatprep.subr.mxu0 0.0
    %3783 = vmatpush1.msra.mxu0 0.0
    %3784 = vmatprep.subr.mxu0 0.0
    %3785 = vmatpush1.msra.mxu0 0.0
    %3786 = vmatprep.subr.mxu0 0.0
    %3787 = vmatpush1.msra.mxu0 0.0
    %3788 = vmatprep.subr.mxu0 0.0
    %3789 = vmatpush1.msra.mxu0 0.0
    %3790 = vmatprep.subr.mxu0 0.0
    %3791 = vmatpush1.msra.mxu0 %v3755
    %3792 = vmatprep.subr.mxu0 0.0
    %3793 = vmatpush2.msra.mxu0 0.0
    %3794 = vmatprep.subr.mxu0 0.0
    %3795 = vmatpush2.msra.mxu0 0.0
    %3796 = vmatprep.subr.mxu0 0.0
    %3797 = vmatpush2.msra.mxu0 0.0
    %3798 = vmatprep.subr.mxu0 0.0
    %3799 = vmatpush2.msra.mxu0 0.0
    %3800 = vmatprep.subr.mxu0 0.0
    %3801 = vmatpush2.msra.mxu0 0.0
    %3802 = vmatprep.subr.mxu0 0.0
    %3803 = vmatpush2.msra.mxu0 0.0
    %3804 = vmatprep.subr.mxu0 0.0
    %3805 = vmatpush2.msra.mxu0 0.0
    %3806 = vmatprep.subr.mxu0 0.0
    %3807 = vmatpush2.msra.mxu0 0.0
    %3808 = vmatprep.subr.mxu0 0.0
    %3809 = vmatpush2.msra.mxu0 0.0
    %3810 = vmatprep.subr.mxu0 0.0
    %3811 = vmatpush2.msra.mxu0 0.0
    %3812 = vmatprep.subr.mxu0 0.0
    %3813 = vmatpush2.msra.mxu0 0.0
    %3814 = vmatprep.subr.mxu0 0.0
    %3815 = vmatpush2.msra.mxu0 0.0
    %3816 = vmatprep.subr.mxu0 0.0
    %3817 = vmatpush2.msra.mxu0 0.0
    %3818 = vmatprep.subr.mxu0 0.0
    %3819 = vmatpush2.msra.mxu0 0.0
    %3820 = vmatprep.subr.mxu0 0.0
    %3821 = vmatpush2.msra.mxu0 0.0
    %3822 = vmatprep.subr.mxu0 0.0
    %3823 = vmatpush2.msra.mxu0 0.0
    %3824 = vmatprep.mubr.f32.mxu0 0.0
    %3825 = vmatmul.mubr.f32.gmra.mxu0 %v3758
    %v3826 = vpop.f32.mrf.mxu0
    %v3827 = vadd.f32 0.0, %v3826
    %v3828 = vpop.f32.mrf.mxu0
    %3829 = vdwg.mxu0
    %3830 = vrot.lane.b32.xlu0 %v2476, 104
    %v3831 = vpop.permute.xlu0 %3830
    %3832 = vrot.lane.b32.xlu0 %v2555, 104
    %v3833 = vpop.permute.xlu0 %3832
    %v3834 = vsel %vm611, %v3831, 0
    %v3836 = vsel %vm611, %v3833, 0
    %3838 = vmatprep.subr.mxu0 0.0
    %3839 = vmatpush1.xpose.msra.mxu0 0.0
    %3840 = vmatprep.subr.mxu0 0.0
    %3841 = vmatpush1.xpose.msra.mxu0 0.0
    %3842 = vmatprep.subr.mxu0 0.0
    %3843 = vmatpush1.xpose.msra.mxu0 0.0
    %3844 = vmatprep.subr.mxu0 0.0
    %3845 = vmatpush1.xpose.msra.mxu0 0.0
    %3846 = vmatprep.subr.mxu0 0.0
    %3847 = vmatpush1.xpose.msra.mxu0 0.0
    %3848 = vmatprep.subr.mxu0 0.0
    %3849 = vmatpush1.xpose.msra.mxu0 0.0
    %3850 = vmatprep.subr.mxu0 0.0
    %3851 = vmatpush1.xpose.msra.mxu0 0.0
    %3852 = vmatprep.subr.mxu0 0.0
    %3853 = vmatpush1.xpose.msra.mxu0 0.0
    %3854 = vmatprep.subr.mxu0 0.0
    %3855 = vmatpush1.xpose.msra.mxu0 0.0
    %3856 = vmatprep.subr.mxu0 0.0
    %3857 = vmatpush1.xpose.msra.mxu0 0.0
    %3858 = vmatprep.subr.mxu0 0.0
    %3859 = vmatpush1.xpose.msra.mxu0 0.0
    %3860 = vmatprep.subr.mxu0 0.0
    %3861 = vmatpush1.xpose.msra.mxu0 0.0
    %3862 = vmatprep.subr.mxu0 0.0
    %3863 = vmatpush1.xpose.msra.mxu0 0.0
    %3864 = vmatprep.subr.mxu0 0.0
    %3865 = vmatpush1.xpose.msra.mxu0 0.0
    %3866 = vmatprep.subr.mxu0 0.0
    %3867 = vmatpush1.xpose.msra.mxu0 0.0
    %3868 = vmatprep.subr.mxu0 0.0
    %3869 = vmatpush1.xpose.msra.mxu0 %v3836
    %3870 = vmatprep.subr.mxu0 0.0
    %3871 = vmatpush2.xpose.msra.mxu0 0.0
    %3872 = vmatprep.subr.mxu0 0.0
    %3873 = vmatpush2.xpose.msra.mxu0 0.0
    %3874 = vmatprep.subr.mxu0 0.0
    %3875 = vmatpush2.xpose.msra.mxu0 0.0
    %3876 = vmatprep.subr.mxu0 0.0
    %3877 = vmatpush2.xpose.msra.mxu0 0.0
    %3878 = vmatprep.subr.mxu0 0.0
    %3879 = vmatpush2.xpose.msra.mxu0 0.0
    %3880 = vmatprep.subr.mxu0 0.0
    %3881 = vmatpush2.xpose.msra.mxu0 0.0
    %3882 = vmatprep.subr.mxu0 0.0
    %3883 = vmatpush2.xpose.msra.mxu0 0.0
    %3884 = vmatprep.subr.mxu0 0.0
    %3885 = vmatpush2.xpose.msra.mxu0 0.0
    %3886 = vmatprep.subr.mxu0 0.0
    %3887 = vmatpush2.xpose.msra.mxu0 0.0
    %3888 = vmatprep.subr.mxu0 0.0
    %3889 = vmatpush2.xpose.msra.mxu0 0.0
    %3890 = vmatprep.subr.mxu0 0.0
    %3891 = vmatpush2.xpose.msra.mxu0 0.0
    %3892 = vmatprep.subr.mxu0 0.0
    %3893 = vmatpush2.xpose.msra.mxu0 0.0
    %3894 = vmatprep.subr.mxu0 0.0
    %3895 = vmatpush2.xpose.msra.mxu0 0.0
    %3896 = vmatprep.subr.mxu0 0.0
    %3897 = vmatpush2.xpose.msra.mxu0 0.0
    %3898 = vmatprep.subr.mxu0 0.0
    %3899 = vmatpush2.xpose.msra.mxu0 0.0
    %3900 = vmatprep.subr.mxu0 0.0
    %3901 = vmatpush2.xpose.msra.mxu0 0.0
    %3902 = vmatprep.mubr.f32.mxu0 0.0
    %3903 = vmatmul.mubr.f32.gmra.mxu0 %v3834
    %v3904 = vpop.f32.mrf.mxu0
    %v3905 = vadd.f32 0.0, %v3904
    %v3906 = vpop.f32.mrf.mxu0
    %3907 = vdwg.mxu0
    %v3908 = vmul.f32 %v3905, 0.35355338
    %v3909 = vadd.f32 %v3908, %v3332
    %v3910 = vsel %vm611, %v3909, -inf
    %3911 = vmax.xlane.f32.xlu0 %v3910
    %v3912 = vpop.xlane.xlu0 %3911
    %v3913 = vsub.f32 %v3909, %v3912
    %v3914 = vmul.f32 %v3913, 1.442695
    %v3915 = vpow.pop %v3914
    %v3916 = vsel %vm611, %v3915, 0.0
    %3917 = vadd.xlane.f32.xlu0 %v3916
    %v3918 = vpop.xlane.xlu0 %3917
    %v3919 = vrcp.pop %v3918
    %v3920 = vmul.f32 %v3915, %v3919
    %3921 = vrot.lane.b32.xlu0 %v2634, 104
    %v3922 = vpop.permute.xlu0 %3921
    %v3925 = vsel %vm611, %v3920, 0
    %3927 = vmatprep.subr.mxu0 0.0
    %3928 = vmatpush1.msra.mxu0 0.0
    %3929 = vmatprep.subr.mxu0 0.0
    %3930 = vmatpush1.msra.mxu0 0.0
    %3931 = vmatprep.subr.mxu0 0.0
    %3932 = vmatpush1.msra.mxu0 0.0
    %3933 = vmatprep.subr.mxu0 0.0
    %3934 = vmatpush1.msra.mxu0 0.0
    %3935 = vmatprep.subr.mxu0 0.0
    %3936 = vmatpush1.msra.mxu0 0.0
    %3937 = vmatprep.subr.mxu0 0.0
    %3938 = vmatpush1.msra.mxu0 0.0
    %3939 = vmatprep.subr.mxu0 0.0
    %3940 = vmatpush1.msra.mxu0 0.0
    %3941 = vmatprep.subr.mxu0 0.0
    %3942 = vmatpush1.msra.mxu0 0.0
    %3943 = vmatprep.subr.mxu0 0.0
    %3944 = vmatpush1.msra.mxu0 0.0
    %3945 = vmatprep.subr.mxu0 0.0
    %3946 = vmatpush1.msra.mxu0 0.0
    %3947 = vmatprep.subr.mxu0 0.0
    %3948 = vmatpush1.msra.mxu0 0.0
    %3949 = vmatprep.subr.mxu0 0.0
    %3950 = vmatpush1.msra.mxu0 0.0
    %3951 = vmatprep.subr.mxu0 0.0
    %3952 = vmatpush1.msra.mxu0 0.0
    %3953 = vmatprep.subr.mxu0 0.0
    %3954 = vmatpush1.msra.mxu0 0.0
    %3955 = vmatprep.subr.mxu0 0.0
    %3956 = vmatpush1.msra.mxu0 0.0
    %3957 = vmatprep.subr.mxu0 0.0
    %3958 = vmatpush1.msra.mxu0 %v3922
    %3959 = vmatprep.subr.mxu0 0.0
    %3960 = vmatpush2.msra.mxu0 0.0
    %3961 = vmatprep.subr.mxu0 0.0
    %3962 = vmatpush2.msra.mxu0 0.0
    %3963 = vmatprep.subr.mxu0 0.0
    %3964 = vmatpush2.msra.mxu0 0.0
    %3965 = vmatprep.subr.mxu0 0.0
    %3966 = vmatpush2.msra.mxu0 0.0
    %3967 = vmatprep.subr.mxu0 0.0
    %3968 = vmatpush2.msra.mxu0 0.0
    %3969 = vmatprep.subr.mxu0 0.0
    %3970 = vmatpush2.msra.mxu0 0.0
    %3971 = vmatprep.subr.mxu0 0.0
    %3972 = vmatpush2.msra.mxu0 0.0
    %3973 = vmatprep.subr.mxu0 0.0
    %3974 = vmatpush2.msra.mxu0 0.0
    %3975 = vmatprep.subr.mxu0 0.0
    %3976 = vmatpush2.msra.mxu0 0.0
    %3977 = vmatprep.subr.mxu0 0.0
    %3978 = vmatpush2.msra.mxu0 0.0
    %3979 = vmatprep.subr.mxu0 0.0
    %3980 = vmatpush2.msra.mxu0 0.0
    %3981 = vmatprep.subr.mxu0 0.0
    %3982 = vmatpush2.msra.mxu0 0.0
    %3983 = vmatprep.subr.mxu0 0.0
    %3984 = vmatpush2.msra.mxu0 0.0
    %3985 = vmatprep.subr.mxu0 0.0
    %3986 = vmatpush2.msra.mxu0 0.0
    %3987 = vmatprep.subr.mxu0 0.0
    %3988 = vmatpush2.msra.mxu0 0.0
    %3989 = vmatprep.subr.mxu0 0.0
    %3990 = vmatpush2.msra.mxu0 0.0
    %3991 = vmatprep.mubr.f32.mxu0 0.0
    %3992 = vmatmul.mubr.f32.gmra.mxu0 %v3925
    %v3993 = vpop.f32.mrf.mxu0
    %v3994 = vadd.f32 0.0, %v3993
    %v3995 = vpop.f32.mrf.mxu0
    %3996 = vdwg.mxu0
    %3998 = vrot.lane.b32.xlu0 %v3660, 8
    %v3999 = vpop.permute.xlu0 %3998
    %4002 = vrot.lane.b32.xlu0 %v3827, 16
    %v4003 = vpop.permute.xlu0 %4002
    %4006 = vrot.lane.b32.xlu0 %v3994, 24
    %v4007 = vpop.permute.xlu0 %4006
    %v4009 = vsel %vm611, %v3492, %v3999
    %v4010 = vsel %vm1295, %v4009, %v4003
    %v4011 = vsel %vm1297, %v4010, %v4007
    %v4012 = vlaneseq
    %v4013 = vshrl.u32 %v4012, 7
    %v4014 = vsub.s32 0, %v4013
    %v4015 = vrot.slane %v125, %v4014
    %v4017 = vsel %vm327, %v3323, 0
    %v4020 = vsel %vm327, %v4011, 0
    %4022 = vmatprep.subr.mxu0 0.0
    %4023 = vmatpush1.msra.mxu0 0.0
    %4024 = vmatprep.subr.mxu0 0.0
    %4025 = vmatpush1.msra.mxu0 0.0
    %4026 = vmatprep.subr.mxu0 0.0
    %4027 = vmatpush1.msra.mxu0 0.0
    %4028 = vmatprep.subr.mxu0 0.0
    %4029 = vmatpush1.msra.mxu0 0.0
    %4030 = vmatprep.subr.mxu0 0.0
    %4031 = vmatpush1.msra.mxu0 0.0
    %4032 = vmatprep.subr.mxu0 0.0
    %4033 = vmatpush1.msra.mxu0 0.0
    %4034 = vmatprep.subr.mxu0 0.0
    %4035 = vmatpush1.msra.mxu0 0.0
    %4036 = vmatprep.subr.mxu0 0.0
    %4037 = vmatpush1.msra.mxu0 0.0
    %4038 = vmatprep.subr.mxu0 0.0
    %4039 = vmatpush1.msra.mxu0 0.0
    %4040 = vmatprep.subr.mxu0 0.0
    %4041 = vmatpush1.msra.mxu0 0.0
    %4042 = vmatprep.subr.mxu0 0.0
    %4043 = vmatpush1.msra.mxu0 0.0
    %4044 = vmatprep.subr.mxu0 0.0
    %4045 = vmatpush1.msra.mxu0 0.0
    %4046 = vmatprep.subr.mxu0 0.0
    %4047 = vmatpush1.msra.mxu0 %v102
    %4048 = vmatprep.subr.mxu0 0.0
    %4049 = vmatpush1.msra.mxu0 %v101
    %4050 = vmatprep.subr.mxu0 0.0
    %4051 = vmatpush1.msra.mxu0 %v100
    %4052 = vmatprep.subr.mxu0 0.0
    %4053 = vmatpush1.msra.mxu0 %v99
    %4054 = vmatprep.subr.mxu0 0.0
    %4055 = vmatpush2.msra.mxu0 0.0
    %4056 = vmatprep.subr.mxu0 0.0
    %4057 = vmatpush2.msra.mxu0 0.0
    %4058 = vmatprep.subr.mxu0 0.0
    %4059 = vmatpush2.msra.mxu0 0.0
    %4060 = vmatprep.subr.mxu0 0.0
    %4061 = vmatpush2.msra.mxu0 0.0
    %4062 = vmatprep.subr.mxu0 0.0
    %4063 = vmatpush2.msra.mxu0 0.0
    %4064 = vmatprep.subr.mxu0 0.0
    %4065 = vmatpush2.msra.mxu0 0.0
    %4066 = vmatprep.subr.mxu0 0.0
    %4067 = vmatpush2.msra.mxu0 0.0
    %4068 = vmatprep.subr.mxu0 0.0
    %4069 = vmatpush2.msra.mxu0 0.0
    %4070 = vmatprep.subr.mxu0 0.0
    %4071 = vmatpush2.msra.mxu0 0.0
    %4072 = vmatprep.subr.mxu0 0.0
    %4073 = vmatpush2.msra.mxu0 0.0
    %4074 = vmatprep.subr.mxu0 0.0
    %4075 = vmatpush2.msra.mxu0 0.0
    %4076 = vmatprep.subr.mxu0 0.0
    %4077 = vmatpush2.msra.mxu0 0.0
    %4078 = vmatprep.subr.mxu0 0.0
    %4079 = vmatpush2.msra.mxu0 0.0
    %4080 = vmatprep.subr.mxu0 0.0
    %4081 = vmatpush2.msra.mxu0 0.0
    %4082 = vmatprep.subr.mxu0 0.0
    %4083 = vmatpush2.msra.mxu0 0.0
    %4084 = vmatprep.subr.mxu0 0.0
    %4085 = vmatpush2.msra.mxu0 0.0
    %4086 = vmatprep.mubr.f32.mxu0 0.0
    %4087 = vmatmul.mubr.f32.gmra.mxu0 %v4017
    %v4088 = vpop.f32.mrf.mxu0
    %v4089 = vadd.f32 %v4015, %v4088
    %v4090 = vpop.f32.mrf.mxu0
    %4091 = vmatprep.mubr.f32.mxu0 0.0
    %4092 = vmatmul.mubr.f32.gmra.mxu0 %v4020
    %v4093 = vpop.f32.mrf.mxu0
    %v4094 = vadd.f32 %v4015, %v4093
    %v4095 = vpop.f32.mrf.mxu0
    %4096 = vdwg.mxu0
    %v4097 = vadd.f32 %v2392, %v4089
    %v4098 = vadd.f32 %v2393, %v4094
    %v4099 = vsel %vm327, %v4097, 0.0
    %4100 = vadd.xlane.f32.xlu0 %v4099
    %v4101 = vpop.xlane.xlu0 %4100
    %v4102 = vsel %vm327, %v4098, 0.0
    %4103 = vadd.xlane.f32.xlu0 %v4102
    %v4104 = vpop.xlane.xlu0 %4103
    %v4105 = vmul.f32 %v4101, %v334
    %v4106 = vmul.f32 %v4104, %v334
    %v4107 = vsub.f32 %v4097, %v4105
    %v4108 = vsub.f32 %v4098, %v4106
    %v4109 = vmul.f32 %v4107, %v4107
    %v4110 = vmul.f32 %v4108, %v4108
    %v4111 = vsel %vm327, %v4109, 0.0
    %4112 = vadd.xlane.f32.xlu0 %v4111
    %v4113 = vpop.xlane.xlu0 %4112
    %v4114 = vsel %vm327, %v4110, 0.0
    %4115 = vadd.xlane.f32.xlu0 %v4114
    %v4116 = vpop.xlane.xlu0 %4115
    %v4117 = vmul.f32 %v4113, %v334
    %v4118 = vmul.f32 %v4116, %v334
    %v4119 = vadd.f32 %v4117, 1e-05
    %v4120 = vadd.f32 %v4118, 1e-05
    %v4121 = vrsqrt.pop %v4119
    %v4122 = vrsqrt.pop %v4120
    %v4123 = vmul.f32 %v4107, %v4121
    %v4124 = vmul.f32 %v4108, %v4122
    %v4125 = vlaneseq
    %v4126 = vshrl.u32 %v4125, 7
    %v4127 = vsub.s32 1, %v4126
    %v4128 = vrot.slane %v125, %v4127
    %v4129 = vmul.f32 %v4123, %v4128
    %v4130 = vmul.f32 %v4124, %v4128
    %v4131 = vlaneseq
    %v4132 = vshrl.u32 %v4131, 7
    %v4133 = vsub.s32 2, %v4132
    %v4134 = vrot.slane %v125, %v4133
    %v4135 = vadd.f32 %v4129, %v4134
    %v4136 = vadd.f32 %v4130, %v4134
    %v4137 = vlaneseq
    %v4138 = vshrl.u32 %v4137, 7
    %v4139 = vsub.s32 3, %v4138
    %v4140 = vrot.slane %v125, %v4139
    %v4142 = vsel %vm327, %v4135, 0
    %v4145 = vsel %vm327, %v4136, 0
    %4147 = vmatprep.subr.mxu0 0.0
    %4148 = vmatpush1.msra.mxu0 0.0
    %4149 = vmatprep.subr.mxu0 0.0
    %4150 = vmatpush1.msra.mxu0 0.0
    %4151 = vmatprep.subr.mxu0 0.0
    %4152 = vmatpush1.msra.mxu0 0.0
    %4153 = vmatprep.subr.mxu0 0.0
    %4154 = vmatpush1.msra.mxu0 0.0
    %4155 = vmatprep.subr.mxu0 0.0
    %4156 = vmatpush1.msra.mxu0 0.0
    %4157 = vmatprep.subr.mxu0 0.0
    %4158 = vmatpush1.msra.mxu0 0.0
    %4159 = vmatprep.subr.mxu0 0.0
    %4160 = vmatpush1.msra.mxu0 0.0
    %4161 = vmatprep.subr.mxu0 0.0
    %4162 = vmatpush1.msra.mxu0 0.0
    %4163 = vmatprep.subr.mxu0 0.0
    %4164 = vmatpush1.msra.mxu0 0.0
    %4165 = vmatprep.subr.mxu0 0.0
    %4166 = vmatpush1.msra.mxu0 0.0
    %4167 = vmatprep.subr.mxu0 0.0
    %4168 = vmatpush1.msra.mxu0 0.0
    %4169 = vmatprep.subr.mxu0 0.0
    %4170 = vmatpush1.msra.mxu0 0.0
    %4171 = vmatprep.subr.mxu0 0.0
    %4172 = vmatpush1.msra.mxu0 %v106
    %4173 = vmatprep.subr.mxu0 0.0
    %4174 = vmatpush1.msra.mxu0 %v105
    %4175 = vmatprep.subr.mxu0 0.0
    %4176 = vmatpush1.msra.mxu0 %v104
    %4177 = vmatprep.subr.mxu0 0.0
    %4178 = vmatpush1.msra.mxu0 %v103
    %4179 = vmatprep.subr.mxu0 0.0
    %4180 = vmatpush2.msra.mxu0 0.0
    %4181 = vmatprep.subr.mxu0 0.0
    %4182 = vmatpush2.msra.mxu0 0.0
    %4183 = vmatprep.subr.mxu0 0.0
    %4184 = vmatpush2.msra.mxu0 0.0
    %4185 = vmatprep.subr.mxu0 0.0
    %4186 = vmatpush2.msra.mxu0 0.0
    %4187 = vmatprep.subr.mxu0 0.0
    %4188 = vmatpush2.msra.mxu0 0.0
    %4189 = vmatprep.subr.mxu0 0.0
    %4190 = vmatpush2.msra.mxu0 0.0
    %4191 = vmatprep.subr.mxu0 0.0
    %4192 = vmatpush2.msra.mxu0 0.0
    %4193 = vmatprep.subr.mxu0 0.0
    %4194 = vmatpush2.msra.mxu0 0.0
    %4195 = vmatprep.subr.mxu0 0.0
    %4196 = vmatpush2.msra.mxu0 0.0
    %4197 = vmatprep.subr.mxu0 0.0
    %4198 = vmatpush2.msra.mxu0 0.0
    %4199 = vmatprep.subr.mxu0 0.0
    %4200 = vmatpush2.msra.mxu0 0.0
    %4201 = vmatprep.subr.mxu0 0.0
    %4202 = vmatpush2.msra.mxu0 0.0
    %4203 = vmatprep.subr.mxu0 0.0
    %4204 = vmatpush2.msra.mxu0 0.0
    %4205 = vmatprep.subr.mxu0 0.0
    %4206 = vmatpush2.msra.mxu0 0.0
    %4207 = vmatprep.subr.mxu0 0.0
    %4208 = vmatpush2.msra.mxu0 0.0
    %4209 = vmatprep.subr.mxu0 0.0
    %4210 = vmatpush2.msra.mxu0 0.0
    %4211 = vmatprep.mubr.f32.mxu0 0.0
    %4212 = vmatmul.mubr.f32.gmra.mxu0 %v4142
    %v4213 = vpop.f32.mrf.mxu0
    %v4214 = vadd.f32 %v4140, %v4213
    %v4215 = vpop.f32.mrf.mxu0
    %4216 = vmatprep.mubr.f32.mxu0 0.0
    %4217 = vmatmul.mubr.f32.gmra.mxu0 %v4145
    %v4218 = vpop.f32.mrf.mxu0
    %v4219 = vadd.f32 %v4140, %v4218
    %v4220 = vpop.f32.mrf.mxu0
    %4221 = vdwg.mxu0
    %v4222 = vlaneseq
    %v4223 = vshrl.u32 %v4222, 7
    %v4224 = vsub.s32 4, %v4223
    %v4225 = vrot.slane %v125, %v4224
    %v4227 = vsel %vm327, %v2350, 0
    %v4230 = vsel %vm327, %v2351, 0
    %4232 = vmatprep.subr.mxu0 0.0
    %4233 = vmatpush1.msra.mxu0 0.0
    %4234 = vmatprep.subr.mxu0 0.0
    %4235 = vmatpush1.msra.mxu0 0.0
    %4236 = vmatprep.subr.mxu0 0.0
    %4237 = vmatpush1.msra.mxu0 0.0
    %4238 = vmatprep.subr.mxu0 0.0
    %4239 = vmatpush1.msra.mxu0 0.0
    %4240 = vmatprep.subr.mxu0 0.0
    %4241 = vmatpush1.msra.mxu0 0.0
    %4242 = vmatprep.subr.mxu0 0.0
    %4243 = vmatpush1.msra.mxu0 0.0
    %4244 = vmatprep.subr.mxu0 0.0
    %4245 = vmatpush1.msra.mxu0 0.0
    %4246 = vmatprep.subr.mxu0 0.0
    %4247 = vmatpush1.msra.mxu0 0.0
    %4248 = vmatprep.subr.mxu0 0.0
    %4249 = vmatpush1.msra.mxu0 0.0
    %4250 = vmatprep.subr.mxu0 0.0
    %4251 = vmatpush1.msra.mxu0 0.0
    %4252 = vmatprep.subr.mxu0 0.0
    %4253 = vmatpush1.msra.mxu0 0.0
    %4254 = vmatprep.subr.mxu0 0.0
    %4255 = vmatpush1.msra.mxu0 0.0
    %4256 = vmatprep.subr.mxu0 0.0
    %4257 = vmatpush1.msra.mxu0 %v110
    %4258 = vmatprep.subr.mxu0 0.0
    %4259 = vmatpush1.msra.mxu0 %v109
    %4260 = vmatprep.subr.mxu0 0.0
    %4261 = vmatpush1.msra.mxu0 %v108
    %4262 = vmatprep.subr.mxu0 0.0
    %4263 = vmatpush1.msra.mxu0 %v107
    %4264 = vmatprep.subr.mxu0 0.0
    %4265 = vmatpush2.msra.mxu0 0.0
    %4266 = vmatprep.subr.mxu0 0.0
    %4267 = vmatpush2.msra.mxu0 0.0
    %4268 = vmatprep.subr.mxu0 0.0
    %4269 = vmatpush2.msra.mxu0 0.0
    %4270 = vmatprep.subr.mxu0 0.0
    %4271 = vmatpush2.msra.mxu0 0.0
    %4272 = vmatprep.subr.mxu0 0.0
    %4273 = vmatpush2.msra.mxu0 0.0
    %4274 = vmatprep.subr.mxu0 0.0
    %4275 = vmatpush2.msra.mxu0 0.0
    %4276 = vmatprep.subr.mxu0 0.0
    %4277 = vmatpush2.msra.mxu0 0.0
    %4278 = vmatprep.subr.mxu0 0.0
    %4279 = vmatpush2.msra.mxu0 0.0
    %4280 = vmatprep.subr.mxu0 0.0
    %4281 = vmatpush2.msra.mxu0 0.0
    %4282 = vmatprep.subr.mxu0 0.0
    %4283 = vmatpush2.msra.mxu0 0.0
    %4284 = vmatprep.subr.mxu0 0.0
    %4285 = vmatpush2.msra.mxu0 0.0
    %4286 = vmatprep.subr.mxu0 0.0
    %4287 = vmatpush2.msra.mxu0 0.0
    %4288 = vmatprep.subr.mxu0 0.0
    %4289 = vmatpush2.msra.mxu0 0.0
    %4290 = vmatprep.subr.mxu0 0.0
    %4291 = vmatpush2.msra.mxu0 0.0
    %4292 = vmatprep.subr.mxu0 0.0
    %4293 = vmatpush2.msra.mxu0 0.0
    %4294 = vmatprep.subr.mxu0 0.0
    %4295 = vmatpush2.msra.mxu0 0.0
    %4296 = vmatprep.mubr.f32.mxu0 0.0
    %4297 = vmatmul.mubr.f32.gmra.mxu0 %v4227
    %v4298 = vpop.f32.mrf.mxu0
    %v4299 = vadd.f32 %v4225, %v4298
    %v4300 = vpop.f32.mrf.mxu0
    %4301 = vmatprep.mubr.f32.mxu0 0.0
    %4302 = vmatmul.mubr.f32.gmra.mxu0 %v4230
    %v4303 = vpop.f32.mrf.mxu0
    %v4304 = vadd.f32 %v4225, %v4303
    %v4305 = vpop.f32.mrf.mxu0
    %4306 = vdwg.mxu0
    %v4307 = vlaneseq
    %v4308 = vshrl.u32 %v4307, 7
    %v4309 = vsub.s32 5, %v4308
    %v4310 = vrot.slane %v125, %v4309
    %4311 = vmatprep.subr.mxu0 0.0
    %4312 = vmatpush1.msra.mxu0 0.0
    %4313 = vmatprep.subr.mxu0 0.0
    %4314 = vmatpush1.msra.mxu0 0.0
    %4315 = vmatprep.subr.mxu0 0.0
    %4316 = vmatpush1.msra.mxu0 0.0
    %4317 = vmatprep.subr.mxu0 0.0
    %4318 = vmatpush1.msra.mxu0 0.0
    %4319 = vmatprep.subr.mxu0 0.0
    %4320 = vmatpush1.msra.mxu0 0.0
    %4321 = vmatprep.subr.mxu0 0.0
    %4322 = vmatpush1.msra.mxu0 0.0
    %4323 = vmatprep.subr.mxu0 0.0
    %4324 = vmatpush1.msra.mxu0 0.0
    %4325 = vmatprep.subr.mxu0 0.0
    %4326 = vmatpush1.msra.mxu0 0.0
    %4327 = vmatprep.subr.mxu0 0.0
    %4328 = vmatpush1.msra.mxu0 0.0
    %4329 = vmatprep.subr.mxu0 0.0
    %4330 = vmatpush1.msra.mxu0 0.0
    %4331 = vmatprep.subr.mxu0 0.0
    %4332 = vmatpush1.msra.mxu0 0.0
    %4333 = vmatprep.subr.mxu0 0.0
    %4334 = vmatpush1.msra.mxu0 0.0
    %4335 = vmatprep.subr.mxu0 0.0
    %4336 = vmatpush1.msra.mxu0 %v114
    %4337 = vmatprep.subr.mxu0 0.0
    %4338 = vmatpush1.msra.mxu0 %v113
    %4339 = vmatprep.subr.mxu0 0.0
    %4340 = vmatpush1.msra.mxu0 %v112
    %4341 = vmatprep.subr.mxu0 0.0
    %4342 = vmatpush1.msra.mxu0 %v111
    %4343 = vmatprep.subr.mxu0 0.0
    %4344 = vmatpush2.msra.mxu0 0.0
    %4345 = vmatprep.subr.mxu0 0.0
    %4346 = vmatpush2.msra.mxu0 0.0
    %4347 = vmatprep.subr.mxu0 0.0
    %4348 = vmatpush2.msra.mxu0 0.0
    %4349 = vmatprep.subr.mxu0 0.0
    %4350 = vmatpush2.msra.mxu0 0.0
    %4351 = vmatprep.subr.mxu0 0.0
    %4352 = vmatpush2.msra.mxu0 0.0
    %4353 = vmatprep.subr.mxu0 0.0
    %4354 = vmatpush2.msra.mxu0 0.0
    %4355 = vmatprep.subr.mxu0 0.0
    %4356 = vmatpush2.msra.mxu0 0.0
    %4357 = vmatprep.subr.mxu0 0.0
    %4358 = vmatpush2.msra.mxu0 0.0
    %4359 = vmatprep.subr.mxu0 0.0
    %4360 = vmatpush2.msra.mxu0 0.0
    %4361 = vmatprep.subr.mxu0 0.0
    %4362 = vmatpush2.msra.mxu0 0.0
    %4363 = vmatprep.subr.mxu0 0.0
    %4364 = vmatpush2.msra.mxu0 0.0
    %4365 = vmatprep.subr.mxu0 0.0
    %4366 = vmatpush2.msra.mxu0 0.0
    %4367 = vmatprep.subr.mxu0 0.0
    %4368 = vmatpush2.msra.mxu0 0.0
    %4369 = vmatprep.subr.mxu0 0.0
    %4370 = vmatpush2.msra.mxu0 0.0
    %4371 = vmatprep.subr.mxu0 0.0
    %4372 = vmatpush2.msra.mxu0 0.0
    %4373 = vmatprep.subr.mxu0 0.0
    %4374 = vmatpush2.msra.mxu0 0.0
    %4375 = vmatprep.mubr.f32.mxu0 0.0
    %4376 = vmatmul.mubr.f32.gmra.mxu0 %v4227
    %v4377 = vpop.f32.mrf.mxu0
    %v4378 = vadd.f32 %v4310, %v4377
    %v4379 = vpop.f32.mrf.mxu0
    %4380 = vmatprep.mubr.f32.mxu0 0.0
    %4381 = vmatmul.mubr.f32.gmra.mxu0 %v4230
    %v4382 = vpop.f32.mrf.mxu0
    %v4383 = vadd.f32 %v4310, %v4382
    %v4384 = vpop.f32.mrf.mxu0
    %4385 = vdwg.mxu0
    %v4387 = vsel %vm611, %v4214, 0
    %v4390 = vsel %vm611, %v4299, 0
    %4392 = vmatprep.subr.mxu0 0.0
    %4393 = vmatpush1.xpose.msra.mxu0 0.0
    %4394 = vmatprep.subr.mxu0 0.0
    %4395 = vmatpush1.xpose.msra.mxu0 0.0
    %4396 = vmatprep.subr.mxu0 0.0
    %4397 = vmatpush1.xpose.msra.mxu0 0.0
    %4398 = vmatprep.subr.mxu0 0.0
    %4399 = vmatpush1.xpose.msra.mxu0 0.0
    %4400 = vmatprep.subr.mxu0 0.0
    %4401 = vmatpush1.xpose.msra.mxu0 0.0
    %4402 = vmatprep.subr.mxu0 0.0
    %4403 = vmatpush1.xpose.msra.mxu0 0.0
    %4404 = vmatprep.subr.mxu0 0.0
    %4405 = vmatpush1.xpose.msra.mxu0 0.0
    %4406 = vmatprep.subr.mxu0 0.0
    %4407 = vmatpush1.xpose.msra.mxu0 0.0
    %4408 = vmatprep.subr.mxu0 0.0
    %4409 = vmatpush1.xpose.msra.mxu0 0.0
    %4410 = vmatprep.subr.mxu0 0.0
    %4411 = vmatpush1.xpose.msra.mxu0 0.0
    %4412 = vmatprep.subr.mxu0 0.0
    %4413 = vmatpush1.xpose.msra.mxu0 0.0
    %4414 = vmatprep.subr.mxu0 0.0
    %4415 = vmatpush1.xpose.msra.mxu0 0.0
    %4416 = vmatprep.subr.mxu0 0.0
    %4417 = vmatpush1.xpose.msra.mxu0 0.0
    %4418 = vmatprep.subr.mxu0 0.0
    %4419 = vmatpush1.xpose.msra.mxu0 0.0
    %4420 = vmatprep.subr.mxu0 0.0
    %4421 = vmatpush1.xpose.msra.mxu0 0.0
    %4422 = vmatprep.subr.mxu0 0.0
    %4423 = vmatpush1.xpose.msra.mxu0 %v4390
    %4424 = vmatprep.subr.mxu0 0.0
    %4425 = vmatpush2.xpose.msra.mxu0 0.0
    %4426 = vmatprep.subr.mxu0 0.0
    %4427 = vmatpush2.xpose.msra.mxu0 0.0
    %4428 = vmatprep.subr.mxu0 0.0
    %4429 = vmatpush2.xpose.msra.mxu0 0.0
    %4430 = vmatprep.subr.mxu0 0.0
    %4431 = vmatpush2.xpose.msra.mxu0 0.0
    %4432 = vmatprep.subr.mxu0 0.0
    %4433 = vmatpush2.xpose.msra.mxu0 0.0
    %4434 = vmatprep.subr.mxu0 0.0
    %4435 = vmatpush2.xpose.msra.mxu0 0.0
    %4436 = vmatprep.subr.mxu0 0.0
    %4437 = vmatpush2.xpose.msra.mxu0 0.0
    %4438 = vmatprep.subr.mxu0 0.0
    %4439 = vmatpush2.xpose.msra.mxu0 0.0
    %4440 = vmatprep.subr.mxu0 0.0
    %4441 = vmatpush2.xpose.msra.mxu0 0.0
    %4442 = vmatprep.subr.mxu0 0.0
    %4443 = vmatpush2.xpose.msra.mxu0 0.0
    %4444 = vmatprep.subr.mxu0 0.0
    %4445 = vmatpush2.xpose.msra.mxu0 0.0
    %4446 = vmatprep.subr.mxu0 0.0
    %4447 = vmatpush2.xpose.msra.mxu0 0.0
    %4448 = vmatprep.subr.mxu0 0.0
    %4449 = vmatpush2.xpose.msra.mxu0 0.0
    %4450 = vmatprep.subr.mxu0 0.0
    %4451 = vmatpush2.xpose.msra.mxu0 0.0
    %4452 = vmatprep.subr.mxu0 0.0
    %4453 = vmatpush2.xpose.msra.mxu0 0.0
    %4454 = vmatprep.subr.mxu0 0.0
    %4455 = vmatpush2.xpose.msra.mxu0 0.0
    %4456 = vmatprep.mubr.f32.mxu0 0.0
    %4457 = vmatmul.mubr.f32.gmra.mxu0 %v4387
    %v4458 = vpop.f32.mrf.mxu0
    %v4459 = vadd.f32 0.0, %v4458
    %v4460 = vpop.f32.mrf.mxu0
    %4461 = vdwg.mxu0
    %v4462 = vmul.f32 %v4459, 0.35355338
    %v4463 = vadd.f32 %v4462, %v693
    %v4464 = vsel %vm611, %v4463, -inf
    %4465 = vmax.xlane.f32.xlu0 %v4464
    %v4466 = vpop.xlane.xlu0 %4465
    %v4467 = vsub.f32 %v4463, %v4466
    %v4468 = vmul.f32 %v4467, 1.442695
    %v4469 = vpow.pop %v4468
    %v4470 = vsel %vm611, %v4469, 0.0
    %4471 = vadd.xlane.f32.xlu0 %v4470
    %v4472 = vpop.xlane.xlu0 %4471
    %v4473 = vrcp.pop %v4472
    %v4474 = vmul.f32 %v4469, %v4473
    %v4476 = vsel %vm611, %v4474, 0
    %4478 = vmatprep.subr.mxu0 0.0
    %4479 = vmatpush1.msra.mxu0 0.0
    %4480 = vmatprep.subr.mxu0 0.0
    %4481 = vmatpush1.msra.mxu0 0.0
    %4482 = vmatprep.subr.mxu0 0.0
    %4483 = vmatpush1.msra.mxu0 0.0
    %4484 = vmatprep.subr.mxu0 0.0
    %4485 = vmatpush1.msra.mxu0 0.0
    %4486 = vmatprep.subr.mxu0 0.0
    %4487 = vmatpush1.msra.mxu0 0.0
    %4488 = vmatprep.subr.mxu0 0.0
    %4489 = vmatpush1.msra.mxu0 0.0
    %4490 = vmatprep.subr.mxu0 0.0
    %4491 = vmatpush1.msra.mxu0 0.0
    %4492 = vmatprep.subr.mxu0 0.0
    %4493 = vmatpush1.msra.mxu0 0.0
    %4494 = vmatprep.subr.mxu0 0.0
    %4495 = vmatpush1.msra.mxu0 0.0
    %4496 = vmatprep.subr.mxu0 0.0
    %4497 = vmatpush1.msra.mxu0 0.0
    %4498 = vmatprep.subr.mxu0 0.0
    %4499 = vmatpush1.msra.mxu0 0.0
    %4500 = vmatprep.subr.mxu0 0.0
    %4501 = vmatpush1.msra.mxu0 0.0
    %4502 = vmatprep.subr.mxu0 0.0
    %4503 = vmatpush1.msra.mxu0 0.0
    %4504 = vmatprep.subr.mxu0 0.0
    %4505 = vmatpush1.msra.mxu0 0.0
    %4506 = vmatprep.subr.mxu0 0.0
    %4507 = vmatpush1.msra.mxu0 0.0
    %4508 = vmatprep.subr.mxu0 0.0
    %4509 = vmatpush1.msra.mxu0 %v4378
    %4510 = vmatprep.subr.mxu0 0.0
    %4511 = vmatpush2.msra.mxu0 0.0
    %4512 = vmatprep.subr.mxu0 0.0
    %4513 = vmatpush2.msra.mxu0 0.0
    %4514 = vmatprep.subr.mxu0 0.0
    %4515 = vmatpush2.msra.mxu0 0.0
    %4516 = vmatprep.subr.mxu0 0.0
    %4517 = vmatpush2.msra.mxu0 0.0
    %4518 = vmatprep.subr.mxu0 0.0
    %4519 = vmatpush2.msra.mxu0 0.0
    %4520 = vmatprep.subr.mxu0 0.0
    %4521 = vmatpush2.msra.mxu0 0.0
    %4522 = vmatprep.subr.mxu0 0.0
    %4523 = vmatpush2.msra.mxu0 0.0
    %4524 = vmatprep.subr.mxu0 0.0
    %4525 = vmatpush2.msra.mxu0 0.0
    %4526 = vmatprep.subr.mxu0 0.0
    %4527 = vmatpush2.msra.mxu0 0.0
    %4528 = vmatprep.subr.mxu0 0.0
    %4529 = vmatpush2.msra.mxu0 0.0
    %4530 = vmatprep.subr.mxu0 0.0
    %4531 = vmatpush2.msra.mxu0 0.0
    %4532 = vmatprep.subr.mxu0 0.0
    %4533 = vmatpush2.msra.mxu0 0.0
    %4534 = vmatprep.subr.mxu0 0.0
    %4535 = vmatpush2.msra.mxu0 0.0
    %4536 = vmatprep.subr.mxu0 0.0
    %4537 = vmatpush2.msra.mxu0 0.0
    %4538 = vmatprep.subr.mxu0 0.0
    %4539 = vmatpush2.msra.mxu0 0.0
    %4540 = vmatprep.subr.mxu0 0.0
    %4541 = vmatpush2.msra.mxu0 0.0
    %4542 = vmatprep.mubr.f32.mxu0 0.0
    %4543 = vmatmul.mubr.f32.gmra.mxu0 %v4476
    %v4544 = vpop.f32.mrf.mxu0
    %v4545 = vadd.f32 0.0, %v4544
    %v4546 = vpop.f32.mrf.mxu0
    %4547 = vdwg.mxu0
    %4548 = vrot.lane.b32.xlu0 %v4214, 120
    %v4549 = vpop.permute.xlu0 %4548
    %4550 = vrot.lane.b32.xlu0 %v4299, 120
    %v4551 = vpop.permute.xlu0 %4550
    %v4552 = vsel %vm611, %v4549, 0
    %v4554 = vsel %vm611, %v4551, 0
    %4556 = vmatprep.subr.mxu0 0.0
    %4557 = vmatpush1.xpose.msra.mxu0 0.0
    %4558 = vmatprep.subr.mxu0 0.0
    %4559 = vmatpush1.xpose.msra.mxu0 0.0
    %4560 = vmatprep.subr.mxu0 0.0
    %4561 = vmatpush1.xpose.msra.mxu0 0.0
    %4562 = vmatprep.subr.mxu0 0.0
    %4563 = vmatpush1.xpose.msra.mxu0 0.0
    %4564 = vmatprep.subr.mxu0 0.0
    %4565 = vmatpush1.xpose.msra.mxu0 0.0
    %4566 = vmatprep.subr.mxu0 0.0
    %4567 = vmatpush1.xpose.msra.mxu0 0.0
    %4568 = vmatprep.subr.mxu0 0.0
    %4569 = vmatpush1.xpose.msra.mxu0 0.0
    %4570 = vmatprep.subr.mxu0 0.0
    %4571 = vmatpush1.xpose.msra.mxu0 0.0
    %4572 = vmatprep.subr.mxu0 0.0
    %4573 = vmatpush1.xpose.msra.mxu0 0.0
    %4574 = vmatprep.subr.mxu0 0.0
    %4575 = vmatpush1.xpose.msra.mxu0 0.0
    %4576 = vmatprep.subr.mxu0 0.0
    %4577 = vmatpush1.xpose.msra.mxu0 0.0
    %4578 = vmatprep.subr.mxu0 0.0
    %4579 = vmatpush1.xpose.msra.mxu0 0.0
    %4580 = vmatprep.subr.mxu0 0.0
    %4581 = vmatpush1.xpose.msra.mxu0 0.0
    %4582 = vmatprep.subr.mxu0 0.0
    %4583 = vmatpush1.xpose.msra.mxu0 0.0
    %4584 = vmatprep.subr.mxu0 0.0
    %4585 = vmatpush1.xpose.msra.mxu0 0.0
    %4586 = vmatprep.subr.mxu0 0.0
    %4587 = vmatpush1.xpose.msra.mxu0 %v4554
    %4588 = vmatprep.subr.mxu0 0.0
    %4589 = vmatpush2.xpose.msra.mxu0 0.0
    %4590 = vmatprep.subr.mxu0 0.0
    %4591 = vmatpush2.xpose.msra.mxu0 0.0
    %4592 = vmatprep.subr.mxu0 0.0
    %4593 = vmatpush2.xpose.msra.mxu0 0.0
    %4594 = vmatprep.subr.mxu0 0.0
    %4595 = vmatpush2.xpose.msra.mxu0 0.0
    %4596 = vmatprep.subr.mxu0 0.0
    %4597 = vmatpush2.xpose.msra.mxu0 0.0
    %4598 = vmatprep.subr.mxu0 0.0
    %4599 = vmatpush2.xpose.msra.mxu0 0.0
    %4600 = vmatprep.subr.mxu0 0.0
    %4601 = vmatpush2.xpose.msra.mxu0 0.0
    %4602 = vmatprep.subr.mxu0 0.0
    %4603 = vmatpush2.xpose.msra.mxu0 0.0
    %4604 = vmatprep.subr.mxu0 0.0
    %4605 = vmatpush2.xpose.msra.mxu0 0.0
    %4606 = vmatprep.subr.mxu0 0.0
    %4607 = vmatpush2.xpose.msra.mxu0 0.0
    %4608 = vmatprep.subr.mxu0 0.0
    %4609 = vmatpush2.xpose.msra.mxu0 0.0
    %4610 = vmatprep.subr.mxu0 0.0
    %4611 = vmatpush2.xpose.msra.mxu0 0.0
    %4612 = vmatprep.subr.mxu0 0.0
    %4613 = vmatpush2.xpose.msra.mxu0 0.0
    %4614 = vmatprep.subr.mxu0 0.0
    %4615 = vmatpush2.xpose.msra.mxu0 0.0
    %4616 = vmatprep.subr.mxu0 0.0
    %4617 = vmatpush2.xpose.msra.mxu0 0.0
    %4618 = vmatprep.subr.mxu0 0.0
    %4619 = vmatpush2.xpose.msra.mxu0 0.0
    %4620 = vmatprep.mubr.f32.mxu0 0.0
    %4621 = vmatmul.mubr.f32.gmra.mxu0 %v4552
    %v4622 = vpop.f32.mrf.mxu0
    %v4623 = vadd.f32 0.0, %v4622
    %v4624 = vpop.f32.mrf.mxu0
    %4625 = vdwg.mxu0
    %v4626 = vmul.f32 %v4623, 0.35355338
    %v4627 = vadd.f32 %v4626, %v693
    %v4628 = vsel %vm611, %v4627, -inf
    %4629 = vmax.xlane.f32.xlu0 %v4628
    %v4630 = vpop.xlane.xlu0 %4629
    %v4631 = vsub.f32 %v4627, %v4630
    %v4632 = vmul.f32 %v4631, 1.442695
    %v4633 = vpow.pop %v4632
    %v4634 = vsel %vm611, %v4633, 0.0
    %4635 = vadd.xlane.f32.xlu0 %v4634
    %v4636 = vpop.xlane.xlu0 %4635
    %v4637 = vrcp.pop %v4636
    %v4638 = vmul.f32 %v4633, %v4637
    %4640 = vrot.lane.b32.xlu0 %v4378, 120
    %v4641 = vpop.permute.xlu0 %4640
    %v4644 = vsel %vm611, %v4638, 0
    %4646 = vmatprep.subr.mxu0 0.0
    %4647 = vmatpush1.msra.mxu0 0.0
    %4648 = vmatprep.subr.mxu0 0.0
    %4649 = vmatpush1.msra.mxu0 0.0
    %4650 = vmatprep.subr.mxu0 0.0
    %4651 = vmatpush1.msra.mxu0 0.0
    %4652 = vmatprep.subr.mxu0 0.0
    %4653 = vmatpush1.msra.mxu0 0.0
    %4654 = vmatprep.subr.mxu0 0.0
    %4655 = vmatpush1.msra.mxu0 0.0
    %4656 = vmatprep.subr.mxu0 0.0
    %4657 = vmatpush1.msra.mxu0 0.0
    %4658 = vmatprep.subr.mxu0 0.0
    %4659 = vmatpush1.msra.mxu0 0.0
    %4660 = vmatprep.subr.mxu0 0.0
    %4661 = vmatpush1.msra.mxu0 0.0
    %4662 = vmatprep.subr.mxu0 0.0
    %4663 = vmatpush1.msra.mxu0 0.0
    %4664 = vmatprep.subr.mxu0 0.0
    %4665 = vmatpush1.msra.mxu0 0.0
    %4666 = vmatprep.subr.mxu0 0.0
    %4667 = vmatpush1.msra.mxu0 0.0
    %4668 = vmatprep.subr.mxu0 0.0
    %4669 = vmatpush1.msra.mxu0 0.0
    %4670 = vmatprep.subr.mxu0 0.0
    %4671 = vmatpush1.msra.mxu0 0.0
    %4672 = vmatprep.subr.mxu0 0.0
    %4673 = vmatpush1.msra.mxu0 0.0
    %4674 = vmatprep.subr.mxu0 0.0
    %4675 = vmatpush1.msra.mxu0 0.0
    %4676 = vmatprep.subr.mxu0 0.0
    %4677 = vmatpush1.msra.mxu0 %v4641
    %4678 = vmatprep.subr.mxu0 0.0
    %4679 = vmatpush2.msra.mxu0 0.0
    %4680 = vmatprep.subr.mxu0 0.0
    %4681 = vmatpush2.msra.mxu0 0.0
    %4682 = vmatprep.subr.mxu0 0.0
    %4683 = vmatpush2.msra.mxu0 0.0
    %4684 = vmatprep.subr.mxu0 0.0
    %4685 = vmatpush2.msra.mxu0 0.0
    %4686 = vmatprep.subr.mxu0 0.0
    %4687 = vmatpush2.msra.mxu0 0.0
    %4688 = vmatprep.subr.mxu0 0.0
    %4689 = vmatpush2.msra.mxu0 0.0
    %4690 = vmatprep.subr.mxu0 0.0
    %4691 = vmatpush2.msra.mxu0 0.0
    %4692 = vmatprep.subr.mxu0 0.0
    %4693 = vmatpush2.msra.mxu0 0.0
    %4694 = vmatprep.subr.mxu0 0.0
    %4695 = vmatpush2.msra.mxu0 0.0
    %4696 = vmatprep.subr.mxu0 0.0
    %4697 = vmatpush2.msra.mxu0 0.0
    %4698 = vmatprep.subr.mxu0 0.0
    %4699 = vmatpush2.msra.mxu0 0.0
    %4700 = vmatprep.subr.mxu0 0.0
    %4701 = vmatpush2.msra.mxu0 0.0
    %4702 = vmatprep.subr.mxu0 0.0
    %4703 = vmatpush2.msra.mxu0 0.0
    %4704 = vmatprep.subr.mxu0 0.0
    %4705 = vmatpush2.msra.mxu0 0.0
    %4706 = vmatprep.subr.mxu0 0.0
    %4707 = vmatpush2.msra.mxu0 0.0
    %4708 = vmatprep.subr.mxu0 0.0
    %4709 = vmatpush2.msra.mxu0 0.0
    %4710 = vmatprep.mubr.f32.mxu0 0.0
    %4711 = vmatmul.mubr.f32.gmra.mxu0 %v4644
    %v4712 = vpop.f32.mrf.mxu0
    %v4713 = vadd.f32 0.0, %v4712
    %v4714 = vpop.f32.mrf.mxu0
    %4715 = vdwg.mxu0
    %4716 = vrot.lane.b32.xlu0 %v4214, 112
    %v4717 = vpop.permute.xlu0 %4716
    %4718 = vrot.lane.b32.xlu0 %v4299, 112
    %v4719 = vpop.permute.xlu0 %4718
    %v4720 = vsel %vm611, %v4717, 0
    %v4722 = vsel %vm611, %v4719, 0
    %4724 = vmatprep.subr.mxu0 0.0
    %4725 = vmatpush1.xpose.msra.mxu0 0.0
    %4726 = vmatprep.subr.mxu0 0.0
    %4727 = vmatpush1.xpose.msra.mxu0 0.0
    %4728 = vmatprep.subr.mxu0 0.0
    %4729 = vmatpush1.xpose.msra.mxu0 0.0
    %4730 = vmatprep.subr.mxu0 0.0
    %4731 = vmatpush1.xpose.msra.mxu0 0.0
    %4732 = vmatprep.subr.mxu0 0.0
    %4733 = vmatpush1.xpose.msra.mxu0 0.0
    %4734 = vmatprep.subr.mxu0 0.0
    %4735 = vmatpush1.xpose.msra.mxu0 0.0
    %4736 = vmatprep.subr.mxu0 0.0
    %4737 = vmatpush1.xpose.msra.mxu0 0.0
    %4738 = vmatprep.subr.mxu0 0.0
    %4739 = vmatpush1.xpose.msra.mxu0 0.0
    %4740 = vmatprep.subr.mxu0 0.0
    %4741 = vmatpush1.xpose.msra.mxu0 0.0
    %4742 = vmatprep.subr.mxu0 0.0
    %4743 = vmatpush1.xpose.msra.mxu0 0.0
    %4744 = vmatprep.subr.mxu0 0.0
    %4745 = vmatpush1.xpose.msra.mxu0 0.0
    %4746 = vmatprep.subr.mxu0 0.0
    %4747 = vmatpush1.xpose.msra.mxu0 0.0
    %4748 = vmatprep.subr.mxu0 0.0
    %4749 = vmatpush1.xpose.msra.mxu0 0.0
    %4750 = vmatprep.subr.mxu0 0.0
    %4751 = vmatpush1.xpose.msra.mxu0 0.0
    %4752 = vmatprep.subr.mxu0 0.0
    %4753 = vmatpush1.xpose.msra.mxu0 0.0
    %4754 = vmatprep.subr.mxu0 0.0
    %4755 = vmatpush1.xpose.msra.mxu0 %v4722
    %4756 = vmatprep.subr.mxu0 0.0
    %4757 = vmatpush2.xpose.msra.mxu0 0.0
    %4758 = vmatprep.subr.mxu0 0.0
    %4759 = vmatpush2.xpose.msra.mxu0 0.0
    %4760 = vmatprep.subr.mxu0 0.0
    %4761 = vmatpush2.xpose.msra.mxu0 0.0
    %4762 = vmatprep.subr.mxu0 0.0
    %4763 = vmatpush2.xpose.msra.mxu0 0.0
    %4764 = vmatprep.subr.mxu0 0.0
    %4765 = vmatpush2.xpose.msra.mxu0 0.0
    %4766 = vmatprep.subr.mxu0 0.0
    %4767 = vmatpush2.xpose.msra.mxu0 0.0
    %4768 = vmatprep.subr.mxu0 0.0
    %4769 = vmatpush2.xpose.msra.mxu0 0.0
    %4770 = vmatprep.subr.mxu0 0.0
    %4771 = vmatpush2.xpose.msra.mxu0 0.0
    %4772 = vmatprep.subr.mxu0 0.0
    %4773 = vmatpush2.xpose.msra.mxu0 0.0
    %4774 = vmatprep.subr.mxu0 0.0
    %4775 = vmatpush2.xpose.msra.mxu0 0.0
    %4776 = vmatprep.subr.mxu0 0.0
    %4777 = vmatpush2.xpose.msra.mxu0 0.0
    %4778 = vmatprep.subr.mxu0 0.0
    %4779 = vmatpush2.xpose.msra.mxu0 0.0
    %4780 = vmatprep.subr.mxu0 0.0
    %4781 = vmatpush2.xpose.msra.mxu0 0.0
    %4782 = vmatprep.subr.mxu0 0.0
    %4783 = vmatpush2.xpose.msra.mxu0 0.0
    %4784 = vmatprep.subr.mxu0 0.0
    %4785 = vmatpush2.xpose.msra.mxu0 0.0
    %4786 = vmatprep.subr.mxu0 0.0
    %4787 = vmatpush2.xpose.msra.mxu0 0.0
    %4788 = vmatprep.mubr.f32.mxu0 0.0
    %4789 = vmatmul.mubr.f32.gmra.mxu0 %v4720
    %v4790 = vpop.f32.mrf.mxu0
    %v4791 = vadd.f32 0.0, %v4790
    %v4792 = vpop.f32.mrf.mxu0
    %4793 = vdwg.mxu0
    %v4794 = vmul.f32 %v4791, 0.35355338
    %v4795 = vadd.f32 %v4794, %v693
    %v4796 = vsel %vm611, %v4795, -inf
    %4797 = vmax.xlane.f32.xlu0 %v4796
    %v4798 = vpop.xlane.xlu0 %4797
    %v4799 = vsub.f32 %v4795, %v4798
    %v4800 = vmul.f32 %v4799, 1.442695
    %v4801 = vpow.pop %v4800
    %v4802 = vsel %vm611, %v4801, 0.0
    %4803 = vadd.xlane.f32.xlu0 %v4802
    %v4804 = vpop.xlane.xlu0 %4803
    %v4805 = vrcp.pop %v4804
    %v4806 = vmul.f32 %v4801, %v4805
    %4807 = vrot.lane.b32.xlu0 %v4378, 112
    %v4808 = vpop.permute.xlu0 %4807
    %v4811 = vsel %vm611, %v4806, 0
    %4813 = vmatprep.subr.mxu0 0.0
    %4814 = vmatpush1.msra.mxu0 0.0
    %4815 = vmatprep.subr.mxu0 0.0
    %4816 = vmatpush1.msra.mxu0 0.0
    %4817 = vmatprep.subr.mxu0 0.0
    %4818 = vmatpush1.msra.mxu0 0.0
    %4819 = vmatprep.subr.mxu0 0.0
    %4820 = vmatpush1.msra.mxu0 0.0
    %4821 = vmatprep.subr.mxu0 0.0
    %4822 = vmatpush1.msra.mxu0 0.0
    %4823 = vmatprep.subr.mxu0 0.0
    %4824 = vmatpush1.msra.mxu0 0.0
    %4825 = vmatprep.subr.mxu0 0.0
    %4826 = vmatpush1.msra.mxu0 0.0
    %4827 = vmatprep.subr.mxu0 0.0
    %4828 = vmatpush1.msra.mxu0 0.0
    %4829 = vmatprep.subr.mxu0 0.0
    %4830 = vmatpush1.msra.mxu0 0.0
    %4831 = vmatprep.subr.mxu0 0.0
    %4832 = vmatpush1.msra.mxu0 0.0
    %4833 = vmatprep.subr.mxu0 0.0
    %4834 = vmatpush1.msra.mxu0 0.0
    %4835 = vmatprep.subr.mxu0 0.0
    %4836 = vmatpush1.msra.mxu0 0.0
    %4837 = vmatprep.subr.mxu0 0.0
    %4838 = vmatpush1.msra.mxu0 0.0
    %4839 = vmatprep.subr.mxu0 0.0
    %4840 = vmatpush1.msra.mxu0 0.0
    %4841 = vmatprep.subr.mxu0 0.0
    %4842 = vmatpush1.msra.mxu0 0.0
    %4843 = vmatprep.subr.mxu0 0.0
    %4844 = vmatpush1.msra.mxu0 %v4808
    %4845 = vmatprep.subr.mxu0 0.0
    %4846 = vmatpush2.msra.mxu0 0.0
    %4847 = vmatprep.subr.mxu0 0.0
    %4848 = vmatpush2.msra.mxu0 0.0
    %4849 = vmatprep.subr.mxu0 0.0
    %4850 = vmatpush2.msra.mxu0 0.0
    %4851 = vmatprep.subr.mxu0 0.0
    %4852 = vmatpush2.msra.mxu0 0.0
    %4853 = vmatprep.subr.mxu0 0.0
    %4854 = vmatpush2.msra.mxu0 0.0
    %4855 = vmatprep.subr.mxu0 0.0
    %4856 = vmatpush2.msra.mxu0 0.0
    %4857 = vmatprep.subr.mxu0 0.0
    %4858 = vmatpush2.msra.mxu0 0.0
    %4859 = vmatprep.subr.mxu0 0.0
    %4860 = vmatpush2.msra.mxu0 0.0
    %4861 = vmatprep.subr.mxu0 0.0
    %4862 = vmatpush2.msra.mxu0 0.0
    %4863 = vmatprep.subr.mxu0 0.0
    %4864 = vmatpush2.msra.mxu0 0.0
    %4865 = vmatprep.subr.mxu0 0.0
    %4866 = vmatpush2.msra.mxu0 0.0
    %4867 = vmatprep.subr.mxu0 0.0
    %4868 = vmatpush2.msra.mxu0 0.0
    %4869 = vmatprep.subr.mxu0 0.0
    %4870 = vmatpush2.msra.mxu0 0.0
    %4871 = vmatprep.subr.mxu0 0.0
    %4872 = vmatpush2.msra.mxu0 0.0
    %4873 = vmatprep.subr.mxu0 0.0
    %4874 = vmatpush2.msra.mxu0 0.0
    %4875 = vmatprep.subr.mxu0 0.0
    %4876 = vmatpush2.msra.mxu0 0.0
    %4877 = vmatprep.mubr.f32.mxu0 0.0
    %4878 = vmatmul.mubr.f32.gmra.mxu0 %v4811
    %v4879 = vpop.f32.mrf.mxu0
    %v4880 = vadd.f32 0.0, %v4879
    %v4881 = vpop.f32.mrf.mxu0
    %4882 = vdwg.mxu0
    %4883 = vrot.lane.b32.xlu0 %v4214, 104
    %v4884 = vpop.permute.xlu0 %4883
    %4885 = vrot.lane.b32.xlu0 %v4299, 104
    %v4886 = vpop.permute.xlu0 %4885
    %v4887 = vsel %vm611, %v4884, 0
    %v4889 = vsel %vm611, %v4886, 0
    %4891 = vmatprep.subr.mxu0 0.0
    %4892 = vmatpush1.xpose.msra.mxu0 0.0
    %4893 = vmatprep.subr.mxu0 0.0
    %4894 = vmatpush1.xpose.msra.mxu0 0.0
    %4895 = vmatprep.subr.mxu0 0.0
    %4896 = vmatpush1.xpose.msra.mxu0 0.0
    %4897 = vmatprep.subr.mxu0 0.0
    %4898 = vmatpush1.xpose.msra.mxu0 0.0
    %4899 = vmatprep.subr.mxu0 0.0
    %4900 = vmatpush1.xpose.msra.mxu0 0.0
    %4901 = vmatprep.subr.mxu0 0.0
    %4902 = vmatpush1.xpose.msra.mxu0 0.0
    %4903 = vmatprep.subr.mxu0 0.0
    %4904 = vmatpush1.xpose.msra.mxu0 0.0
    %4905 = vmatprep.subr.mxu0 0.0
    %4906 = vmatpush1.xpose.msra.mxu0 0.0
    %4907 = vmatprep.subr.mxu0 0.0
    %4908 = vmatpush1.xpose.msra.mxu0 0.0
    %4909 = vmatprep.subr.mxu0 0.0
    %4910 = vmatpush1.xpose.msra.mxu0 0.0
    %4911 = vmatprep.subr.mxu0 0.0
    %4912 = vmatpush1.xpose.msra.mxu0 0.0
    %4913 = vmatprep.subr.mxu0 0.0
    %4914 = vmatpush1.xpose.msra.mxu0 0.0
    %4915 = vmatprep.subr.mxu0 0.0
    %4916 = vmatpush1.xpose.msra.mxu0 0.0
    %4917 = vmatprep.subr.mxu0 0.0
    %4918 = vmatpush1.xpose.msra.mxu0 0.0
    %4919 = vmatprep.subr.mxu0 0.0
    %4920 = vmatpush1.xpose.msra.mxu0 0.0
    %4921 = vmatprep.subr.mxu0 0.0
    %4922 = vmatpush1.xpose.msra.mxu0 %v4889
    %4923 = vmatprep.subr.mxu0 0.0
    %4924 = vmatpush2.xpose.msra.mxu0 0.0
    %4925 = vmatprep.subr.mxu0 0.0
    %4926 = vmatpush2.xpose.msra.mxu0 0.0
    %4927 = vmatprep.subr.mxu0 0.0
    %4928 = vmatpush2.xpose.msra.mxu0 0.0
    %4929 = vmatprep.subr.mxu0 0.0
    %4930 = vmatpush2.xpose.msra.mxu0 0.0
    %4931 = vmatprep.subr.mxu0 0.0
    %4932 = vmatpush2.xpose.msra.mxu0 0.0
    %4933 = vmatprep.subr.mxu0 0.0
    %4934 = vmatpush2.xpose.msra.mxu0 0.0
    %4935 = vmatprep.subr.mxu0 0.0
    %4936 = vmatpush2.xpose.msra.mxu0 0.0
    %4937 = vmatprep.subr.mxu0 0.0
    %4938 = vmatpush2.xpose.msra.mxu0 0.0
    %4939 = vmatprep.subr.mxu0 0.0
    %4940 = vmatpush2.xpose.msra.mxu0 0.0
    %4941 = vmatprep.subr.mxu0 0.0
    %4942 = vmatpush2.xpose.msra.mxu0 0.0
    %4943 = vmatprep.subr.mxu0 0.0
    %4944 = vmatpush2.xpose.msra.mxu0 0.0
    %4945 = vmatprep.subr.mxu0 0.0
    %4946 = vmatpush2.xpose.msra.mxu0 0.0
    %4947 = vmatprep.subr.mxu0 0.0
    %4948 = vmatpush2.xpose.msra.mxu0 0.0
    %4949 = vmatprep.subr.mxu0 0.0
    %4950 = vmatpush2.xpose.msra.mxu0 0.0
    %4951 = vmatprep.subr.mxu0 0.0
    %4952 = vmatpush2.xpose.msra.mxu0 0.0
    %4953 = vmatprep.subr.mxu0 0.0
    %4954 = vmatpush2.xpose.msra.mxu0 0.0
    %4955 = vmatprep.mubr.f32.mxu0 0.0
    %4956 = vmatmul.mubr.f32.gmra.mxu0 %v4887
    %v4957 = vpop.f32.mrf.mxu0
    %v4958 = vadd.f32 0.0, %v4957
    %v4959 = vpop.f32.mrf.mxu0
    %4960 = vdwg.mxu0
    %v4961 = vmul.f32 %v4958, 0.35355338
    %v4962 = vadd.f32 %v4961, %v693
    %v4963 = vsel %vm611, %v4962, -inf
    %4964 = vmax.xlane.f32.xlu0 %v4963
    %v4965 = vpop.xlane.xlu0 %4964
    %v4966 = vsub.f32 %v4962, %v4965
    %v4967 = vmul.f32 %v4966, 1.442695
    %v4968 = vpow.pop %v4967
    %v4969 = vsel %vm611, %v4968, 0.0
    %4970 = vadd.xlane.f32.xlu0 %v4969
    %v4971 = vpop.xlane.xlu0 %4970
    %v4972 = vrcp.pop %v4971
    %v4973 = vmul.f32 %v4968, %v4972
    %4974 = vrot.lane.b32.xlu0 %v4378, 104
    %v4975 = vpop.permute.xlu0 %4974
    %v4978 = vsel %vm611, %v4973, 0
    %4980 = vmatprep.subr.mxu0 0.0
    %4981 = vmatpush1.msra.mxu0 0.0
    %4982 = vmatprep.subr.mxu0 0.0
    %4983 = vmatpush1.msra.mxu0 0.0
    %4984 = vmatprep.subr.mxu0 0.0
    %4985 = vmatpush1.msra.mxu0 0.0
    %4986 = vmatprep.subr.mxu0 0.0
    %4987 = vmatpush1.msra.mxu0 0.0
    %4988 = vmatprep.subr.mxu0 0.0
    %4989 = vmatpush1.msra.mxu0 0.0
    %4990 = vmatprep.subr.mxu0 0.0
    %4991 = vmatpush1.msra.mxu0 0.0
    %4992 = vmatprep.subr.mxu0 0.0
    %4993 = vmatpush1.msra.mxu0 0.0
    %4994 = vmatprep.subr.mxu0 0.0
    %4995 = vmatpush1.msra.mxu0 0.0
    %4996 = vmatprep.subr.mxu0 0.0
    %4997 = vmatpush1.msra.mxu0 0.0
    %4998 = vmatprep.subr.mxu0 0.0
    %4999 = vmatpush1.msra.mxu0 0.0
    %5000 = vmatprep.subr.mxu0 0.0
    %5001 = vmatpush1.msra.mxu0 0.0
    %5002 = vmatprep.subr.mxu0 0.0
    %5003 = vmatpush1.msra.mxu0 0.0
    %5004 = vmatprep.subr.mxu0 0.0
    %5005 = vmatpush1.msra.mxu0 0.0
    %5006 = vmatprep.subr.mxu0 0.0
    %5007 = vmatpush1.msra.mxu0 0.0
    %5008 = vmatprep.subr.mxu0 0.0
    %5009 = vmatpush1.msra.mxu0 0.0
    %5010 = vmatprep.subr.mxu0 0.0
    %5011 = vmatpush1.msra.mxu0 %v4975
    %5012 = vmatprep.subr.mxu0 0.0
    %5013 = vmatpush2.msra.mxu0 0.0
    %5014 = vmatprep.subr.mxu0 0.0
    %5015 = vmatpush2.msra.mxu0 0.0
    %5016 = vmatprep.subr.mxu0 0.0
    %5017 = vmatpush2.msra.mxu0 0.0
    %5018 = vmatprep.subr.mxu0 0.0
    %5019 = vmatpush2.msra.mxu0 0.0
    %5020 = vmatprep.subr.mxu0 0.0
    %5021 = vmatpush2.msra.mxu0 0.0
    %5022 = vmatprep.subr.mxu0 0.0
    %5023 = vmatpush2.msra.mxu0 0.0
    %5024 = vmatprep.subr.mxu0 0.0
    %5025 = vmatpush2.msra.mxu0 0.0
    %5026 = vmatprep.subr.mxu0 0.0
    %5027 = vmatpush2.msra.mxu0 0.0
    %5028 = vmatprep.subr.mxu0 0.0
    %5029 = vmatpush2.msra.mxu0 0.0
    %5030 = vmatprep.subr.mxu0 0.0
    %5031 = vmatpush2.msra.mxu0 0.0
    %5032 = vmatprep.subr.mxu0 0.0
    %5033 = vmatpush2.msra.mxu0 0.0
    %5034 = vmatprep.subr.mxu0 0.0
    %5035 = vmatpush2.msra.mxu0 0.0
    %5036 = vmatprep.subr.mxu0 0.0
    %5037 = vmatpush2.msra.mxu0 0.0
    %5038 = vmatprep.subr.mxu0 0.0
    %5039 = vmatpush2.msra.mxu0 0.0
    %5040 = vmatprep.subr.mxu0 0.0
    %5041 = vmatpush2.msra.mxu0 0.0
    %5042 = vmatprep.subr.mxu0 0.0
    %5043 = vmatpush2.msra.mxu0 0.0
    %5044 = vmatprep.mubr.f32.mxu0 0.0
    %5045 = vmatmul.mubr.f32.gmra.mxu0 %v4978
    %v5046 = vpop.f32.mrf.mxu0
    %v5047 = vadd.f32 0.0, %v5046
    %v5048 = vpop.f32.mrf.mxu0
    %5049 = vdwg.mxu0
    %5051 = vrot.lane.b32.xlu0 %v4713, 8
    %v5052 = vpop.permute.xlu0 %5051
    %5055 = vrot.lane.b32.xlu0 %v4880, 16
    %v5056 = vpop.permute.xlu0 %5055
    %5059 = vrot.lane.b32.xlu0 %v5047, 24
    %v5060 = vpop.permute.xlu0 %5059
    %v5062 = vsel %vm611, %v4545, %v5052
    %v5063 = vsel %vm1295, %v5062, %v5056
    %v5064 = vsel %vm1297, %v5063, %v5060
    %v5066 = vsel %vm611, %v4219, 0
    %v5069 = vsel %vm611, %v4304, 0
    %5071 = vmatprep.subr.mxu0 0.0
    %5072 = vmatpush1.xpose.msra.mxu0 0.0
    %5073 = vmatprep.subr.mxu0 0.0
    %5074 = vmatpush1.xpose.msra.mxu0 0.0
    %5075 = vmatprep.subr.mxu0 0.0
    %5076 = vmatpush1.xpose.msra.mxu0 0.0
    %5077 = vmatprep.subr.mxu0 0.0
    %5078 = vmatpush1.xpose.msra.mxu0 0.0
    %5079 = vmatprep.subr.mxu0 0.0
    %5080 = vmatpush1.xpose.msra.mxu0 0.0
    %5081 = vmatprep.subr.mxu0 0.0
    %5082 = vmatpush1.xpose.msra.mxu0 0.0
    %5083 = vmatprep.subr.mxu0 0.0
    %5084 = vmatpush1.xpose.msra.mxu0 0.0
    %5085 = vmatprep.subr.mxu0 0.0
    %5086 = vmatpush1.xpose.msra.mxu0 0.0
    %5087 = vmatprep.subr.mxu0 0.0
    %5088 = vmatpush1.xpose.msra.mxu0 0.0
    %5089 = vmatprep.subr.mxu0 0.0
    %5090 = vmatpush1.xpose.msra.mxu0 0.0
    %5091 = vmatprep.subr.mxu0 0.0
    %5092 = vmatpush1.xpose.msra.mxu0 0.0
    %5093 = vmatprep.subr.mxu0 0.0
    %5094 = vmatpush1.xpose.msra.mxu0 0.0
    %5095 = vmatprep.subr.mxu0 0.0
    %5096 = vmatpush1.xpose.msra.mxu0 0.0
    %5097 = vmatprep.subr.mxu0 0.0
    %5098 = vmatpush1.xpose.msra.mxu0 0.0
    %5099 = vmatprep.subr.mxu0 0.0
    %5100 = vmatpush1.xpose.msra.mxu0 0.0
    %5101 = vmatprep.subr.mxu0 0.0
    %5102 = vmatpush1.xpose.msra.mxu0 %v5069
    %5103 = vmatprep.subr.mxu0 0.0
    %5104 = vmatpush2.xpose.msra.mxu0 0.0
    %5105 = vmatprep.subr.mxu0 0.0
    %5106 = vmatpush2.xpose.msra.mxu0 0.0
    %5107 = vmatprep.subr.mxu0 0.0
    %5108 = vmatpush2.xpose.msra.mxu0 0.0
    %5109 = vmatprep.subr.mxu0 0.0
    %5110 = vmatpush2.xpose.msra.mxu0 0.0
    %5111 = vmatprep.subr.mxu0 0.0
    %5112 = vmatpush2.xpose.msra.mxu0 0.0
    %5113 = vmatprep.subr.mxu0 0.0
    %5114 = vmatpush2.xpose.msra.mxu0 0.0
    %5115 = vmatprep.subr.mxu0 0.0
    %5116 = vmatpush2.xpose.msra.mxu0 0.0
    %5117 = vmatprep.subr.mxu0 0.0
    %5118 = vmatpush2.xpose.msra.mxu0 0.0
    %5119 = vmatprep.subr.mxu0 0.0
    %5120 = vmatpush2.xpose.msra.mxu0 0.0
    %5121 = vmatprep.subr.mxu0 0.0
    %5122 = vmatpush2.xpose.msra.mxu0 0.0
    %5123 = vmatprep.subr.mxu0 0.0
    %5124 = vmatpush2.xpose.msra.mxu0 0.0
    %5125 = vmatprep.subr.mxu0 0.0
    %5126 = vmatpush2.xpose.msra.mxu0 0.0
    %5127 = vmatprep.subr.mxu0 0.0
    %5128 = vmatpush2.xpose.msra.mxu0 0.0
    %5129 = vmatprep.subr.mxu0 0.0
    %5130 = vmatpush2.xpose.msra.mxu0 0.0
    %5131 = vmatprep.subr.mxu0 0.0
    %5132 = vmatpush2.xpose.msra.mxu0 0.0
    %5133 = vmatprep.subr.mxu0 0.0
    %5134 = vmatpush2.xpose.msra.mxu0 0.0
    %5135 = vmatprep.mubr.f32.mxu0 0.0
    %5136 = vmatmul.mubr.f32.gmra.mxu0 %v5066
    %v5137 = vpop.f32.mrf.mxu0
    %v5138 = vadd.f32 0.0, %v5137
    %v5139 = vpop.f32.mrf.mxu0
    %5140 = vdwg.mxu0
    %v5141 = vmul.f32 %v5138, 0.35355338
    %v5142 = vadd.f32 %v5141, %v1382
    %v5143 = vsel %vm611, %v5142, -inf
    %5144 = vmax.xlane.f32.xlu0 %v5143
    %v5145 = vpop.xlane.xlu0 %5144
    %v5146 = vsub.f32 %v5142, %v5145
    %v5147 = vmul.f32 %v5146, 1.442695
    %v5148 = vpow.pop %v5147
    %v5149 = vsel %vm611, %v5148, 0.0
    %5150 = vadd.xlane.f32.xlu0 %v5149
    %v5151 = vpop.xlane.xlu0 %5150
    %v5152 = vrcp.pop %v5151
    %v5153 = vmul.f32 %v5148, %v5152
    %v5155 = vsel %vm611, %v5153, 0
    %5157 = vmatprep.subr.mxu0 0.0
    %5158 = vmatpush1.msra.mxu0 0.0
    %5159 = vmatprep.subr.mxu0 0.0
    %5160 = vmatpush1.msra.mxu0 0.0
    %5161 = vmatprep.subr.mxu0 0.0
    %5162 = vmatpush1.msra.mxu0 0.0
    %5163 = vmatprep.subr.mxu0 0.0
    %5164 = vmatpush1.msra.mxu0 0.0
    %5165 = vmatprep.subr.mxu0 0.0
    %5166 = vmatpush1.msra.mxu0 0.0
    %5167 = vmatprep.subr.mxu0 0.0
    %5168 = vmatpush1.msra.mxu0 0.0
    %5169 = vmatprep.subr.mxu0 0.0
    %5170 = vmatpush1.msra.mxu0 0.0
    %5171 = vmatprep.subr.mxu0 0.0
    %5172 = vmatpush1.msra.mxu0 0.0
    %5173 = vmatprep.subr.mxu0 0.0
    %5174 = vmatpush1.msra.mxu0 0.0
    %5175 = vmatprep.subr.mxu0 0.0
    %5176 = vmatpush1.msra.mxu0 0.0
    %5177 = vmatprep.subr.mxu0 0.0
    %5178 = vmatpush1.msra.mxu0 0.0
    %5179 = vmatprep.subr.mxu0 0.0
    %5180 = vmatpush1.msra.mxu0 0.0
    %5181 = vmatprep.subr.mxu0 0.0
    %5182 = vmatpush1.msra.mxu0 0.0
    %5183 = vmatprep.subr.mxu0 0.0
    %5184 = vmatpush1.msra.mxu0 0.0
    %5185 = vmatprep.subr.mxu0 0.0
    %5186 = vmatpush1.msra.mxu0 0.0
    %5187 = vmatprep.subr.mxu0 0.0
    %5188 = vmatpush1.msra.mxu0 %v4383
    %5189 = vmatprep.subr.mxu0 0.0
    %5190 = vmatpush2.msra.mxu0 0.0
    %5191 = vmatprep.subr.mxu0 0.0
    %5192 = vmatpush2.msra.mxu0 0.0
    %5193 = vmatprep.subr.mxu0 0.0
    %5194 = vmatpush2.msra.mxu0 0.0
    %5195 = vmatprep.subr.mxu0 0.0
    %5196 = vmatpush2.msra.mxu0 0.0
    %5197 = vmatprep.subr.mxu0 0.0
    %5198 = vmatpush2.msra.mxu0 0.0
    %5199 = vmatprep.subr.mxu0 0.0
    %5200 = vmatpush2.msra.mxu0 0.0
    %5201 = vmatprep.subr.mxu0 0.0
    %5202 = vmatpush2.msra.mxu0 0.0
    %5203 = vmatprep.subr.mxu0 0.0
    %5204 = vmatpush2.msra.mxu0 0.0
    %5205 = vmatprep.subr.mxu0 0.0
    %5206 = vmatpush2.msra.mxu0 0.0
    %5207 = vmatprep.subr.mxu0 0.0
    %5208 = vmatpush2.msra.mxu0 0.0
    %5209 = vmatprep.subr.mxu0 0.0
    %5210 = vmatpush2.msra.mxu0 0.0
    %5211 = vmatprep.subr.mxu0 0.0
    %5212 = vmatpush2.msra.mxu0 0.0
    %5213 = vmatprep.subr.mxu0 0.0
    %5214 = vmatpush2.msra.mxu0 0.0
    %5215 = vmatprep.subr.mxu0 0.0
    %5216 = vmatpush2.msra.mxu0 0.0
    %5217 = vmatprep.subr.mxu0 0.0
    %5218 = vmatpush2.msra.mxu0 0.0
    %5219 = vmatprep.subr.mxu0 0.0
    %5220 = vmatpush2.msra.mxu0 0.0
    %5221 = vmatprep.mubr.f32.mxu0 0.0
    %5222 = vmatmul.mubr.f32.gmra.mxu0 %v5155
    %v5223 = vpop.f32.mrf.mxu0
    %v5224 = vadd.f32 0.0, %v5223
    %v5225 = vpop.f32.mrf.mxu0
    %5226 = vdwg.mxu0
    %5227 = vrot.lane.b32.xlu0 %v4219, 120
    %v5228 = vpop.permute.xlu0 %5227
    %5229 = vrot.lane.b32.xlu0 %v4304, 120
    %v5230 = vpop.permute.xlu0 %5229
    %v5231 = vsel %vm611, %v5228, 0
    %v5233 = vsel %vm611, %v5230, 0
    %5235 = vmatprep.subr.mxu0 0.0
    %5236 = vmatpush1.xpose.msra.mxu0 0.0
    %5237 = vmatprep.subr.mxu0 0.0
    %5238 = vmatpush1.xpose.msra.mxu0 0.0
    %5239 = vmatprep.subr.mxu0 0.0
    %5240 = vmatpush1.xpose.msra.mxu0 0.0
    %5241 = vmatprep.subr.mxu0 0.0
    %5242 = vmatpush1.xpose.msra.mxu0 0.0
    %5243 = vmatprep.subr.mxu0 0.0
    %5244 = vmatpush1.xpose.msra.mxu0 0.0
    %5245 = vmatprep.subr.mxu0 0.0
    %5246 = vmatpush1.xpose.msra.mxu0 0.0
    %5247 = vmatprep.subr.mxu0 0.0
    %5248 = vmatpush1.xpose.msra.mxu0 0.0
    %5249 = vmatprep.subr.mxu0 0.0
    %5250 = vmatpush1.xpose.msra.mxu0 0.0
    %5251 = vmatprep.subr.mxu0 0.0
    %5252 = vmatpush1.xpose.msra.mxu0 0.0
    %5253 = vmatprep.subr.mxu0 0.0
    %5254 = vmatpush1.xpose.msra.mxu0 0.0
    %5255 = vmatprep.subr.mxu0 0.0
    %5256 = vmatpush1.xpose.msra.mxu0 0.0
    %5257 = vmatprep.subr.mxu0 0.0
    %5258 = vmatpush1.xpose.msra.mxu0 0.0
    %5259 = vmatprep.subr.mxu0 0.0
    %5260 = vmatpush1.xpose.msra.mxu0 0.0
    %5261 = vmatprep.subr.mxu0 0.0
    %5262 = vmatpush1.xpose.msra.mxu0 0.0
    %5263 = vmatprep.subr.mxu0 0.0
    %5264 = vmatpush1.xpose.msra.mxu0 0.0
    %5265 = vmatprep.subr.mxu0 0.0
    %5266 = vmatpush1.xpose.msra.mxu0 %v5233
    %5267 = vmatprep.subr.mxu0 0.0
    %5268 = vmatpush2.xpose.msra.mxu0 0.0
    %5269 = vmatprep.subr.mxu0 0.0
    %5270 = vmatpush2.xpose.msra.mxu0 0.0
    %5271 = vmatprep.subr.mxu0 0.0
    %5272 = vmatpush2.xpose.msra.mxu0 0.0
    %5273 = vmatprep.subr.mxu0 0.0
    %5274 = vmatpush2.xpose.msra.mxu0 0.0
    %5275 = vmatprep.subr.mxu0 0.0
    %5276 = vmatpush2.xpose.msra.mxu0 0.0
    %5277 = vmatprep.subr.mxu0 0.0
    %5278 = vmatpush2.xpose.msra.mxu0 0.0
    %5279 = vmatprep.subr.mxu0 0.0
    %5280 = vmatpush2.xpose.msra.mxu0 0.0
    %5281 = vmatprep.subr.mxu0 0.0
    %5282 = vmatpush2.xpose.msra.mxu0 0.0
    %5283 = vmatprep.subr.mxu0 0.0
    %5284 = vmatpush2.xpose.msra.mxu0 0.0
    %5285 = vmatprep.subr.mxu0 0.0
    %5286 = vmatpush2.xpose.msra.mxu0 0.0
    %5287 = vmatprep.subr.mxu0 0.0
    %5288 = vmatpush2.xpose.msra.mxu0 0.0
    %5289 = vmatprep.subr.mxu0 0.0
    %5290 = vmatpush2.xpose.msra.mxu0 0.0
    %5291 = vmatprep.subr.mxu0 0.0
    %5292 = vmatpush2.xpose.msra.mxu0 0.0
    %5293 = vmatprep.subr.mxu0 0.0
    %5294 = vmatpush2.xpose.msra.mxu0 0.0
    %5295 = vmatprep.subr.mxu0 0.0
    %5296 = vmatpush2.xpose.msra.mxu0 0.0
    %5297 = vmatprep.subr.mxu0 0.0
    %5298 = vmatpush2.xpose.msra.mxu0 0.0
    %5299 = vmatprep.mubr.f32.mxu0 0.0
    %5300 = vmatmul.mubr.f32.gmra.mxu0 %v5231
    %v5301 = vpop.f32.mrf.mxu0
    %v5302 = vadd.f32 0.0, %v5301
    %v5303 = vpop.f32.mrf.mxu0
    %5304 = vdwg.mxu0
    %v5305 = vmul.f32 %v5302, 0.35355338
    %v5306 = vadd.f32 %v5305, %v1382
    %v5307 = vsel %vm611, %v5306, -inf
    %5308 = vmax.xlane.f32.xlu0 %v5307
    %v5309 = vpop.xlane.xlu0 %5308
    %v5310 = vsub.f32 %v5306, %v5309
    %v5311 = vmul.f32 %v5310, 1.442695
    %v5312 = vpow.pop %v5311
    %v5313 = vsel %vm611, %v5312, 0.0
    %5314 = vadd.xlane.f32.xlu0 %v5313
    %v5315 = vpop.xlane.xlu0 %5314
    %v5316 = vrcp.pop %v5315
    %v5317 = vmul.f32 %v5312, %v5316
    %5319 = vrot.lane.b32.xlu0 %v4383, 120
    %v5320 = vpop.permute.xlu0 %5319
    %v5323 = vsel %vm611, %v5317, 0
    %5325 = vmatprep.subr.mxu0 0.0
    %5326 = vmatpush1.msra.mxu0 0.0
    %5327 = vmatprep.subr.mxu0 0.0
    %5328 = vmatpush1.msra.mxu0 0.0
    %5329 = vmatprep.subr.mxu0 0.0
    %5330 = vmatpush1.msra.mxu0 0.0
    %5331 = vmatprep.subr.mxu0 0.0
    %5332 = vmatpush1.msra.mxu0 0.0
    %5333 = vmatprep.subr.mxu0 0.0
    %5334 = vmatpush1.msra.mxu0 0.0
    %5335 = vmatprep.subr.mxu0 0.0
    %5336 = vmatpush1.msra.mxu0 0.0
    %5337 = vmatprep.subr.mxu0 0.0
    %5338 = vmatpush1.msra.mxu0 0.0
    %5339 = vmatprep.subr.mxu0 0.0
    %5340 = vmatpush1.msra.mxu0 0.0
    %5341 = vmatprep.subr.mxu0 0.0
    %5342 = vmatpush1.msra.mxu0 0.0
    %5343 = vmatprep.subr.mxu0 0.0
    %5344 = vmatpush1.msra.mxu0 0.0
    %5345 = vmatprep.subr.mxu0 0.0
    %5346 = vmatpush1.msra.mxu0 0.0
    %5347 = vmatprep.subr.mxu0 0.0
    %5348 = vmatpush1.msra.mxu0 0.0
    %5349 = vmatprep.subr.mxu0 0.0
    %5350 = vmatpush1.msra.mxu0 0.0
    %5351 = vmatprep.subr.mxu0 0.0
    %5352 = vmatpush1.msra.mxu0 0.0
    %5353 = vmatprep.subr.mxu0 0.0
    %5354 = vmatpush1.msra.mxu0 0.0
    %5355 = vmatprep.subr.mxu0 0.0
    %5356 = vmatpush1.msra.mxu0 %v5320
    %5357 = vmatprep.subr.mxu0 0.0
    %5358 = vmatpush2.msra.mxu0 0.0
    %5359 = vmatprep.subr.mxu0 0.0
    %5360 = vmatpush2.msra.mxu0 0.0
    %5361 = vmatprep.subr.mxu0 0.0
    %5362 = vmatpush2.msra.mxu0 0.0
    %5363 = vmatprep.subr.mxu0 0.0
    %5364 = vmatpush2.msra.mxu0 0.0
    %5365 = vmatprep.subr.mxu0 0.0
    %5366 = vmatpush2.msra.mxu0 0.0
    %5367 = vmatprep.subr.mxu0 0.0
    %5368 = vmatpush2.msra.mxu0 0.0
    %5369 = vmatprep.subr.mxu0 0.0
    %5370 = vmatpush2.msra.mxu0 0.0
    %5371 = vmatprep.subr.mxu0 0.0
    %5372 = vmatpush2.msra.mxu0 0.0
    %5373 = vmatprep.subr.mxu0 0.0
    %5374 = vmatpush2.msra.mxu0 0.0
    %5375 = vmatprep.subr.mxu0 0.0
    %5376 = vmatpush2.msra.mxu0 0.0
    %5377 = vmatprep.subr.mxu0 0.0
    %5378 = vmatpush2.msra.mxu0 0.0
    %5379 = vmatprep.subr.mxu0 0.0
    %5380 = vmatpush2.msra.mxu0 0.0
    %5381 = vmatprep.subr.mxu0 0.0
    %5382 = vmatpush2.msra.mxu0 0.0
    %5383 = vmatprep.subr.mxu0 0.0
    %5384 = vmatpush2.msra.mxu0 0.0
    %5385 = vmatprep.subr.mxu0 0.0
    %5386 = vmatpush2.msra.mxu0 0.0
    %5387 = vmatprep.subr.mxu0 0.0
    %5388 = vmatpush2.msra.mxu0 0.0
    %5389 = vmatprep.mubr.f32.mxu0 0.0
    %5390 = vmatmul.mubr.f32.gmra.mxu0 %v5323
    %v5391 = vpop.f32.mrf.mxu0
    %v5392 = vadd.f32 0.0, %v5391
    %v5393 = vpop.f32.mrf.mxu0
    %5394 = vdwg.mxu0
    %5395 = vrot.lane.b32.xlu0 %v4219, 112
    %v5396 = vpop.permute.xlu0 %5395
    %5397 = vrot.lane.b32.xlu0 %v4304, 112
    %v5398 = vpop.permute.xlu0 %5397
    %v5399 = vsel %vm611, %v5396, 0
    %v5401 = vsel %vm611, %v5398, 0
    %5403 = vmatprep.subr.mxu0 0.0
    %5404 = vmatpush1.xpose.msra.mxu0 0.0
    %5405 = vmatprep.subr.mxu0 0.0
    %5406 = vmatpush1.xpose.msra.mxu0 0.0
    %5407 = vmatprep.subr.mxu0 0.0
    %5408 = vmatpush1.xpose.msra.mxu0 0.0
    %5409 = vmatprep.subr.mxu0 0.0
    %5410 = vmatpush1.xpose.msra.mxu0 0.0
    %5411 = vmatprep.subr.mxu0 0.0
    %5412 = vmatpush1.xpose.msra.mxu0 0.0
    %5413 = vmatprep.subr.mxu0 0.0
    %5414 = vmatpush1.xpose.msra.mxu0 0.0
    %5415 = vmatprep.subr.mxu0 0.0
    %5416 = vmatpush1.xpose.msra.mxu0 0.0
    %5417 = vmatprep.subr.mxu0 0.0
    %5418 = vmatpush1.xpose.msra.mxu0 0.0
    %5419 = vmatprep.subr.mxu0 0.0
    %5420 = vmatpush1.xpose.msra.mxu0 0.0
    %5421 = vmatprep.subr.mxu0 0.0
    %5422 = vmatpush1.xpose.msra.mxu0 0.0
    %5423 = vmatprep.subr.mxu0 0.0
    %5424 = vmatpush1.xpose.msra.mxu0 0.0
    %5425 = vmatprep.subr.mxu0 0.0
    %5426 = vmatpush1.xpose.msra.mxu0 0.0
    %5427 = vmatprep.subr.mxu0 0.0
    %5428 = vmatpush1.xpose.msra.mxu0 0.0
    %5429 = vmatprep.subr.mxu0 0.0
    %5430 = vmatpush1.xpose.msra.mxu0 0.0
    %5431 = vmatprep.subr.mxu0 0.0
    %5432 = vmatpush1.xpose.msra.mxu0 0.0
    %5433 = vmatprep.subr.mxu0 0.0
    %5434 = vmatpush1.xpose.msra.mxu0 %v5401
    %5435 = vmatprep.subr.mxu0 0.0
    %5436 = vmatpush2.xpose.msra.mxu0 0.0
    %5437 = vmatprep.subr.mxu0 0.0
    %5438 = vmatpush2.xpose.msra.mxu0 0.0
    %5439 = vmatprep.subr.mxu0 0.0
    %5440 = vmatpush2.xpose.msra.mxu0 0.0
    %5441 = vmatprep.subr.mxu0 0.0
    %5442 = vmatpush2.xpose.msra.mxu0 0.0
    %5443 = vmatprep.subr.mxu0 0.0
    %5444 = vmatpush2.xpose.msra.mxu0 0.0
    %5445 = vmatprep.subr.mxu0 0.0
    %5446 = vmatpush2.xpose.msra.mxu0 0.0
    %5447 = vmatprep.subr.mxu0 0.0
    %5448 = vmatpush2.xpose.msra.mxu0 0.0
    %5449 = vmatprep.subr.mxu0 0.0
    %5450 = vmatpush2.xpose.msra.mxu0 0.0
    %5451 = vmatprep.subr.mxu0 0.0
    %5452 = vmatpush2.xpose.msra.mxu0 0.0
    %5453 = vmatprep.subr.mxu0 0.0
    %5454 = vmatpush2.xpose.msra.mxu0 0.0
    %5455 = vmatprep.subr.mxu0 0.0
    %5456 = vmatpush2.xpose.msra.mxu0 0.0
    %5457 = vmatprep.subr.mxu0 0.0
    %5458 = vmatpush2.xpose.msra.mxu0 0.0
    %5459 = vmatprep.subr.mxu0 0.0
    %5460 = vmatpush2.xpose.msra.mxu0 0.0
    %5461 = vmatprep.subr.mxu0 0.0
    %5462 = vmatpush2.xpose.msra.mxu0 0.0
    %5463 = vmatprep.subr.mxu0 0.0
    %5464 = vmatpush2.xpose.msra.mxu0 0.0
    %5465 = vmatprep.subr.mxu0 0.0
    %5466 = vmatpush2.xpose.msra.mxu0 0.0
    %5467 = vmatprep.mubr.f32.mxu0 0.0
    %5468 = vmatmul.mubr.f32.gmra.mxu0 %v5399
    %v5469 = vpop.f32.mrf.mxu0
    %v5470 = vadd.f32 0.0, %v5469
    %v5471 = vpop.f32.mrf.mxu0
    %5472 = vdwg.mxu0
    %v5473 = vmul.f32 %v5470, 0.35355338
    %v5474 = vadd.f32 %v5473, %v1382
    %v5475 = vsel %vm611, %v5474, -inf
    %5476 = vmax.xlane.f32.xlu0 %v5475
    %v5477 = vpop.xlane.xlu0 %5476
    %v5478 = vsub.f32 %v5474, %v5477
    %v5479 = vmul.f32 %v5478, 1.442695
    %v5480 = vpow.pop %v5479
    %v5481 = vsel %vm611, %v5480, 0.0
    %5482 = vadd.xlane.f32.xlu0 %v5481
    %v5483 = vpop.xlane.xlu0 %5482
    %v5484 = vrcp.pop %v5483
    %v5485 = vmul.f32 %v5480, %v5484
    %5486 = vrot.lane.b32.xlu0 %v4383, 112
    %v5487 = vpop.permute.xlu0 %5486
    %v5490 = vsel %vm611, %v5485, 0
    %5492 = vmatprep.subr.mxu0 0.0
    %5493 = vmatpush1.msra.mxu0 0.0
    %5494 = vmatprep.subr.mxu0 0.0
    %5495 = vmatpush1.msra.mxu0 0.0
    %5496 = vmatprep.subr.mxu0 0.0
    %5497 = vmatpush1.msra.mxu0 0.0
    %5498 = vmatprep.subr.mxu0 0.0
    %5499 = vmatpush1.msra.mxu0 0.0
    %5500 = vmatprep.subr.mxu0 0.0
    %5501 = vmatpush1.msra.mxu0 0.0
    %5502 = vmatprep.subr.mxu0 0.0
    %5503 = vmatpush1.msra.mxu0 0.0
    %5504 = vmatprep.subr.mxu0 0.0
    %5505 = vmatpush1.msra.mxu0 0.0
    %5506 = vmatprep.subr.mxu0 0.0
    %5507 = vmatpush1.msra.mxu0 0.0
    %5508 = vmatprep.subr.mxu0 0.0
    %5509 = vmatpush1.msra.mxu0 0.0
    %5510 = vmatprep.subr.mxu0 0.0
    %5511 = vmatpush1.msra.mxu0 0.0
    %5512 = vmatprep.subr.mxu0 0.0
    %5513 = vmatpush1.msra.mxu0 0.0
    %5514 = vmatprep.subr.mxu0 0.0
    %5515 = vmatpush1.msra.mxu0 0.0
    %5516 = vmatprep.subr.mxu0 0.0
    %5517 = vmatpush1.msra.mxu0 0.0
    %5518 = vmatprep.subr.mxu0 0.0
    %5519 = vmatpush1.msra.mxu0 0.0
    %5520 = vmatprep.subr.mxu0 0.0
    %5521 = vmatpush1.msra.mxu0 0.0
    %5522 = vmatprep.subr.mxu0 0.0
    %5523 = vmatpush1.msra.mxu0 %v5487
    %5524 = vmatprep.subr.mxu0 0.0
    %5525 = vmatpush2.msra.mxu0 0.0
    %5526 = vmatprep.subr.mxu0 0.0
    %5527 = vmatpush2.msra.mxu0 0.0
    %5528 = vmatprep.subr.mxu0 0.0
    %5529 = vmatpush2.msra.mxu0 0.0
    %5530 = vmatprep.subr.mxu0 0.0
    %5531 = vmatpush2.msra.mxu0 0.0
    %5532 = vmatprep.subr.mxu0 0.0
    %5533 = vmatpush2.msra.mxu0 0.0
    %5534 = vmatprep.subr.mxu0 0.0
    %5535 = vmatpush2.msra.mxu0 0.0
    %5536 = vmatprep.subr.mxu0 0.0
    %5537 = vmatpush2.msra.mxu0 0.0
    %5538 = vmatprep.subr.mxu0 0.0
    %5539 = vmatpush2.msra.mxu0 0.0
    %5540 = vmatprep.subr.mxu0 0.0
    %5541 = vmatpush2.msra.mxu0 0.0
    %5542 = vmatprep.subr.mxu0 0.0
    %5543 = vmatpush2.msra.mxu0 0.0
    %5544 = vmatprep.subr.mxu0 0.0
    %5545 = vmatpush2.msra.mxu0 0.0
    %5546 = vmatprep.subr.mxu0 0.0
    %5547 = vmatpush2.msra.mxu0 0.0
    %5548 = vmatprep.subr.mxu0 0.0
    %5549 = vmatpush2.msra.mxu0 0.0
    %5550 = vmatprep.subr.mxu0 0.0
    %5551 = vmatpush2.msra.mxu0 0.0
    %5552 = vmatprep.subr.mxu0 0.0
    %5553 = vmatpush2.msra.mxu0 0.0
    %5554 = vmatprep.subr.mxu0 0.0
    %5555 = vmatpush2.msra.mxu0 0.0
    %5556 = vmatprep.mubr.f32.mxu0 0.0
    %5557 = vmatmul.mubr.f32.gmra.mxu0 %v5490
    %v5558 = vpop.f32.mrf.mxu0
    %v5559 = vadd.f32 0.0, %v5558
    %v5560 = vpop.f32.mrf.mxu0
    %5561 = vdwg.mxu0
    %5562 = vrot.lane.b32.xlu0 %v4219, 104
    %v5563 = vpop.permute.xlu0 %5562
    %5564 = vrot.lane.b32.xlu0 %v4304, 104
    %v5565 = vpop.permute.xlu0 %5564
    %v5566 = vsel %vm611, %v5563, 0
    %v5568 = vsel %vm611, %v5565, 0
    %5570 = vmatprep.subr.mxu0 0.0
    %5571 = vmatpush1.xpose.msra.mxu0 0.0
    %5572 = vmatprep.subr.mxu0 0.0
    %5573 = vmatpush1.xpose.msra.mxu0 0.0
    %5574 = vmatprep.subr.mxu0 0.0
    %5575 = vmatpush1.xpose.msra.mxu0 0.0
    %5576 = vmatprep.subr.mxu0 0.0
    %5577 = vmatpush1.xpose.msra.mxu0 0.0
    %5578 = vmatprep.subr.mxu0 0.0
    %5579 = vmatpush1.xpose.msra.mxu0 0.0
    %5580 = vmatprep.subr.mxu0 0.0
    %5581 = vmatpush1.xpose.msra.mxu0 0.0
    %5582 = vmatprep.subr.mxu0 0.0
    %5583 = vmatpush1.xpose.msra.mxu0 0.0
    %5584 = vmatprep.subr.mxu0 0.0
    %5585 = vmatpush1.xpose.msra.mxu0 0.0
    %5586 = vmatprep.subr.mxu0 0.0
    %5587 = vmatpush1.xpose.msra.mxu0 0.0
    %5588 = vmatprep.subr.mxu0 0.0
    %5589 = vmatpush1.xpose.msra.mxu0 0.0
    %5590 = vmatprep.subr.mxu0 0.0
    %5591 = vmatpush1.xpose.msra.mxu0 0.0
    %5592 = vmatprep.subr.mxu0 0.0
    %5593 = vmatpush1.xpose.msra.mxu0 0.0
    %5594 = vmatprep.subr.mxu0 0.0
    %5595 = vmatpush1.xpose.msra.mxu0 0.0
    %5596 = vmatprep.subr.mxu0 0.0
    %5597 = vmatpush1.xpose.msra.mxu0 0.0
    %5598 = vmatprep.subr.mxu0 0.0
    %5599 = vmatpush1.xpose.msra.mxu0 0.0
    %5600 = vmatprep.subr.mxu0 0.0
    %5601 = vmatpush1.xpose.msra.mxu0 %v5568
    %5602 = vmatprep.subr.mxu0 0.0
    %5603 = vmatpush2.xpose.msra.mxu0 0.0
    %5604 = vmatprep.subr.mxu0 0.0
    %5605 = vmatpush2.xpose.msra.mxu0 0.0
    %5606 = vmatprep.subr.mxu0 0.0
    %5607 = vmatpush2.xpose.msra.mxu0 0.0
    %5608 = vmatprep.subr.mxu0 0.0
    %5609 = vmatpush2.xpose.msra.mxu0 0.0
    %5610 = vmatprep.subr.mxu0 0.0
    %5611 = vmatpush2.xpose.msra.mxu0 0.0
    %5612 = vmatprep.subr.mxu0 0.0
    %5613 = vmatpush2.xpose.msra.mxu0 0.0
    %5614 = vmatprep.subr.mxu0 0.0
    %5615 = vmatpush2.xpose.msra.mxu0 0.0
    %5616 = vmatprep.subr.mxu0 0.0
    %5617 = vmatpush2.xpose.msra.mxu0 0.0
    %5618 = vmatprep.subr.mxu0 0.0
    %5619 = vmatpush2.xpose.msra.mxu0 0.0
    %5620 = vmatprep.subr.mxu0 0.0
    %5621 = vmatpush2.xpose.msra.mxu0 0.0
    %5622 = vmatprep.subr.mxu0 0.0
    %5623 = vmatpush2.xpose.msra.mxu0 0.0
    %5624 = vmatprep.subr.mxu0 0.0
    %5625 = vmatpush2.xpose.msra.mxu0 0.0
    %5626 = vmatprep.subr.mxu0 0.0
    %5627 = vmatpush2.xpose.msra.mxu0 0.0
    %5628 = vmatprep.subr.mxu0 0.0
    %5629 = vmatpush2.xpose.msra.mxu0 0.0
    %5630 = vmatprep.subr.mxu0 0.0
    %5631 = vmatpush2.xpose.msra.mxu0 0.0
    %5632 = vmatprep.subr.mxu0 0.0
    %5633 = vmatpush2.xpose.msra.mxu0 0.0
    %5634 = vmatprep.mubr.f32.mxu0 0.0
    %5635 = vmatmul.mubr.f32.gmra.mxu0 %v5566
    %v5636 = vpop.f32.mrf.mxu0
    %v5637 = vadd.f32 0.0, %v5636
    %v5638 = vpop.f32.mrf.mxu0
    %5639 = vdwg.mxu0
    %v5640 = vmul.f32 %v5637, 0.35355338
    %v5641 = vadd.f32 %v5640, %v1382
    %v5642 = vsel %vm611, %v5641, -inf
    %5643 = vmax.xlane.f32.xlu0 %v5642
    %v5644 = vpop.xlane.xlu0 %5643
    %v5645 = vsub.f32 %v5641, %v5644
    %v5646 = vmul.f32 %v5645, 1.442695
    %v5647 = vpow.pop %v5646
    %v5648 = vsel %vm611, %v5647, 0.0
    %5649 = vadd.xlane.f32.xlu0 %v5648
    %v5650 = vpop.xlane.xlu0 %5649
    %v5651 = vrcp.pop %v5650
    %v5652 = vmul.f32 %v5647, %v5651
    %5653 = vrot.lane.b32.xlu0 %v4383, 104
    %v5654 = vpop.permute.xlu0 %5653
    %v5657 = vsel %vm611, %v5652, 0
    %5659 = vmatprep.subr.mxu0 0.0
    %5660 = vmatpush1.msra.mxu0 0.0
    %5661 = vmatprep.subr.mxu0 0.0
    %5662 = vmatpush1.msra.mxu0 0.0
    %5663 = vmatprep.subr.mxu0 0.0
    %5664 = vmatpush1.msra.mxu0 0.0
    %5665 = vmatprep.subr.mxu0 0.0
    %5666 = vmatpush1.msra.mxu0 0.0
    %5667 = vmatprep.subr.mxu0 0.0
    %5668 = vmatpush1.msra.mxu0 0.0
    %5669 = vmatprep.subr.mxu0 0.0
    %5670 = vmatpush1.msra.mxu0 0.0
    %5671 = vmatprep.subr.mxu0 0.0
    %5672 = vmatpush1.msra.mxu0 0.0
    %5673 = vmatprep.subr.mxu0 0.0
    %5674 = vmatpush1.msra.mxu0 0.0
    %5675 = vmatprep.subr.mxu0 0.0
    %5676 = vmatpush1.msra.mxu0 0.0
    %5677 = vmatprep.subr.mxu0 0.0
    %5678 = vmatpush1.msra.mxu0 0.0
    %5679 = vmatprep.subr.mxu0 0.0
    %5680 = vmatpush1.msra.mxu0 0.0
    %5681 = vmatprep.subr.mxu0 0.0
    %5682 = vmatpush1.msra.mxu0 0.0
    %5683 = vmatprep.subr.mxu0 0.0
    %5684 = vmatpush1.msra.mxu0 0.0
    %5685 = vmatprep.subr.mxu0 0.0
    %5686 = vmatpush1.msra.mxu0 0.0
    %5687 = vmatprep.subr.mxu0 0.0
    %5688 = vmatpush1.msra.mxu0 0.0
    %5689 = vmatprep.subr.mxu0 0.0
    %5690 = vmatpush1.msra.mxu0 %v5654
    %5691 = vmatprep.subr.mxu0 0.0
    %5692 = vmatpush2.msra.mxu0 0.0
    %5693 = vmatprep.subr.mxu0 0.0
    %5694 = vmatpush2.msra.mxu0 0.0
    %5695 = vmatprep.subr.mxu0 0.0
    %5696 = vmatpush2.msra.mxu0 0.0
    %5697 = vmatprep.subr.mxu0 0.0
    %5698 = vmatpush2.msra.mxu0 0.0
    %5699 = vmatprep.subr.mxu0 0.0
    %5700 = vmatpush2.msra.mxu0 0.0
    %5701 = vmatprep.subr.mxu0 0.0
    %5702 = vmatpush2.msra.mxu0 0.0
    %5703 = vmatprep.subr.mxu0 0.0
    %5704 = vmatpush2.msra.mxu0 0.0
    %5705 = vmatprep.subr.mxu0 0.0
    %5706 = vmatpush2.msra.mxu0 0.0
    %5707 = vmatprep.subr.mxu0 0.0
    %5708 = vmatpush2.msra.mxu0 0.0
    %5709 = vmatprep.subr.mxu0 0.0
    %5710 = vmatpush2.msra.mxu0 0.0
    %5711 = vmatprep.subr.mxu0 0.0
    %5712 = vmatpush2.msra.mxu0 0.0
    %5713 = vmatprep.subr.mxu0 0.0
    %5714 = vmatpush2.msra.mxu0 0.0
    %5715 = vmatprep.subr.mxu0 0.0
    %5716 = vmatpush2.msra.mxu0 0.0
    %5717 = vmatprep.subr.mxu0 0.0
    %5718 = vmatpush2.msra.mxu0 0.0
    %5719 = vmatprep.subr.mxu0 0.0
    %5720 = vmatpush2.msra.mxu0 0.0
    %5721 = vmatprep.subr.mxu0 0.0
    %5722 = vmatpush2.msra.mxu0 0.0
    %5723 = vmatprep.mubr.f32.mxu0 0.0
    %5724 = vmatmul.mubr.f32.gmra.mxu0 %v5657
    %v5725 = vpop.f32.mrf.mxu0
    %v5726 = vadd.f32 0.0, %v5725
    %v5727 = vpop.f32.mrf.mxu0
    %5728 = vdwg.mxu0
    %5730 = vrot.lane.b32.xlu0 %v5392, 8
    %v5731 = vpop.permute.xlu0 %5730
    %5734 = vrot.lane.b32.xlu0 %v5559, 16
    %v5735 = vpop.permute.xlu0 %5734
    %5738 = vrot.lane.b32.xlu0 %v5726, 24
    %v5739 = vpop.permute.xlu0 %5738
    %v5741 = vsel %vm611, %v5224, %v5731
    %v5742 = vsel %vm1295, %v5741, %v5735
    %v5743 = vsel %vm1297, %v5742, %v5739
    %v5744 = vlaneseq
    %v5745 = vshrl.u32 %v5744, 7
    %v5746 = vsub.s32 6, %v5745
    %v5747 = vrot.slane %v125, %v5746
    %v5749 = vsel %vm327, %v5064, 0
    %v5752 = vsel %vm327, %v5743, 0
    %5754 = vmatprep.subr.mxu0 0.0
    %5755 = vmatpush1.msra.mxu0 0.0
    %5756 = vmatprep.subr.mxu0 0.0
    %5757 = vmatpush1.msra.mxu0 0.0
    %5758 = vmatprep.subr.mxu0 0.0
    %5759 = vmatpush1.msra.mxu0 0.0
    %5760 = vmatprep.subr.mxu0 0.0
    %5761 = vmatpush1.msra.mxu0 0.0
    %5762 = vmatprep.subr.mxu0 0.0
    %5763 = vmatpush1.msra.mxu0 0.0
    %5764 = vmatprep.subr.mxu0 0.0
    %5765 = vmatpush1.msra.mxu0 0.0
    %5766 = vmatprep.subr.mxu0 0.0
    %5767 = vmatpush1.msra.mxu0 0.0
    %5768 = vmatprep.subr.mxu0 0.0
    %5769 = vmatpush1.msra.mxu0 0.0
    %5770 = vmatprep.subr.mxu0 0.0
    %5771 = vmatpush1.msra.mxu0 0.0
    %5772 = vmatprep.subr.mxu0 0.0
    %5773 = vmatpush1.msra.mxu0 0.0
    %5774 = vmatprep.subr.mxu0 0.0
    %5775 = vmatpush1.msra.mxu0 0.0
    %5776 = vmatprep.subr.mxu0 0.0
    %5777 = vmatpush1.msra.mxu0 0.0
    %5778 = vmatprep.subr.mxu0 0.0
    %5779 = vmatpush1.msra.mxu0 %v118
    %5780 = vmatprep.subr.mxu0 0.0
    %5781 = vmatpush1.msra.mxu0 %v117
    %5782 = vmatprep.subr.mxu0 0.0
    %5783 = vmatpush1.msra.mxu0 %v116
    %5784 = vmatprep.subr.mxu0 0.0
    %5785 = vmatpush1.msra.mxu0 %v115
    %5786 = vmatprep.subr.mxu0 0.0
    %5787 = vmatpush2.msra.mxu0 0.0
    %5788 = vmatprep.subr.mxu0 0.0
    %5789 = vmatpush2.msra.mxu0 0.0
    %5790 = vmatprep.subr.mxu0 0.0
    %5791 = vmatpush2.msra.mxu0 0.0
    %5792 = vmatprep.subr.mxu0 0.0
    %5793 = vmatpush2.msra.mxu0 0.0
    %5794 = vmatprep.subr.mxu0 0.0
    %5795 = vmatpush2.msra.mxu0 0.0
    %5796 = vmatprep.subr.mxu0 0.0
    %5797 = vmatpush2.msra.mxu0 0.0
    %5798 = vmatprep.subr.mxu0 0.0
    %5799 = vmatpush2.msra.mxu0 0.0
    %5800 = vmatprep.subr.mxu0 0.0
    %5801 = vmatpush2.msra.mxu0 0.0
    %5802 = vmatprep.subr.mxu0 0.0
    %5803 = vmatpush2.msra.mxu0 0.0
    %5804 = vmatprep.subr.mxu0 0.0
    %5805 = vmatpush2.msra.mxu0 0.0
    %5806 = vmatprep.subr.mxu0 0.0
    %5807 = vmatpush2.msra.mxu0 0.0
    %5808 = vmatprep.subr.mxu0 0.0
    %5809 = vmatpush2.msra.mxu0 0.0
    %5810 = vmatprep.subr.mxu0 0.0
    %5811 = vmatpush2.msra.mxu0 0.0
    %5812 = vmatprep.subr.mxu0 0.0
    %5813 = vmatpush2.msra.mxu0 0.0
    %5814 = vmatprep.subr.mxu0 0.0
    %5815 = vmatpush2.msra.mxu0 0.0
    %5816 = vmatprep.subr.mxu0 0.0
    %5817 = vmatpush2.msra.mxu0 0.0
    %5818 = vmatprep.mubr.f32.mxu0 0.0
    %5819 = vmatmul.mubr.f32.gmra.mxu0 %v5749
    %v5820 = vpop.f32.mrf.mxu0
    %v5821 = vadd.f32 %v5747, %v5820
    %v5822 = vpop.f32.mrf.mxu0
    %5823 = vmatprep.mubr.f32.mxu0 0.0
    %5824 = vmatmul.mubr.f32.gmra.mxu0 %v5752
    %v5825 = vpop.f32.mrf.mxu0
    %v5826 = vadd.f32 %v5747, %v5825
    %v5827 = vpop.f32.mrf.mxu0
    %5828 = vdwg.mxu0
    %v5829 = vadd.f32 %v4135, %v5821
    %v5830 = vadd.f32 %v4136, %v5826
    %v5831 = vsel %vm327, %v5829, 0.0
    %5832 = vadd.xlane.f32.xlu0 %v5831
    %v5833 = vpop.xlane.xlu0 %5832
    %v5834 = vsel %vm327, %v5830, 0.0
    %5835 = vadd.xlane.f32.xlu0 %v5834
    %v5836 = vpop.xlane.xlu0 %5835
    %v5837 = vmul.f32 %v5833, %v334
    %v5838 = vmul.f32 %v5836, %v334
    %v5839 = vsub.f32 %v5829, %v5837
    %v5840 = vsub.f32 %v5830, %v5838
    %v5841 = vmul.f32 %v5839, %v5839
    %v5842 = vmul.f32 %v5840, %v5840
    %v5843 = vsel %vm327, %v5841, 0.0
    %5844 = vadd.xlane.f32.xlu0 %v5843
    %v5845 = vpop.xlane.xlu0 %5844
    %v5846 = vsel %vm327, %v5842, 0.0
    %5847 = vadd.xlane.f32.xlu0 %v5846
    %v5848 = vpop.xlane.xlu0 %5847
    %v5849 = vmul.f32 %v5845, %v334
    %v5850 = vmul.f32 %v5848, %v334
    %v5851 = vadd.f32 %v5849, 1e-05
    %v5852 = vadd.f32 %v5850, 1e-05
    %v5853 = vrsqrt.pop %v5851
    %v5854 = vrsqrt.pop %v5852
    %v5855 = vmul.f32 %v5839, %v5853
    %v5856 = vmul.f32 %v5840, %v5854
    %v5857 = vlaneseq
    %v5858 = vshrl.u32 %v5857, 7
    %v5859 = vsub.s32 7, %v5858
    %v5860 = vrot.slane %v125, %v5859
    %v5861 = vmul.f32 %v5855, %v5860
    %v5862 = vmul.f32 %v5856, %v5860
    %v5863 = vlaneseq
    %v5864 = vshrl.u32 %v5863, 7
    %v5865 = vsub.s32 0, %v5864
    %v5866 = vrot.slane %v126, %v5865
    %v5867 = vadd.f32 %v5861, %v5866
    %v5868 = vadd.f32 %v5862, %v5866
    %v5869 = vld [vmem:[%s8 + $0x20] sm:$0xff]
    %v5870 = vld [vmem:[%s8 + $0x28] sm:$0xff]
    %v5871 = vld [vmem:[%s8 + $0x30] sm:$0xff]
    %v5872 = vld [vmem:[%s8 + $0x38] sm:$0xff]
    %v5873 = vlaneseq
    %v5874 = vshrl.u32 %v5873, 7
    %v5875 = vsub.s32 1, %v5874
    %v5876 = vrot.slane %v127, %v5875
    %v5878 = vsel %vm327, %v5867, 0
    %v5881 = vsel %vm327, %v5868, 0
    %5883 = vmatprep.subr.mxu0 0.0
    %5884 = vmatpush1.msra.mxu0 0.0
    %5885 = vmatprep.subr.mxu0 0.0
    %5886 = vmatpush1.msra.mxu0 0.0
    %5887 = vmatprep.subr.mxu0 0.0
    %5888 = vmatpush1.msra.mxu0 0.0
    %5889 = vmatprep.subr.mxu0 0.0
    %5890 = vmatpush1.msra.mxu0 0.0
    %5891 = vmatprep.subr.mxu0 0.0
    %5892 = vmatpush1.msra.mxu0 0.0
    %5893 = vmatprep.subr.mxu0 0.0
    %5894 = vmatpush1.msra.mxu0 0.0
    %5895 = vmatprep.subr.mxu0 0.0
    %5896 = vmatpush1.msra.mxu0 0.0
    %5897 = vmatprep.subr.mxu0 0.0
    %5898 = vmatpush1.msra.mxu0 0.0
    %5899 = vmatprep.subr.mxu0 0.0
    %5900 = vmatpush1.msra.mxu0 0.0
    %5901 = vmatprep.subr.mxu0 0.0
    %5902 = vmatpush1.msra.mxu0 0.0
    %5903 = vmatprep.subr.mxu0 0.0
    %5904 = vmatpush1.msra.mxu0 0.0
    %5905 = vmatprep.subr.mxu0 0.0
    %5906 = vmatpush1.msra.mxu0 0.0
    %5907 = vmatprep.subr.mxu0 0.0
    %5908 = vmatpush1.msra.mxu0 %v5872
    %5909 = vmatprep.subr.mxu0 0.0
    %5910 = vmatpush1.msra.mxu0 %v5871
    %5911 = vmatprep.subr.mxu0 0.0
    %5912 = vmatpush1.msra.mxu0 %v5870
    %5913 = vmatprep.subr.mxu0 0.0
    %5914 = vmatpush1.msra.mxu0 %v5869
    %5915 = vmatprep.subr.mxu0 0.0
    %5916 = vmatpush2.msra.mxu0 0.0
    %5917 = vmatprep.subr.mxu0 0.0
    %5918 = vmatpush2.msra.mxu0 0.0
    %5919 = vmatprep.subr.mxu0 0.0
    %5920 = vmatpush2.msra.mxu0 0.0
    %5921 = vmatprep.subr.mxu0 0.0
    %5922 = vmatpush2.msra.mxu0 0.0
    %5923 = vmatprep.subr.mxu0 0.0
    %5924 = vmatpush2.msra.mxu0 0.0
    %5925 = vmatprep.subr.mxu0 0.0
    %5926 = vmatpush2.msra.mxu0 0.0
    %5927 = vmatprep.subr.mxu0 0.0
    %5928 = vmatpush2.msra.mxu0 0.0
    %5929 = vmatprep.subr.mxu0 0.0
    %5930 = vmatpush2.msra.mxu0 0.0
    %5931 = vmatprep.subr.mxu0 0.0
    %5932 = vmatpush2.msra.mxu0 0.0
    %5933 = vmatprep.subr.mxu0 0.0
    %5934 = vmatpush2.msra.mxu0 0.0
    %5935 = vmatprep.subr.mxu0 0.0
    %5936 = vmatpush2.msra.mxu0 0.0
    %5937 = vmatprep.subr.mxu0 0.0
    %5938 = vmatpush2.msra.mxu0 0.0
    %5939 = vmatprep.subr.mxu0 0.0
    %5940 = vmatpush2.msra.mxu0 0.0
    %5941 = vmatprep.subr.mxu0 0.0
    %5942 = vmatpush2.msra.mxu0 0.0
    %5943 = vmatprep.subr.mxu0 0.0
    %5944 = vmatpush2.msra.mxu0 0.0
    %5945 = vmatprep.subr.mxu0 0.0
    %5946 = vmatpush2.msra.mxu0 0.0
    %5947 = vmatprep.mubr.f32.mxu0 0.0
    %5948 = vmatmul.mubr.f32.gmra.mxu0 %v5878
    %v5949 = vpop.f32.mrf.mxu0
    %v5950 = vadd.f32 %v5876, %v5949
    %v5951 = vpop.f32.mrf.mxu0
    %5952 = vmatprep.mubr.f32.mxu0 0.0
    %5953 = vmatmul.mubr.f32.gmra.mxu0 %v5881
    %v5954 = vpop.f32.mrf.mxu0
    %v5955 = vadd.f32 %v5876, %v5954
    %v5956 = vpop.f32.mrf.mxu0
    %5957 = vdwg.mxu0
    %v5958 = vmul.f32 %v5950, %v5950
    %v5959 = vmul.f32 %v5955, %v5955
    %v5960 = vmul.f32 %v5950, %v5958
    %v5961 = vmul.f32 %v5955, %v5959
    %v5962 = vmul.f32 %v5960, 0.044715
    %v5963 = vmul.f32 %v5961, 0.044715
    %v5964 = vadd.f32 %v5950, %v5962
    %v5965 = vadd.f32 %v5955, %v5963
    %v5966 = vmul.f32 %v5964, 0.7978846
    %v5967 = vmul.f32 %v5965, 0.7978846
    %v5968 = vtanh.pop %v5966
    %v5969 = vtanh.pop %v5967
    %v5970 = vadd.f32 %v5968, 1.0
    %v5971 = vadd.f32 %v5969, 1.0
    %v5972 = vmul.f32 %v5970, 0.5
    %v5973 = vmul.f32 %v5971, 0.5
    %v5974 = vmul.f32 %v5950, %v5972
    %v5975 = vmul.f32 %v5955, %v5973
    %v5976 = vld [vmem:[%s9 + $0x40] sm:$0xff]
    %v5977 = vld [vmem:[%s9 + $0x48] sm:$0xff]
    %v5978 = vld [vmem:[%s9 + $0x50] sm:$0xff]
    %v5979 = vld [vmem:[%s9 + $0x58] sm:$0xff]
    %v5980 = vld [vmem:[%s9 + $0x60] sm:$0xff]
    %v5981 = vld [vmem:[%s9 + $0x68] sm:$0xff]
    %v5982 = vld [vmem:[%s9 + $0x70] sm:$0xff]
    %v5983 = vld [vmem:[%s9 + $0x78] sm:$0xff]
    %v5984 = vlaneseq
    %v5985 = vshrl.u32 %v5984, 7
    %v5986 = vsub.s32 1, %v5985
    %v5987 = vrot.slane %v126, %v5986
    %v5989 = vsel %vm2230, %v5974, 0
    %v5992 = vsel %vm2230, %v5975, 0
    %5994 = vmatprep.subr.mxu0 0.0
    %5995 = vmatpush1.msra.mxu0 0.0
    %5996 = vmatprep.subr.mxu0 0.0
    %5997 = vmatpush1.msra.mxu0 0.0
    %5998 = vmatprep.subr.mxu0 0.0
    %5999 = vmatpush1.msra.mxu0 0.0
    %6000 = vmatprep.subr.mxu0 0.0
    %6001 = vmatpush1.msra.mxu0 0.0
    %6002 = vmatprep.subr.mxu0 0.0
    %6003 = vmatpush1.msra.mxu0 0.0
    %6004 = vmatprep.subr.mxu0 0.0
    %6005 = vmatpush1.msra.mxu0 0.0
    %6006 = vmatprep.subr.mxu0 0.0
    %6007 = vmatpush1.msra.mxu0 0.0
    %6008 = vmatprep.subr.mxu0 0.0
    %6009 = vmatpush1.msra.mxu0 0.0
    %6010 = vmatprep.subr.mxu0 0.0
    %6011 = vmatpush1.msra.mxu0 %v5983
    %6012 = vmatprep.subr.mxu0 0.0
    %6013 = vmatpush1.msra.mxu0 %v5982
    %6014 = vmatprep.subr.mxu0 0.0
    %6015 = vmatpush1.msra.mxu0 %v5981
    %6016 = vmatprep.subr.mxu0 0.0
    %6017 = vmatpush1.msra.mxu0 %v5980
    %6018 = vmatprep.subr.mxu0 0.0
    %6019 = vmatpush1.msra.mxu0 %v5979
    %6020 = vmatprep.subr.mxu0 0.0
    %6021 = vmatpush1.msra.mxu0 %v5978
    %6022 = vmatprep.subr.mxu0 0.0
    %6023 = vmatpush1.msra.mxu0 %v5977
    %6024 = vmatprep.subr.mxu0 0.0
    %6025 = vmatpush1.msra.mxu0 %v5976
    %6026 = vmatprep.subr.mxu0 0.0
    %6027 = vmatpush2.msra.mxu0 0.0
    %6028 = vmatprep.subr.mxu0 0.0
    %6029 = vmatpush2.msra.mxu0 0.0
    %6030 = vmatprep.subr.mxu0 0.0
    %6031 = vmatpush2.msra.mxu0 0.0
    %6032 = vmatprep.subr.mxu0 0.0
    %6033 = vmatpush2.msra.mxu0 0.0
    %6034 = vmatprep.subr.mxu0 0.0
    %6035 = vmatpush2.msra.mxu0 0.0
    %6036 = vmatprep.subr.mxu0 0.0
    %6037 = vmatpush2.msra.mxu0 0.0
    %6038 = vmatprep.subr.mxu0 0.0
    %6039 = vmatpush2.msra.mxu0 0.0
    %6040 = vmatprep.subr.mxu0 0.0
    %6041 = vmatpush2.msra.mxu0 0.0
    %6042 = vmatprep.subr.mxu0 0.0
    %6043 = vmatpush2.msra.mxu0 0.0
    %6044 = vmatprep.subr.mxu0 0.0
    %6045 = vmatpush2.msra.mxu0 0.0
    %6046 = vmatprep.subr.mxu0 0.0
    %6047 = vmatpush2.msra.mxu0 0.0
    %6048 = vmatprep.subr.mxu0 0.0
    %6049 = vmatpush2.msra.mxu0 0.0
    %6050 = vmatprep.subr.mxu0 0.0
    %6051 = vmatpush2.msra.mxu0 0.0
    %6052 = vmatprep.subr.mxu0 0.0
    %6053 = vmatpush2.msra.mxu0 0.0
    %6054 = vmatprep.subr.mxu0 0.0
    %6055 = vmatpush2.msra.mxu0 0.0
    %6056 = vmatprep.subr.mxu0 0.0
    %6057 = vmatpush2.msra.mxu0 0.0
    %6058 = vmatprep.mubr.f32.mxu0 0.0
    %6059 = vmatmul.mubr.f32.gmra.mxu0 %v5989
    %v6060 = vpop.f32.mrf.mxu0
    %v6061 = vadd.f32 %v5987, %v6060
    %v6062 = vpop.f32.mrf.mxu0
    %6063 = vmatprep.mubr.f32.mxu0 0.0
    %6064 = vmatmul.mubr.f32.gmra.mxu0 %v5992
    %v6065 = vpop.f32.mrf.mxu0
    %v6066 = vadd.f32 %v5987, %v6065
    %v6067 = vpop.f32.mrf.mxu0
    %6068 = vdwg.mxu0
    %v6069 = vadd.f32 %v5867, %v6061
    %v6070 = vadd.f32 %v5868, %v6066
    %v6071 = vsel %vm327, %v6069, 0.0
    %6072 = vadd.xlane.f32.xlu0 %v6071
    %v6073 = vpop.xlane.xlu0 %6072
    %v6074 = vsel %vm327, %v6070, 0.0
    %6075 = vadd.xlane.f32.xlu0 %v6074
    %v6076 = vpop.xlane.xlu0 %6075
    %v6077 = vmul.f32 %v6073, %v334
    %v6078 = vmul.f32 %v6076, %v334
    %v6079 = vsub.f32 %v6069, %v6077
    %v6080 = vsub.f32 %v6070, %v6078
    %v6081 = vmul.f32 %v6079, %v6079
    %v6082 = vmul.f32 %v6080, %v6080
    %v6083 = vsel %vm327, %v6081, 0.0
    %6084 = vadd.xlane.f32.xlu0 %v6083
    %v6085 = vpop.xlane.xlu0 %6084
    %v6086 = vsel %vm327, %v6082, 0.0
    %6087 = vadd.xlane.f32.xlu0 %v6086
    %v6088 = vpop.xlane.xlu0 %6087
    %v6089 = vmul.f32 %v6085, %v334
    %v6090 = vmul.f32 %v6088, %v334
    %v6091 = vadd.f32 %v6089, 1e-05
    %v6092 = vadd.f32 %v6090, 1e-05
    %v6093 = vrsqrt.pop %v6091
    %v6094 = vrsqrt.pop %v6092
    %v6095 = vmul.f32 %v6079, %v6093
    %v6096 = vmul.f32 %v6080, %v6094
    %v6097 = vlaneseq
    %v6098 = vshrl.u32 %v6097, 7
    %v6099 = vsub.s32 2, %v6098
    %v6100 = vrot.slane %v126, %v6099
    %v6101 = vmul.f32 %v6095, %v6100
    %v6102 = vmul.f32 %v6096, %v6100
    %v6103 = vlaneseq
    %v6104 = vshrl.u32 %v6103, 7
    %v6105 = vsub.s32 3, %v6104
    %v6106 = vrot.slane %v126, %v6105
    %v6107 = vadd.f32 %v6101, %v6106
    %v6108 = vadd.f32 %v6102, %v6106
    %v6109 = vld [vmem:[%s10] sm:$0xff]
    %v6110 = vld [vmem:[%s10 + $0x8] sm:$0xff]
    %v6111 = vld [vmem:[%s10 + $0x10] sm:$0xff]
    %v6112 = vld [vmem:[%s10 + $0x18] sm:$0xff]
    %v6113 = vld [vmem:[%s10 + $0x20] sm:$0xff]
    %v6114 = vld [vmem:[%s10 + $0x28] sm:$0xff]
    %v6115 = vld [vmem:[%s10 + $0x30] sm:$0xff]
    %v6116 = vld [vmem:[%s10 + $0x38] sm:$0xff]
    %v6117 = vld [vmem:[%s10 + $0x40] sm:$0xff]
    %v6118 = vld [vmem:[%s10 + $0x48] sm:$0xff]
    %v6119 = vld [vmem:[%s10 + $0x50] sm:$0xff]
    %v6120 = vld [vmem:[%s10 + $0x58] sm:$0xff]
    %v6121 = vld [vmem:[%s10 + $0x60] sm:$0xff]
    %v6122 = vld [vmem:[%s10 + $0x68] sm:$0xff]
    %v6123 = vld [vmem:[%s10 + $0x70] sm:$0xff]
    %v6124 = vld [vmem:[%s10 + $0x78] sm:$0xff]
    %v6126 = vlaneseq
    %v6127 = vshrl.u32 %v6126, 7
    %v6128 = vsub.s32 0, %v6127
    %v6129 = vrot.slane %v128, %v6128
    %v6130 = vlaneseq
    %v6131 = vshrl.u32 %v6130, 7
    %v6132 = vsub.s32 2, %v6131
    %v6133 = vrot.slane %v128, %v6132
    %v6134 = vlaneseq
    %v6135 = vshrl.u32 %v6134, 7
    %v6136 = vsub.s32 4, %v6135
    %v6137 = vrot.slane %v128, %v6136
    %v6138 = vlaneseq
    %v6139 = vshrl.u32 %v6138, 7
    %v6140 = vsub.s32 6, %v6139
    %v6141 = vrot.slane %v128, %v6140
    %v6146 = vlaneseq
    %v6147 = vshrl.u32 %v6146, 7
    %v6148 = vsub.s32 0, %v6147
    %v6149 = vrot.slane %v6129, %v6148
    %v6150 = vlaneseq
    %v6151 = vshrl.u32 %v6150, 7
    %v6152 = vsub.s32 0, %v6151
    %v6153 = vrot.slane %v6133, %v6152
    %v6154 = vlaneseq
    %v6155 = vshrl.u32 %v6154, 7
    %v6156 = vsub.s32 0, %v6155
    %v6157 = vrot.slane %v6137, %v6156
    %v6158 = vlaneseq
    %v6159 = vshrl.u32 %v6158, 7
    %v6160 = vsub.s32 0, %v6159
    %v6161 = vrot.slane %v6141, %v6160
    %v6163 = vsel %vm327, %v6107, 0
    %v6166 = vsel %vm327, %v6108, 0
    %6168 = vmatprep.subr.mxu0 0.0
    %6169 = vmatpush1.msra.mxu0 0.0
    %6170 = vmatprep.subr.mxu0 0.0
    %6171 = vmatpush1.msra.mxu0 0.0
    %6172 = vmatprep.subr.mxu0 0.0
    %6173 = vmatpush1.msra.mxu0 0.0
    %6174 = vmatprep.subr.mxu0 0.0
    %6175 = vmatpush1.msra.mxu0 0.0
    %6176 = vmatprep.subr.mxu0 0.0
    %6177 = vmatpush1.msra.mxu0 0.0
    %6178 = vmatprep.subr.mxu0 0.0
    %6179 = vmatpush1.msra.mxu0 0.0
    %6180 = vmatprep.subr.mxu0 0.0
    %6181 = vmatpush1.msra.mxu0 0.0
    %6182 = vmatprep.subr.mxu0 0.0
    %6183 = vmatpush1.msra.mxu0 0.0
    %6184 = vmatprep.subr.mxu0 0.0
    %6185 = vmatpush1.msra.mxu0 0.0
    %6186 = vmatprep.subr.mxu0 0.0
    %6187 = vmatpush1.msra.mxu0 0.0
    %6188 = vmatprep.subr.mxu0 0.0
    %6189 = vmatpush1.msra.mxu0 0.0
    %6190 = vmatprep.subr.mxu0 0.0
    %6191 = vmatpush1.msra.mxu0 0.0
    %6192 = vmatprep.subr.mxu0 %v6122
    %6193 = vmatpush1.msra.mxu0 %v6121
    %6194 = vmatprep.subr.mxu0 %v6118
    %6195 = vmatpush1.msra.mxu0 %v6117
    %6196 = vmatprep.subr.mxu0 %v6114
    %6197 = vmatpush1.msra.mxu0 %v6113
    %6198 = vmatprep.subr.mxu0 %v6110
    %6199 = vmatpush1.msra.mxu0 %v6109
    %6200 = vmatprep.subr.mxu0 0.0
    %6201 = vmatpush2.msra.mxu0 0.0
    %6202 = vmatprep.subr.mxu0 0.0
    %6203 = vmatpush2.msra.mxu0 0.0
    %6204 = vmatprep.subr.mxu0 0.0
    %6205 = vmatpush2.msra.mxu0 0.0
    %6206 = vmatprep.subr.mxu0 0.0
    %6207 = vmatpush2.msra.mxu0 0.0
    %6208 = vmatprep.subr.mxu0 0.0
    %6209 = vmatpush2.msra.mxu0 0.0
    %6210 = vmatprep.subr.mxu0 0.0
    %6211 = vmatpush2.msra.mxu0 0.0
    %6212 = vmatprep.subr.mxu0 0.0
    %6213 = vmatpush2.msra.mxu0 0.0
    %6214 = vmatprep.subr.mxu0 0.0
    %6215 = vmatpush2.msra.mxu0 0.0
    %6216 = vmatprep.subr.mxu0 0.0
    %6217 = vmatpush2.msra.mxu0 0.0
    %6218 = vmatprep.subr.mxu0 0.0
    %6219 = vmatpush2.msra.mxu0 0.0
    %6220 = vmatprep.subr.mxu0 0.0
    %6221 = vmatpush2.msra.mxu0 0.0
    %6222 = vmatprep.subr.mxu0 0.0
    %6223 = vmatpush2.msra.mxu0 0.0
    %6224 = vmatprep.subr.mxu0 0.0
    %6225 = vmatpush2.msra.mxu0 0.0
    %6226 = vmatprep.subr.mxu0 0.0
    %6227 = vmatpush2.msra.mxu0 0.0
    %6228 = vmatprep.subr.mxu0 0.0
    %6229 = vmatpush2.msra.mxu0 0.0
    %6230 = vmatprep.subr.mxu0 0.0
    %6231 = vmatpush2.msra.mxu0 0.0
    %6232 = vmatprep.mubr.f32.mxu0 0.0
    %6233 = vmatmul.mubr.f32.gmra.mxu0 %v6163
    %v6234 = vpop.f32.mrf.mxu0
    %v6235 = vadd.f32 %v6149, %v6234
    %v6236 = vpop.f32.mrf.mxu0
    %v6237 = vadd.f32 %v6153, %v6236
    %6238 = vmatprep.mubr.f32.mxu0 0.0
    %6239 = vmatmul.mubr.f32.gmra.mxu0 %v6166
    %v6240 = vpop.f32.mrf.mxu0
    %v6241 = vadd.f32 %v6149, %v6240
    %v6242 = vpop.f32.mrf.mxu0
    %v6243 = vadd.f32 %v6153, %v6242
    %6244 = vdwg.mxu0
    %6245 = vmatprep.subr.mxu0 0.0
    %6246 = vmatpush1.msra.mxu0 0.0
    %6247 = vmatprep.subr.mxu0 0.0
    %6248 = vmatpush1.msra.mxu0 0.0
    %6249 = vmatprep.subr.mxu0 0.0
    %6250 = vmatpush1.msra.mxu0 0.0
    %6251 = vmatprep.subr.mxu0 0.0
    %6252 = vmatpush1.msra.mxu0 0.0
    %6253 = vmatprep.subr.mxu0 0.0
    %6254 = vmatpush1.msra.mxu0 0.0
    %6255 = vmatprep.subr.mxu0 0.0
    %6256 = vmatpush1.msra.mxu0 0.0
    %6257 = vmatprep.subr.mxu0 0.0
    %6258 = vmatpush1.msra.mxu0 0.0
    %6259 = vmatprep.subr.mxu0 0.0
    %6260 = vmatpush1.msra.mxu0 0.0
    %6261 = vmatprep.subr.mxu0 0.0
    %6262 = vmatpush1.msra.mxu0 0.0
    %6263 = vmatprep.subr.mxu0 0.0
    %6264 = vmatpush1.msra.mxu0 0.0
    %6265 = vmatprep.subr.mxu0 0.0
    %6266 = vmatpush1.msra.mxu0 0.0
    %6267 = vmatprep.subr.mxu0 0.0
    %6268 = vmatpush1.msra.mxu0 0.0
    %6269 = vmatprep.subr.mxu0 %v6124
    %6270 = vmatpush1.msra.mxu0 %v6123
    %6271 = vmatprep.subr.mxu0 %v6120
    %6272 = vmatpush1.msra.mxu0 %v6119
    %6273 = vmatprep.subr.mxu0 %v6116
    %6274 = vmatpush1.msra.mxu0 %v6115
    %6275 = vmatprep.subr.mxu0 %v6112
    %6276 = vmatpush1.msra.mxu0 %v6111
    %6277 = vmatprep.subr.mxu0 0.0
    %6278 = vmatpush2.msra.mxu0 0.0
    %6279 = vmatprep.subr.mxu0 0.0
    %6280 = vmatpush2.msra.mxu0 0.0
    %6281 = vmatprep.subr.mxu0 0.0
    %6282 = vmatpush2.msra.mxu0 0.0
    %6283 = vmatprep.subr.mxu0 0.0
    %6284 = vmatpush2.msra.mxu0 0.0
    %6285 = vmatprep.subr.mxu0 0.0
    %6286 = vmatpush2.msra.mxu0 0.0
    %6287 = vmatprep.subr.mxu0 0.0
    %6288 = vmatpush2.msra.mxu0 0.0
    %6289 = vmatprep.subr.mxu0 0.0
    %6290 = vmatpush2.msra.mxu0 0.0
    %6291 = vmatprep.subr.mxu0 0.0
    %6292 = vmatpush2.msra.mxu0 0.0
    %6293 = vmatprep.subr.mxu0 0.0
    %6294 = vmatpush2.msra.mxu0 0.0
    %6295 = vmatprep.subr.mxu0 0.0
    %6296 = vmatpush2.msra.mxu0 0.0
    %6297 = vmatprep.subr.mxu0 0.0
    %6298 = vmatpush2.msra.mxu0 0.0
    %6299 = vmatprep.subr.mxu0 0.0
    %6300 = vmatpush2.msra.mxu0 0.0
    %6301 = vmatprep.subr.mxu0 0.0
    %6302 = vmatpush2.msra.mxu0 0.0
    %6303 = vmatprep.subr.mxu0 0.0
    %6304 = vmatpush2.msra.mxu0 0.0
    %6305 = vmatprep.subr.mxu0 0.0
    %6306 = vmatpush2.msra.mxu0 0.0
    %6307 = vmatprep.subr.mxu0 0.0
    %6308 = vmatpush2.msra.mxu0 0.0
    %6309 = vmatprep.mubr.f32.mxu0 0.0
    %6310 = vmatmul.mubr.f32.gmra.mxu0 %v6163
    %v6311 = vpop.f32.mrf.mxu0
    %v6312 = vadd.f32 %v6157, %v6311
    %v6313 = vpop.f32.mrf.mxu0
    %v6314 = vadd.f32 %v6161, %v6313
    %6315 = vmatprep.mubr.f32.mxu0 0.0
    %6316 = vmatmul.mubr.f32.gmra.mxu0 %v6166
    %v6317 = vpop.f32.mrf.mxu0
    %v6318 = vadd.f32 %v6157, %v6317
    %v6319 = vpop.f32.mrf.mxu0
    %v6320 = vadd.f32 %v6161, %v6319
    %6321 = vdwg.mxu0
    %v6322 = vmax.f32 %v6235, 0.0
    %v6323 = vmax.f32 %v6237, 0.0
    %v6324 = vmax.f32 %v6312, 0.0
    %v6325 = vmax.f32 %v6314, 0.0
    %v6326 = vmax.f32 %v6241, 0.0
    %v6327 = vmax.f32 %v6243, 0.0
    %v6328 = vmax.f32 %v6318, 0.0
    %v6329 = vmax.f32 %v6320, 0.0
    %v6330 = vld [vmem:[#allocation2] sm:$0xff]
    %v6331 = vld [vmem:[#allocation2 + $0x8] sm:$0xff]
    %v6332 = vld [vmem:[#allocation2 + $0x10] sm:$0xff]
    %v6333 = vld [vmem:[#allocation2 + $0x18] sm:$0xff]
    %v6334 = vld [vmem:[#allocation2 + $0x20] sm:$0xff]
    %v6335 = vld [vmem:[#allocation2 + $0x28] sm:$0xff]
    %v6336 = vld [vmem:[#allocation2 + $0x30] sm:$0xff]
    %v6337 = vld [vmem:[#allocation2 + $0x38] sm:$0xff]
    %v6338 = vld [vmem:[#allocation2 + $0x40] sm:$0xff]
    %v6339 = vld [vmem:[#allocation2 + $0x48] sm:$0xff]
    %v6340 = vld [vmem:[#allocation2 + $0x50] sm:$0xff]
    %v6341 = vld [vmem:[#allocation2 + $0x58] sm:$0xff]
    %v6342 = vld [vmem:[#allocation2 + $0x60] sm:$0xff]
    %v6343 = vld [vmem:[#allocation2 + $0x68] sm:$0xff]
    %v6344 = vld [vmem:[#allocation2 + $0x70] sm:$0xff]
    %v6345 = vld [vmem:[#allocation2 + $0x78] sm:$0xff]
    %v6346 = vld [vmem:[#allocation2 + $0x80] sm:$0xff]
    %v6347 = vld [vmem:[#allocation2 + $0x88] sm:$0xff]
    %v6348 = vld [vmem:[#allocation2 + $0x90] sm:$0xff]
    %v6349 = vld [vmem:[#allocation2 + $0x98] sm:$0xff]
    %v6350 = vld [vmem:[#allocation2 + $0xa0] sm:$0xff]
    %v6351 = vld [vmem:[#allocation2 + $0xa8] sm:$0xff]
    %v6352 = vld [vmem:[#allocation2 + $0xb0] sm:$0xff]
    %v6353 = vld [vmem:[#allocation2 + $0xb8] sm:$0xff]
    %v6354 = vld [vmem:[#allocation2 + $0xc0] sm:$0xff]
    %v6355 = vld [vmem:[#allocation2 + $0xc8] sm:$0xff]
    %v6356 = vld [vmem:[#allocation2 + $0xd0] sm:$0xff]
    %v6357 = vld [vmem:[#allocation2 + $0xd8] sm:$0xff]
    %v6358 = vld [vmem:[#allocation2 + $0xe0] sm:$0xff]
    %v6359 = vld [vmem:[#allocation2 + $0xe8] sm:$0xff]
    %v6360 = vld [vmem:[#allocation2 + $0xf0] sm:$0xff]
    %v6361 = vld [vmem:[#allocation2 + $0xf8] sm:$0xff]
    %v6362 = vld [vmem:[#allocation2 + $0x100] sm:$0xff]
    %v6363 = vld [vmem:[#allocation2 + $0x108] sm:$0xff]
    %v6364 = vld [vmem:[#allocation2 + $0x110] sm:$0xff]
    %v6365 = vld [vmem:[#allocation2 + $0x118] sm:$0xff]
    %v6366 = vld [vmem:[#allocation2 + $0x120] sm:$0xff]
    %v6367 = vld [vmem:[#allocation2 + $0x128] sm:$0xff]
    %v6368 = vld [vmem:[#allocation2 + $0x130] sm:$0xff]
    %v6369 = vld [vmem:[#allocation2 + $0x138] sm:$0xff]
    %v6370 = vld [vmem:[#allocation2 + $0x140] sm:$0xff]
    %v6371 = vld [vmem:[#allocation2 + $0x148] sm:$0xff]
    %v6372 = vld [vmem:[#allocation2 + $0x150] sm:$0xff]
    %v6373 = vld [vmem:[#allocation2 + $0x158] sm:$0xff]
    %v6374 = vld [vmem:[#allocation2 + $0x160] sm:$0xff]
    %v6375 = vld [vmem:[#allocation2 + $0x168] sm:$0xff]
    %v6376 = vld [vmem:[#allocation2 + $0x170] sm:$0xff]
    %v6377 = vld [vmem:[#allocation2 + $0x178] sm:$0xff]
    %v6378 = vld [vmem:[#allocation2 + $0x180] sm:$0xff]
    %v6379 = vld [vmem:[#allocation2 + $0x188] sm:$0xff]
    %v6380 = vld [vmem:[#allocation2 + $0x190] sm:$0xff]
    %v6381 = vld [vmem:[#allocation2 + $0x198] sm:$0xff]
    %v6382 = vld [vmem:[#allocation2 + $0x1a0] sm:$0xff]
    %v6383 = vld [vmem:[#allocation2 + $0x1a8] sm:$0xff]
    %v6384 = vld [vmem:[#allocation2 + $0x1b0] sm:$0xff]
    %v6385 = vld [vmem:[#allocation2 + $0x1b8] sm:$0xff]
    %v6386 = vld [vmem:[#allocation2 + $0x1c0] sm:$0xff]
    %v6387 = vld [vmem:[#allocation2 + $0x1c8] sm:$0xff]
    %v6388 = vld [vmem:[#allocation2 + $0x1d0] sm:$0xff]
    %v6389 = vld [vmem:[#allocation2 + $0x1d8] sm:$0xff]
    %v6390 = vld [vmem:[#allocation2 + $0x1e0] sm:$0xff]
    %v6391 = vld [vmem:[#allocation2 + $0x1e8] sm:$0xff]
    %v6392 = vld [vmem:[#allocation2 + $0x1f0] sm:$0xff]
    %v6393 = vld [vmem:[#allocation2 + $0x1f8] sm:$0xff]
    %v6394 = vld [vmem:[#allocation2 + $0x200] sm:$0xff]
    %v6395 = vld [vmem:[#allocation2 + $0x208] sm:$0xff]
    %v6396 = vld [vmem:[#allocation2 + $0x210] sm:$0xff]
    %v6397 = vld [vmem:[#allocation2 + $0x218] sm:$0xff]
    %v6398 = vld [vmem:[#allocation2 + $0x220] sm:$0xff]
    %v6399 = vld [vmem:[#allocation2 + $0x228] sm:$0xff]
    %v6400 = vld [vmem:[#allocation2 + $0x230] sm:$0xff]
    %v6401 = vld [vmem:[#allocation2 + $0x238] sm:$0xff]
    %v6402 = vld [vmem:[#allocation2 + $0x240] sm:$0xff]
    %v6403 = vld [vmem:[#allocation2 + $0x248] sm:$0xff]
    %v6404 = vld [vmem:[#allocation2 + $0x250] sm:$0xff]
    %v6405 = vld [vmem:[#allocation2 + $0x258] sm:$0xff]
    %v6406 = vld [vmem:[#allocation2 + $0x260] sm:$0xff]
    %v6407 = vld [vmem:[#allocation2 + $0x268] sm:$0xff]
    %v6408 = vld [vmem:[#allocation2 + $0x270] sm:$0xff]
    %v6409 = vld [vmem:[#allocation2 + $0x278] sm:$0xff]
    %v6410 = vld [vmem:[#allocation2 + $0x280] sm:$0xff]
    %v6411 = vld [vmem:[#allocation2 + $0x288] sm:$0xff]
    %v6412 = vld [vmem:[#allocation2 + $0x290] sm:$0xff]
    %v6413 = vld [vmem:[#allocation2 + $0x298] sm:$0xff]
    %v6414 = vld [vmem:[#allocation2 + $0x2a0] sm:$0xff]
    %v6415 = vld [vmem:[#allocation2 + $0x2a8] sm:$0xff]
    %v6416 = vld [vmem:[#allocation2 + $0x2b0] sm:$0xff]
    %v6417 = vld [vmem:[#allocation2 + $0x2b8] sm:$0xff]
    %v6418 = vld [vmem:[#allocation2 + $0x2c0] sm:$0xff]
    %v6419 = vld [vmem:[#allocation2 + $0x2c8] sm:$0xff]
    %v6420 = vld [vmem:[#allocation2 + $0x2d0] sm:$0xff]
    %v6421 = vld [vmem:[#allocation2 + $0x2d8] sm:$0xff]
    %v6422 = vld [vmem:[#allocation2 + $0x2e0] sm:$0xff]
    %v6423 = vld [vmem:[#allocation2 + $0x2e8] sm:$0xff]
    %v6424 = vld [vmem:[#allocation2 + $0x2f0] sm:$0xff]
    %v6425 = vld [vmem:[#allocation2 + $0x2f8] sm:$0xff]
    %v6426 = vld [vmem:[#allocation2 + $0x300] sm:$0xff]
    %v6427 = vld [vmem:[#allocation2 + $0x308] sm:$0xff]
    %v6428 = vld [vmem:[#allocation2 + $0x310] sm:$0xff]
    %v6429 = vld [vmem:[#allocation2 + $0x318] sm:$0xff]
    %v6430 = vld [vmem:[#allocation2 + $0x320] sm:$0xff]
    %v6431 = vld [vmem:[#allocation2 + $0x328] sm:$0xff]
    %v6432 = vld [vmem:[#allocation2 + $0x330] sm:$0xff]
    %v6433 = vld [vmem:[#allocation2 + $0x338] sm:$0xff]
    %v6434 = vld [vmem:[#allocation2 + $0x340] sm:$0xff]
    %v6435 = vld [vmem:[#allocation2 + $0x348] sm:$0xff]
    %v6436 = vld [vmem:[#allocation2 + $0x350] sm:$0xff]
    %v6437 = vld [vmem:[#allocation2 + $0x358] sm:$0xff]
    %v6438 = vld [vmem:[#allocation2 + $0x360] sm:$0xff]
    %v6439 = vld [vmem:[#allocation2 + $0x368] sm:$0xff]
    %v6440 = vld [vmem:[#allocation2 + $0x370] sm:$0xff]
    %v6441 = vld [vmem:[#allocation2 + $0x378] sm:$0xff]
    %v6442 = vld [vmem:[#allocation2 + $0x380] sm:$0xff]
    %v6443 = vld [vmem:[#allocation2 + $0x388] sm:$0xff]
    %v6444 = vld [vmem:[#allocation2 + $0x390] sm:$0xff]
    %v6445 = vld [vmem:[#allocation2 + $0x398] sm:$0xff]
    %v6446 = vld [vmem:[#allocation2 + $0x3a0] sm:$0xff]
    %v6447 = vld [vmem:[#allocation2 + $0x3a8] sm:$0xff]
    %v6448 = vld [vmem:[#allocation2 + $0x3b0] sm:$0xff]
    %v6449 = vld [vmem:[#allocation2 + $0x3b8] sm:$0xff]
    %v6450 = vld [vmem:[#allocation2 + $0x3c0] sm:$0xff]
    %v6451 = vld [vmem:[#allocation2 + $0x3c8] sm:$0xff]
    %v6452 = vld [vmem:[#allocation2 + $0x3d0] sm:$0xff]
    %v6453 = vld [vmem:[#allocation2 + $0x3d8] sm:$0xff]
    %v6454 = vld [vmem:[#allocation2 + $0x3e0] sm:$0xff]
    %v6455 = vld [vmem:[#allocation2 + $0x3e8] sm:$0xff]
    %v6456 = vld [vmem:[#allocation2 + $0x3f0] sm:$0xff]
    %v6457 = vld [vmem:[#allocation2 + $0x3f8] sm:$0xff]
    %v6458 = vld [vmem:[#allocation2 + $0x400] sm:$0xff]
    %v6459 = vld [vmem:[#allocation2 + $0x408] sm:$0xff]
    %v6460 = vld [vmem:[#allocation2 + $0x410] sm:$0xff]
    %v6461 = vld [vmem:[#allocation2 + $0x418] sm:$0xff]
    %v6462 = vld [vmem:[#allocation2 + $0x420] sm:$0xff]
    %v6463 = vld [vmem:[#allocation2 + $0x428] sm:$0xff]
    %v6464 = vld [vmem:[#allocation2 + $0x430] sm:$0xff]
    %v6465 = vld [vmem:[#allocation2 + $0x438] sm:$0xff]
    %v6466 = vld [vmem:[#allocation2 + $0x440] sm:$0xff]
    %v6467 = vld [vmem:[#allocation2 + $0x448] sm:$0xff]
    %v6468 = vld [vmem:[#allocation2 + $0x450] sm:$0xff]
    %v6469 = vld [vmem:[#allocation2 + $0x458] sm:$0xff]
    %v6470 = vld [vmem:[#allocation2 + $0x460] sm:$0xff]
    %v6471 = vld [vmem:[#allocation2 + $0x468] sm:$0xff]
    %v6472 = vld [vmem:[#allocation2 + $0x470] sm:$0xff]
    %v6473 = vld [vmem:[#allocation2 + $0x478] sm:$0xff]
    %v6474 = vld [vmem:[#allocation2 + $0x480] sm:$0xff]
    %v6475 = vld [vmem:[#allocation2 + $0x488] sm:$0xff]
    %v6476 = vld [vmem:[#allocation2 + $0x490] sm:$0xff]
    %v6477 = vld [vmem:[#allocation2 + $0x498] sm:$0xff]
    %v6478 = vld [vmem:[#allocation2 + $0x4a0] sm:$0xff]
    %v6479 = vld [vmem:[#allocation2 + $0x4a8] sm:$0xff]
    %v6480 = vld [vmem:[#allocation2 + $0x4b0] sm:$0xff]
    %v6481 = vld [vmem:[#allocation2 + $0x4b8] sm:$0xff]
    %v6482 = vld [vmem:[#allocation2 + $0x4c0] sm:$0xff]
    %v6483 = vld [vmem:[#allocation2 + $0x4c8] sm:$0xff]
    %v6484 = vld [vmem:[#allocation2 + $0x4d0] sm:$0xff]
    %v6485 = vld [vmem:[#allocation2 + $0x4d8] sm:$0xff]
    %v6486 = vld [vmem:[#allocation2 + $0x4e0] sm:$0xff]
    %v6487 = vld [vmem:[#allocation2 + $0x4e8] sm:$0xff]
    %v6488 = vld [vmem:[#allocation2 + $0x4f0] sm:$0xff]
    %v6489 = vld [vmem:[#allocation2 + $0x4f8] sm:$0xff]
    %v6490 = vld [vmem:[#allocation2 + $0x500] sm:$0xff]
    %v6491 = vld [vmem:[#allocation2 + $0x508] sm:$0xff]
    %v6492 = vld [vmem:[#allocation2 + $0x510] sm:$0xff]
    %v6493 = vld [vmem:[#allocation2 + $0x518] sm:$0xff]
    %v6494 = vld [vmem:[#allocation2 + $0x520] sm:$0xff]
    %v6495 = vld [vmem:[#allocation2 + $0x528] sm:$0xff]
    %v6496 = vld [vmem:[#allocation2 + $0x530] sm:$0xff]
    %v6497 = vld [vmem:[#allocation2 + $0x538] sm:$0xff]
    %v6498 = vld [vmem:[#allocation2 + $0x540] sm:$0xff]
    %v6499 = vld [vmem:[#allocation2 + $0x548] sm:$0xff]
    %v6500 = vld [vmem:[#allocation2 + $0x550] sm:$0xff]
    %v6501 = vld [vmem:[#allocation2 + $0x558] sm:$0xff]
    %v6502 = vld [vmem:[#allocation2 + $0x560] sm:$0xff]
    %v6503 = vld [vmem:[#allocation2 + $0x568] sm:$0xff]
    %v6504 = vld [vmem:[#allocation2 + $0x570] sm:$0xff]
    %v6505 = vld [vmem:[#allocation2 + $0x578] sm:$0xff]
    %v6506 = vld [vmem:[#allocation2 + $0x580] sm:$0xff]
    %v6507 = vld [vmem:[#allocation2 + $0x588] sm:$0xff]
    %v6508 = vld [vmem:[#allocation2 + $0x590] sm:$0xff]
    %v6509 = vld [vmem:[#allocation2 + $0x598] sm:$0xff]
    %v6510 = vld [vmem:[#allocation2 + $0x5a0] sm:$0xff]
    %v6511 = vld [vmem:[#allocation2 + $0x5a8] sm:$0xff]
    %v6512 = vld [vmem:[#allocation2 + $0x5b0] sm:$0xff]
    %v6513 = vld [vmem:[#allocation2 + $0x5b8] sm:$0xff]
    %v6514 = vld [vmem:[#allocation2 + $0x5c0] sm:$0xff]
    %v6515 = vld [vmem:[#allocation2 + $0x5c8] sm:$0xff]
    %v6516 = vld [vmem:[#allocation2 + $0x5d0] sm:$0xff]
    %v6517 = vld [vmem:[#allocation2 + $0x5d8] sm:$0xff]
    %v6518 = vld [vmem:[#allocation2 + $0x5e0] sm:$0xff]
    %v6519 = vld [vmem:[#allocation2 + $0x5e8] sm:$0xff]
    %v6520 = vld [vmem:[#allocation2 + $0x5f0] sm:$0xff]
    %v6521 = vld [vmem:[#allocation2 + $0x5f8] sm:$0xff]
    %v6522 = vld [vmem:[#allocation2 + $0x600] sm:$0xff]
    %v6523 = vld [vmem:[#allocation2 + $0x608] sm:$0xff]
    %v6524 = vld [vmem:[#allocation2 + $0x610] sm:$0xff]
    %v6525 = vld [vmem:[#allocation2 + $0x618] sm:$0xff]
    %v6526 = vld [vmem:[#allocation2 + $0x620] sm:$0xff]
    %v6527 = vld [vmem:[#allocation2 + $0x628] sm:$0xff]
    %v6528 = vld [vmem:[#allocation2 + $0x630] sm:$0xff]
    %v6529 = vld [vmem:[#allocation2 + $0x638] sm:$0xff]
    %v6530 = vld [vmem:[#allocation2 + $0x640] sm:$0xff]
    %v6531 = vld [vmem:[#allocation2 + $0x648] sm:$0xff]
    %v6532 = vld [vmem:[#allocation2 + $0x650] sm:$0xff]
    %v6533 = vld [vmem:[#allocation2 + $0x658] sm:$0xff]
    %v6534 = vld [vmem:[#allocation2 + $0x660] sm:$0xff]
    %v6535 = vld [vmem:[#allocation2 + $0x668] sm:$0xff]
    %v6536 = vld [vmem:[#allocation2 + $0x670] sm:$0xff]
    %v6537 = vld [vmem:[#allocation2 + $0x678] sm:$0xff]
    %v6538 = vld [vmem:[#allocation2 + $0x680] sm:$0xff]
    %v6539 = vld [vmem:[#allocation2 + $0x688] sm:$0xff]
    %v6540 = vld [vmem:[#allocation2 + $0x690] sm:$0xff]
    %v6541 = vld [vmem:[#allocation2 + $0x698] sm:$0xff]
    %v6542 = vld [vmem:[#allocation2 + $0x6a0] sm:$0xff]
    %v6543 = vld [vmem:[#allocation2 + $0x6a8] sm:$0xff]
    %v6544 = vld [vmem:[#allocation2 + $0x6b0] sm:$0xff]
    %v6545 = vld [vmem:[#allocation2 + $0x6b8] sm:$0xff]
    %v6546 = vld [vmem:[#allocation2 + $0x6c0] sm:$0xff]
    %v6547 = vld [vmem:[#allocation2 + $0x6c8] sm:$0xff]
    %v6548 = vld [vmem:[#allocation2 + $0x6d0] sm:$0xff]
    %v6549 = vld [vmem:[#allocation2 + $0x6d8] sm:$0xff]
    %v6550 = vld [vmem:[#allocation2 + $0x6e0] sm:$0xff]
    %v6551 = vld [vmem:[#allocation2 + $0x6e8] sm:$0xff]
    %v6552 = vld [vmem:[#allocation2 + $0x6f0] sm:$0xff]
    %v6553 = vld [vmem:[#allocation2 + $0x6f8] sm:$0xff]
    %v6554 = vld [vmem:[#allocation2 + $0x700] sm:$0xff]
    %v6555 = vld [vmem:[#allocation2 + $0x708] sm:$0xff]
    %v6556 = vld [vmem:[#allocation2 + $0x710] sm:$0xff]
    %v6557 = vld [vmem:[#allocation2 + $0x718] sm:$0xff]
    %v6558 = vld [vmem:[#allocation2 + $0x720] sm:$0xff]
    %v6559 = vld [vmem:[#allocation2 + $0x728] sm:$0xff]
    %v6560 = vld [vmem:[#allocation2 + $0x730] sm:$0xff]
    %v6561 = vld [vmem:[#allocation2 + $0x738] sm:$0xff]
    %v6562 = vld [vmem:[#allocation2 + $0x740] sm:$0xff]
    %v6563 = vld [vmem:[#allocation2 + $0x748] sm:$0xff]
    %v6564 = vld [vmem:[#allocation2 + $0x750] sm:$0xff]
    %v6565 = vld [vmem:[#allocation2 + $0x758] sm:$0xff]
    %v6566 = vld [vmem:[#allocation2 + $0x760] sm:$0xff]
    %v6567 = vld [vmem:[#allocation2 + $0x768] sm:$0xff]
    %v6568 = vld [vmem:[#allocation2 + $0x770] sm:$0xff]
    %v6569 = vld [vmem:[#allocation2 + $0x778] sm:$0xff]
    %v6570 = vld [vmem:[#allocation2 + $0x780] sm:$0xff]
    %v6571 = vld [vmem:[#allocation2 + $0x788] sm:$0xff]
    %v6572 = vld [vmem:[#allocation2 + $0x790] sm:$0xff]
    %v6573 = vld [vmem:[#allocation2 + $0x798] sm:$0xff]
    %v6574 = vld [vmem:[#allocation2 + $0x7a0] sm:$0xff]
    %v6575 = vld [vmem:[#allocation2 + $0x7a8] sm:$0xff]
    %v6576 = vld [vmem:[#allocation2 + $0x7b0] sm:$0xff]
    %v6577 = vld [vmem:[#allocation2 + $0x7b8] sm:$0xff]
    %v6578 = vld [vmem:[#allocation2 + $0x7c0] sm:$0xff]
    %v6579 = vld [vmem:[#allocation2 + $0x7c8] sm:$0xff]
    %v6580 = vld [vmem:[#allocation2 + $0x7d0] sm:$0xff]
    %v6581 = vld [vmem:[#allocation2 + $0x7d8] sm:$0xff]
    %v6582 = vld [vmem:[#allocation2 + $0x7e0] sm:$0xff]
    %v6583 = vld [vmem:[#allocation2 + $0x7e8] sm:$0xff]
    %v6584 = vld [vmem:[#allocation2 + $0x7f0] sm:$0xff]
    %v6585 = vld [vmem:[#allocation2 + $0x7f8] sm:$0xff]
    %v6586 = vlaneseq
    %v6587 = vshrl.u32 %v6586, 7
    %v6588 = vsub.s32 1, %v6587
    %v6589 = vrot.slane %v128, %v6588
    %v6590 = vlaneseq
    %v6591 = vshrl.u32 %v6590, 7
    %v6592 = vsub.s32 3, %v6591
    %v6593 = vrot.slane %v128, %v6592
    %v6594 = vlaneseq
    %v6595 = vshrl.u32 %v6594, 7
    %v6596 = vsub.s32 5, %v6595
    %v6597 = vrot.slane %v128, %v6596
    %v6598 = vlaneseq
    %v6599 = vshrl.u32 %v6598, 7
    %v6600 = vsub.s32 7, %v6599
    %v6601 = vrot.slane %v128, %v6600
    %v6606 = vlaneseq
    %v6607 = vshrl.u32 %v6606, 7
    %v6608 = vsub.s32 1, %v6607
    %v6609 = vrot.slane %v6589, %v6608
    %v6610 = vlaneseq
    %v6611 = vshrl.u32 %v6610, 7
    %v6612 = vsub.s32 1, %v6611
    %v6613 = vrot.slane %v6593, %v6612
    %v6614 = vlaneseq
    %v6615 = vshrl.u32 %v6614, 7
    %v6616 = vsub.s32 1, %v6615
    %v6617 = vrot.slane %v6597, %v6616
    %v6618 = vlaneseq
    %v6619 = vshrl.u32 %v6618, 7
    %v6620 = vsub.s32 1, %v6619
    %v6621 = vrot.slane %v6601, %v6620
    %6622 = vmatprep.subr.mxu0 %v6391
    %6623 = vmatpush1.msra.mxu0 %v6390
    %6624 = vmatprep.subr.mxu0 %v6387
    %6625 = vmatpush1.msra.mxu0 %v6386
    %6626 = vmatprep.subr.mxu0 %v6383
    %6627 = vmatpush1.msra.mxu0 %v6382
    %6628 = vmatprep.subr.mxu0 %v6379
    %6629 = vmatpush1.msra.mxu0 %v6378
    %6630 = vmatprep.subr.mxu0 %v6375
    %6631 = vmatpush1.msra.mxu0 %v6374
    %6632 = vmatprep.subr.mxu0 %v6371
    %6633 = vmatpush1.msra.mxu0 %v6370
    %6634 = vmatprep.subr.mxu0 %v6367
    %6635 = vmatpush1.msra.mxu0 %v6366
    %6636 = vmatprep.subr.mxu0 %v6363
    %6637 = vmatpush1.msra.mxu0 %v6362
    %6638 = vmatprep.subr.mxu0 %v6359
    %6639 = vmatpush1.msra.mxu0 %v6358
    %6640 = vmatprep.subr.mxu0 %v6355
    %6641 = vmatpush1.msra.mxu0 %v6354
    %6642 = vmatprep.subr.mxu0 %v6351
    %6643 = vmatpush1.msra.mxu0 %v6350
    %6644 = vmatprep.subr.mxu0 %v6347
    %6645 = vmatpush1.msra.mxu0 %v6346
    %6646 = vmatprep.subr.mxu0 %v6343
    %6647 = vmatpush1.msra.mxu0 %v6342
    %6648 = vmatprep.subr.mxu0 %v6339
    %6649 = vmatpush1.msra.mxu0 %v6338
    %6650 = vmatprep.subr.mxu0 %v6335
    %6651 = vmatpush1.msra.mxu0 %v6334
    %6652 = vmatprep.subr.mxu0 %v6331
    %6653 = vmatpush1.msra.mxu0 %v6330
    %6654 = vmatprep.subr.mxu0 %v6455
    %6655 = vmatpush2.msra.mxu0 %v6454
    %6656 = vmatprep.subr.mxu0 %v6451
    %6657 = vmatpush2.msra.mxu0 %v6450
    %6658 = vmatprep.subr.mxu0 %v6447
    %6659 = vmatpush2.msra.mxu0 %v6446
    %6660 = vmatprep.subr.mxu0 %v6443
    %6661 = vmatpush2.msra.mxu0 %v6442
    %6662 = vmatprep.subr.mxu0 %v6439
    %6663 = vmatpush2.msra.mxu0 %v6438
    %6664 = vmatprep.subr.mxu0 %v6435
    %6665 = vmatpush2.msra.mxu0 %v6434
    %6666 = vmatprep.subr.mxu0 %v6431
    %6667 = vmatpush2.msra.mxu0 %v6430
    %6668 = vmatprep.subr.mxu0 %v6427
    %6669 = vmatpush2.msra.mxu0 %v6426
    %6670 = vmatprep.subr.mxu0 %v6423
    %6671 = vmatpush2.msra.mxu0 %v6422
    %6672 = vmatprep.subr.mxu0 %v6419
    %6673 = vmatpush2.msra.mxu0 %v6418
    %6674 = vmatprep.subr.mxu0 %v6415
    %6675 = vmatpush2.msra.mxu0 %v6414
    %6676 = vmatprep.subr.mxu0 %v6411
    %6677 = vmatpush2.msra.mxu0 %v6410
    %6678 = vmatprep.subr.mxu0 %v6407
    %6679 = vmatpush2.msra.mxu0 %v6406
    %6680 = vmatprep.subr.mxu0 %v6403
    %6681 = vmatpush2.msra.mxu0 %v6402
    %6682 = vmatprep.subr.mxu0 %v6399
    %6683 = vmatpush2.msra.mxu0 %v6398
    %6684 = vmatprep.subr.mxu0 %v6395
    %6685 = vmatpush2.msra.mxu0 %v6394
    %6686 = vmatprep.mubr.f32.mxu0 %v6323
    %6687 = vmatmul.mubr.f32.gmra.mxu0 %v6322
    %v6688 = vpop.f32.mrf.mxu0
    %v6689 = vadd.f32 %v6609, %v6688
    %v6690 = vpop.f32.mrf.mxu0
    %v6691 = vadd.f32 %v6613, %v6690
    %6692 = vmatprep.mubr.f32.mxu0 %v6327
    %6693 = vmatmul.mubr.f32.gmra.mxu0 %v6326
    %v6694 = vpop.f32.mrf.mxu0
    %v6695 = vadd.f32 %v6609, %v6694
    %v6696 = vpop.f32.mrf.mxu0
    %v6697 = vadd.f32 %v6613, %v6696
    %6698 = vdwg.mxu0
    %6699 = vmatprep.subr.mxu0 %v6519
    %6700 = vmatpush1.msra.mxu0 %v6518
    %6701 = vmatprep.subr.mxu0 %v6515
    %6702 = vmatpush1.msra.mxu0 %v6514
    %6703 = vmatprep.subr.mxu0 %v6511
    %6704 = vmatpush1.msra.mxu0 %v6510
    %6705 = vmatprep.subr.mxu0 %v6507
    %6706 = vmatpush1.msra.mxu0 %v6506
    %6707 = vmatprep.subr.mxu0 %v6503
    %6708 = vmatpush1.msra.mxu0 %v6502
    %6709 = vmatprep.subr.mxu0 %v6499
    %6710 = vmatpush1.msra.mxu0 %v6498
    %6711 = vmatprep.subr.mxu0 %v6495
    %6712 = vmatpush1.msra.mxu0 %v6494
    %6713 = vmatprep.subr.mxu0 %v6491
    %6714 = vmatpush1.msra.mxu0 %v6490
    %6715 = vmatprep.subr.mxu0 %v6487
    %6716 = vmatpush1.msra.mxu0 %v6486
    %6717 = vmatprep.subr.mxu0 %v6483
    %6718 = vmatpush1.msra.mxu0 %v6482
    %6719 = vmatprep.subr.mxu0 %v6479
    %6720 = vmatpush1.msra.mxu0 %v6478
    %6721 = vmatprep.subr.mxu0 %v6475
    %6722 = vmatpush1.msra.mxu0 %v6474
    %6723 = vmatprep.subr.mxu0 %v6471
    %6724 = vmatpush1.msra.mxu0 %v6470
    %6725 = vmatprep.subr.mxu0 %v6467
    %6726 = vmatpush1.msra.mxu0 %v6466
    %6727 = vmatprep.subr.mxu0 %v6463
    %6728 = vmatpush1.msra.mxu0 %v6462
    %6729 = vmatprep.subr.mxu0 %v6459
    %6730 = vmatpush1.msra.mxu0 %v6458
    %6731 = vmatprep.subr.mxu0 %v6583
    %6732 = vmatpush2.msra.mxu0 %v6582
    %6733 = vmatprep.subr.mxu0 %v6579
    %6734 = vmatpush2.msra.mxu0 %v6578
    %6735 = vmatprep.subr.mxu0 %v6575
    %6736 = vmatpush2.msra.mxu0 %v6574
    %6737 = vmatprep.subr.mxu0 %v6571
    %6738 = vmatpush2.msra.mxu0 %v6570
    %6739 = vmatprep.subr.mxu0 %v6567
    %6740 = vmatpush2.msra.mxu0 %v6566
    %6741 = vmatprep.subr.mxu0 %v6563
    %6742 = vmatpush2.msra.mxu0 %v6562
    %6743 = vmatprep.subr.mxu0 %v6559
    %6744 = vmatpush2.msra.mxu0 %v6558
    %6745 = vmatprep.subr.mxu0 %v6555
    %6746 = vmatpush2.msra.mxu0 %v6554
    %6747 = vmatprep.subr.mxu0 %v6551
    %6748 = vmatpush2.msra.mxu0 %v6550
    %6749 = vmatprep.subr.mxu0 %v6547
    %6750 = vmatpush2.msra.mxu0 %v6546
    %6751 = vmatprep.subr.mxu0 %v6543
    %6752 = vmatpush2.msra.mxu0 %v6542
    %6753 = vmatprep.subr.mxu0 %v6539
    %6754 = vmatpush2.msra.mxu0 %v6538
    %6755 = vmatprep.subr.mxu0 %v6535
    %6756 = vmatpush2.msra.mxu0 %v6534
    %6757 = vmatprep.subr.mxu0 %v6531
    %6758 = vmatpush2.msra.mxu0 %v6530
    %6759 = vmatprep.subr.mxu0 %v6527
    %6760 = vmatpush2.msra.mxu0 %v6526
    %6761 = vmatprep.subr.mxu0 %v6523
    %6762 = vmatpush2.msra.mxu0 %v6522
    %6763 = vmatprep.mubr.f32.mxu0 %v6325
    %6764 = vmatmul.mubr.f32.gmra.mxu0 %v6324
    %v6765 = vpop.f32.mrf.mxu0
    %v6766 = vadd.f32 %v6689, %v6765
    %v6767 = vpop.f32.mrf.mxu0
    %v6768 = vadd.f32 %v6691, %v6767
    %6769 = vmatprep.mubr.f32.mxu0 %v6329
    %6770 = vmatmul.mubr.f32.gmra.mxu0 %v6328
    %v6771 = vpop.f32.mrf.mxu0
    %v6772 = vadd.f32 %v6695, %v6771
    %v6773 = vpop.f32.mrf.mxu0
    %v6774 = vadd.f32 %v6697, %v6773
    %6775 = vdwg.mxu0
    %6776 = vmatprep.subr.mxu0 %v6393
    %6777 = vmatpush1.msra.mxu0 %v6392
    %6778 = vmatprep.subr.mxu0 %v6389
    %6779 = vmatpush1.msra.mxu0 %v6388
    %6780 = vmatprep.subr.mxu0 %v6385
    %6781 = vmatpush1.msra.mxu0 %v6384
    %6782 = vmatprep.subr.mxu0 %v6381
    %6783 = vmatpush1.msra.mxu0 %v6380
    %6784 = vmatprep.subr.mxu0 %v6377
    %6785 = vmatpush1.msra.mxu0 %v6376
    %6786 = vmatprep.subr.mxu0 %v6373
    %6787 = vmatpush1.msra.mxu0 %v6372
    %6788 = vmatprep.subr.mxu0 %v6369
    %6789 = vmatpush1.msra.mxu0 %v6368
    %6790 = vmatprep.subr.mxu0 %v6365
    %6791 = vmatpush1.msra.mxu0 %v6364
    %6792 = vmatprep.subr.mxu0 %v6361
    %6793 = vmatpush1.msra.mxu0 %v6360
    %6794 = vmatprep.subr.mxu0 %v6357
    %6795 = vmatpush1.msra.mxu0 %v6356
    %6796 = vmatprep.subr.mxu0 %v6353
    %6797 = vmatpush1.msra.mxu0 %v6352
    %6798 = vmatprep.subr.mxu0 %v6349
    %6799 = vmatpush1.msra.mxu0 %v6348
    %6800 = vmatprep.subr.mxu0 %v6345
    %6801 = vmatpush1.msra.mxu0 %v6344
    %6802 = vmatprep.subr.mxu0 %v6341
    %6803 = vmatpush1.msra.mxu0 %v6340
    %6804 = vmatprep.subr.mxu0 %v6337
    %6805 = vmatpush1.msra.mxu0 %v6336
    %6806 = vmatprep.subr.mxu0 %v6333
    %6807 = vmatpush1.msra.mxu0 %v6332
    %6808 = vmatprep.subr.mxu0 %v6457
    %6809 = vmatpush2.msra.mxu0 %v6456
    %6810 = vmatprep.subr.mxu0 %v6453
    %6811 = vmatpush2.msra.mxu0 %v6452
    %6812 = vmatprep.subr.mxu0 %v6449
    %6813 = vmatpush2.msra.mxu0 %v6448
    %6814 = vmatprep.subr.mxu0 %v6445
    %6815 = vmatpush2.msra.mxu0 %v6444
    %6816 = vmatprep.subr.mxu0 %v6441
    %6817 = vmatpush2.msra.mxu0 %v6440
    %6818 = vmatprep.subr.mxu0 %v6437
    %6819 = vmatpush2.msra.mxu0 %v6436
    %6820 = vmatprep.subr.mxu0 %v6433
    %6821 = vmatpush2.msra.mxu0 %v6432
    %6822 = vmatprep.subr.mxu0 %v6429
    %6823 = vmatpush2.msra.mxu0 %v6428
    %6824 = vmatprep.subr.mxu0 %v6425
    %6825 = vmatpush2.msra.mxu0 %v6424
    %6826 = vmatprep.subr.mxu0 %v6421
    %6827 = vmatpush2.msra.mxu0 %v6420
    %6828 = vmatprep.subr.mxu0 %v6417
    %6829 = vmatpush2.msra.mxu0 %v6416
    %6830 = vmatprep.subr.mxu0 %v6413
    %6831 = vmatpush2.msra.mxu0 %v6412
    %6832 = vmatprep.subr.mxu0 %v6409
    %6833 = vmatpush2.msra.mxu0 %v6408
    %6834 = vmatprep.subr.mxu0 %v6405
    %6835 = vmatpush2.msra.mxu0 %v6404
    %6836 = vmatprep.subr.mxu0 %v6401
    %6837 = vmatpush2.msra.mxu0 %v6400
    %6838 = vmatprep.subr.mxu0 %v6397
    %6839 = vmatpush2.msra.mxu0 %v6396
    %6840 = vmatprep.mubr.f32.mxu0 %v6323
    %6841 = vmatmul.mubr.f32.gmra.mxu0 %v6322
    %v6842 = vpop.f32.mrf.mxu0
    %v6843 = vadd.f32 %v6617, %v6842
    %v6844 = vpop.f32.mrf.mxu0
    %v6845 = vadd.f32 %v6621, %v6844
    %6846 = vmatprep.mubr.f32.mxu0 %v6327
    %6847 = vmatmul.mubr.f32.gmra.mxu0 %v6326
    %v6848 = vpop.f32.mrf.mxu0
    %v6849 = vadd.f32 %v6617, %v6848
    %v6850 = vpop.f32.mrf.mxu0
    %v6851 = vadd.f32 %v6621, %v6850
    %6852 = vdwg.mxu0
    %6853 = vmatprep.subr.mxu0 %v6521
    %6854 = vmatpush1.msra.mxu0 %v6520
    %6855 = vmatprep.subr.mxu0 %v6517
    %6856 = vmatpush1.msra.mxu0 %v6516
    %6857 = vmatprep.subr.mxu0 %v6513
    %6858 = vmatpush1.msra.mxu0 %v6512
    %6859 = vmatprep.subr.mxu0 %v6509
    %6860 = vmatpush1.msra.mxu0 %v6508
    %6861 = vmatprep.subr.mxu0 %v6505
    %6862 = vmatpush1.msra.mxu0 %v6504
    %6863 = vmatprep.subr.mxu0 %v6501
    %6864 = vmatpush1.msra.mxu0 %v6500
    %6865 = vmatprep.subr.mxu0 %v6497
    %6866 = vmatpush1.msra.mxu0 %v6496
    %6867 = vmatprep.subr.mxu0 %v6493
    %6868 = vmatpush1.msra.mxu0 %v6492
    %6869 = vmatprep.subr.mxu0 %v6489
    %6870 = vmatpush1.msra.mxu0 %v6488
    %6871 = vmatprep.subr.mxu0 %v6485
    %6872 = vmatpush1.msra.mxu0 %v6484
    %6873 = vmatprep.subr.mxu0 %v6481
    %6874 = vmatpush1.msra.mxu0 %v6480
    %6875 = vmatprep.subr.mxu0 %v6477
    %6876 = vmatpush1.msra.mxu0 %v6476
    %6877 = vmatprep.subr.mxu0 %v6473
    %6878 = vmatpush1.msra.mxu0 %v6472
    %6879 = vmatprep.subr.mxu0 %v6469
    %6880 = vmatpush1.msra.mxu0 %v6468
    %6881 = vmatprep.subr.mxu0 %v6465
    %6882 = vmatpush1.msra.mxu0 %v6464
    %6883 = vmatprep.subr.mxu0 %v6461
    %6884 = vmatpush1.msra.mxu0 %v6460
    %6885 = vmatprep.subr.mxu0 %v6585
    %6886 = vmatpush2.msra.mxu0 %v6584
    %6887 = vmatprep.subr.mxu0 %v6581
    %6888 = vmatpush2.msra.mxu0 %v6580
    %6889 = vmatprep.subr.mxu0 %v6577
    %6890 = vmatpush2.msra.mxu0 %v6576
    %6891 = vmatprep.subr.mxu0 %v6573
    %6892 = vmatpush2.msra.mxu0 %v6572
    %6893 = vmatprep.subr.mxu0 %v6569
    %6894 = vmatpush2.msra.mxu0 %v6568
    %6895 = vmatprep.subr.mxu0 %v6565
    %6896 = vmatpush2.msra.mxu0 %v6564
    %6897 = vmatprep.subr.mxu0 %v6561
    %6898 = vmatpush2.msra.mxu0 %v6560
    %6899 = vmatprep.subr.mxu0 %v6557
    %6900 = vmatpush2.msra.mxu0 %v6556
    %6901 = vmatprep.subr.mxu0 %v6553
    %6902 = vmatpush2.msra.mxu0 %v6552
    %6903 = vmatprep.subr.mxu0 %v6549
    %6904 = vmatpush2.msra.mxu0 %v6548
    %6905 = vmatprep.subr.mxu0 %v6545
    %6906 = vmatpush2.msra.mxu0 %v6544
    %6907 = vmatprep.subr.mxu0 %v6541
    %6908 = vmatpush2.msra.mxu0 %v6540
    %6909 = vmatprep.subr.mxu0 %v6537
    %6910 = vmatpush2.msra.mxu0 %v6536
    %6911 = vmatprep.subr.mxu0 %v6533
    %6912 = vmatpush2.msra.mxu0 %v6532
    %6913 = vmatprep.subr.mxu0 %v6529
    %6914 = vmatpush2.msra.mxu0 %v6528
    %6915 = vmatprep.subr.mxu0 %v6525
    %6916 = vmatpush2.msra.mxu0 %v6524
    %6917 = vmatprep.mubr.f32.mxu0 %v6325
    %6918 = vmatmul.mubr.f32.gmra.mxu0 %v6324
    %v6919 = vpop.f32.mrf.mxu0
    %v6920 = vadd.f32 %v6843, %v6919
    %v6921 = vpop.f32.mrf.mxu0
    %v6922 = vadd.f32 %v6845, %v6921
    %6923 = vmatprep.mubr.f32.mxu0 %v6329
    %6924 = vmatmul.mubr.f32.gmra.mxu0 %v6328
    %v6925 = vpop.f32.mrf.mxu0
    %v6926 = vadd.f32 %v6849, %v6925
    %v6927 = vpop.f32.mrf.mxu0
    %v6928 = vadd.f32 %v6851, %v6927
    %6929 = vdwg.mxu0
    %v6930 = vmax.f32 %v6766, 0.0
    %v6931 = vmax.f32 %v6768, 0.0
    %v6932 = vmax.f32 %v6920, 0.0
    %v6933 = vmax.f32 %v6922, 0.0
    %v6934 = vmax.f32 %v6772, 0.0
    %v6935 = vmax.f32 %v6774, 0.0
    %v6936 = vmax.f32 %v6926, 0.0
    %v6937 = vmax.f32 %v6928, 0.0
    %v6938 = vld [vmem:[%s12] sm:$0xff]
    %v6939 = vld [vmem:[%s12 + $0x8] sm:$0xff]
    %v6940 = vld [vmem:[%s12 + $0x10] sm:$0xff]
    %v6941 = vld [vmem:[%s12 + $0x18] sm:$0xff]
    %v6942 = vld [vmem:[%s12 + $0x20] sm:$0xff]
    %v6943 = vld [vmem:[%s12 + $0x28] sm:$0xff]
    %v6944 = vld [vmem:[%s12 + $0x30] sm:$0xff]
    %v6945 = vld [vmem:[%s12 + $0x38] sm:$0xff]
    %v6946 = vld [vmem:[%s12 + $0x40] sm:$0xff]
    %v6947 = vld [vmem:[%s12 + $0x48] sm:$0xff]
    %v6948 = vld [vmem:[%s12 + $0x50] sm:$0xff]
    %v6949 = vld [vmem:[%s12 + $0x58] sm:$0xff]
    %v6950 = vld [vmem:[%s12 + $0x60] sm:$0xff]
    %v6951 = vld [vmem:[%s12 + $0x68] sm:$0xff]
    %v6952 = vld [vmem:[%s12 + $0x70] sm:$0xff]
    %v6953 = vld [vmem:[%s12 + $0x78] sm:$0xff]
    %v6954 = vld [vmem:[%s12 + $0x80] sm:$0xff]
    %v6955 = vld [vmem:[%s12 + $0x88] sm:$0xff]
    %v6956 = vld [vmem:[%s12 + $0x90] sm:$0xff]
    %v6957 = vld [vmem:[%s12 + $0x98] sm:$0xff]
    %v6958 = vld [vmem:[%s12 + $0xa0] sm:$0xff]
    %v6959 = vld [vmem:[%s12 + $0xa8] sm:$0xff]
    %v6960 = vld [vmem:[%s12 + $0xb0] sm:$0xff]
    %v6961 = vld [vmem:[%s12 + $0xb8] sm:$0xff]
    %v6962 = vld [vmem:[%s12 + $0xc0] sm:$0xff]
    %v6963 = vld [vmem:[%s12 + $0xc8] sm:$0xff]
    %v6964 = vld [vmem:[%s12 + $0xd0] sm:$0xff]
    %v6965 = vld [vmem:[%s12 + $0xd8] sm:$0xff]
    %v6966 = vld [vmem:[%s12 + $0xe0] sm:$0xff]
    %v6967 = vld [vmem:[%s12 + $0xe8] sm:$0xff]
    %v6968 = vld [vmem:[%s12 + $0xf0] sm:$0xff]
    %v6969 = vld [vmem:[%s12 + $0xf8] sm:$0xff]
    %v6970 = vld [vmem:[%s12 + $0x100] sm:$0xff]
    %v6971 = vld [vmem:[%s12 + $0x108] sm:$0xff]
    %v6972 = vld [vmem:[%s12 + $0x110] sm:$0xff]
    %v6973 = vld [vmem:[%s12 + $0x118] sm:$0xff]
    %v6974 = vld [vmem:[%s12 + $0x120] sm:$0xff]
    %v6975 = vld [vmem:[%s12 + $0x128] sm:$0xff]
    %v6976 = vld [vmem:[%s12 + $0x130] sm:$0xff]
    %v6977 = vld [vmem:[%s12 + $0x138] sm:$0xff]
    %v6978 = vld [vmem:[%s12 + $0x140] sm:$0xff]
    %v6979 = vld [vmem:[%s12 + $0x148] sm:$0xff]
    %v6980 = vld [vmem:[%s12 + $0x150] sm:$0xff]
    %v6981 = vld [vmem:[%s12 + $0x158] sm:$0xff]
    %v6982 = vld [vmem:[%s12 + $0x160] sm:$0xff]
    %v6983 = vld [vmem:[%s12 + $0x168] sm:$0xff]
    %v6984 = vld [vmem:[%s12 + $0x170] sm:$0xff]
    %v6985 = vld [vmem:[%s12 + $0x178] sm:$0xff]
    %v6986 = vld [vmem:[%s12 + $0x180] sm:$0xff]
    %v6987 = vld [vmem:[%s12 + $0x188] sm:$0xff]
    %v6988 = vld [vmem:[%s12 + $0x190] sm:$0xff]
    %v6989 = vld [vmem:[%s12 + $0x198] sm:$0xff]
    %v6990 = vld [vmem:[%s12 + $0x1a0] sm:$0xff]
    %v6991 = vld [vmem:[%s12 + $0x1a8] sm:$0xff]
    %v6992 = vld [vmem:[%s12 + $0x1b0] sm:$0xff]
    %v6993 = vld [vmem:[%s12 + $0x1b8] sm:$0xff]
    %v6994 = vld [vmem:[%s12 + $0x1c0] sm:$0xff]
    %v6995 = vld [vmem:[%s12 + $0x1c8] sm:$0xff]
    %v6996 = vld [vmem:[%s12 + $0x1d0] sm:$0xff]
    %v6997 = vld [vmem:[%s12 + $0x1d8] sm:$0xff]
    %v6998 = vld [vmem:[%s12 + $0x1e0] sm:$0xff]
    %v6999 = vld [vmem:[%s12 + $0x1e8] sm:$0xff]
    %v7000 = vld [vmem:[%s12 + $0x1f0] sm:$0xff]
    %v7001 = vld [vmem:[%s12 + $0x1f8] sm:$0xff]
    %v7003 = vlaneseq
    %v7004 = vshrl.u32 %v7003, 7
    %v7005 = vsub.s32 0, %v7004
    %v7006 = vrot.slane %v129, %v7005
    %7008 = vmatprep.subr.mxu0 0.0
    %7009 = vmatpush1.msra.mxu0 %v6953
    %7010 = vmatprep.subr.mxu0 0.0
    %7011 = vmatpush1.msra.mxu0 %v6952
    %7012 = vmatprep.subr.mxu0 0.0
    %7013 = vmatpush1.msra.mxu0 %v6951
    %7014 = vmatprep.subr.mxu0 0.0
    %7015 = vmatpush1.msra.mxu0 %v6950
    %7016 = vmatprep.subr.mxu0 0.0
    %7017 = vmatpush1.msra.mxu0 %v6949
    %7018 = vmatprep.subr.mxu0 0.0
    %7019 = vmatpush1.msra.mxu0 %v6948
    %7020 = vmatprep.subr.mxu0 0.0
    %7021 = vmatpush1.msra.mxu0 %v6947
    %7022 = vmatprep.subr.mxu0 0.0
    %7023 = vmatpush1.msra.mxu0 %v6946
    %7024 = vmatprep.subr.mxu0 0.0
    %7025 = vmatpush1.msra.mxu0 %v6945
    %7026 = vmatprep.subr.mxu0 0.0
    %7027 = vmatpush1.msra.mxu0 %v6944
    %7028 = vmatprep.subr.mxu0 0.0
    %7029 = vmatpush1.msra.mxu0 %v6943
    %7030 = vmatprep.subr.mxu0 0.0
    %7031 = vmatpush1.msra.mxu0 %v6942
    %7032 = vmatprep.subr.mxu0 0.0
    %7033 = vmatpush1.msra.mxu0 %v6941
    %7034 = vmatprep.subr.mxu0 0.0
    %7035 = vmatpush1.msra.mxu0 %v6940
    %7036 = vmatprep.subr.mxu0 0.0
    %7037 = vmatpush1.msra.mxu0 %v6939
    %7038 = vmatprep.subr.mxu0 0.0
    %7039 = vmatpush1.msra.mxu0 %v6938
    %7040 = vmatprep.subr.mxu0 0.0
    %7041 = vmatpush2.msra.mxu0 %v6969
    %7042 = vmatprep.subr.mxu0 0.0
    %7043 = vmatpush2.msra.mxu0 %v6968
    %7044 = vmatprep.subr.mxu0 0.0
    %7045 = vmatpush2.msra.mxu0 %v6967
    %7046 = vmatprep.subr.mxu0 0.0
    %7047 = vmatpush2.msra.mxu0 %v6966
    %7048 = vmatprep.subr.mxu0 0.0
    %7049 = vmatpush2.msra.mxu0 %v6965
    %7050 = vmatprep.subr.mxu0 0.0
    %7051 = vmatpush2.msra.mxu0 %v6964
    %7052 = vmatprep.subr.mxu0 0.0
    %7053 = vmatpush2.msra.mxu0 %v6963
    %7054 = vmatprep.subr.mxu0 0.0
    %7055 = vmatpush2.msra.mxu0 %v6962
    %7056 = vmatprep.subr.mxu0 0.0
    %7057 = vmatpush2.msra.mxu0 %v6961
    %7058 = vmatprep.subr.mxu0 0.0
    %7059 = vmatpush2.msra.mxu0 %v6960
    %7060 = vmatprep.subr.mxu0 0.0
    %7061 = vmatpush2.msra.mxu0 %v6959
    %7062 = vmatprep.subr.mxu0 0.0
    %7063 = vmatpush2.msra.mxu0 %v6958
    %7064 = vmatprep.subr.mxu0 0.0
    %7065 = vmatpush2.msra.mxu0 %v6957
    %7066 = vmatprep.subr.mxu0 0.0
    %7067 = vmatpush2.msra.mxu0 %v6956
    %7068 = vmatprep.subr.mxu0 0.0
    %7069 = vmatpush2.msra.mxu0 %v6955
    %7070 = vmatprep.subr.mxu0 0.0
    %7071 = vmatpush2.msra.mxu0 %v6954
    %7072 = vmatprep.mubr.f32.mxu0 %v6931
    %7073 = vmatmul.mubr.f32.gmra.mxu0 %v6930
    %v7074 = vpop.f32.mrf.mxu0
    %v7075 = vadd.f32 %v7006, %v7074
    %v7076 = vpop.f32.mrf.mxu0
    %7077 = vmatprep.mubr.f32.mxu0 %v6935
    %7078 = vmatmul.mubr.f32.gmra.mxu0 %v6934
    %v7079 = vpop.f32.mrf.mxu0
    %v7080 = vadd.f32 %v7006, %v7079
    %v7081 = vpop.f32.mrf.mxu0
    %7082 = vdwg.mxu0
    %7083 = vmatprep.subr.mxu0 0.0
    %7084 = vmatpush1.msra.mxu0 %v6985
    %7085 = vmatprep.subr.mxu0 0.0
    %7086 = vmatpush1.msra.mxu0 %v6984
    %7087 = vmatprep.subr.mxu0 0.0
    %7088 = vmatpush1.msra.mxu0 %v6983
    %7089 = vmatprep.subr.mxu0 0.0
    %7090 = vmatpush1.msra.mxu0 %v6982
    %7091 = vmatprep.subr.mxu0 0.0
    %7092 = vmatpush1.msra.mxu0 %v6981
    %7093 = vmatprep.subr.mxu0 0.0
    %7094 = vmatpush1.msra.mxu0 %v6980
    %7095 = vmatprep.subr.mxu0 0.0
    %7096 = vmatpush1.msra.mxu0 %v6979
    %7097 = vmatprep.subr.mxu0 0.0
    %7098 = vmatpush1.msra.mxu0 %v6978
    %7099 = vmatprep.subr.mxu0 0.0
    %7100 = vmatpush1.msra.mxu0 %v6977
    %7101 = vmatprep.subr.mxu0 0.0
    %7102 = vmatpush1.msra.mxu0 %v6976
    %7103 = vmatprep.subr.mxu0 0.0
    %7104 = vmatpush1.msra.mxu0 %v6975
    %7105 = vmatprep.subr.mxu0 0.0
    %7106 = vmatpush1.msra.mxu0 %v6974
    %7107 = vmatprep.subr.mxu0 0.0
    %7108 = vmatpush1.msra.mxu0 %v6973
    %7109 = vmatprep.subr.mxu0 0.0
    %7110 = vmatpush1.msra.mxu0 %v6972
    %7111 = vmatprep.subr.mxu0 0.0
    %7112 = vmatpush1.msra.mxu0 %v6971
    %7113 = vmatprep.subr.mxu0 0.0
    %7114 = vmatpush1.msra.mxu0 %v6970
    %7115 = vmatprep.subr.mxu0 0.0
    %7116 = vmatpush2.msra.mxu0 %v7001
    %7117 = vmatprep.subr.mxu0 0.0
    %7118 = vmatpush2.msra.mxu0 %v7000
    %7119 = vmatprep.subr.mxu0 0.0
    %7120 = vmatpush2.msra.mxu0 %v6999
    %7121 = vmatprep.subr.mxu0 0.0
    %7122 = vmatpush2.msra.mxu0 %v6998
    %7123 = vmatprep.subr.mxu0 0.0
    %7124 = vmatpush2.msra.mxu0 %v6997
    %7125 = vmatprep.subr.mxu0 0.0
    %7126 = vmatpush2.msra.mxu0 %v6996
    %7127 = vmatprep.subr.mxu0 0.0
    %7128 = vmatpush2.msra.mxu0 %v6995
    %7129 = vmatprep.subr.mxu0 0.0
    %7130 = vmatpush2.msra.mxu0 %v6994
    %7131 = vmatprep.subr.mxu0 0.0
    %7132 = vmatpush2.msra.mxu0 %v6993
    %7133 = vmatprep.subr.mxu0 0.0
    %7134 = vmatpush2.msra.mxu0 %v6992
    %7135 = vmatprep.subr.mxu0 0.0
    %7136 = vmatpush2.msra.mxu0 %v6991
    %7137 = vmatprep.subr.mxu0 0.0
    %7138 = vmatpush2.msra.mxu0 %v6990
    %7139 = vmatprep.subr.mxu0 0.0
    %7140 = vmatpush2.msra.mxu0 %v6989
    %7141 = vmatprep.subr.mxu0 0.0
    %7142 = vmatpush2.msra.mxu0 %v6988
    %7143 = vmatprep.subr.mxu0 0.0
    %7144 = vmatpush2.msra.mxu0 %v6987
    %7145 = vmatprep.subr.mxu0 0.0
    %7146 = vmatpush2.msra.mxu0 %v6986
    %7147 = vmatprep.mubr.f32.mxu0 %v6933
    %7148 = vmatmul.mubr.f32.gmra.mxu0 %v6932
    %v7149 = vpop.f32.mrf.mxu0
    %v7150 = vadd.f32 %v7075, %v7149
    %v7151 = vpop.f32.mrf.mxu0
    %7152 = vmatprep.mubr.f32.mxu0 %v6937
    %7153 = vmatmul.mubr.f32.gmra.mxu0 %v6936
    %v7154 = vpop.f32.mrf.mxu0
    %v7155 = vadd.f32 %v7080, %v7154
    %v7156 = vpop.f32.mrf.mxu0
    %7157 = vdwg.mxu0
    %v7158 = vlaneseq
    %v7159 = vshrl.u32 %v7158, 7
    %v7160 = vsub.s32 4, %v7159
    %v7161 = vrot.slane %v126, %v7160
    %7162 = vmatprep.subr.mxu0 0.0
    %7163 = vmatpush1.msra.mxu0 0.0
    %7164 = vmatprep.subr.mxu0 0.0
    %7165 = vmatpush1.msra.mxu0 0.0
    %7166 = vmatprep.subr.mxu0 0.0
    %7167 = vmatpush1.msra.mxu0 0.0
    %7168 = vmatprep.subr.mxu0 0.0
    %7169 = vmatpush1.msra.mxu0 0.0
    %7170 = vmatprep.subr.mxu0 0.0
    %7171 = vmatpush1.msra.mxu0 0.0
    %7172 = vmatprep.subr.mxu0 0.0
    %7173 = vmatpush1.msra.mxu0 0.0
    %7174 = vmatprep.subr.mxu0 0.0
    %7175 = vmatpush1.msra.mxu0 0.0
    %7176 = vmatprep.subr.mxu0 0.0
    %7177 = vmatpush1.msra.mxu0 0.0
    %7178 = vmatprep.subr.mxu0 0.0
    %7179 = vmatpush1.msra.mxu0 0.0
    %7180 = vmatprep.subr.mxu0 0.0
    %7181 = vmatpush1.msra.mxu0 0.0
    %7182 = vmatprep.subr.mxu0 0.0
    %7183 = vmatpush1.msra.mxu0 0.0
    %7184 = vmatprep.subr.mxu0 0.0
    %7185 = vmatpush1.msra.mxu0 0.0
    %7186 = vmatprep.subr.mxu0 0.0
    %7187 = vmatpush1.msra.mxu0 %v122
    %7188 = vmatprep.subr.mxu0 0.0
    %7189 = vmatpush1.msra.mxu0 %v121
    %7190 = vmatprep.subr.mxu0 0.0
    %7191 = vmatpush1.msra.mxu0 %v120
    %7192 = vmatprep.subr.mxu0 0.0
    %7193 = vmatpush1.msra.mxu0 %v119
    %7194 = vmatprep.subr.mxu0 0.0
    %7195 = vmatpush2.msra.mxu0 0.0
    %7196 = vmatprep.subr.mxu0 0.0
    %7197 = vmatpush2.msra.mxu0 0.0
    %7198 = vmatprep.subr.mxu0 0.0
    %7199 = vmatpush2.msra.mxu0 0.0
    %7200 = vmatprep.subr.mxu0 0.0
    %7201 = vmatpush2.msra.mxu0 0.0
    %7202 = vmatprep.subr.mxu0 0.0
    %7203 = vmatpush2.msra.mxu0 0.0
    %7204 = vmatprep.subr.mxu0 0.0
    %7205 = vmatpush2.msra.mxu0 0.0
    %7206 = vmatprep.subr.mxu0 0.0
    %7207 = vmatpush2.msra.mxu0 0.0
    %7208 = vmatprep.subr.mxu0 0.0
    %7209 = vmatpush2.msra.mxu0 0.0
    %7210 = vmatprep.subr.mxu0 0.0
    %7211 = vmatpush2.msra.mxu0 0.0
    %7212 = vmatprep.subr.mxu0 0.0
    %7213 = vmatpush2.msra.mxu0 0.0
    %7214 = vmatprep.subr.mxu0 0.0
    %7215 = vmatpush2.msra.mxu0 0.0
    %7216 = vmatprep.subr.mxu0 0.0
    %7217 = vmatpush2.msra.mxu0 0.0
    %7218 = vmatprep.subr.mxu0 0.0
    %7219 = vmatpush2.msra.mxu0 0.0
    %7220 = vmatprep.subr.mxu0 0.0
    %7221 = vmatpush2.msra.mxu0 0.0
    %7222 = vmatprep.subr.mxu0 0.0
    %7223 = vmatpush2.msra.mxu0 0.0
    %7224 = vmatprep.subr.mxu0 0.0
    %7225 = vmatpush2.msra.mxu0 0.0
    %7226 = vmatprep.mubr.f32.mxu0 0.0
    %7227 = vmatmul.mubr.f32.gmra.mxu0 %v6163
    %v7228 = vpop.f32.mrf.mxu0
    %v7229 = vadd.f32 %v7161, %v7228
    %v7230 = vpop.f32.mrf.mxu0
    %7231 = vmatprep.mubr.f32.mxu0 0.0
    %7232 = vmatmul.mubr.f32.gmra.mxu0 %v6166
    %v7233 = vpop.f32.mrf.mxu0
    %v7234 = vadd.f32 %v7161, %v7233
    %v7235 = vpop.f32.mrf.mxu0
    %7236 = vdwg.mxu0
    %v7238 = vsel %vm327, %v7229, 0
    %7240 = vmatprep.subr.mxu0 0.0
    %7241 = vmatpush1.xpose.msra.mxu0 0.0
    %7242 = vmatprep.subr.mxu0 0.0
    %7243 = vmatpush1.xpose.msra.mxu0 0.0
    %7244 = vmatprep.subr.mxu0 0.0
    %7245 = vmatpush1.xpose.msra.mxu0 0.0
    %7246 = vmatprep.subr.mxu0 0.0
    %7247 = vmatpush1.xpose.msra.mxu0 0.0
    %7248 = vmatprep.subr.mxu0 0.0
    %7249 = vmatpush1.xpose.msra.mxu0 0.0
    %7250 = vmatprep.subr.mxu0 0.0
    %7251 = vmatpush1.xpose.msra.mxu0 0.0
    %7252 = vmatprep.subr.mxu0 0.0
    %7253 = vmatpush1.xpose.msra.mxu0 0.0
    %7254 = vmatprep.subr.mxu0 0.0
    %7255 = vmatpush1.xpose.msra.mxu0 0.0
    %7256 = vmatprep.subr.mxu0 0.0
    %7257 = vmatpush1.xpose.msra.mxu0 0.0
    %7258 = vmatprep.subr.mxu0 0.0
    %7259 = vmatpush1.xpose.msra.mxu0 0.0
    %7260 = vmatprep.subr.mxu0 0.0
    %7261 = vmatpush1.xpose.msra.mxu0 0.0
    %7262 = vmatprep.subr.mxu0 0.0
    %7263 = vmatpush1.xpose.msra.mxu0 0.0
    %7264 = vmatprep.subr.mxu0 0.0
    %7265 = vmatpush1.xpose.msra.mxu0 0.0
    %7266 = vmatprep.subr.mxu0 0.0
    %7267 = vmatpush1.xpose.msra.mxu0 0.0
    %7268 = vmatprep.subr.mxu0 0.0
    %7269 = vmatpush1.xpose.msra.mxu0 0.0
    %7270 = vmatprep.subr.mxu0 0.0
    %7271 = vmatpush1.xpose.msra.mxu0 %v4227
    %7272 = vmatprep.subr.mxu0 0.0
    %7273 = vmatpush2.xpose.msra.mxu0 0.0
    %7274 = vmatprep.subr.mxu0 0.0
    %7275 = vmatpush2.xpose.msra.mxu0 0.0
    %7276 = vmatprep.subr.mxu0 0.0
    %7277 = vmatpush2.xpose.msra.mxu0 0.0
    %7278 = vmatprep.subr.mxu0 0.0
    %7279 = vmatpush2.xpose.msra.mxu0 0.0
    %7280 = vmatprep.subr.mxu0 0.0
    %7281 = vmatpush2.xpose.msra.mxu0 0.0
    %7282 = vmatprep.subr.mxu0 0.0
    %7283 = vmatpush2.xpose.msra.mxu0 0.0
    %7284 = vmatprep.subr.mxu0 0.0
    %7285 = vmatpush2.xpose.msra.mxu0 0.0
    %7286 = vmatprep.subr.mxu0 0.0
    %7287 = vmatpush2.xpose.msra.mxu0 0.0
    %7288 = vmatprep.subr.mxu0 0.0
    %7289 = vmatpush2.xpose.msra.mxu0 0.0
    %7290 = vmatprep.subr.mxu0 0.0
    %7291 = vmatpush2.xpose.msra.mxu0 0.0
    %7292 = vmatprep.subr.mxu0 0.0
    %7293 = vmatpush2.xpose.msra.mxu0 0.0
    %7294 = vmatprep.subr.mxu0 0.0
    %7295 = vmatpush2.xpose.msra.mxu0 0.0
    %7296 = vmatprep.subr.mxu0 0.0
    %7297 = vmatpush2.xpose.msra.mxu0 0.0
    %7298 = vmatprep.subr.mxu0 0.0
    %7299 = vmatpush2.xpose.msra.mxu0 0.0
    %7300 = vmatprep.subr.mxu0 0.0
    %7301 = vmatpush2.xpose.msra.mxu0 0.0
    %7302 = vmatprep.subr.mxu0 0.0
    %7303 = vmatpush2.xpose.msra.mxu0 0.0
    %7304 = vmatprep.mubr.f32.mxu0 0.0
    %7305 = vmatmul.mubr.f32.gmra.mxu0 %v7238
    %v7306 = vpop.f32.mrf.mxu0
    %v7307 = vadd.f32 0.0, %v7306
    %v7308 = vpop.f32.mrf.mxu0
    %7309 = vdwg.mxu0
    %v7310 = vmul.f32 %v7307, 0.17677669
    %v7311 = vadd.f32 %v7310, %v693
    %v7313 = vsel %vm327, %v7234, 0
    %7315 = vmatprep.subr.mxu0 0.0
    %7316 = vmatpush1.xpose.msra.mxu0 0.0
    %7317 = vmatprep.subr.mxu0 0.0
    %7318 = vmatpush1.xpose.msra.mxu0 0.0
    %7319 = vmatprep.subr.mxu0 0.0
    %7320 = vmatpush1.xpose.msra.mxu0 0.0
    %7321 = vmatprep.subr.mxu0 0.0
    %7322 = vmatpush1.xpose.msra.mxu0 0.0
    %7323 = vmatprep.subr.mxu0 0.0
    %7324 = vmatpush1.xpose.msra.mxu0 0.0
    %7325 = vmatprep.subr.mxu0 0.0
    %7326 = vmatpush1.xpose.msra.mxu0 0.0
    %7327 = vmatprep.subr.mxu0 0.0
    %7328 = vmatpush1.xpose.msra.mxu0 0.0
    %7329 = vmatprep.subr.mxu0 0.0
    %7330 = vmatpush1.xpose.msra.mxu0 0.0
    %7331 = vmatprep.subr.mxu0 0.0
    %7332 = vmatpush1.xpose.msra.mxu0 0.0
    %7333 = vmatprep.subr.mxu0 0.0
    %7334 = vmatpush1.xpose.msra.mxu0 0.0
    %7335 = vmatprep.subr.mxu0 0.0
    %7336 = vmatpush1.xpose.msra.mxu0 0.0
    %7337 = vmatprep.subr.mxu0 0.0
    %7338 = vmatpush1.xpose.msra.mxu0 0.0
    %7339 = vmatprep.subr.mxu0 0.0
    %7340 = vmatpush1.xpose.msra.mxu0 0.0
    %7341 = vmatprep.subr.mxu0 0.0
    %7342 = vmatpush1.xpose.msra.mxu0 0.0
    %7343 = vmatprep.subr.mxu0 0.0
    %7344 = vmatpush1.xpose.msra.mxu0 0.0
    %7345 = vmatprep.subr.mxu0 0.0
    %7346 = vmatpush1.xpose.msra.mxu0 %v4230
    %7347 = vmatprep.subr.mxu0 0.0
    %7348 = vmatpush2.xpose.msra.mxu0 0.0
    %7349 = vmatprep.subr.mxu0 0.0
    %7350 = vmatpush2.xpose.msra.mxu0 0.0
    %7351 = vmatprep.subr.mxu0 0.0
    %7352 = vmatpush2.xpose.msra.mxu0 0.0
    %7353 = vmatprep.subr.mxu0 0.0
    %7354 = vmatpush2.xpose.msra.mxu0 0.0
    %7355 = vmatprep.subr.mxu0 0.0
    %7356 = vmatpush2.xpose.msra.mxu0 0.0
    %7357 = vmatprep.subr.mxu0 0.0
    %7358 = vmatpush2.xpose.msra.mxu0 0.0
    %7359 = vmatprep.subr.mxu0 0.0
    %7360 = vmatpush2.xpose.msra.mxu0 0.0
    %7361 = vmatprep.subr.mxu0 0.0
    %7362 = vmatpush2.xpose.msra.mxu0 0.0
    %7363 = vmatprep.subr.mxu0 0.0
    %7364 = vmatpush2.xpose.msra.mxu0 0.0
    %7365 = vmatprep.subr.mxu0 0.0
    %7366 = vmatpush2.xpose.msra.mxu0 0.0
    %7367 = vmatprep.subr.mxu0 0.0
    %7368 = vmatpush2.xpose.msra.mxu0 0.0
    %7369 = vmatprep.subr.mxu0 0.0
    %7370 = vmatpush2.xpose.msra.mxu0 0.0
    %7371 = vmatprep.subr.mxu0 0.0
    %7372 = vmatpush2.xpose.msra.mxu0 0.0
    %7373 = vmatprep.subr.mxu0 0.0
    %7374 = vmatpush2.xpose.msra.mxu0 0.0
    %7375 = vmatprep.subr.mxu0 0.0
    %7376 = vmatpush2.xpose.msra.mxu0 0.0
    %7377 = vmatprep.subr.mxu0 0.0
    %7378 = vmatpush2.xpose.msra.mxu0 0.0
    %7379 = vmatprep.mubr.f32.mxu0 0.0
    %7380 = vmatmul.mubr.f32.gmra.mxu0 %v7313
    %v7381 = vpop.f32.mrf.mxu0
    %v7382 = vadd.f32 0.0, %v7381
    %v7383 = vpop.f32.mrf.mxu0
    %7384 = vdwg.mxu0
    %v7385 = vmul.f32 %v7382, 0.17677669
    %v7386 = vadd.f32 %v7385, %v1382
    %v7387 = vsel %vm1295, %v7150, -inf
    %7388 = vmax.xlane.f32.xlu0 %v7387
    %v7389 = vpop.xlane.xlu0 %7388
    %v7390 = vsel %vm1295, %v7155, -inf
    %7391 = vmax.xlane.f32.xlu0 %v7390
    %v7392 = vpop.xlane.xlu0 %7391
    %v7393 = vsel %vm611, %v7311, -inf
    %7394 = vmax.xlane.f32.xlu0 %v7393
    %v7395 = vpop.xlane.xlu0 %7394
    %v7396 = vsel %vm611, %v7386, -inf
    %7397 = vmax.xlane.f32.xlu0 %v7396
    %v7398 = vpop.xlane.xlu0 %7397
    %v7399 = vmax.f32 %v7389, %v7395
    %v7400 = vmax.f32 %v7392, %v7398
    %v7401 = vsub.f32 %v7150, %v7399
    %v7402 = vsub.f32 %v7155, %v7400
    %v7403 = vmul.f32 %v7401, 1.442695
    %v7404 = vpow.pop %v7403
    %v7405 = vmul.f32 %v7402, 1.442695
    %v7406 = vpow.pop %v7405
    %v7407 = vsub.f32 %v7311, %v7399
    %v7408 = vsub.f32 %v7386, %v7400
    %v7409 = vmul.f32 %v7407, 1.442695
    %v7410 = vpow.pop %v7409
    %v7411 = vmul.f32 %v7408, 1.442695
    %v7412 = vpow.pop %v7411
    %v7413 = vsel %vm1295, %v7404, 0.0
    %7414 = vadd.xlane.f32.xlu0 %v7413
    %v7415 = vpop.xlane.xlu0 %7414
    %v7416 = vsel %vm1295, %v7406, 0.0
    %7417 = vadd.xlane.f32.xlu0 %v7416
    %v7418 = vpop.xlane.xlu0 %7417
    %v7419 = vsel %vm611, %v7410, 0.0
    %7420 = vadd.xlane.f32.xlu0 %v7419
    %v7421 = vpop.xlane.xlu0 %7420
    %v7422 = vsel %vm611, %v7412, 0.0
    %7423 = vadd.xlane.f32.xlu0 %v7422
    %v7424 = vpop.xlane.xlu0 %7423
    %v7425 = vadd.f32 %v7415, %v7421
    %v7426 = vadd.f32 %v7418, %v7424
    %v7427 = vrcp.pop %v7425
    %v7428 = vmul.f32 1.0, %v7427
    %v7429 = vrcp.pop %v7426
    %v7430 = vmul.f32 1.0, %v7429
    %v7431 = vmul.f32 %v7404, %v7428
    %v7432 = vmul.f32 %v7406, %v7430
    %v7433 = vmul.f32 %v7410, %v7428
    %v7434 = vmul.f32 %v7412, %v7430
    %v7435 = vld [vmem:[%s2] sm:$0xff]
    %v7436 = vld [vmem:[%s2 + $0x8] sm:$0xff]
    %7437 = vset.pattern.permute.xlu0 0
    %7438 = vperm.xlu0 %7437, %v7435
    %v7439 = vpop.permute.xlu0 %7438
    %7440 = vset.pattern.permute.xlu0 0
    %7441 = vperm.xlu0 %7440, %v7436
    %v7442 = vpop.permute.xlu0 %7441
    %vm7443 = vcmp.eq.s32.totalorder %v7439, %v150
    %vm7444 = vcmp.eq.s32.totalorder %v7442, %v150
    %v7445 = vsel %vm7443, 1, 0
    %v7446 = vsel %vm7444, 1, 0
    %v7447 = vcvt.s32.f32 %v7445
    %v7448 = vcvt.s32.f32 %v7446
    %v7450 = vsel %vm1295, %v7431, 0
    %v7453 = vsel %vm1295, %v7432, 0
    %7455 = vmatprep.subr.mxu0 0.0
    %7456 = vmatpush1.msra.mxu0 0.0
    %7457 = vmatprep.subr.mxu0 0.0
    %7458 = vmatpush1.msra.mxu0 0.0
    %7459 = vmatprep.subr.mxu0 0.0
    %7460 = vmatpush1.msra.mxu0 0.0
    %7461 = vmatprep.subr.mxu0 0.0
    %7462 = vmatpush1.msra.mxu0 0.0
    %7463 = vmatprep.subr.mxu0 0.0
    %7464 = vmatpush1.msra.mxu0 0.0
    %7465 = vmatprep.subr.mxu0 0.0
    %7466 = vmatpush1.msra.mxu0 0.0
    %7467 = vmatprep.subr.mxu0 0.0
    %7468 = vmatpush1.msra.mxu0 0.0
    %7469 = vmatprep.subr.mxu0 0.0
    %7470 = vmatpush1.msra.mxu0 0.0
    %7471 = vmatprep.subr.mxu0 0.0
    %7472 = vmatpush1.msra.mxu0 0.0
    %7473 = vmatprep.subr.mxu0 0.0
    %7474 = vmatpush1.msra.mxu0 0.0
    %7475 = vmatprep.subr.mxu0 0.0
    %7476 = vmatpush1.msra.mxu0 0.0
    %7477 = vmatprep.subr.mxu0 0.0
    %7478 = vmatpush1.msra.mxu0 0.0
    %7479 = vmatprep.subr.mxu0 0.0
    %7480 = vmatpush1.msra.mxu0 0.0
    %7481 = vmatprep.subr.mxu0 0.0
    %7482 = vmatpush1.msra.mxu0 0.0
    %7483 = vmatprep.subr.mxu0 0.0
    %7484 = vmatpush1.msra.mxu0 %v7448
    %7485 = vmatprep.subr.mxu0 0.0
    %7486 = vmatpush1.msra.mxu0 %v7447
    %7487 = vmatprep.subr.mxu0 0.0
    %7488 = vmatpush2.msra.mxu0 0.0
    %7489 = vmatprep.subr.mxu0 0.0
    %7490 = vmatpush2.msra.mxu0 0.0
    %7491 = vmatprep.subr.mxu0 0.0
    %7492 = vmatpush2.msra.mxu0 0.0
    %7493 = vmatprep.subr.mxu0 0.0
    %7494 = vmatpush2.msra.mxu0 0.0
    %7495 = vmatprep.subr.mxu0 0.0
    %7496 = vmatpush2.msra.mxu0 0.0
    %7497 = vmatprep.subr.mxu0 0.0
    %7498 = vmatpush2.msra.mxu0 0.0
    %7499 = vmatprep.subr.mxu0 0.0
    %7500 = vmatpush2.msra.mxu0 0.0
    %7501 = vmatprep.subr.mxu0 0.0
    %7502 = vmatpush2.msra.mxu0 0.0
    %7503 = vmatprep.subr.mxu0 0.0
    %7504 = vmatpush2.msra.mxu0 0.0
    %7505 = vmatprep.subr.mxu0 0.0
    %7506 = vmatpush2.msra.mxu0 0.0
    %7507 = vmatprep.subr.mxu0 0.0
    %7508 = vmatpush2.msra.mxu0 0.0
    %7509 = vmatprep.subr.mxu0 0.0
    %7510 = vmatpush2.msra.mxu0 0.0
    %7511 = vmatprep.subr.mxu0 0.0
    %7512 = vmatpush2.msra.mxu0 0.0
    %7513 = vmatprep.subr.mxu0 0.0
    %7514 = vmatpush2.msra.mxu0 0.0
    %7515 = vmatprep.subr.mxu0 0.0
    %7516 = vmatpush2.msra.mxu0 0.0
    %7517 = vmatprep.subr.mxu0 0.0
    %7518 = vmatpush2.msra.mxu0 0.0
    %7519 = vmatprep.mubr.f32.mxu0 0.0
    %7520 = vmatmul.mubr.f32.gmra.mxu0 %v7450
    %v7521 = vpop.f32.mrf.mxu0
    %v7522 = vadd.f32 0.0, %v7521
    %v7523 = vpop.f32.mrf.mxu0
    %7524 = vmatprep.mubr.f32.mxu0 0.0
    %7525 = vmatmul.mubr.f32.gmra.mxu0 %v7453
    %v7526 = vpop.f32.mrf.mxu0
    %v7527 = vadd.f32 0.0, %v7526
    %v7528 = vpop.f32.mrf.mxu0
    %7529 = vdwg.mxu0
    %v7531 = vsel %vm611, %v7433, 0
    %7533 = vmatprep.subr.mxu0 0.0
    %7534 = vmatpush1.msra.mxu0 0.0
    %7535 = vmatprep.subr.mxu0 0.0
    %7536 = vmatpush1.msra.mxu0 0.0
    %7537 = vmatprep.subr.mxu0 0.0
    %7538 = vmatpush1.msra.mxu0 0.0
    %7539 = vmatprep.subr.mxu0 0.0
    %7540 = vmatpush1.msra.mxu0 0.0
    %7541 = vmatprep.subr.mxu0 0.0
    %7542 = vmatpush1.msra.mxu0 0.0
    %7543 = vmatprep.subr.mxu0 0.0
    %7544 = vmatpush1.msra.mxu0 0.0
    %7545 = vmatprep.subr.mxu0 0.0
    %7546 = vmatpush1.msra.mxu0 0.0
    %7547 = vmatprep.subr.mxu0 0.0
    %7548 = vmatpush1.msra.mxu0 0.0
    %7549 = vmatprep.subr.mxu0 0.0
    %7550 = vmatpush1.msra.mxu0 0.0
    %7551 = vmatprep.subr.mxu0 0.0
    %7552 = vmatpush1.msra.mxu0 0.0
    %7553 = vmatprep.subr.mxu0 0.0
    %7554 = vmatpush1.msra.mxu0 0.0
    %7555 = vmatprep.subr.mxu0 0.0
    %7556 = vmatpush1.msra.mxu0 0.0
    %7557 = vmatprep.subr.mxu0 0.0
    %7558 = vmatpush1.msra.mxu0 0.0
    %7559 = vmatprep.subr.mxu0 0.0
    %7560 = vmatpush1.msra.mxu0 0.0
    %7561 = vmatprep.subr.mxu0 0.0
    %7562 = vmatpush1.msra.mxu0 0.0
    %7563 = vmatprep.subr.mxu0 0.0
    %7564 = vmatpush1.msra.mxu0 %v161
    %7565 = vmatprep.subr.mxu0 0.0
    %7566 = vmatpush2.msra.mxu0 0.0
    %7567 = vmatprep.subr.mxu0 0.0
    %7568 = vmatpush2.msra.mxu0 0.0
    %7569 = vmatprep.subr.mxu0 0.0
    %7570 = vmatpush2.msra.mxu0 0.0
    %7571 = vmatprep.subr.mxu0 0.0
    %7572 = vmatpush2.msra.mxu0 0.0
    %7573 = vmatprep.subr.mxu0 0.0
    %7574 = vmatpush2.msra.mxu0 0.0
    %7575 = vmatprep.subr.mxu0 0.0
    %7576 = vmatpush2.msra.mxu0 0.0
    %7577 = vmatprep.subr.mxu0 0.0
    %7578 = vmatpush2.msra.mxu0 0.0
    %7579 = vmatprep.subr.mxu0 0.0
    %7580 = vmatpush2.msra.mxu0 0.0
    %7581 = vmatprep.subr.mxu0 0.0
    %7582 = vmatpush2.msra.mxu0 0.0
    %7583 = vmatprep.subr.mxu0 0.0
    %7584 = vmatpush2.msra.mxu0 0.0
    %7585 = vmatprep.subr.mxu0 0.0
    %7586 = vmatpush2.msra.mxu0 0.0
    %7587 = vmatprep.subr.mxu0 0.0
    %7588 = vmatpush2.msra.mxu0 0.0
    %7589 = vmatprep.subr.mxu0 0.0
    %7590 = vmatpush2.msra.mxu0 0.0
    %7591 = vmatprep.subr.mxu0 0.0
    %7592 = vmatpush2.msra.mxu0 0.0
    %7593 = vmatprep.subr.mxu0 0.0
    %7594 = vmatpush2.msra.mxu0 0.0
    %7595 = vmatprep.subr.mxu0 0.0
    %7596 = vmatpush2.msra.mxu0 0.0
    %7597 = vmatprep.mubr.f32.mxu0 0.0
    %7598 = vmatmul.mubr.f32.gmra.mxu0 %v7531
    %v7599 = vpop.f32.mrf.mxu0
    %v7600 = vadd.f32 0.0, %v7599
    %v7601 = vpop.f32.mrf.mxu0
    %7602 = vdwg.mxu0
    %v7603 = vadd.f32 %v7522, %v7600
    %7604 = vst [vmem:[#allocation5] sm:$0xff] %v7603
    %v7606 = vsel %vm611, %v7434, 0
    %7608 = vmatprep.subr.mxu0 0.0
    %7609 = vmatpush1.msra.mxu0 0.0
    %7610 = vmatprep.subr.mxu0 0.0
    %7611 = vmatpush1.msra.mxu0 0.0
    %7612 = vmatprep.subr.mxu0 0.0
    %7613 = vmatpush1.msra.mxu0 0.0
    %7614 = vmatprep.subr.mxu0 0.0
    %7615 = vmatpush1.msra.mxu0 0.0
    %7616 = vmatprep.subr.mxu0 0.0
    %7617 = vmatpush1.msra.mxu0 0.0
    %7618 = vmatprep.subr.mxu0 0.0
    %7619 = vmatpush1.msra.mxu0 0.0
    %7620 = vmatprep.subr.mxu0 0.0
    %7621 = vmatpush1.msra.mxu0 0.0
    %7622 = vmatprep.subr.mxu0 0.0
    %7623 = vmatpush1.msra.mxu0 0.0
    %7624 = vmatprep.subr.mxu0 0.0
    %7625 = vmatpush1.msra.mxu0 0.0
    %7626 = vmatprep.subr.mxu0 0.0
    %7627 = vmatpush1.msra.mxu0 0.0
    %7628 = vmatprep.subr.mxu0 0.0
    %7629 = vmatpush1.msra.mxu0 0.0
    %7630 = vmatprep.subr.mxu0 0.0
    %7631 = vmatpush1.msra.mxu0 0.0
    %7632 = vmatprep.subr.mxu0 0.0
    %7633 = vmatpush1.msra.mxu0 0.0
    %7634 = vmatprep.subr.mxu0 0.0
    %7635 = vmatpush1.msra.mxu0 0.0
    %7636 = vmatprep.subr.mxu0 0.0
    %7637 = vmatpush1.msra.mxu0 0.0
    %7638 = vmatprep.subr.mxu0 0.0
    %7639 = vmatpush1.msra.mxu0 %v162
    %7640 = vmatprep.subr.mxu0 0.0
    %7641 = vmatpush2.msra.mxu0 0.0
    %7642 = vmatprep.subr.mxu0 0.0
    %7643 = vmatpush2.msra.mxu0 0.0
    %7644 = vmatprep.subr.mxu0 0.0
    %7645 = vmatpush2.msra.mxu0 0.0
    %7646 = vmatprep.subr.mxu0 0.0
    %7647 = vmatpush2.msra.mxu0 0.0
    %7648 = vmatprep.subr.mxu0 0.0
    %7649 = vmatpush2.msra.mxu0 0.0
    %7650 = vmatprep.subr.mxu0 0.0
    %7651 = vmatpush2.msra.mxu0 0.0
    %7652 = vmatprep.subr.mxu0 0.0
    %7653 = vmatpush2.msra.mxu0 0.0
    %7654 = vmatprep.subr.mxu0 0.0
    %7655 = vmatpush2.msra.mxu0 0.0
    %7656 = vmatprep.subr.mxu0 0.0
    %7657 = vmatpush2.msra.mxu0 0.0
    %7658 = vmatprep.subr.mxu0 0.0
    %7659 = vmatpush2.msra.mxu0 0.0
    %7660 = vmatprep.subr.mxu0 0.0
    %7661 = vmatpush2.msra.mxu0 0.0
    %7662 = vmatprep.subr.mxu0 0.0
    %7663 = vmatpush2.msra.mxu0 0.0
    %7664 = vmatprep.subr.mxu0 0.0
    %7665 = vmatpush2.msra.mxu0 0.0
    %7666 = vmatprep.subr.mxu0 0.0
    %7667 = vmatpush2.msra.mxu0 0.0
    %7668 = vmatprep.subr.mxu0 0.0
    %7669 = vmatpush2.msra.mxu0 0.0
    %7670 = vmatprep.subr.mxu0 0.0
    %7671 = vmatpush2.msra.mxu0 0.0
    %7672 = vmatprep.mubr.f32.mxu0 0.0
    %7673 = vmatmul.mubr.f32.gmra.mxu0 %v7606
    %v7674 = vpop.f32.mrf.mxu0
    %v7675 = vadd.f32 0.0, %v7674
    %v7676 = vpop.f32.mrf.mxu0
    %7677 = vdwg.mxu0
    %v7678 = vadd.f32 %v7527, %v7675
    %s7679 = scalar_lea.vmem [#allocation5], 8
    %7680 = vst [vmem:[%s7679] sm:$0xff] %v7678
    // Predicated region
    $region74: #{seq2seq_copy_pointer_forward.1} parent=1 // pred_check
      _
    $region75: #{seq2seq_copy_pointer_forward.1} parent=1 // pred_check_branch
      %7682 = sbr.rel (0) target = $region77
    $region76: #{seq2seq_copy_pointer_forward.1} parent=1 // pred_region
      %s7684 = ssub.s32 256, 256
      %7685 = vsyncadd [#allocation4], %s7684
      %s7686 = sshll.u32 [#allocation5], 4
      %s7687 = int_to_ptr.vmem [resolvable:$true] %s7686
      %7692 = dma.vmem_to_hbm [thread:$0]  %s7687, 256, %s17, [#allocation4], 128, 128, 8
    $region77: #{seq2seq_copy_pointer_forward.1} parent=1 // pred_fallthru
      _
    // Predicated region
    $region78: #{seq2seq_copy_pointer_forward.1} parent=1 // pred_check
      _
    $region79: #{seq2seq_copy_pointer_forward.1} parent=1 // pred_check_branch
      %7694 = sbr.rel (0) target = $region81
    $region80: #{seq2seq_copy_pointer_forward.1} parent=1 // pred_region
      %7695 = dma.done [#allocation4], 256
    $region81: #{seq2seq_copy_pointer_forward.1} parent=1 // pred_fallthru
      _
    %7696 = vsyncpa [#allocation3], 1
    %7697 = vsyncpa [#allocation4], 1

</llo_original>
